<compile_context>
chip_gen: v7x
topology: tpu7x:2x2x1
jax: 0.10.0
libtpu: 0.0.40
codegen_flags: <defaults>
</compile_context>

<pallas_src>
import math

import jax
import jax.numpy as jnp
from jax import lax
from jax.experimental import pallas as pl
from jax.experimental.pallas import tpu as pltpu

# ---- small, module-consistent hyper-parameters -------------------------------
SRC_VOCAB = 100
HEADS = 4
D_MODEL = 32
D_FF = 64
N_LAYERS = 6
DK = D_MODEL // HEADS      # 8

LANE = 128                 # padded lane width (f32 vreg lane count)
W_COLS = 3 * LANE          # [ qkv_interleaved | w1 | w2 ], each (LANE, LANE)


def encoder_kernel(x_ref, w_ref, wo3_ref, boa_ref, out_ref):
    """One batch block: all N_LAYERS of (MHA -> FFN) with shared weights."""
    Bb, S, DP = x_ref.shape               # (batch block, seq, padded d_model)
    M = Bb * S
    h, dk = HEADS, DK
    g = 3 * dk                            # per-head [q|k|v] group width

    # activations carry a constant 1.0 in lane DP-1, which multiplies the bias
    # rows packed into row DP-1 of each weight block (exact bias folding).
    x0 = x_ref[...].reshape(M, DP)        # f32

    # Hoisted once (outside the unrolled layer loop): attention output bias,
    # which also re-plants the constant-1 lane for the FFN bias rows.
    bo_aug = jnp.broadcast_to(boa_ref[...], (M, DP))          # (M, DP) f32

    def layer(_, tokens):
        t_bf = tokens.astype(jnp.bfloat16)

        # --- fused q/k/v projection: ONE lane-dense (M,128)x(128,128) bf16 dot
        # (weight slab stays a ref; slice at the use site -> no spills).
        qkv = jnp.dot(t_bf, w_ref[:, 0:DP],
                      preferred_element_type=jnp.float32)      # (M, DP) f32
        qkv_b = qkv.astype(jnp.bfloat16)

        # --- lift heads onto a leading batch axis (major-axis stack only) ----
        heads = jnp.stack([qkv_b[:, i * g:(i + 1) * g] for i in range(h)],
                          axis=0)                              # (h, M, 3*dk)
        heads = heads.reshape(h * Bb, S, g)                    # (h*Bb, S, 3*dk)
        q = heads[:, :, 0:dk]
        k = heads[:, :, dk:2 * dk]
        v = heads[:, :, 2 * dk:3 * dk]

        # --- batched attention over all (head, batch) pairs at once ----------
        # 1/sqrt(dk) is folded into wq/bq at pack time; softmax math in f32.
        s = jnp.einsum('bqd,bkd->bqk', q, k,
                       preferred_element_type=jnp.float32)     # (h*Bb, S, S)
        s = s - jnp.max(s, axis=-1, keepdims=True)
        p = jnp.exp(s)
        p = p * pl.reciprocal(jnp.sum(p, axis=-1, keepdims=True), approx=True)
        ctx = jnp.einsum('bqk,bkd->bqd', p.astype(jnp.bfloat16), v,
                         preferred_element_type=jnp.float32)   # (h*Bb, S, dk)

        # --- head merge: one head-batched matmul against wo, then a sum ------
        # (no lane-axis concatenation of the 8-wide per-head outputs).
        ctx = ctx.reshape(h, M, dk).astype(jnp.bfloat16)
        merged = jnp.einsum('hmd,hdn->hmn', ctx, wo3_ref[...],
                            preferred_element_type=jnp.float32)  # (h, M, DP)
        attn = bo_aug
        for i in range(h):                 # static unroll; cheap VPU adds
            attn = attn + merged[i]

        # --- position-wise FFN: Linear -> ReLU -> Linear ----------------------
        # b1/b2 and the constant-1 lane pass-through live in rows/col DP-1.
        hid = jnp.maximum(
            jnp.dot(attn.astype(jnp.bfloat16), w_ref[:, DP:2 * DP],
                    preferred_element_type=jnp.float32), 0.0)
        return jnp.dot(hid.astype(jnp.bfloat16), w_ref[:, 2 * DP:3 * DP],
                       preferred_element_type=jnp.float32)

    tokens = lax.fori_loop(0, N_LAYERS, layer, x0, unroll=True)
    out_ref[...] = tokens.reshape(Bb, S, DP)


# ------------------------------ packing ---------------------------------------
def pack_params(params):
    """Pad to 128 lanes, fold biases/scale into the weights, cast to bf16."""
    inv = 1.0 / math.sqrt(DK)
    dk = DK

    # Head-interleaved fused q/k/v block: columns [i*3dk, (i+1)*3dk) hold head
    # i's [q | k | v]; scale folded into wq/bq; biases in row LANE-1.
    qkv_blk = jnp.zeros((LANE, LANE), jnp.float32)
    for i in range(HEADS):
        c = i * 3 * dk
        sl = slice(i * dk, (i + 1) * dk)
        qkv_blk = qkv_blk.at[:D_MODEL, c:c + dk].set(params["wq"][:, sl] * inv)
        qkv_blk = qkv_blk.at[:D_MODEL, c + dk:c + 2 * dk].set(params["wk"][:, sl])
        qkv_blk = qkv_blk.at[:D_MODEL, c + 2 * dk:c + 3 * dk].set(params["wv"][:, sl])
        qkv_blk = qkv_blk.at[LANE - 1, c:c + dk].set(params["bq"][0, sl] * inv)
        qkv_blk = qkv_blk.at[LANE - 1, c + dk:c + 2 * dk].set(params["bk"][0, sl])
        qkv_blk = qkv_blk.at[LANE - 1, c + 2 * dk:c + 3 * dk].set(params["bv"][0, sl])

    def lin_blk(w, b):
        blk = jnp.zeros((LANE, LANE), jnp.float32)
        blk = blk.at[:w.shape[0], :w.shape[1]].set(w)
        blk = blk.at[LANE - 1, :w.shape[1]].set(b[0])
        blk = blk.at[LANE - 1, LANE - 1].set(1.0)   # pass-through of the 1-lane
        return blk

    w_slab = jnp.concatenate(
        [qkv_blk, lin_blk(params["w1"], params["b1"]),
         lin_blk(params["w2"], params["b2"])], axis=1).astype(jnp.bfloat16)

    wo3 = jnp.zeros((HEADS, DK, LANE), jnp.float32)
    wo3 = wo3.at[:, :, :D_MODEL].set(params["wo"].reshape(HEADS, DK, D_MODEL))
    wo3 = wo3.astype(jnp.bfloat16)

    bo_aug = jnp.zeros((1, LANE), jnp.float32)
    bo_aug = bo_aug.at[0, :D_MODEL].set(params["bo"][0])
    bo_aug = bo_aug.at[0, LANE - 1].set(1.0)        # restore the constant-1 lane
    return w_slab, wo3, bo_aug


# ------------------------------ wrapper ---------------------------------------
def run_encoder(tokens_bsd, w_slab, wo3, bo_aug, *, batch_block=None):
    """tokens_bsd: (B, S, D) f32 (already embedded + positionally encoded)."""
    B, S, D = tokens_bsd.shape
    x = jnp.pad(tokens_bsd, ((0, 0), (0, 0), (0, LANE - D)))
    x = x.at[:, :, LANE - 1].set(1.0)     # constant-1 lane feeds folded biases

    if batch_block is None:
        # Single grid step at tiny sizes (the ~0.35us/step pipeline overhead
        # dominates); once per-step work grows, split the batch over >=2
        # "parallel" steps so both v7x TensorCores are fed (1 TC on v5e/v6e).
        bb = B if (B < 2 or B * S < 1024) else int(pl.cdiv(B, 2))
    else:
        bb = batch_block
    grid = (pl.cdiv(B, bb),)

    out = pl.pallas_call(
        encoder_kernel,
        out_shape=jax.ShapeDtypeStruct((B, S, LANE), jnp.float32),
        grid_spec=pltpu.PrefetchScalarGridSpec(
            num_scalar_prefetch=0,
            grid=grid,
            in_specs=[
                pl.BlockSpec((bb, S, LANE), lambda i: (i, 0, 0)),
                pl.BlockSpec((LANE, W_COLS), lambda i: (0, 0)),
                pl.BlockSpec((HEADS, DK, LANE), lambda i: (0, 0, 0)),
                pl.BlockSpec((1, LANE), lambda i: (0, 0)),
            ],
            out_specs=pl.BlockSpec((bb, S, LANE), lambda i: (i, 0, 0)),
        ),
        compiler_params=pltpu.CompilerParams(
            dimension_semantics=("parallel",)),
    )(x, w_slab, wo3, bo_aug)

    # NOTE(v5e): for large B*S consumers may prefer the padded (B, S, 128)
    # slab directly (this slice is an extra XLA HBM pass); kept for API shape.
    return out[:, :, :D]


# ------------------------------ glue (plain JAX) ------------------------------
def sinusoidal_pe(seq_len, d_model):
    pos = jnp.arange(seq_len, dtype=jnp.float32)[:, None]
    i = jnp.arange(0, d_model, 2, dtype=jnp.float32)
    angle = pos / jnp.power(10000.0, i / d_model)
    pe = jnp.zeros((seq_len, d_model), jnp.float32)
    pe = pe.at[:, 0::2].set(jnp.sin(angle))
    pe = pe.at[:, 1::2].set(jnp.cos(angle))
    return pe


def init_params(key):
    keys = jax.random.split(key, 8)
    std = 0.1

    def lin(k, fan_in, fan_out):
        kw, kb = jax.random.split(k)
        w = jax.random.normal(kw, (fan_in, fan_out), jnp.float32) * std
        b = jax.random.normal(kb, (1, fan_out), jnp.float32) * std
        return w, b

    params = {}
    params["embed"] = jax.random.normal(keys[0], (SRC_VOCAB, D_MODEL), jnp.float32) * std
    params["wq"], params["bq"] = lin(keys[1], D_MODEL, D_MODEL)
    params["wk"], params["bk"] = lin(keys[2], D_MODEL, D_MODEL)
    params["wv"], params["bv"] = lin(keys[3], D_MODEL, D_MODEL)
    params["wo"], params["bo"] = lin(keys[4], D_MODEL, D_MODEL)
    params["w1"], params["b1"] = lin(keys[5], D_MODEL, D_FF)
    params["w2"], params["b2"] = lin(keys[6], D_FF, D_MODEL)
    return params


def encoder_forward(x_tokens, params):
    # WordEmbedder: embedding lookup * sqrt(d_model); PositionalEncoder: + PE.
    emb = params["embed"][x_tokens] * math.sqrt(D_MODEL)          # (B, S, D)
    pe = sinusoidal_pe(x_tokens.shape[1], D_MODEL)[None, :, :]
    tokens = (emb + pe).astype(jnp.float32)
    w_slab, wo3, bo_aug = pack_params(params)
    return run_encoder(tokens, w_slab, wo3, bo_aug)


# ------------------ pure-JAX reference (mirrors bf16 matmul precision) --------
def encoder_layers_reference(tokens, params):
    inv = 1.0 / math.sqrt(DK)
    bf = lambda a: a.astype(jnp.bfloat16)

    def mm(a, w):
        return jnp.dot(bf(a), bf(w), preferred_element_type=jnp.float32)

    B, S, _ = tokens.shape
    x = tokens.astype(jnp.float32)
    for _ in range(N_LAYERS):
        xm = x.reshape(B * S, D_MODEL)
        q = mm(xm, params["wq"] * inv) + bf(params["bq"] * inv).astype(jnp.float32)
        k = mm(xm, params["wk"]) + bf(params["bk"]).astype(jnp.float32)
        v = mm(xm, params["wv"]) + bf(params["bv"]).astype(jnp.float32)
        qh = q.reshape(B, S, HEADS, DK)
        kh = k.reshape(B, S, HEADS, DK)
        vh = v.reshape(B, S, HEADS, DK)
        s = jnp.einsum('bqhd,bkhd->bhqk', bf(qh), bf(kh),
                       preferred_element_type=jnp.float32)
        s = s - jnp.max(s, axis=-1, keepdims=True)
        p = jnp.exp(s)
        p = p / jnp.sum(p, axis=-1, keepdims=True)
        ctx = jnp.einsum('bhqk,bkhd->bqhd', bf(p), bf(vh),
                         preferred_element_type=jnp.float32).reshape(B * S, D_MODEL)
        attn = mm(ctx, params["wo"]) + params["bo"]
        hid = jnp.maximum(mm(attn, params["w1"]) + bf(params["b1"]).astype(jnp.float32), 0.0)
        x = (mm(hid, params["w2"]) + bf(params["b2"]).astype(jnp.float32)
             ).reshape(B, S, D_MODEL)
    return x


if __name__ == "__main__":
    key = jax.random.PRNGKey(0)
    k_tok, k_par = jax.random.split(key)

    B, S = 2, 8
    x = jax.random.randint(k_tok, (B, S), 0, SRC_VOCAB, dtype=jnp.int32)
    params = init_params(k_par)

    out = encoder_forward(x, params)
    out = jax.block_until_ready(out)
    assert out.shape == (B, S, D_MODEL)
    assert bool(jnp.all(jnp.isfinite(out)))

    # Structural check vs a pure-JAX reference that mirrors the kernel's bf16
    # matmul precision (remaining deltas: approx reciprocal + accum order).
    emb = params["embed"][x] * math.sqrt(D_MODEL)
    tokens = (emb + sinusoidal_pe(S, D_MODEL)[None]).astype(jnp.float32)
    ref = encoder_layers_reference(tokens, params)
    err = float(jnp.max(jnp.abs(out - ref)))
    scale = float(jnp.max(jnp.abs(ref)))
    assert err <= 5e-2 * scale + 1e-6, (err, scale)

    print("KERNEL_OK")
</pallas_src>

<mosaic_0001>
module attributes {stable_mosaic.version = 11 : i64} {
  func.func @encoder_kernel(%arg0: i32, %arg1: memref<2x8x128xf32, #tpu.memory_space<vmem>>, %arg2: memref<128x384xbf16, #tpu.memory_space<vmem>>, %arg3: memref<4x8x128xbf16, #tpu.memory_space<vmem>>, %arg4: memref<1x128xf32, #tpu.memory_space<vmem>>, %arg5: memref<2x8x128xf32, #tpu.memory_space<vmem>>) attributes {dimension_semantics = [#tpu.dimension_semantics<parallel>], iteration_bounds = array<i64: 1>, scalar_prefetch = 0 : i64, scratch_operands = 0 : i64, tpu.core_type = #tpu.core_type<tc>, window_params = [{transform_indices = @transform_0, window_bounds = array<i64: 2, 8, 128>}, {pipeline_mode = #tpu.pipeline_mode<synchronous>, transform_indices = @transform_1, window_bounds = array<i64: 128, 384>}, {pipeline_mode = #tpu.pipeline_mode<synchronous>, transform_indices = @transform_2, window_bounds = array<i64: 4, 8, 128>}, {pipeline_mode = #tpu.pipeline_mode<synchronous>, transform_indices = @transform_3, window_bounds = array<i64: 1, 128>}, {transform_indices = @transform_4, window_bounds = array<i64: 2, 8, 128>}]} {
    %c0 = arith.constant 0 : index
    %c0_0 = arith.constant 0 : index
    %c0_1 = arith.constant 0 : index
    %0 = vector.load %arg1[%c0, %c0_0, %c0_1] : memref<2x8x128xf32, #tpu.memory_space<vmem>>, vector<2x8x128xf32>
    %1 = vector.shape_cast %0 : vector<2x8x128xf32> to vector<16x128xf32>
    %c0_2 = arith.constant 0 : index
    %c0_3 = arith.constant 0 : index
    %2 = vector.load %arg4[%c0_2, %c0_3] : memref<1x128xf32, #tpu.memory_space<vmem>>, vector<1x128xf32>
    %3 = vector.shape_cast %2 : vector<1x128xf32> to vector<1x128xf32>
    %4 = vector.broadcast %3 : vector<1x128xf32> to vector<16x128xf32>
    %c0_i32 = arith.constant 0 : i32
    %5 = arith.truncf %1 : vector<16x128xf32> to vector<16x128xbf16>
    %c0_4 = arith.constant 0 : index
    %c0_5 = arith.constant 0 : index
    %6 = vector.load %arg2[%c0_4, %c0_5] : memref<128x384xbf16, #tpu.memory_space<vmem>>, vector<128x128xbf16>
    %cst = arith.constant dense<0.000000e+00> : vector<16x128xf32>
    %7 = tpu.matmul %5, %6, %cst {dimension_numbers = #tpu.dot_dimension_numbers<[1], [0], [0], [1], [0, 0, 1, 1], [], []>} : vector<16x128xbf16>, vector<128x128xbf16>, vector<16x128xf32> -> vector<16x128xf32>
    %8 = arith.truncf %7 : vector<16x128xf32> to vector<16x128xbf16>
    %9 = vector.extract_strided_slice %8 {offsets = [0, 0], sizes = [16, 24], strides = [1, 1]} : vector<16x128xbf16> to vector<16x24xbf16>
    %10 = vector.extract_strided_slice %8 {offsets = [0, 24], sizes = [16, 24], strides = [1, 1]} : vector<16x128xbf16> to vector<16x24xbf16>
    %11 = vector.extract_strided_slice %8 {offsets = [0, 48], sizes = [16, 24], strides = [1, 1]} : vector<16x128xbf16> to vector<16x24xbf16>
    %12 = vector.extract_strided_slice %8 {offsets = [0, 72], sizes = [16, 24], strides = [1, 1]} : vector<16x128xbf16> to vector<16x24xbf16>
    %13 = vector.shape_cast %9 : vector<16x24xbf16> to vector<1x16x24xbf16>
    %14 = vector.shape_cast %10 : vector<16x24xbf16> to vector<1x16x24xbf16>
    %15 = vector.shape_cast %11 : vector<16x24xbf16> to vector<1x16x24xbf16>
    %16 = vector.shape_cast %12 : vector<16x24xbf16> to vector<1x16x24xbf16>
    %17 = tpu.concatenate %13, %14, %15, %16 in 0 : vector<1x16x24xbf16>, vector<1x16x24xbf16>, vector<1x16x24xbf16>, vector<1x16x24xbf16> -> vector<4x16x24xbf16>
    %18 = vector.shape_cast %17 : vector<4x16x24xbf16> to vector<8x8x24xbf16>
    %19 = vector.extract_strided_slice %18 {offsets = [0, 0, 0], sizes = [8, 8, 8], strides = [1, 1, 1]} : vector<8x8x24xbf16> to vector<8x8x8xbf16>
    %20 = vector.extract_strided_slice %18 {offsets = [0, 0, 8], sizes = [8, 8, 8], strides = [1, 1, 1]} : vector<8x8x24xbf16> to vector<8x8x8xbf16>
    %21 = vector.extract_strided_slice %18 {offsets = [0, 0, 16], sizes = [8, 8, 8], strides = [1, 1, 1]} : vector<8x8x24xbf16> to vector<8x8x8xbf16>
    "tpu.trace_start"() <{level = 10 : i32, message = "bqd,bkd->bqk"}> : () -> ()
    %cst_6 = arith.constant dense<0.000000e+00> : vector<8x8x8xf32>
    %22 = tpu.matmul %19, %20, %cst_6 {dimension_numbers = #tpu.dot_dimension_numbers<[2], [2], [1], [1], [0, 0, 0, 1, 1, 1], [0], [0]>} : vector<8x8x8xbf16>, vector<8x8x8xbf16>, vector<8x8x8xf32> -> vector<8x8x8xf32>
    "tpu.trace_stop"() : () -> ()
    %cst_7 = arith.constant dense<0xFF800000> : vector<8x8xf32>
    %23 = vector.multi_reduction <maximumf>, %22, %cst_7 [2] : vector<8x8x8xf32> to vector<8x8xf32>
    %24 = vector.shape_cast %23 : vector<8x8xf32> to vector<8x8x1xf32>
    %25 = vector.broadcast %24 : vector<8x8x1xf32> to vector<8x8x8xf32>
    %26 = arith.subf %22, %25 : vector<8x8x8xf32>
    %27 = math.exp %26 : vector<8x8x8xf32>
    %cst_8 = arith.constant dense<0.000000e+00> : vector<8x8xf32>
    %28 = vector.multi_reduction <add>, %27, %cst_8 [2] : vector<8x8x8xf32> to vector<8x8xf32>
    %29 = vector.shape_cast %28 : vector<8x8xf32> to vector<8x8x1xf32>
    %30 = tpu.reciprocal %29 {approx = true} : vector<8x8x1xf32> -> vector<8x8x1xf32>
    %31 = vector.broadcast %30 : vector<8x8x1xf32> to vector<8x8x8xf32>
    %32 = arith.mulf %27, %31 : vector<8x8x8xf32>
    %33 = arith.truncf %32 : vector<8x8x8xf32> to vector<8x8x8xbf16>
    "tpu.trace_start"() <{level = 10 : i32, message = "bqk,bkd->bqd"}> : () -> ()
    %cst_9 = arith.constant dense<0.000000e+00> : vector<8x8x8xf32>
    %34 = tpu.matmul %33, %21, %cst_9 {dimension_numbers = #tpu.dot_dimension_numbers<[2], [1], [1], [2], [0, 0, 0, 1, 1, 2], [0], [0]>} : vector<8x8x8xbf16>, vector<8x8x8xbf16>, vector<8x8x8xf32> -> vector<8x8x8xf32>
    "tpu.trace_stop"() : () -> ()
    %35 = vector.shape_cast %34 : vector<8x8x8xf32> to vector<4x16x8xf32>
    %36 = arith.truncf %35 : vector<4x16x8xf32> to vector<4x16x8xbf16>
    %c0_10 = arith.constant 0 : index
    %c0_11 = arith.constant 0 : index
    %c0_12 = arith.constant 0 : index
    %37 = vector.load %arg3[%c0_10, %c0_11, %c0_12] : memref<4x8x128xbf16, #tpu.memory_space<vmem>>, vector<4x8x128xbf16>
    "tpu.trace_start"() <{level = 10 : i32, message = "hmd,hdn->hmn"}> : () -> ()
    %cst_13 = arith.constant dense<0.000000e+00> : vector<4x16x128xf32>
    %38 = tpu.matmul %36, %37, %cst_13 {dimension_numbers = #tpu.dot_dimension_numbers<[2], [1], [1], [2], [0, 0, 0, 1, 1, 2], [0], [0]>} : vector<4x16x8xbf16>, vector<4x8x128xbf16>, vector<4x16x128xf32> -> vector<4x16x128xf32>
    "tpu.trace_stop"() : () -> ()
    %39 = vector.extract_strided_slice %38 {offsets = [0, 0, 0], sizes = [1, 16, 128], strides = [1, 1, 1]} : vector<4x16x128xf32> to vector<1x16x128xf32>
    %40 = vector.shape_cast %39 : vector<1x16x128xf32> to vector<16x128xf32>
    %41 = arith.addf %4, %40 : vector<16x128xf32>
    %42 = vector.extract_strided_slice %38 {offsets = [1, 0, 0], sizes = [1, 16, 128], strides = [1, 1, 1]} : vector<4x16x128xf32> to vector<1x16x128xf32>
    %43 = vector.shape_cast %42 : vector<1x16x128xf32> to vector<16x128xf32>
    %44 = arith.addf %41, %43 : vector<16x128xf32>
    %45 = vector.extract_strided_slice %38 {offsets = [2, 0, 0], sizes = [1, 16, 128], strides = [1, 1, 1]} : vector<4x16x128xf32> to vector<1x16x128xf32>
    %46 = vector.shape_cast %45 : vector<1x16x128xf32> to vector<16x128xf32>
    %47 = arith.addf %44, %46 : vector<16x128xf32>
    %48 = vector.extract_strided_slice %38 {offsets = [3, 0, 0], sizes = [1, 16, 128], strides = [1, 1, 1]} : vector<4x16x128xf32> to vector<1x16x128xf32>
    %49 = vector.shape_cast %48 : vector<1x16x128xf32> to vector<16x128xf32>
    %50 = arith.addf %47, %49 : vector<16x128xf32>
    %51 = arith.truncf %50 : vector<16x128xf32> to vector<16x128xbf16>
    %c0_14 = arith.constant 0 : index
    %c128 = arith.constant 128 : index
    %52 = vector.load %arg2[%c0_14, %c128] : memref<128x384xbf16, #tpu.memory_space<vmem>>, vector<128x128xbf16>
    %cst_15 = arith.constant dense<0.000000e+00> : vector<16x128xf32>
    %53 = tpu.matmul %51, %52, %cst_15 {dimension_numbers = #tpu.dot_dimension_numbers<[1], [0], [0], [1], [0, 0, 1, 1], [], []>} : vector<16x128xbf16>, vector<128x128xbf16>, vector<16x128xf32> -> vector<16x128xf32>
    %cst_16 = arith.constant 0.000000e+00 : f32
    %54 = vector.broadcast %cst_16 : f32 to vector<16x128xf32>
    %55 = arith.maximumf %53, %54 : vector<16x128xf32>
    %56 = arith.truncf %55 : vector<16x128xf32> to vector<16x128xbf16>
    %c0_17 = arith.constant 0 : index
    %c256 = arith.constant 256 : index
    %57 = vector.load %arg2[%c0_17, %c256] : memref<128x384xbf16, #tpu.memory_space<vmem>>, vector<128x128xbf16>
    %cst_18 = arith.constant dense<0.000000e+00> : vector<16x128xf32>
    %58 = tpu.matmul %56, %57, %cst_18 {dimension_numbers = #tpu.dot_dimension_numbers<[1], [0], [0], [1], [0, 0, 1, 1], [], []>} : vector<16x128xbf16>, vector<128x128xbf16>, vector<16x128xf32> -> vector<16x128xf32>
    %c1_i32 = arith.constant 1 : i32
    %59 = arith.truncf %58 : vector<16x128xf32> to vector<16x128xbf16>
    %c0_19 = arith.constant 0 : index
    %c0_20 = arith.constant 0 : index
    %60 = vector.load %arg2[%c0_19, %c0_20] : memref<128x384xbf16, #tpu.memory_space<vmem>>, vector<128x128xbf16>
    %cst_21 = arith.constant dense<0.000000e+00> : vector<16x128xf32>
    %61 = tpu.matmul %59, %60, %cst_21 {dimension_numbers = #tpu.dot_dimension_numbers<[1], [0], [0], [1], [0, 0, 1, 1], [], []>} : vector<16x128xbf16>, vector<128x128xbf16>, vector<16x128xf32> -> vector<16x128xf32>
    %62 = arith.truncf %61 : vector<16x128xf32> to vector<16x128xbf16>
    %63 = vector.extract_strided_slice %62 {offsets = [0, 0], sizes = [16, 24], strides = [1, 1]} : vector<16x128xbf16> to vector<16x24xbf16>
    %64 = vector.extract_strided_slice %62 {offsets = [0, 24], sizes = [16, 24], strides = [1, 1]} : vector<16x128xbf16> to vector<16x24xbf16>
    %65 = vector.extract_strided_slice %62 {offsets = [0, 48], sizes = [16, 24], strides = [1, 1]} : vector<16x128xbf16> to vector<16x24xbf16>
    %66 = vector.extract_strided_slice %62 {offsets = [0, 72], sizes = [16, 24], strides = [1, 1]} : vector<16x128xbf16> to vector<16x24xbf16>
    %67 = vector.shape_cast %63 : vector<16x24xbf16> to vector<1x16x24xbf16>
    %68 = vector.shape_cast %64 : vector<16x24xbf16> to vector<1x16x24xbf16>
    %69 = vector.shape_cast %65 : vector<16x24xbf16> to vector<1x16x24xbf16>
    %70 = vector.shape_cast %66 : vector<16x24xbf16> to vector<1x16x24xbf16>
    %71 = tpu.concatenate %67, %68, %69, %70 in 0 : vector<1x16x24xbf16>, vector<1x16x24xbf16>, vector<1x16x24xbf16>, vector<1x16x24xbf16> -> vector<4x16x24xbf16>
    %72 = vector.shape_cast %71 : vector<4x16x24xbf16> to vector<8x8x24xbf16>
    %73 = vector.extract_strided_slice %72 {offsets = [0, 0, 0], sizes = [8, 8, 8], strides = [1, 1, 1]} : vector<8x8x24xbf16> to vector<8x8x8xbf16>
    %74 = vector.extract_strided_slice %72 {offsets = [0, 0, 8], sizes = [8, 8, 8], strides = [1, 1, 1]} : vector<8x8x24xbf16> to vector<8x8x8xbf16>
    %75 = vector.extract_strided_slice %72 {offsets = [0, 0, 16], sizes = [8, 8, 8], strides = [1, 1, 1]} : vector<8x8x24xbf16> to vector<8x8x8xbf16>
    "tpu.trace_start"() <{level = 10 : i32, message = "bqd,bkd->bqk"}> : () -> ()
    %cst_22 = arith.constant dense<0.000000e+00> : vector<8x8x8xf32>
    %76 = tpu.matmul %73, %74, %cst_22 {dimension_numbers = #tpu.dot_dimension_numbers<[2], [2], [1], [1], [0, 0, 0, 1, 1, 1], [0], [0]>} : vector<8x8x8xbf16>, vector<8x8x8xbf16>, vector<8x8x8xf32> -> vector<8x8x8xf32>
    "tpu.trace_stop"() : () -> ()
    %cst_23 = arith.constant dense<0xFF800000> : vector<8x8xf32>
    %77 = vector.multi_reduction <maximumf>, %76, %cst_23 [2] : vector<8x8x8xf32> to vector<8x8xf32>
    %78 = vector.shape_cast %77 : vector<8x8xf32> to vector<8x8x1xf32>
    %79 = vector.broadcast %78 : vector<8x8x1xf32> to vector<8x8x8xf32>
    %80 = arith.subf %76, %79 : vector<8x8x8xf32>
    %81 = math.exp %80 : vector<8x8x8xf32>
    %cst_24 = arith.constant dense<0.000000e+00> : vector<8x8xf32>
    %82 = vector.multi_reduction <add>, %81, %cst_24 [2] : vector<8x8x8xf32> to vector<8x8xf32>
    %83 = vector.shape_cast %82 : vector<8x8xf32> to vector<8x8x1xf32>
    %84 = tpu.reciprocal %83 {approx = true} : vector<8x8x1xf32> -> vector<8x8x1xf32>
    %85 = vector.broadcast %84 : vector<8x8x1xf32> to vector<8x8x8xf32>
    %86 = arith.mulf %81, %85 : vector<8x8x8xf32>
    %87 = arith.truncf %86 : vector<8x8x8xf32> to vector<8x8x8xbf16>
    "tpu.trace_start"() <{level = 10 : i32, message = "bqk,bkd->bqd"}> : () -> ()
    %cst_25 = arith.constant dense<0.000000e+00> : vector<8x8x8xf32>
    %88 = tpu.matmul %87, %75, %cst_25 {dimension_numbers = #tpu.dot_dimension_numbers<[2], [1], [1], [2], [0, 0, 0, 1, 1, 2], [0], [0]>} : vector<8x8x8xbf16>, vector<8x8x8xbf16>, vector<8x8x8xf32> -> vector<8x8x8xf32>
    "tpu.trace_stop"() : () -> ()
    %89 = vector.shape_cast %88 : vector<8x8x8xf32> to vector<4x16x8xf32>
    %90 = arith.truncf %89 : vector<4x16x8xf32> to vector<4x16x8xbf16>
    %c0_26 = arith.constant 0 : index
    %c0_27 = arith.constant 0 : index
    %c0_28 = arith.constant 0 : index
    %91 = vector.load %arg3[%c0_26, %c0_27, %c0_28] : memref<4x8x128xbf16, #tpu.memory_space<vmem>>, vector<4x8x128xbf16>
    "tpu.trace_start"() <{level = 10 : i32, message = "hmd,hdn->hmn"}> : () -> ()
    %cst_29 = arith.constant dense<0.000000e+00> : vector<4x16x128xf32>
    %92 = tpu.matmul %90, %91, %cst_29 {dimension_numbers = #tpu.dot_dimension_numbers<[2], [1], [1], [2], [0, 0, 0, 1, 1, 2], [0], [0]>} : vector<4x16x8xbf16>, vector<4x8x128xbf16>, vector<4x16x128xf32> -> vector<4x16x128xf32>
    "tpu.trace_stop"() : () -> ()
    %93 = vector.extract_strided_slice %92 {offsets = [0, 0, 0], sizes = [1, 16, 128], strides = [1, 1, 1]} : vector<4x16x128xf32> to vector<1x16x128xf32>
    %94 = vector.shape_cast %93 : vector<1x16x128xf32> to vector<16x128xf32>
    %95 = arith.addf %4, %94 : vector<16x128xf32>
    %96 = vector.extract_strided_slice %92 {offsets = [1, 0, 0], sizes = [1, 16, 128], strides = [1, 1, 1]} : vector<4x16x128xf32> to vector<1x16x128xf32>
    %97 = vector.shape_cast %96 : vector<1x16x128xf32> to vector<16x128xf32>
    %98 = arith.addf %95, %97 : vector<16x128xf32>
    %99 = vector.extract_strided_slice %92 {offsets = [2, 0, 0], sizes = [1, 16, 128], strides = [1, 1, 1]} : vector<4x16x128xf32> to vector<1x16x128xf32>
    %100 = vector.shape_cast %99 : vector<1x16x128xf32> to vector<16x128xf32>
    %101 = arith.addf %98, %100 : vector<16x128xf32>
    %102 = vector.extract_strided_slice %92 {offsets = [3, 0, 0], sizes = [1, 16, 128], strides = [1, 1, 1]} : vector<4x16x128xf32> to vector<1x16x128xf32>
    %103 = vector.shape_cast %102 : vector<1x16x128xf32> to vector<16x128xf32>
    %104 = arith.addf %101, %103 : vector<16x128xf32>
    %105 = arith.truncf %104 : vector<16x128xf32> to vector<16x128xbf16>
    %c0_30 = arith.constant 0 : index
    %c128_31 = arith.constant 128 : index
    %106 = vector.load %arg2[%c0_30, %c128_31] : memref<128x384xbf16, #tpu.memory_space<vmem>>, vector<128x128xbf16>
    %cst_32 = arith.constant dense<0.000000e+00> : vector<16x128xf32>
    %107 = tpu.matmul %105, %106, %cst_32 {dimension_numbers = #tpu.dot_dimension_numbers<[1], [0], [0], [1], [0, 0, 1, 1], [], []>} : vector<16x128xbf16>, vector<128x128xbf16>, vector<16x128xf32> -> vector<16x128xf32>
    %cst_33 = arith.constant 0.000000e+00 : f32
    %108 = vector.broadcast %cst_33 : f32 to vector<16x128xf32>
    %109 = arith.maximumf %107, %108 : vector<16x128xf32>
    %110 = arith.truncf %109 : vector<16x128xf32> to vector<16x128xbf16>
    %c0_34 = arith.constant 0 : index
    %c256_35 = arith.constant 256 : index
    %111 = vector.load %arg2[%c0_34, %c256_35] : memref<128x384xbf16, #tpu.memory_space<vmem>>, vector<128x128xbf16>
    %cst_36 = arith.constant dense<0.000000e+00> : vector<16x128xf32>
    %112 = tpu.matmul %110, %111, %cst_36 {dimension_numbers = #tpu.dot_dimension_numbers<[1], [0], [0], [1], [0, 0, 1, 1], [], []>} : vector<16x128xbf16>, vector<128x128xbf16>, vector<16x128xf32> -> vector<16x128xf32>
    %c2_i32 = arith.constant 2 : i32
    %113 = arith.truncf %112 : vector<16x128xf32> to vector<16x128xbf16>
    %c0_37 = arith.constant 0 : index
    %c0_38 = arith.constant 0 : index
    %114 = vector.load %arg2[%c0_37, %c0_38] : memref<128x384xbf16, #tpu.memory_space<vmem>>, vector<128x128xbf16>
    %cst_39 = arith.constant dense<0.000000e+00> : vector<16x128xf32>
    %115 = tpu.matmul %113, %114, %cst_39 {dimension_numbers = #tpu.dot_dimension_numbers<[1], [0], [0], [1], [0, 0, 1, 1], [], []>} : vector<16x128xbf16>, vector<128x128xbf16>, vector<16x128xf32> -> vector<16x128xf32>
    %116 = arith.truncf %115 : vector<16x128xf32> to vector<16x128xbf16>
    %117 = vector.extract_strided_slice %116 {offsets = [0, 0], sizes = [16, 24], strides = [1, 1]} : vector<16x128xbf16> to vector<16x24xbf16>
    %118 = vector.extract_strided_slice %116 {offsets = [0, 24], sizes = [16, 24], strides = [1, 1]} : vector<16x128xbf16> to vector<16x24xbf16>
    %119 = vector.extract_strided_slice %116 {offsets = [0, 48], sizes = [16, 24], strides = [1, 1]} : vector<16x128xbf16> to vector<16x24xbf16>
    %120 = vector.extract_strided_slice %116 {offsets = [0, 72], sizes = [16, 24], strides = [1, 1]} : vector<16x128xbf16> to vector<16x24xbf16>
    %121 = vector.shape_cast %117 : vector<16x24xbf16> to vector<1x16x24xbf16>
    %122 = vector.shape_cast %118 : vector<16x24xbf16> to vector<1x16x24xbf16>
    %123 = vector.shape_cast %119 : vector<16x24xbf16> to vector<1x16x24xbf16>
    %124 = vector.shape_cast %120 : vector<16x24xbf16> to vector<1x16x24xbf16>
    %125 = tpu.concatenate %121, %122, %123, %124 in 0 : vector<1x16x24xbf16>, vector<1x16x24xbf16>, vector<1x16x24xbf16>, vector<1x16x24xbf16> -> vector<4x16x24xbf16>
    %126 = vector.shape_cast %125 : vector<4x16x24xbf16> to vector<8x8x24xbf16>
    %127 = vector.extract_strided_slice %126 {offsets = [0, 0, 0], sizes = [8, 8, 8], strides = [1, 1, 1]} : vector<8x8x24xbf16> to vector<8x8x8xbf16>
    %128 = vector.extract_strided_slice %126 {offsets = [0, 0, 8], sizes = [8, 8, 8], strides = [1, 1, 1]} : vector<8x8x24xbf16> to vector<8x8x8xbf16>
    %129 = vector.extract_strided_slice %126 {offsets = [0, 0, 16], sizes = [8, 8, 8], strides = [1, 1, 1]} : vector<8x8x24xbf16> to vector<8x8x8xbf16>
    "tpu.trace_start"() <{level = 10 : i32, message = "bqd,bkd->bqk"}> : () -> ()
    %cst_40 = arith.constant dense<0.000000e+00> : vector<8x8x8xf32>
    %130 = tpu.matmul %127, %128, %cst_40 {dimension_numbers = #tpu.dot_dimension_numbers<[2], [2], [1], [1], [0, 0, 0, 1, 1, 1], [0], [0]>} : vector<8x8x8xbf16>, vector<8x8x8xbf16>, vector<8x8x8xf32> -> vector<8x8x8xf32>
    "tpu.trace_stop"() : () -> ()
    %cst_41 = arith.constant dense<0xFF800000> : vector<8x8xf32>
    %131 = vector.multi_reduction <maximumf>, %130, %cst_41 [2] : vector<8x8x8xf32> to vector<8x8xf32>
    %132 = vector.shape_cast %131 : vector<8x8xf32> to vector<8x8x1xf32>
    %133 = vector.broadcast %132 : vector<8x8x1xf32> to vector<8x8x8xf32>
    %134 = arith.subf %130, %133 : vector<8x8x8xf32>
    %135 = math.exp %134 : vector<8x8x8xf32>
    %cst_42 = arith.constant dense<0.000000e+00> : vector<8x8xf32>
    %136 = vector.multi_reduction <add>, %135, %cst_42 [2] : vector<8x8x8xf32> to vector<8x8xf32>
    %137 = vector.shape_cast %136 : vector<8x8xf32> to vector<8x8x1xf32>
    %138 = tpu.reciprocal %137 {approx = true} : vector<8x8x1xf32> -> vector<8x8x1xf32>
    %139 = vector.broadcast %138 : vector<8x8x1xf32> to vector<8x8x8xf32>
    %140 = arith.mulf %135, %139 : vector<8x8x8xf32>
    %141 = arith.truncf %140 : vector<8x8x8xf32> to vector<8x8x8xbf16>
    "tpu.trace_start"() <{level = 10 : i32, message = "bqk,bkd->bqd"}> : () -> ()
    %cst_43 = arith.constant dense<0.000000e+00> : vector<8x8x8xf32>
    %142 = tpu.matmul %141, %129, %cst_43 {dimension_numbers = #tpu.dot_dimension_numbers<[2], [1], [1], [2], [0, 0, 0, 1, 1, 2], [0], [0]>} : vector<8x8x8xbf16>, vector<8x8x8xbf16>, vector<8x8x8xf32> -> vector<8x8x8xf32>
    "tpu.trace_stop"() : () -> ()
    %143 = vector.shape_cast %142 : vector<8x8x8xf32> to vector<4x16x8xf32>
    %144 = arith.truncf %143 : vector<4x16x8xf32> to vector<4x16x8xbf16>
    %c0_44 = arith.constant 0 : index
    %c0_45 = arith.constant 0 : index
    %c0_46 = arith.constant 0 : index
    %145 = vector.load %arg3[%c0_44, %c0_45, %c0_46] : memref<4x8x128xbf16, #tpu.memory_space<vmem>>, vector<4x8x128xbf16>
    "tpu.trace_start"() <{level = 10 : i32, message = "hmd,hdn->hmn"}> : () -> ()
    %cst_47 = arith.constant dense<0.000000e+00> : vector<4x16x128xf32>
    %146 = tpu.matmul %144, %145, %cst_47 {dimension_numbers = #tpu.dot_dimension_numbers<[2], [1], [1], [2], [0, 0, 0, 1, 1, 2], [0], [0]>} : vector<4x16x8xbf16>, vector<4x8x128xbf16>, vector<4x16x128xf32> -> vector<4x16x128xf32>
    "tpu.trace_stop"() : () -> ()
    %147 = vector.extract_strided_slice %146 {offsets = [0, 0, 0], sizes = [1, 16, 128], strides = [1, 1, 1]} : vector<4x16x128xf32> to vector<1x16x128xf32>
    %148 = vector.shape_cast %147 : vector<1x16x128xf32> to vector<16x128xf32>
    %149 = arith.addf %4, %148 : vector<16x128xf32>
    %150 = vector.extract_strided_slice %146 {offsets = [1, 0, 0], sizes = [1, 16, 128], strides = [1, 1, 1]} : vector<4x16x128xf32> to vector<1x16x128xf32>
    %151 = vector.shape_cast %150 : vector<1x16x128xf32> to vector<16x128xf32>
    %152 = arith.addf %149, %151 : vector<16x128xf32>
    %153 = vector.extract_strided_slice %146 {offsets = [2, 0, 0], sizes = [1, 16, 128], strides = [1, 1, 1]} : vector<4x16x128xf32> to vector<1x16x128xf32>
    %154 = vector.shape_cast %153 : vector<1x16x128xf32> to vector<16x128xf32>
    %155 = arith.addf %152, %154 : vector<16x128xf32>
    %156 = vector.extract_strided_slice %146 {offsets = [3, 0, 0], sizes = [1, 16, 128], strides = [1, 1, 1]} : vector<4x16x128xf32> to vector<1x16x128xf32>
    %157 = vector.shape_cast %156 : vector<1x16x128xf32> to vector<16x128xf32>
    %158 = arith.addf %155, %157 : vector<16x128xf32>
    %159 = arith.truncf %158 : vector<16x128xf32> to vector<16x128xbf16>
    %c0_48 = arith.constant 0 : index
    %c128_49 = arith.constant 128 : index
    %160 = vector.load %arg2[%c0_48, %c128_49] : memref<128x384xbf16, #tpu.memory_space<vmem>>, vector<128x128xbf16>
    %cst_50 = arith.constant dense<0.000000e+00> : vector<16x128xf32>
    %161 = tpu.matmul %159, %160, %cst_50 {dimension_numbers = #tpu.dot_dimension_numbers<[1], [0], [0], [1], [0, 0, 1, 1], [], []>} : vector<16x128xbf16>, vector<128x128xbf16>, vector<16x128xf32> -> vector<16x128xf32>
    %cst_51 = arith.constant 0.000000e+00 : f32
    %162 = vector.broadcast %cst_51 : f32 to vector<16x128xf32>
    %163 = arith.maximumf %161, %162 : vector<16x128xf32>
    %164 = arith.truncf %163 : vector<16x128xf32> to vector<16x128xbf16>
    %c0_52 = arith.constant 0 : index
    %c256_53 = arith.constant 256 : index
    %165 = vector.load %arg2[%c0_52, %c256_53] : memref<128x384xbf16, #tpu.memory_space<vmem>>, vector<128x128xbf16>
    %cst_54 = arith.constant dense<0.000000e+00> : vector<16x128xf32>
    %166 = tpu.matmul %164, %165, %cst_54 {dimension_numbers = #tpu.dot_dimension_numbers<[1], [0], [0], [1], [0, 0, 1, 1], [], []>} : vector<16x128xbf16>, vector<128x128xbf16>, vector<16x128xf32> -> vector<16x128xf32>
    %c3_i32 = arith.constant 3 : i32
    %167 = arith.truncf %166 : vector<16x128xf32> to vector<16x128xbf16>
    %c0_55 = arith.constant 0 : index
    %c0_56 = arith.constant 0 : index
    %168 = vector.load %arg2[%c0_55, %c0_56] : memref<128x384xbf16, #tpu.memory_space<vmem>>, vector<128x128xbf16>
    %cst_57 = arith.constant dense<0.000000e+00> : vector<16x128xf32>
    %169 = tpu.matmul %167, %168, %cst_57 {dimension_numbers = #tpu.dot_dimension_numbers<[1], [0], [0], [1], [0, 0, 1, 1], [], []>} : vector<16x128xbf16>, vector<128x128xbf16>, vector<16x128xf32> -> vector<16x128xf32>
    %170 = arith.truncf %169 : vector<16x128xf32> to vector<16x128xbf16>
    %171 = vector.extract_strided_slice %170 {offsets = [0, 0], sizes = [16, 24], strides = [1, 1]} : vector<16x128xbf16> to vector<16x24xbf16>
    %172 = vector.extract_strided_slice %170 {offsets = [0, 24], sizes = [16, 24], strides = [1, 1]} : vector<16x128xbf16> to vector<16x24xbf16>
    %173 = vector.extract_strided_slice %170 {offsets = [0, 48], sizes = [16, 24], strides = [1, 1]} : vector<16x128xbf16> to vector<16x24xbf16>
    %174 = vector.extract_strided_slice %170 {offsets = [0, 72], sizes = [16, 24], strides = [1, 1]} : vector<16x128xbf16> to vector<16x24xbf16>
    %175 = vector.shape_cast %171 : vector<16x24xbf16> to vector<1x16x24xbf16>
    %176 = vector.shape_cast %172 : vector<16x24xbf16> to vector<1x16x24xbf16>
    %177 = vector.shape_cast %173 : vector<16x24xbf16> to vector<1x16x24xbf16>
    %178 = vector.shape_cast %174 : vector<16x24xbf16> to vector<1x16x24xbf16>
    %179 = tpu.concatenate %175, %176, %177, %178 in 0 : vector<1x16x24xbf16>, vector<1x16x24xbf16>, vector<1x16x24xbf16>, vector<1x16x24xbf16> -> vector<4x16x24xbf16>
    %180 = vector.shape_cast %179 : vector<4x16x24xbf16> to vector<8x8x24xbf16>
    %181 = vector.extract_strided_slice %180 {offsets = [0, 0, 0], sizes = [8, 8, 8], strides = [1, 1, 1]} : vector<8x8x24xbf16> to vector<8x8x8xbf16>
    %182 = vector.extract_strided_slice %180 {offsets = [0, 0, 8], sizes = [8, 8, 8], strides = [1, 1, 1]} : vector<8x8x24xbf16> to vector<8x8x8xbf16>
    %183 = vector.extract_strided_slice %180 {offsets = [0, 0, 16], sizes = [8, 8, 8], strides = [1, 1, 1]} : vector<8x8x24xbf16> to vector<8x8x8xbf16>
    "tpu.trace_start"() <{level = 10 : i32, message = "bqd,bkd->bqk"}> : () -> ()
    %cst_58 = arith.constant dense<0.000000e+00> : vector<8x8x8xf32>
    %184 = tpu.matmul %181, %182, %cst_58 {dimension_numbers = #tpu.dot_dimension_numbers<[2], [2], [1], [1], [0, 0, 0, 1, 1, 1], [0], [0]>} : vector<8x8x8xbf16>, vector<8x8x8xbf16>, vector<8x8x8xf32> -> vector<8x8x8xf32>
    "tpu.trace_stop"() : () -> ()
    %cst_59 = arith.constant dense<0xFF800000> : vector<8x8xf32>
    %185 = vector.multi_reduction <maximumf>, %184, %cst_59 [2] : vector<8x8x8xf32> to vector<8x8xf32>
    %186 = vector.shape_cast %185 : vector<8x8xf32> to vector<8x8x1xf32>
    %187 = vector.broadcast %186 : vector<8x8x1xf32> to vector<8x8x8xf32>
    %188 = arith.subf %184, %187 : vector<8x8x8xf32>
    %189 = math.exp %188 : vector<8x8x8xf32>
    %cst_60 = arith.constant dense<0.000000e+00> : vector<8x8xf32>
    %190 = vector.multi_reduction <add>, %189, %cst_60 [2] : vector<8x8x8xf32> to vector<8x8xf32>
    %191 = vector.shape_cast %190 : vector<8x8xf32> to vector<8x8x1xf32>
    %192 = tpu.reciprocal %191 {approx = true} : vector<8x8x1xf32> -> vector<8x8x1xf32>
    %193 = vector.broadcast %192 : vector<8x8x1xf32> to vector<8x8x8xf32>
    %194 = arith.mulf %189, %193 : vector<8x8x8xf32>
    %195 = arith.truncf %194 : vector<8x8x8xf32> to vector<8x8x8xbf16>
    "tpu.trace_start"() <{level = 10 : i32, message = "bqk,bkd->bqd"}> : () -> ()
    %cst_61 = arith.constant dense<0.000000e+00> : vector<8x8x8xf32>
    %196 = tpu.matmul %195, %183, %cst_61 {dimension_numbers = #tpu.dot_dimension_numbers<[2], [1], [1], [2], [0, 0, 0, 1, 1, 2], [0], [0]>} : vector<8x8x8xbf16>, vector<8x8x8xbf16>, vector<8x8x8xf32> -> vector<8x8x8xf32>
    "tpu.trace_stop"() : () -> ()
    %197 = vector.shape_cast %196 : vector<8x8x8xf32> to vector<4x16x8xf32>
    %198 = arith.truncf %197 : vector<4x16x8xf32> to vector<4x16x8xbf16>
    %c0_62 = arith.constant 0 : index
    %c0_63 = arith.constant 0 : index
    %c0_64 = arith.constant 0 : index
    %199 = vector.load %arg3[%c0_62, %c0_63, %c0_64] : memref<4x8x128xbf16, #tpu.memory_space<vmem>>, vector<4x8x128xbf16>
    "tpu.trace_start"() <{level = 10 : i32, message = "hmd,hdn->hmn"}> : () -> ()
    %cst_65 = arith.constant dense<0.000000e+00> : vector<4x16x128xf32>
    %200 = tpu.matmul %198, %199, %cst_65 {dimension_numbers = #tpu.dot_dimension_numbers<[2], [1], [1], [2], [0, 0, 0, 1, 1, 2], [0], [0]>} : vector<4x16x8xbf16>, vector<4x8x128xbf16>, vector<4x16x128xf32> -> vector<4x16x128xf32>
    "tpu.trace_stop"() : () -> ()
    %201 = vector.extract_strided_slice %200 {offsets = [0, 0, 0], sizes = [1, 16, 128], strides = [1, 1, 1]} : vector<4x16x128xf32> to vector<1x16x128xf32>
    %202 = vector.shape_cast %201 : vector<1x16x128xf32> to vector<16x128xf32>
    %203 = arith.addf %4, %202 : vector<16x128xf32>
    %204 = vector.extract_strided_slice %200 {offsets = [1, 0, 0], sizes = [1, 16, 128], strides = [1, 1, 1]} : vector<4x16x128xf32> to vector<1x16x128xf32>
    %205 = vector.shape_cast %204 : vector<1x16x128xf32> to vector<16x128xf32>
    %206 = arith.addf %203, %205 : vector<16x128xf32>
    %207 = vector.extract_strided_slice %200 {offsets = [2, 0, 0], sizes = [1, 16, 128], strides = [1, 1, 1]} : vector<4x16x128xf32> to vector<1x16x128xf32>
    %208 = vector.shape_cast %207 : vector<1x16x128xf32> to vector<16x128xf32>
    %209 = arith.addf %206, %208 : vector<16x128xf32>
    %210 = vector.extract_strided_slice %200 {offsets = [3, 0, 0], sizes = [1, 16, 128], strides = [1, 1, 1]} : vector<4x16x128xf32> to vector<1x16x128xf32>
    %211 = vector.shape_cast %210 : vector<1x16x128xf32> to vector<16x128xf32>
    %212 = arith.addf %209, %211 : vector<16x128xf32>
    %213 = arith.truncf %212 : vector<16x128xf32> to vector<16x128xbf16>
    %c0_66 = arith.constant 0 : index
    %c128_67 = arith.constant 128 : index
    %214 = vector.load %arg2[%c0_66, %c128_67] : memref<128x384xbf16, #tpu.memory_space<vmem>>, vector<128x128xbf16>
    %cst_68 = arith.constant dense<0.000000e+00> : vector<16x128xf32>
    %215 = tpu.matmul %213, %214, %cst_68 {dimension_numbers = #tpu.dot_dimension_numbers<[1], [0], [0], [1], [0, 0, 1, 1], [], []>} : vector<16x128xbf16>, vector<128x128xbf16>, vector<16x128xf32> -> vector<16x128xf32>
    %cst_69 = arith.constant 0.000000e+00 : f32
    %216 = vector.broadcast %cst_69 : f32 to vector<16x128xf32>
    %217 = arith.maximumf %215, %216 : vector<16x128xf32>
    %218 = arith.truncf %217 : vector<16x128xf32> to vector<16x128xbf16>
    %c0_70 = arith.constant 0 : index
    %c256_71 = arith.constant 256 : index
    %219 = vector.load %arg2[%c0_70, %c256_71] : memref<128x384xbf16, #tpu.memory_space<vmem>>, vector<128x128xbf16>
    %cst_72 = arith.constant dense<0.000000e+00> : vector<16x128xf32>
    %220 = tpu.matmul %218, %219, %cst_72 {dimension_numbers = #tpu.dot_dimension_numbers<[1], [0], [0], [1], [0, 0, 1, 1], [], []>} : vector<16x128xbf16>, vector<128x128xbf16>, vector<16x128xf32> -> vector<16x128xf32>
    %c4_i32 = arith.constant 4 : i32
    %221 = arith.truncf %220 : vector<16x128xf32> to vector<16x128xbf16>
    %c0_73 = arith.constant 0 : index
    %c0_74 = arith.constant 0 : index
    %222 = vector.load %arg2[%c0_73, %c0_74] : memref<128x384xbf16, #tpu.memory_space<vmem>>, vector<128x128xbf16>
    %cst_75 = arith.constant dense<0.000000e+00> : vector<16x128xf32>
    %223 = tpu.matmul %221, %222, %cst_75 {dimension_numbers = #tpu.dot_dimension_numbers<[1], [0], [0], [1], [0, 0, 1, 1], [], []>} : vector<16x128xbf16>, vector<128x128xbf16>, vector<16x128xf32> -> vector<16x128xf32>
    %224 = arith.truncf %223 : vector<16x128xf32> to vector<16x128xbf16>
    %225 = vector.extract_strided_slice %224 {offsets = [0, 0], sizes = [16, 24], strides = [1, 1]} : vector<16x128xbf16> to vector<16x24xbf16>
    %226 = vector.extract_strided_slice %224 {offsets = [0, 24], sizes = [16, 24], strides = [1, 1]} : vector<16x128xbf16> to vector<16x24xbf16>
    %227 = vector.extract_strided_slice %224 {offsets = [0, 48], sizes = [16, 24], strides = [1, 1]} : vector<16x128xbf16> to vector<16x24xbf16>
    %228 = vector.extract_strided_slice %224 {offsets = [0, 72], sizes = [16, 24], strides = [1, 1]} : vector<16x128xbf16> to vector<16x24xbf16>
    %229 = vector.shape_cast %225 : vector<16x24xbf16> to vector<1x16x24xbf16>
    %230 = vector.shape_cast %226 : vector<16x24xbf16> to vector<1x16x24xbf16>
    %231 = vector.shape_cast %227 : vector<16x24xbf16> to vector<1x16x24xbf16>
    %232 = vector.shape_cast %228 : vector<16x24xbf16> to vector<1x16x24xbf16>
    %233 = tpu.concatenate %229, %230, %231, %232 in 0 : vector<1x16x24xbf16>, vector<1x16x24xbf16>, vector<1x16x24xbf16>, vector<1x16x24xbf16> -> vector<4x16x24xbf16>
    %234 = vector.shape_cast %233 : vector<4x16x24xbf16> to vector<8x8x24xbf16>
    %235 = vector.extract_strided_slice %234 {offsets = [0, 0, 0], sizes = [8, 8, 8], strides = [1, 1, 1]} : vector<8x8x24xbf16> to vector<8x8x8xbf16>
    %236 = vector.extract_strided_slice %234 {offsets = [0, 0, 8], sizes = [8, 8, 8], strides = [1, 1, 1]} : vector<8x8x24xbf16> to vector<8x8x8xbf16>
    %237 = vector.extract_strided_slice %234 {offsets = [0, 0, 16], sizes = [8, 8, 8], strides = [1, 1, 1]} : vector<8x8x24xbf16> to vector<8x8x8xbf16>
    "tpu.trace_start"() <{level = 10 : i32, message = "bqd,bkd->bqk"}> : () -> ()
    %cst_76 = arith.constant dense<0.000000e+00> : vector<8x8x8xf32>
    %238 = tpu.matmul %235, %236, %cst_76 {dimension_numbers = #tpu.dot_dimension_numbers<[2], [2], [1], [1], [0, 0, 0, 1, 1, 1], [0], [0]>} : vector<8x8x8xbf16>, vector<8x8x8xbf16>, vector<8x8x8xf32> -> vector<8x8x8xf32>
    "tpu.trace_stop"() : () -> ()
    %cst_77 = arith.constant dense<0xFF800000> : vector<8x8xf32>
    %239 = vector.multi_reduction <maximumf>, %238, %cst_77 [2] : vector<8x8x8xf32> to vector<8x8xf32>
    %240 = vector.shape_cast %239 : vector<8x8xf32> to vector<8x8x1xf32>
    %241 = vector.broadcast %240 : vector<8x8x1xf32> to vector<8x8x8xf32>
    %242 = arith.subf %238, %241 : vector<8x8x8xf32>
    %243 = math.exp %242 : vector<8x8x8xf32>
    %cst_78 = arith.constant dense<0.000000e+00> : vector<8x8xf32>
    %244 = vector.multi_reduction <add>, %243, %cst_78 [2] : vector<8x8x8xf32> to vector<8x8xf32>
    %245 = vector.shape_cast %244 : vector<8x8xf32> to vector<8x8x1xf32>
    %246 = tpu.reciprocal %245 {approx = true} : vector<8x8x1xf32> -> vector<8x8x1xf32>
    %247 = vector.broadcast %246 : vector<8x8x1xf32> to vector<8x8x8xf32>
    %248 = arith.mulf %243, %247 : vector<8x8x8xf32>
    %249 = arith.truncf %248 : vector<8x8x8xf32> to vector<8x8x8xbf16>
    "tpu.trace_start"() <{level = 10 : i32, message = "bqk,bkd->bqd"}> : () -> ()
    %cst_79 = arith.constant dense<0.000000e+00> : vector<8x8x8xf32>
    %250 = tpu.matmul %249, %237, %cst_79 {dimension_numbers = #tpu.dot_dimension_numbers<[2], [1], [1], [2], [0, 0, 0, 1, 1, 2], [0], [0]>} : vector<8x8x8xbf16>, vector<8x8x8xbf16>, vector<8x8x8xf32> -> vector<8x8x8xf32>
    "tpu.trace_stop"() : () -> ()
    %251 = vector.shape_cast %250 : vector<8x8x8xf32> to vector<4x16x8xf32>
    %252 = arith.truncf %251 : vector<4x16x8xf32> to vector<4x16x8xbf16>
    %c0_80 = arith.constant 0 : index
    %c0_81 = arith.constant 0 : index
    %c0_82 = arith.constant 0 : index
    %253 = vector.load %arg3[%c0_80, %c0_81, %c0_82] : memref<4x8x128xbf16, #tpu.memory_space<vmem>>, vector<4x8x128xbf16>
    "tpu.trace_start"() <{level = 10 : i32, message = "hmd,hdn->hmn"}> : () -> ()
    %cst_83 = arith.constant dense<0.000000e+00> : vector<4x16x128xf32>
    %254 = tpu.matmul %252, %253, %cst_83 {dimension_numbers = #tpu.dot_dimension_numbers<[2], [1], [1], [2], [0, 0, 0, 1, 1, 2], [0], [0]>} : vector<4x16x8xbf16>, vector<4x8x128xbf16>, vector<4x16x128xf32> -> vector<4x16x128xf32>
    "tpu.trace_stop"() : () -> ()
    %255 = vector.extract_strided_slice %254 {offsets = [0, 0, 0], sizes = [1, 16, 128], strides = [1, 1, 1]} : vector<4x16x128xf32> to vector<1x16x128xf32>
    %256 = vector.shape_cast %255 : vector<1x16x128xf32> to vector<16x128xf32>
    %257 = arith.addf %4, %256 : vector<16x128xf32>
    %258 = vector.extract_strided_slice %254 {offsets = [1, 0, 0], sizes = [1, 16, 128], strides = [1, 1, 1]} : vector<4x16x128xf32> to vector<1x16x128xf32>
    %259 = vector.shape_cast %258 : vector<1x16x128xf32> to vector<16x128xf32>
    %260 = arith.addf %257, %259 : vector<16x128xf32>
    %261 = vector.extract_strided_slice %254 {offsets = [2, 0, 0], sizes = [1, 16, 128], strides = [1, 1, 1]} : vector<4x16x128xf32> to vector<1x16x128xf32>
    %262 = vector.shape_cast %261 : vector<1x16x128xf32> to vector<16x128xf32>
    %263 = arith.addf %260, %262 : vector<16x128xf32>
    %264 = vector.extract_strided_slice %254 {offsets = [3, 0, 0], sizes = [1, 16, 128], strides = [1, 1, 1]} : vector<4x16x128xf32> to vector<1x16x128xf32>
    %265 = vector.shape_cast %264 : vector<1x16x128xf32> to vector<16x128xf32>
    %266 = arith.addf %263, %265 : vector<16x128xf32>
    %267 = arith.truncf %266 : vector<16x128xf32> to vector<16x128xbf16>
    %c0_84 = arith.constant 0 : index
    %c128_85 = arith.constant 128 : index
    %268 = vector.load %arg2[%c0_84, %c128_85] : memref<128x384xbf16, #tpu.memory_space<vmem>>, vector<128x128xbf16>
    %cst_86 = arith.constant dense<0.000000e+00> : vector<16x128xf32>
    %269 = tpu.matmul %267, %268, %cst_86 {dimension_numbers = #tpu.dot_dimension_numbers<[1], [0], [0], [1], [0, 0, 1, 1], [], []>} : vector<16x128xbf16>, vector<128x128xbf16>, vector<16x128xf32> -> vector<16x128xf32>
    %cst_87 = arith.constant 0.000000e+00 : f32
    %270 = vector.broadcast %cst_87 : f32 to vector<16x128xf32>
    %271 = arith.maximumf %269, %270 : vector<16x128xf32>
    %272 = arith.truncf %271 : vector<16x128xf32> to vector<16x128xbf16>
    %c0_88 = arith.constant 0 : index
    %c256_89 = arith.constant 256 : index
    %273 = vector.load %arg2[%c0_88, %c256_89] : memref<128x384xbf16, #tpu.memory_space<vmem>>, vector<128x128xbf16>
    %cst_90 = arith.constant dense<0.000000e+00> : vector<16x128xf32>
    %274 = tpu.matmul %272, %273, %cst_90 {dimension_numbers = #tpu.dot_dimension_numbers<[1], [0], [0], [1], [0, 0, 1, 1], [], []>} : vector<16x128xbf16>, vector<128x128xbf16>, vector<16x128xf32> -> vector<16x128xf32>
    %c5_i32 = arith.constant 5 : i32
    %275 = arith.truncf %274 : vector<16x128xf32> to vector<16x128xbf16>
    %c0_91 = arith.constant 0 : index
    %c0_92 = arith.constant 0 : index
    %276 = vector.load %arg2[%c0_91, %c0_92] : memref<128x384xbf16, #tpu.memory_space<vmem>>, vector<128x128xbf16>
    %cst_93 = arith.constant dense<0.000000e+00> : vector<16x128xf32>
    %277 = tpu.matmul %275, %276, %cst_93 {dimension_numbers = #tpu.dot_dimension_numbers<[1], [0], [0], [1], [0, 0, 1, 1], [], []>} : vector<16x128xbf16>, vector<128x128xbf16>, vector<16x128xf32> -> vector<16x128xf32>
    %278 = arith.truncf %277 : vector<16x128xf32> to vector<16x128xbf16>
    %279 = vector.extract_strided_slice %278 {offsets = [0, 0], sizes = [16, 24], strides = [1, 1]} : vector<16x128xbf16> to vector<16x24xbf16>
    %280 = vector.extract_strided_slice %278 {offsets = [0, 24], sizes = [16, 24], strides = [1, 1]} : vector<16x128xbf16> to vector<16x24xbf16>
    %281 = vector.extract_strided_slice %278 {offsets = [0, 48], sizes = [16, 24], strides = [1, 1]} : vector<16x128xbf16> to vector<16x24xbf16>
    %282 = vector.extract_strided_slice %278 {offsets = [0, 72], sizes = [16, 24], strides = [1, 1]} : vector<16x128xbf16> to vector<16x24xbf16>
    %283 = vector.shape_cast %279 : vector<16x24xbf16> to vector<1x16x24xbf16>
    %284 = vector.shape_cast %280 : vector<16x24xbf16> to vector<1x16x24xbf16>
    %285 = vector.shape_cast %281 : vector<16x24xbf16> to vector<1x16x24xbf16>
    %286 = vector.shape_cast %282 : vector<16x24xbf16> to vector<1x16x24xbf16>
    %287 = tpu.concatenate %283, %284, %285, %286 in 0 : vector<1x16x24xbf16>, vector<1x16x24xbf16>, vector<1x16x24xbf16>, vector<1x16x24xbf16> -> vector<4x16x24xbf16>
    %288 = vector.shape_cast %287 : vector<4x16x24xbf16> to vector<8x8x24xbf16>
    %289 = vector.extract_strided_slice %288 {offsets = [0, 0, 0], sizes = [8, 8, 8], strides = [1, 1, 1]} : vector<8x8x24xbf16> to vector<8x8x8xbf16>
    %290 = vector.extract_strided_slice %288 {offsets = [0, 0, 8], sizes = [8, 8, 8], strides = [1, 1, 1]} : vector<8x8x24xbf16> to vector<8x8x8xbf16>
    %291 = vector.extract_strided_slice %288 {offsets = [0, 0, 16], sizes = [8, 8, 8], strides = [1, 1, 1]} : vector<8x8x24xbf16> to vector<8x8x8xbf16>
    "tpu.trace_start"() <{level = 10 : i32, message = "bqd,bkd->bqk"}> : () -> ()
    %cst_94 = arith.constant dense<0.000000e+00> : vector<8x8x8xf32>
    %292 = tpu.matmul %289, %290, %cst_94 {dimension_numbers = #tpu.dot_dimension_numbers<[2], [2], [1], [1], [0, 0, 0, 1, 1, 1], [0], [0]>} : vector<8x8x8xbf16>, vector<8x8x8xbf16>, vector<8x8x8xf32> -> vector<8x8x8xf32>
    "tpu.trace_stop"() : () -> ()
    %cst_95 = arith.constant dense<0xFF800000> : vector<8x8xf32>
    %293 = vector.multi_reduction <maximumf>, %292, %cst_95 [2] : vector<8x8x8xf32> to vector<8x8xf32>
    %294 = vector.shape_cast %293 : vector<8x8xf32> to vector<8x8x1xf32>
    %295 = vector.broadcast %294 : vector<8x8x1xf32> to vector<8x8x8xf32>
    %296 = arith.subf %292, %295 : vector<8x8x8xf32>
    %297 = math.exp %296 : vector<8x8x8xf32>
    %cst_96 = arith.constant dense<0.000000e+00> : vector<8x8xf32>
    %298 = vector.multi_reduction <add>, %297, %cst_96 [2] : vector<8x8x8xf32> to vector<8x8xf32>
    %299 = vector.shape_cast %298 : vector<8x8xf32> to vector<8x8x1xf32>
    %300 = tpu.reciprocal %299 {approx = true} : vector<8x8x1xf32> -> vector<8x8x1xf32>
    %301 = vector.broadcast %300 : vector<8x8x1xf32> to vector<8x8x8xf32>
    %302 = arith.mulf %297, %301 : vector<8x8x8xf32>
    %303 = arith.truncf %302 : vector<8x8x8xf32> to vector<8x8x8xbf16>
    "tpu.trace_start"() <{level = 10 : i32, message = "bqk,bkd->bqd"}> : () -> ()
    %cst_97 = arith.constant dense<0.000000e+00> : vector<8x8x8xf32>
    %304 = tpu.matmul %303, %291, %cst_97 {dimension_numbers = #tpu.dot_dimension_numbers<[2], [1], [1], [2], [0, 0, 0, 1, 1, 2], [0], [0]>} : vector<8x8x8xbf16>, vector<8x8x8xbf16>, vector<8x8x8xf32> -> vector<8x8x8xf32>
    "tpu.trace_stop"() : () -> ()
    %305 = vector.shape_cast %304 : vector<8x8x8xf32> to vector<4x16x8xf32>
    %306 = arith.truncf %305 : vector<4x16x8xf32> to vector<4x16x8xbf16>
    %c0_98 = arith.constant 0 : index
    %c0_99 = arith.constant 0 : index
    %c0_100 = arith.constant 0 : index
    %307 = vector.load %arg3[%c0_98, %c0_99, %c0_100] : memref<4x8x128xbf16, #tpu.memory_space<vmem>>, vector<4x8x128xbf16>
    "tpu.trace_start"() <{level = 10 : i32, message = "hmd,hdn->hmn"}> : () -> ()
    %cst_101 = arith.constant dense<0.000000e+00> : vector<4x16x128xf32>
    %308 = tpu.matmul %306, %307, %cst_101 {dimension_numbers = #tpu.dot_dimension_numbers<[2], [1], [1], [2], [0, 0, 0, 1, 1, 2], [0], [0]>} : vector<4x16x8xbf16>, vector<4x8x128xbf16>, vector<4x16x128xf32> -> vector<4x16x128xf32>
    "tpu.trace_stop"() : () -> ()
    %309 = vector.extract_strided_slice %308 {offsets = [0, 0, 0], sizes = [1, 16, 128], strides = [1, 1, 1]} : vector<4x16x128xf32> to vector<1x16x128xf32>
    %310 = vector.shape_cast %309 : vector<1x16x128xf32> to vector<16x128xf32>
    %311 = arith.addf %4, %310 : vector<16x128xf32>
    %312 = vector.extract_strided_slice %308 {offsets = [1, 0, 0], sizes = [1, 16, 128], strides = [1, 1, 1]} : vector<4x16x128xf32> to vector<1x16x128xf32>
    %313 = vector.shape_cast %312 : vector<1x16x128xf32> to vector<16x128xf32>
    %314 = arith.addf %311, %313 : vector<16x128xf32>
    %315 = vector.extract_strided_slice %308 {offsets = [2, 0, 0], sizes = [1, 16, 128], strides = [1, 1, 1]} : vector<4x16x128xf32> to vector<1x16x128xf32>
    %316 = vector.shape_cast %315 : vector<1x16x128xf32> to vector<16x128xf32>
    %317 = arith.addf %314, %316 : vector<16x128xf32>
    %318 = vector.extract_strided_slice %308 {offsets = [3, 0, 0], sizes = [1, 16, 128], strides = [1, 1, 1]} : vector<4x16x128xf32> to vector<1x16x128xf32>
    %319 = vector.shape_cast %318 : vector<1x16x128xf32> to vector<16x128xf32>
    %320 = arith.addf %317, %319 : vector<16x128xf32>
    %321 = arith.truncf %320 : vector<16x128xf32> to vector<16x128xbf16>
    %c0_102 = arith.constant 0 : index
    %c128_103 = arith.constant 128 : index
    %322 = vector.load %arg2[%c0_102, %c128_103] : memref<128x384xbf16, #tpu.memory_space<vmem>>, vector<128x128xbf16>
    %cst_104 = arith.constant dense<0.000000e+00> : vector<16x128xf32>
    %323 = tpu.matmul %321, %322, %cst_104 {dimension_numbers = #tpu.dot_dimension_numbers<[1], [0], [0], [1], [0, 0, 1, 1], [], []>} : vector<16x128xbf16>, vector<128x128xbf16>, vector<16x128xf32> -> vector<16x128xf32>
    %cst_105 = arith.constant 0.000000e+00 : f32
    %324 = vector.broadcast %cst_105 : f32 to vector<16x128xf32>
    %325 = arith.maximumf %323, %324 : vector<16x128xf32>
    %326 = arith.truncf %325 : vector<16x128xf32> to vector<16x128xbf16>
    %c0_106 = arith.constant 0 : index
    %c256_107 = arith.constant 256 : index
    %327 = vector.load %arg2[%c0_106, %c256_107] : memref<128x384xbf16, #tpu.memory_space<vmem>>, vector<128x128xbf16>
    %cst_108 = arith.constant dense<0.000000e+00> : vector<16x128xf32>
    %328 = tpu.matmul %326, %327, %cst_108 {dimension_numbers = #tpu.dot_dimension_numbers<[1], [0], [0], [1], [0, 0, 1, 1], [], []>} : vector<16x128xbf16>, vector<128x128xbf16>, vector<16x128xf32> -> vector<16x128xf32>
    %329 = vector.shape_cast %328 : vector<16x128xf32> to vector<2x8x128xf32>
    %c0_109 = arith.constant 0 : index
    %c0_110 = arith.constant 0 : index
    %c0_111 = arith.constant 0 : index
    %330 = vector.load %arg5[%c0_109, %c0_110, %c0_111] : memref<2x8x128xf32, #tpu.memory_space<vmem>>, vector<2x8x128xf32>
    tpu.vector_store %arg5[%c0_109, %c0_110, %c0_111], %329 {strides = array<i32>} : memref<2x8x128xf32, #tpu.memory_space<vmem>>, vector<2x8x128xf32>,
    return
  }
  func.func @transform_0(%arg0: i32) -> (i32, i32, i32) {
    %c0_i32 = arith.constant 0 : i32
    %c0_i32_0 = arith.constant 0 : i32
    %c0_i32_1 = arith.constant 0 : i32
    return %arg0, %c0_i32, %c0_i32_0 : i32, i32, i32
  }
  func.func @transform_1(%arg0: i32) -> (i32, i32) {
    %c0_i32 = arith.constant 0 : i32
    %c0_i32_0 = arith.constant 0 : i32
    %c0_i32_1 = arith.constant 0 : i32
    return %c0_i32, %c0_i32_0 : i32, i32
  }
  func.func @transform_2(%arg0: i32) -> (i32, i32, i32) {
    %c0_i32 = arith.constant 0 : i32
    %c0_i32_0 = arith.constant 0 : i32
    %c0_i32_1 = arith.constant 0 : i32
    %c0_i32_2 = arith.constant 0 : i32
    return %c0_i32, %c0_i32_0, %c0_i32_1 : i32, i32, i32
  }
  func.func @transform_3(%arg0: i32) -> (i32, i32) {
    %c0_i32 = arith.constant 0 : i32
    %c0_i32_0 = arith.constant 0 : i32
    %c0_i32_1 = arith.constant 0 : i32
    return %c0_i32, %c0_i32_0 : i32, i32
  }
  func.func @transform_4(%arg0: i32) -> (i32, i32, i32) {
    %c0_i32 = arith.constant 0 : i32
    %c0_i32_0 = arith.constant 0 : i32
    %c0_i32_1 = arith.constant 0 : i32
    return %arg0, %c0_i32, %c0_i32_0 : i32, i32, i32
  }
}

</mosaic_0001>

<llo_original>
// kernel: tpu_custom_call.1
$region0: #{tpu_custom_call.1}
  #allocation0 [shape = 'u32[]', space=smem, size = 0x4, offset = 0x4, fixed_abs, tag = 'smem constant byte address 0x4 - core index']
  #allocation1 [shape = 'u32[144,128]{1,0:T(1,128)}', space=vmem, size = 0x12000, scoped, tag = 'internal scratch']
  %s0 = inlined_call_operand.hbm [shape: f32[2,8,128], index: 0, kind: input, shape index: {}]
  %s1 = inlined_call_operand.hbm [shape: bf16[128,384], index: 1, kind: input, shape index: {}]
  %s2 = inlined_call_operand.hbm [shape: bf16[4,8,128], index: 2, kind: input, shape index: {}]
  %s3 = inlined_call_operand.vmem [shape: f32[1,128], index: 3, kind: input, shape index: {}]
  %s4 = inlined_call_operand.hbm [shape: f32[2,8,128], index: 4, kind: output, shape index: {}]
  %s5 = sld [smem:[#allocation0]]
  $region38: #{tpu_custom_call.1} parent=0
    _
  %s7 = ssub.s32 1, %s5
  %s8 = scalar_select 0, %s7, %s5
  $region1: #{tpu_custom_call.1} parent=0
    #allocation2 [shape = 'u8[8192]{0}', space=vmem, size = 0x2000, scoped, tag = 'input window, operand 0, single buffered']
    #allocation3 [shape = 's32[1]{0}', space=sflag, size = 0x4, scoped, tag = 'scoped memory for tpu_custom_call.1']
    #allocation4 [shape = 's32[1]{0}', space=sflag, size = 0x4, scoped, tag = 'scoped memory for tpu_custom_call.1']
    #allocation5 [shape = 'u8[98304]{0}', space=vmem, size = 0x18000, scoped, tag = 'input window, operand 1, single buffered']
    #allocation6 [shape = 's32[1]{0}', space=sflag, size = 0x4, scoped, tag = 'scoped memory for tpu_custom_call.1']
    #allocation7 [shape = 'u8[8192]{0}', space=vmem, size = 0x2000, scoped, tag = 'input window, operand 2, single buffered']
    #allocation8 [shape = 'u8[8192]{0}', space=vmem, size = 0x2000, scoped, tag = 'output window, operand 0, single buffered']
    %9 = vsyncpa [#allocation3], 0
    %10 = vsyncpa [#allocation6], 0
    %11 = vsyncpa [#allocation4], 0
    // Predicated region
    $region2: #{tpu_custom_call.1} parent=1 // pred_check
      _
    $region3: #{tpu_custom_call.1} parent=1 // pred_check_branch
      %13 = sbr.rel (0) target = $region5
    $region4: #{tpu_custom_call.1} parent=1 // pred_region
      %s15 = ssub.s32 256, 256
      %16 = vsyncadd [#allocation3], %s15
      %s17 = sshll.u32 [#allocation2], 4
      %s18 = int_to_ptr.vmem [resolvable:$true] %s17
      %23 = dma.hbm_to_vmem [thread:$0]  %s0, 256, %s18, [#allocation3], 128, 128, 8
    $region5: #{tpu_custom_call.1} parent=1 // pred_fallthru
      _
    // Predicated region
    $region6: #{tpu_custom_call.1} parent=1 // pred_check
      _
    $region7: #{tpu_custom_call.1} parent=1 // pred_check_branch
      %25 = sbr.rel (0) target = $region9
    $region8: #{tpu_custom_call.1} parent=1 // pred_region
      %s27 = ssub.s32 3072, 3072
      %28 = vsyncadd [#allocation6], %s27
      %s29 = sshll.u32 [#allocation5], 4
      %s30 = int_to_ptr.vmem [resolvable:$true] %s29
      %35 = dma.hbm_to_vmem [thread:$0]  %s1, 3072, %s30, [#allocation6], 192, 192, 12
    $region9: #{tpu_custom_call.1} parent=1 // pred_fallthru
      _
    // Predicated region
    $region10: #{tpu_custom_call.1} parent=1 // pred_check
      _
    $region11: #{tpu_custom_call.1} parent=1 // pred_check_branch
      %37 = sbr.rel (0) target = $region13
    $region12: #{tpu_custom_call.1} parent=1 // pred_region
      %s39 = ssub.s32 256, 256
      %40 = vsyncadd [#allocation6], %s39
      %s41 = sshll.u32 [#allocation7], 4
      %s42 = int_to_ptr.vmem [resolvable:$true] %s41
      %47 = dma.hbm_to_vmem [thread:$0]  %s2, 256, %s42, [#allocation6], 64, 64, 4
    $region13: #{tpu_custom_call.1} parent=1 // pred_fallthru
      _
    // Predicated region
    $region14: #{tpu_custom_call.1} parent=1 // pred_check
      _
    $region15: #{tpu_custom_call.1} parent=1 // pred_check_branch
      %49 = sbr.rel (0) target = $region17
    $region16: #{tpu_custom_call.1} parent=1 // pred_region
      _
    $region17: #{tpu_custom_call.1} parent=1 // pred_fallthru
      _
    // Predicated region
    $region18: #{tpu_custom_call.1} parent=1 // pred_check
      _
    $region19: #{tpu_custom_call.1} parent=1 // pred_check_branch
      %51 = sbr.rel (0) target = $region21
    $region20: #{tpu_custom_call.1} parent=1 // pred_region
      %52 = dma.done [#allocation3], 256
    $region21: #{tpu_custom_call.1} parent=1 // pred_fallthru
      _
    // Predicated region
    $region22: #{tpu_custom_call.1} parent=1 // pred_check
      _
    $region23: #{tpu_custom_call.1} parent=1 // pred_check_branch
      %54 = sbr.rel (0) target = $region25
    $region24: #{tpu_custom_call.1} parent=1 // pred_region
      %55 = dma.done [#allocation6], 3072
    $region25: #{tpu_custom_call.1} parent=1 // pred_fallthru
      _
    // Predicated region
    $region26: #{tpu_custom_call.1} parent=1 // pred_check
      _
    $region27: #{tpu_custom_call.1} parent=1 // pred_check_branch
      %57 = sbr.rel (0) target = $region29
    $region28: #{tpu_custom_call.1} parent=1 // pred_region
      %58 = dma.done [#allocation6], 256
    $region29: #{tpu_custom_call.1} parent=1 // pred_fallthru
      _
    %v60 = vld [vmem:[#allocation2] sm:$0xff]
    %v61 = vld [vmem:[#allocation2 + $0x8] sm:$0xff]
    %v62 = vld [vmem:[%s3] sm:$0x1]
    %v64 = vlaneseq
    %v65 = vshrl.u32 %v64, 7
    %v66 = vsub.s32 0, %v65
    %v67 = vrot.slane %v62, %v66
    %v69 = vpack.c.bf16 %v61, %v60
    %v70 = vld [vmem:[#allocation5] sm:$0xf]
    %v71 = vld [vmem:[#allocation5 + $0xc] sm:$0xf]
    %v72 = vld [vmem:[#allocation5 + $0x18] sm:$0xf]
    %v73 = vld [vmem:[#allocation5 + $0x24] sm:$0xf]
    %v74 = vld [vmem:[#allocation5 + $0x30] sm:$0xf]
    %v75 = vld [vmem:[#allocation5 + $0x3c] sm:$0xf]
    %v76 = vld [vmem:[#allocation5 + $0x48] sm:$0xf]
    %v77 = vld [vmem:[#allocation5 + $0x54] sm:$0xf]
    %v78 = vld [vmem:[#allocation5 + $0x60] sm:$0xf]
    %v79 = vld [vmem:[#allocation5 + $0x6c] sm:$0xf]
    %v80 = vld [vmem:[#allocation5 + $0x78] sm:$0xf]
    %v81 = vld [vmem:[#allocation5 + $0x84] sm:$0xf]
    %v82 = vld [vmem:[#allocation5 + $0x90] sm:$0xf]
    %v83 = vld [vmem:[#allocation5 + $0x9c] sm:$0xf]
    %v84 = vld [vmem:[#allocation5 + $0xa8] sm:$0xf]
    %v85 = vld [vmem:[#allocation5 + $0xb4] sm:$0xf]
    %v102 = vunpack.c.l.b16 %v70
    %v103 = vunpack.c.l.b16 %v71
    %v104 = vunpack.c.l.b16 %v72
    %v105 = vunpack.c.l.b16 %v73
    %v106 = vunpack.c.l.b16 %v74
    %v107 = vunpack.c.l.b16 %v75
    %v108 = vunpack.c.l.b16 %v76
    %v109 = vunpack.c.l.b16 %v77
    %v110 = vunpack.c.l.b16 %v78
    %v111 = vunpack.c.l.b16 %v79
    %v112 = vunpack.c.l.b16 %v80
    %v113 = vunpack.c.l.b16 %v81
    %v114 = vunpack.c.l.b16 %v82
    %v115 = vunpack.c.l.b16 %v83
    %v116 = vunpack.c.l.b16 %v84
    %v117 = vunpack.c.l.b16 %v85
    %v118 = vpack.c.b16 %v103, %v102
    %v119 = vpack.c.b16 %v105, %v104
    %v120 = vpack.c.b16 %v107, %v106
    %v121 = vpack.c.b16 %v109, %v108
    %v122 = vpack.c.b16 %v111, %v110
    %v123 = vpack.c.b16 %v113, %v112
    %v124 = vpack.c.b16 %v115, %v114
    %v125 = vpack.c.b16 %v117, %v116
    %134 = vmatprep.subr.bf16.mxu0 0
    %135 = vmatpush1.bf16.msra.mxu0 %v118
    %136 = vmatprep.subr.bf16.mxu0 0
    %137 = vmatpush1.bf16.msra.mxu0 %v119
    %138 = vmatprep.subr.bf16.mxu0 0
    %139 = vmatpush1.bf16.msra.mxu0 %v120
    %140 = vmatprep.subr.bf16.mxu0 0
    %141 = vmatpush1.bf16.msra.mxu0 %v121
    %142 = vmatprep.subr.bf16.mxu0 0
    %143 = vmatpush1.bf16.msra.mxu0 %v122
    %144 = vmatprep.subr.bf16.mxu0 0
    %145 = vmatpush1.bf16.msra.mxu0 %v123
    %146 = vmatprep.subr.bf16.mxu0 0
    %147 = vmatpush1.bf16.msra.mxu0 %v124
    %148 = vmatprep.subr.bf16.mxu0 0
    %149 = vmatpush1.bf16.msra.mxu0 %v125
    %150 = vmatprep.subr.bf16.mxu0 0
    %151 = vmatpush1.bf16.msra.mxu0 0
    %152 = vmatprep.subr.bf16.mxu0 0
    %153 = vmatpush1.bf16.msra.mxu0 0
    %154 = vmatprep.subr.bf16.mxu0 0
    %155 = vmatpush1.bf16.msra.mxu0 0
    %156 = vmatprep.subr.bf16.mxu0 0
    %157 = vmatpush1.bf16.msra.mxu0 0
    %158 = vmatprep.subr.bf16.mxu0 0
    %159 = vmatpush1.bf16.msra.mxu0 0
    %160 = vmatprep.subr.bf16.mxu0 0
    %161 = vmatpush1.bf16.msra.mxu0 0
    %162 = vmatprep.subr.bf16.mxu0 0
    %163 = vmatpush1.bf16.msra.mxu0 0
    %164 = vmatprep.subr.bf16.mxu0 0
    %165 = vmatpush1.bf16.msra.mxu0 0
    %166 = vmatprep.mubr.bf16.mxu0 0
    %167 = vmatmul.mubr.bf16.gmra.mrb[0].mxu0 %v69
    %v168 = vpop.f32.mrb[0].mxu0
    %v169 = vadd.f32 0.0, %v168
    %v170 = vpop.f32.mrb[0].mxu0
    %v171 = vpop.f32.mrb[0].mxu0
    %v172 = vadd.f32 0.0, %v171
    %v173 = vpop.f32.mrb[0].mxu0
    %174 = vdwg.mxu0
    %v175 = vpack.c.bf16 %v172, %v169
    %177 = vrot.lane.b32.xlu0 %v175, 104
    %v178 = vpop.permute.xlu0 %177
    %179 = vrot.lane.b32.xlu0 %v175, 80
    %v180 = vpop.permute.xlu0 %179
    %181 = vrot.lane.b32.xlu0 %v175, 56
    %v182 = vpop.permute.xlu0 %181
    %v183 = vunpack.c.l.b16 %v175
    %v184 = vunpack.c.h.b16 %v175
    %v185 = vunpack.c.l.b16 %v178
    %v186 = vunpack.c.h.b16 %v178
    %v187 = vunpack.c.l.b16 %v180
    %v188 = vunpack.c.h.b16 %v180
    %v189 = vunpack.c.l.b16 %v182
    %v190 = vunpack.c.h.b16 %v182
    %v191 = vpack.c.b16 %v183, %v183
    %v192 = vpack.c.b16 %v184, %v184
    %v193 = vpack.c.b16 %v185, %v185
    %v194 = vpack.c.b16 %v186, %v186
    %v195 = vpack.c.b16 %v187, %v187
    %v196 = vpack.c.b16 %v188, %v188
    %v197 = vpack.c.b16 %v189, %v189
    %v198 = vpack.c.b16 %v190, %v190
    %199 = vrot.lane.b32.xlu0 %v191, 120
    %v200 = vpop.permute.xlu0 %199
    %vm201 = vcmask 64512
    %v203 = vsel %vm201, %v191, 0
    %v206 = vsel %vm201, %v200, 0
    %208 = vmatprep.subr.bf16.mxu0 0
    %209 = vmatpush1.bf16.xpose.msra.mxu0 %v206
    %210 = vmatprep.subr.bf16.mxu0 0
    %211 = vmatpush1.bf16.xpose.msra.mxu0 0
    %212 = vmatprep.subr.bf16.mxu0 0
    %213 = vmatpush1.bf16.xpose.msra.mxu0 0
    %214 = vmatprep.subr.bf16.mxu0 0
    %215 = vmatpush1.bf16.xpose.msra.mxu0 0
    %216 = vmatprep.subr.bf16.mxu0 0
    %217 = vmatpush1.bf16.xpose.msra.mxu0 0
    %218 = vmatprep.subr.bf16.mxu0 0
    %219 = vmatpush1.bf16.xpose.msra.mxu0 0
    %220 = vmatprep.subr.bf16.mxu0 0
    %221 = vmatpush1.bf16.xpose.msra.mxu0 0
    %222 = vmatprep.subr.bf16.mxu0 0
    %223 = vmatpush1.bf16.xpose.msra.mxu0 0
    %224 = vmatprep.subr.bf16.mxu0 0
    %225 = vmatpush1.bf16.xpose.msra.mxu0 0
    %226 = vmatprep.subr.bf16.mxu0 0
    %227 = vmatpush1.bf16.xpose.msra.mxu0 0
    %228 = vmatprep.subr.bf16.mxu0 0
    %229 = vmatpush1.bf16.xpose.msra.mxu0 0
    %230 = vmatprep.subr.bf16.mxu0 0
    %231 = vmatpush1.bf16.xpose.msra.mxu0 0
    %232 = vmatprep.subr.bf16.mxu0 0
    %233 = vmatpush1.bf16.xpose.msra.mxu0 0
    %234 = vmatprep.subr.bf16.mxu0 0
    %235 = vmatpush1.bf16.xpose.msra.mxu0 0
    %236 = vmatprep.subr.bf16.mxu0 0
    %237 = vmatpush1.bf16.xpose.msra.mxu0 0
    %238 = vmatprep.subr.bf16.mxu0 0
    %239 = vmatpush1.bf16.xpose.msra.mxu0 0
    %240 = vmatprep.mubr.bf16.mxu0 0
    %241 = vmatmul.mubr.bf16.gmra.mrb[0].mxu0 %v203
    %v242 = vpop.f32.mrb[0].mxu0
    %v243 = vadd.f32 0.0, %v242
    %v244 = vpop.f32.mrb[0].mxu0
    %v245 = vpop.f32.mrb[0].mxu0
    %v246 = vpop.f32.mrb[0].mxu0
    %247 = vdwg.mxu0
    %248 = vrot.lane.b32.xlu0 %v192, 120
    %v249 = vpop.permute.xlu0 %248
    %v251 = vsel %vm201, %v192, 0
    %v254 = vsel %vm201, %v249, 0
    %256 = vmatprep.subr.bf16.mxu0 0
    %257 = vmatpush1.bf16.xpose.msra.mxu0 %v254
    %258 = vmatprep.subr.bf16.mxu0 0
    %259 = vmatpush1.bf16.xpose.msra.mxu0 0
    %260 = vmatprep.subr.bf16.mxu0 0
    %261 = vmatpush1.bf16.xpose.msra.mxu0 0
    %262 = vmatprep.subr.bf16.mxu0 0
    %263 = vmatpush1.bf16.xpose.msra.mxu0 0
    %264 = vmatprep.subr.bf16.mxu0 0
    %265 = vmatpush1.bf16.xpose.msra.mxu0 0
    %266 = vmatprep.subr.bf16.mxu0 0
    %267 = vmatpush1.bf16.xpose.msra.mxu0 0
    %268 = vmatprep.subr.bf16.mxu0 0
    %269 = vmatpush1.bf16.xpose.msra.mxu0 0
    %270 = vmatprep.subr.bf16.mxu0 0
    %271 = vmatpush1.bf16.xpose.msra.mxu0 0
    %272 = vmatprep.subr.bf16.mxu0 0
    %273 = vmatpush1.bf16.xpose.msra.mxu0 0
    %274 = vmatprep.subr.bf16.mxu0 0
    %275 = vmatpush1.bf16.xpose.msra.mxu0 0
    %276 = vmatprep.subr.bf16.mxu0 0
    %277 = vmatpush1.bf16.xpose.msra.mxu0 0
    %278 = vmatprep.subr.bf16.mxu0 0
    %279 = vmatpush1.bf16.xpose.msra.mxu0 0
    %280 = vmatprep.subr.bf16.mxu0 0
    %281 = vmatpush1.bf16.xpose.msra.mxu0 0
    %282 = vmatprep.subr.bf16.mxu0 0
    %283 = vmatpush1.bf16.xpose.msra.mxu0 0
    %284 = vmatprep.subr.bf16.mxu0 0
    %285 = vmatpush1.bf16.xpose.msra.mxu0 0
    %286 = vmatprep.subr.bf16.mxu0 0
    %287 = vmatpush1.bf16.xpose.msra.mxu0 0
    %288 = vmatprep.mubr.bf16.mxu0 0
    %289 = vmatmul.mubr.bf16.gmra.mrb[0].mxu0 %v251
    %v290 = vpop.f32.mrb[0].mxu0
    %v291 = vadd.f32 0.0, %v290
    %v292 = vpop.f32.mrb[0].mxu0
    %v293 = vpop.f32.mrb[0].mxu0
    %v294 = vpop.f32.mrb[0].mxu0
    %295 = vdwg.mxu0
    %296 = vrot.lane.b32.xlu0 %v193, 120
    %v297 = vpop.permute.xlu0 %296
    %v299 = vsel %vm201, %v193, 0
    %v302 = vsel %vm201, %v297, 0
    %304 = vmatprep.subr.bf16.mxu0 0
    %305 = vmatpush1.bf16.xpose.msra.mxu0 %v302
    %306 = vmatprep.subr.bf16.mxu0 0
    %307 = vmatpush1.bf16.xpose.msra.mxu0 0
    %308 = vmatprep.subr.bf16.mxu0 0
    %309 = vmatpush1.bf16.xpose.msra.mxu0 0
    %310 = vmatprep.subr.bf16.mxu0 0
    %311 = vmatpush1.bf16.xpose.msra.mxu0 0
    %312 = vmatprep.subr.bf16.mxu0 0
    %313 = vmatpush1.bf16.xpose.msra.mxu0 0
    %314 = vmatprep.subr.bf16.mxu0 0
    %315 = vmatpush1.bf16.xpose.msra.mxu0 0
    %316 = vmatprep.subr.bf16.mxu0 0
    %317 = vmatpush1.bf16.xpose.msra.mxu0 0
    %318 = vmatprep.subr.bf16.mxu0 0
    %319 = vmatpush1.bf16.xpose.msra.mxu0 0
    %320 = vmatprep.subr.bf16.mxu0 0
    %321 = vmatpush1.bf16.xpose.msra.mxu0 0
    %322 = vmatprep.subr.bf16.mxu0 0
    %323 = vmatpush1.bf16.xpose.msra.mxu0 0
    %324 = vmatprep.subr.bf16.mxu0 0
    %325 = vmatpush1.bf16.xpose.msra.mxu0 0
    %326 = vmatprep.subr.bf16.mxu0 0
    %327 = vmatpush1.bf16.xpose.msra.mxu0 0
    %328 = vmatprep.subr.bf16.mxu0 0
    %329 = vmatpush1.bf16.xpose.msra.mxu0 0
    %330 = vmatprep.subr.bf16.mxu0 0
    %331 = vmatpush1.bf16.xpose.msra.mxu0 0
    %332 = vmatprep.subr.bf16.mxu0 0
    %333 = vmatpush1.bf16.xpose.msra.mxu0 0
    %334 = vmatprep.subr.bf16.mxu0 0
    %335 = vmatpush1.bf16.xpose.msra.mxu0 0
    %336 = vmatprep.mubr.bf16.mxu0 0
    %337 = vmatmul.mubr.bf16.gmra.mrb[0].mxu0 %v299
    %v338 = vpop.f32.mrb[0].mxu0
    %v339 = vadd.f32 0.0, %v338
    %v340 = vpop.f32.mrb[0].mxu0
    %v341 = vpop.f32.mrb[0].mxu0
    %v342 = vpop.f32.mrb[0].mxu0
    %343 = vdwg.mxu0
    %344 = vrot.lane.b32.xlu0 %v194, 120
    %v345 = vpop.permute.xlu0 %344
    %v347 = vsel %vm201, %v194, 0
    %v350 = vsel %vm201, %v345, 0
    %352 = vmatprep.subr.bf16.mxu0 0
    %353 = vmatpush1.bf16.xpose.msra.mxu0 %v350
    %354 = vmatprep.subr.bf16.mxu0 0
    %355 = vmatpush1.bf16.xpose.msra.mxu0 0
    %356 = vmatprep.subr.bf16.mxu0 0
    %357 = vmatpush1.bf16.xpose.msra.mxu0 0
    %358 = vmatprep.subr.bf16.mxu0 0
    %359 = vmatpush1.bf16.xpose.msra.mxu0 0
    %360 = vmatprep.subr.bf16.mxu0 0
    %361 = vmatpush1.bf16.xpose.msra.mxu0 0
    %362 = vmatprep.subr.bf16.mxu0 0
    %363 = vmatpush1.bf16.xpose.msra.mxu0 0
    %364 = vmatprep.subr.bf16.mxu0 0
    %365 = vmatpush1.bf16.xpose.msra.mxu0 0
    %366 = vmatprep.subr.bf16.mxu0 0
    %367 = vmatpush1.bf16.xpose.msra.mxu0 0
    %368 = vmatprep.subr.bf16.mxu0 0
    %369 = vmatpush1.bf16.xpose.msra.mxu0 0
    %370 = vmatprep.subr.bf16.mxu0 0
    %371 = vmatpush1.bf16.xpose.msra.mxu0 0
    %372 = vmatprep.subr.bf16.mxu0 0
    %373 = vmatpush1.bf16.xpose.msra.mxu0 0
    %374 = vmatprep.subr.bf16.mxu0 0
    %375 = vmatpush1.bf16.xpose.msra.mxu0 0
    %376 = vmatprep.subr.bf16.mxu0 0
    %377 = vmatpush1.bf16.xpose.msra.mxu0 0
    %378 = vmatprep.subr.bf16.mxu0 0
    %379 = vmatpush1.bf16.xpose.msra.mxu0 0
    %380 = vmatprep.subr.bf16.mxu0 0
    %381 = vmatpush1.bf16.xpose.msra.mxu0 0
    %382 = vmatprep.subr.bf16.mxu0 0
    %383 = vmatpush1.bf16.xpose.msra.mxu0 0
    %384 = vmatprep.mubr.bf16.mxu0 0
    %385 = vmatmul.mubr.bf16.gmra.mrb[0].mxu0 %v347
    %v386 = vpop.f32.mrb[0].mxu0
    %v387 = vadd.f32 0.0, %v386
    %v388 = vpop.f32.mrb[0].mxu0
    %v389 = vpop.f32.mrb[0].mxu0
    %v390 = vpop.f32.mrb[0].mxu0
    %391 = vdwg.mxu0
    %392 = vrot.lane.b32.xlu0 %v195, 120
    %v393 = vpop.permute.xlu0 %392
    %v395 = vsel %vm201, %v195, 0
    %v398 = vsel %vm201, %v393, 0
    %400 = vmatprep.subr.bf16.mxu0 0
    %401 = vmatpush1.bf16.xpose.msra.mxu0 %v398
    %402 = vmatprep.subr.bf16.mxu0 0
    %403 = vmatpush1.bf16.xpose.msra.mxu0 0
    %404 = vmatprep.subr.bf16.mxu0 0
    %405 = vmatpush1.bf16.xpose.msra.mxu0 0
    %406 = vmatprep.subr.bf16.mxu0 0
    %407 = vmatpush1.bf16.xpose.msra.mxu0 0
    %408 = vmatprep.subr.bf16.mxu0 0
    %409 = vmatpush1.bf16.xpose.msra.mxu0 0
    %410 = vmatprep.subr.bf16.mxu0 0
    %411 = vmatpush1.bf16.xpose.msra.mxu0 0
    %412 = vmatprep.subr.bf16.mxu0 0
    %413 = vmatpush1.bf16.xpose.msra.mxu0 0
    %414 = vmatprep.subr.bf16.mxu0 0
    %415 = vmatpush1.bf16.xpose.msra.mxu0 0
    %416 = vmatprep.subr.bf16.mxu0 0
    %417 = vmatpush1.bf16.xpose.msra.mxu0 0
    %418 = vmatprep.subr.bf16.mxu0 0
    %419 = vmatpush1.bf16.xpose.msra.mxu0 0
    %420 = vmatprep.subr.bf16.mxu0 0
    %421 = vmatpush1.bf16.xpose.msra.mxu0 0
    %422 = vmatprep.subr.bf16.mxu0 0
    %423 = vmatpush1.bf16.xpose.msra.mxu0 0
    %424 = vmatprep.subr.bf16.mxu0 0
    %425 = vmatpush1.bf16.xpose.msra.mxu0 0
    %426 = vmatprep.subr.bf16.mxu0 0
    %427 = vmatpush1.bf16.xpose.msra.mxu0 0
    %428 = vmatprep.subr.bf16.mxu0 0
    %429 = vmatpush1.bf16.xpose.msra.mxu0 0
    %430 = vmatprep.subr.bf16.mxu0 0
    %431 = vmatpush1.bf16.xpose.msra.mxu0 0
    %432 = vmatprep.mubr.bf16.mxu0 0
    %433 = vmatmul.mubr.bf16.gmra.mrb[0].mxu0 %v395
    %v434 = vpop.f32.mrb[0].mxu0
    %v435 = vadd.f32 0.0, %v434
    %v436 = vpop.f32.mrb[0].mxu0
    %v437 = vpop.f32.mrb[0].mxu0
    %v438 = vpop.f32.mrb[0].mxu0
    %439 = vdwg.mxu0
    %440 = vrot.lane.b32.xlu0 %v196, 120
    %v441 = vpop.permute.xlu0 %440
    %v443 = vsel %vm201, %v196, 0
    %v446 = vsel %vm201, %v441, 0
    %448 = vmatprep.subr.bf16.mxu0 0
    %449 = vmatpush1.bf16.xpose.msra.mxu0 %v446
    %450 = vmatprep.subr.bf16.mxu0 0
    %451 = vmatpush1.bf16.xpose.msra.mxu0 0
    %452 = vmatprep.subr.bf16.mxu0 0
    %453 = vmatpush1.bf16.xpose.msra.mxu0 0
    %454 = vmatprep.subr.bf16.mxu0 0
    %455 = vmatpush1.bf16.xpose.msra.mxu0 0
    %456 = vmatprep.subr.bf16.mxu0 0
    %457 = vmatpush1.bf16.xpose.msra.mxu0 0
    %458 = vmatprep.subr.bf16.mxu0 0
    %459 = vmatpush1.bf16.xpose.msra.mxu0 0
    %460 = vmatprep.subr.bf16.mxu0 0
    %461 = vmatpush1.bf16.xpose.msra.mxu0 0
    %462 = vmatprep.subr.bf16.mxu0 0
    %463 = vmatpush1.bf16.xpose.msra.mxu0 0
    %464 = vmatprep.subr.bf16.mxu0 0
    %465 = vmatpush1.bf16.xpose.msra.mxu0 0
    %466 = vmatprep.subr.bf16.mxu0 0
    %467 = vmatpush1.bf16.xpose.msra.mxu0 0
    %468 = vmatprep.subr.bf16.mxu0 0
    %469 = vmatpush1.bf16.xpose.msra.mxu0 0
    %470 = vmatprep.subr.bf16.mxu0 0
    %471 = vmatpush1.bf16.xpose.msra.mxu0 0
    %472 = vmatprep.subr.bf16.mxu0 0
    %473 = vmatpush1.bf16.xpose.msra.mxu0 0
    %474 = vmatprep.subr.bf16.mxu0 0
    %475 = vmatpush1.bf16.xpose.msra.mxu0 0
    %476 = vmatprep.subr.bf16.mxu0 0
    %477 = vmatpush1.bf16.xpose.msra.mxu0 0
    %478 = vmatprep.subr.bf16.mxu0 0
    %479 = vmatpush1.bf16.xpose.msra.mxu0 0
    %480 = vmatprep.mubr.bf16.mxu0 0
    %481 = vmatmul.mubr.bf16.gmra.mrb[0].mxu0 %v443
    %v482 = vpop.f32.mrb[0].mxu0
    %v483 = vadd.f32 0.0, %v482
    %v484 = vpop.f32.mrb[0].mxu0
    %v485 = vpop.f32.mrb[0].mxu0
    %v486 = vpop.f32.mrb[0].mxu0
    %487 = vdwg.mxu0
    %488 = vrot.lane.b32.xlu0 %v197, 120
    %v489 = vpop.permute.xlu0 %488
    %v491 = vsel %vm201, %v197, 0
    %v494 = vsel %vm201, %v489, 0
    %496 = vmatprep.subr.bf16.mxu0 0
    %497 = vmatpush1.bf16.xpose.msra.mxu0 %v494
    %498 = vmatprep.subr.bf16.mxu0 0
    %499 = vmatpush1.bf16.xpose.msra.mxu0 0
    %500 = vmatprep.subr.bf16.mxu0 0
    %501 = vmatpush1.bf16.xpose.msra.mxu0 0
    %502 = vmatprep.subr.bf16.mxu0 0
    %503 = vmatpush1.bf16.xpose.msra.mxu0 0
    %504 = vmatprep.subr.bf16.mxu0 0
    %505 = vmatpush1.bf16.xpose.msra.mxu0 0
    %506 = vmatprep.subr.bf16.mxu0 0
    %507 = vmatpush1.bf16.xpose.msra.mxu0 0
    %508 = vmatprep.subr.bf16.mxu0 0
    %509 = vmatpush1.bf16.xpose.msra.mxu0 0
    %510 = vmatprep.subr.bf16.mxu0 0
    %511 = vmatpush1.bf16.xpose.msra.mxu0 0
    %512 = vmatprep.subr.bf16.mxu0 0
    %513 = vmatpush1.bf16.xpose.msra.mxu0 0
    %514 = vmatprep.subr.bf16.mxu0 0
    %515 = vmatpush1.bf16.xpose.msra.mxu0 0
    %516 = vmatprep.subr.bf16.mxu0 0
    %517 = vmatpush1.bf16.xpose.msra.mxu0 0
    %518 = vmatprep.subr.bf16.mxu0 0
    %519 = vmatpush1.bf16.xpose.msra.mxu0 0
    %520 = vmatprep.subr.bf16.mxu0 0
    %521 = vmatpush1.bf16.xpose.msra.mxu0 0
    %522 = vmatprep.subr.bf16.mxu0 0
    %523 = vmatpush1.bf16.xpose.msra.mxu0 0
    %524 = vmatprep.subr.bf16.mxu0 0
    %525 = vmatpush1.bf16.xpose.msra.mxu0 0
    %526 = vmatprep.subr.bf16.mxu0 0
    %527 = vmatpush1.bf16.xpose.msra.mxu0 0
    %528 = vmatprep.mubr.bf16.mxu0 0
    %529 = vmatmul.mubr.bf16.gmra.mrb[0].mxu0 %v491
    %v530 = vpop.f32.mrb[0].mxu0
    %v531 = vadd.f32 0.0, %v530
    %v532 = vpop.f32.mrb[0].mxu0
    %v533 = vpop.f32.mrb[0].mxu0
    %v534 = vpop.f32.mrb[0].mxu0
    %535 = vdwg.mxu0
    %536 = vrot.lane.b32.xlu0 %v198, 120
    %v537 = vpop.permute.xlu0 %536
    %v539 = vsel %vm201, %v198, 0
    %v542 = vsel %vm201, %v537, 0
    %544 = vmatprep.subr.bf16.mxu0 0
    %545 = vmatpush1.bf16.xpose.msra.mxu0 %v542
    %546 = vmatprep.subr.bf16.mxu0 0
    %547 = vmatpush1.bf16.xpose.msra.mxu0 0
    %548 = vmatprep.subr.bf16.mxu0 0
    %549 = vmatpush1.bf16.xpose.msra.mxu0 0
    %550 = vmatprep.subr.bf16.mxu0 0
    %551 = vmatpush1.bf16.xpose.msra.mxu0 0
    %552 = vmatprep.subr.bf16.mxu0 0
    %553 = vmatpush1.bf16.xpose.msra.mxu0 0
    %554 = vmatprep.subr.bf16.mxu0 0
    %555 = vmatpush1.bf16.xpose.msra.mxu0 0
    %556 = vmatprep.subr.bf16.mxu0 0
    %557 = vmatpush1.bf16.xpose.msra.mxu0 0
    %558 = vmatprep.subr.bf16.mxu0 0
    %559 = vmatpush1.bf16.xpose.msra.mxu0 0
    %560 = vmatprep.subr.bf16.mxu0 0
    %561 = vmatpush1.bf16.xpose.msra.mxu0 0
    %562 = vmatprep.subr.bf16.mxu0 0
    %563 = vmatpush1.bf16.xpose.msra.mxu0 0
    %564 = vmatprep.subr.bf16.mxu0 0
    %565 = vmatpush1.bf16.xpose.msra.mxu0 0
    %566 = vmatprep.subr.bf16.mxu0 0
    %567 = vmatpush1.bf16.xpose.msra.mxu0 0
    %568 = vmatprep.subr.bf16.mxu0 0
    %569 = vmatpush1.bf16.xpose.msra.mxu0 0
    %570 = vmatprep.subr.bf16.mxu0 0
    %571 = vmatpush1.bf16.xpose.msra.mxu0 0
    %572 = vmatprep.subr.bf16.mxu0 0
    %573 = vmatpush1.bf16.xpose.msra.mxu0 0
    %574 = vmatprep.subr.bf16.mxu0 0
    %575 = vmatpush1.bf16.xpose.msra.mxu0 0
    %576 = vmatprep.mubr.bf16.mxu0 0
    %577 = vmatmul.mubr.bf16.gmra.mrb[0].mxu0 %v539
    %v578 = vpop.f32.mrb[0].mxu0
    %v579 = vadd.f32 0.0, %v578
    %v580 = vpop.f32.mrb[0].mxu0
    %v581 = vpop.f32.mrb[0].mxu0
    %v582 = vpop.f32.mrb[0].mxu0
    %583 = vdwg.mxu0
    %v584 = vsel %vm201, %v243, -inf
    %585 = vmax.xlane.f32.xlu0 %v584
    %v586 = vpop.xlane.xlu0 %585
    %v587 = vsel %vm201, %v291, -inf
    %588 = vmax.xlane.f32.xlu0 %v587
    %v589 = vpop.xlane.xlu0 %588
    %v590 = vsel %vm201, %v339, -inf
    %591 = vmax.xlane.f32.xlu0 %v590
    %v592 = vpop.xlane.xlu0 %591
    %v593 = vsel %vm201, %v387, -inf
    %594 = vmax.xlane.f32.xlu0 %v593
    %v595 = vpop.xlane.xlu0 %594
    %v596 = vsel %vm201, %v435, -inf
    %597 = vmax.xlane.f32.xlu0 %v596
    %v598 = vpop.xlane.xlu0 %597
    %v599 = vsel %vm201, %v483, -inf
    %600 = vmax.xlane.f32.xlu0 %v599
    %v601 = vpop.xlane.xlu0 %600
    %v602 = vsel %vm201, %v531, -inf
    %603 = vmax.xlane.f32.xlu0 %v602
    %v604 = vpop.xlane.xlu0 %603
    %v605 = vsel %vm201, %v579, -inf
    %606 = vmax.xlane.f32.xlu0 %v605
    %v607 = vpop.xlane.xlu0 %606
    %v608 = vsub.f32 %v243, %v586
    %v609 = vsub.f32 %v291, %v589
    %v610 = vsub.f32 %v339, %v592
    %v611 = vsub.f32 %v387, %v595
    %v612 = vsub.f32 %v435, %v598
    %v613 = vsub.f32 %v483, %v601
    %v614 = vsub.f32 %v531, %v604
    %v615 = vsub.f32 %v579, %v607
    %v616 = vmul.f32 %v608, 1.442695
    %v617 = vpow.pop %v616
    %v618 = vmul.f32 %v609, 1.442695
    %v619 = vpow.pop %v618
    %v620 = vmul.f32 %v610, 1.442695
    %v621 = vpow.pop %v620
    %v622 = vmul.f32 %v611, 1.442695
    %v623 = vpow.pop %v622
    %v624 = vmul.f32 %v612, 1.442695
    %v625 = vpow.pop %v624
    %v626 = vmul.f32 %v613, 1.442695
    %v627 = vpow.pop %v626
    %v628 = vmul.f32 %v614, 1.442695
    %v629 = vpow.pop %v628
    %v630 = vmul.f32 %v615, 1.442695
    %v631 = vpow.pop %v630
    %v632 = vsel %vm201, %v617, 0.0
    %633 = vadd.xlane.f32.xlu0 %v632
    %v634 = vpop.xlane.xlu0 %633
    %v635 = vsel %vm201, %v619, 0.0
    %636 = vadd.xlane.f32.xlu0 %v635
    %v637 = vpop.xlane.xlu0 %636
    %v638 = vsel %vm201, %v621, 0.0
    %639 = vadd.xlane.f32.xlu0 %v638
    %v640 = vpop.xlane.xlu0 %639
    %v641 = vsel %vm201, %v623, 0.0
    %642 = vadd.xlane.f32.xlu0 %v641
    %v643 = vpop.xlane.xlu0 %642
    %v644 = vsel %vm201, %v625, 0.0
    %645 = vadd.xlane.f32.xlu0 %v644
    %v646 = vpop.xlane.xlu0 %645
    %v647 = vsel %vm201, %v627, 0.0
    %648 = vadd.xlane.f32.xlu0 %v647
    %v649 = vpop.xlane.xlu0 %648
    %v650 = vsel %vm201, %v629, 0.0
    %651 = vadd.xlane.f32.xlu0 %v650
    %v652 = vpop.xlane.xlu0 %651
    %v653 = vsel %vm201, %v631, 0.0
    %654 = vadd.xlane.f32.xlu0 %v653
    %v655 = vpop.xlane.xlu0 %654
    %v656 = vrcp.pop %v634
    %v657 = vrcp.pop %v637
    %v658 = vrcp.pop %v640
    %v659 = vrcp.pop %v643
    %v660 = vrcp.pop %v646
    %v661 = vrcp.pop %v649
    %v662 = vrcp.pop %v652
    %v663 = vrcp.pop %v655
    %v664 = vmul.f32 %v617, %v656
    %v665 = vmul.f32 %v619, %v657
    %v666 = vmul.f32 %v621, %v658
    %v667 = vmul.f32 %v623, %v659
    %v668 = vmul.f32 %v625, %v660
    %v669 = vmul.f32 %v627, %v661
    %v670 = vmul.f32 %v629, %v662
    %v671 = vmul.f32 %v631, %v663
    %v672 = vpack.c.bf16 %v664, %v664
    %v673 = vpack.c.bf16 %v665, %v665
    %v674 = vpack.c.bf16 %v666, %v666
    %v675 = vpack.c.bf16 %v667, %v667
    %v676 = vpack.c.bf16 %v668, %v668
    %v677 = vpack.c.bf16 %v669, %v669
    %v678 = vpack.c.bf16 %v670, %v670
    %v679 = vpack.c.bf16 %v671, %v671
    %680 = vrot.lane.b32.xlu0 %v191, 112
    %v681 = vpop.permute.xlu0 %680
    %v683 = vsel %vm201, %v672, 0
    %vm685 = vcmask 1043456
    %v687 = vsel %vm685, %v681, 0
    %689 = vmatprep.subr.bf16.mxu0 0
    %690 = vmatpush1.bf16.msra.mxu0 %v687
    %691 = vmatprep.subr.bf16.mxu0 0
    %692 = vmatpush1.bf16.msra.mxu0 0
    %693 = vmatprep.subr.bf16.mxu0 0
    %694 = vmatpush1.bf16.msra.mxu0 0
    %695 = vmatprep.subr.bf16.mxu0 0
    %696 = vmatpush1.bf16.msra.mxu0 0
    %697 = vmatprep.subr.bf16.mxu0 0
    %698 = vmatpush1.bf16.msra.mxu0 0
    %699 = vmatprep.subr.bf16.mxu0 0
    %700 = vmatpush1.bf16.msra.mxu0 0
    %701 = vmatprep.subr.bf16.mxu0 0
    %702 = vmatpush1.bf16.msra.mxu0 0
    %703 = vmatprep.subr.bf16.mxu0 0
    %704 = vmatpush1.bf16.msra.mxu0 0
    %705 = vmatprep.subr.bf16.mxu0 0
    %706 = vmatpush1.bf16.msra.mxu0 0
    %707 = vmatprep.subr.bf16.mxu0 0
    %708 = vmatpush1.bf16.msra.mxu0 0
    %709 = vmatprep.subr.bf16.mxu0 0
    %710 = vmatpush1.bf16.msra.mxu0 0
    %711 = vmatprep.subr.bf16.mxu0 0
    %712 = vmatpush1.bf16.msra.mxu0 0
    %713 = vmatprep.subr.bf16.mxu0 0
    %714 = vmatpush1.bf16.msra.mxu0 0
    %715 = vmatprep.subr.bf16.mxu0 0
    %716 = vmatpush1.bf16.msra.mxu0 0
    %717 = vmatprep.subr.bf16.mxu0 0
    %718 = vmatpush1.bf16.msra.mxu0 0
    %719 = vmatprep.subr.bf16.mxu0 0
    %720 = vmatpush1.bf16.msra.mxu0 0
    %721 = vmatprep.mubr.bf16.mxu0 0
    %722 = vmatmul.mubr.bf16.gmra.mrb[0].mxu0 %v683
    %v723 = vpop.f32.mrb[0].mxu0
    %v724 = vadd.f32 0.0, %v723
    %v725 = vpop.f32.mrb[0].mxu0
    %v726 = vpop.f32.mrb[0].mxu0
    %v727 = vpop.f32.mrb[0].mxu0
    %728 = vdwg.mxu0
    %729 = vrot.lane.b32.xlu0 %v192, 112
    %v730 = vpop.permute.xlu0 %729
    %v732 = vsel %vm201, %v673, 0
    %v735 = vsel %vm685, %v730, 0
    %737 = vmatprep.subr.bf16.mxu0 0
    %738 = vmatpush1.bf16.msra.mxu0 %v735
    %739 = vmatprep.subr.bf16.mxu0 0
    %740 = vmatpush1.bf16.msra.mxu0 0
    %741 = vmatprep.subr.bf16.mxu0 0
    %742 = vmatpush1.bf16.msra.mxu0 0
    %743 = vmatprep.subr.bf16.mxu0 0
    %744 = vmatpush1.bf16.msra.mxu0 0
    %745 = vmatprep.subr.bf16.mxu0 0
    %746 = vmatpush1.bf16.msra.mxu0 0
    %747 = vmatprep.subr.bf16.mxu0 0
    %748 = vmatpush1.bf16.msra.mxu0 0
    %749 = vmatprep.subr.bf16.mxu0 0
    %750 = vmatpush1.bf16.msra.mxu0 0
    %751 = vmatprep.subr.bf16.mxu0 0
    %752 = vmatpush1.bf16.msra.mxu0 0
    %753 = vmatprep.subr.bf16.mxu0 0
    %754 = vmatpush1.bf16.msra.mxu0 0
    %755 = vmatprep.subr.bf16.mxu0 0
    %756 = vmatpush1.bf16.msra.mxu0 0
    %757 = vmatprep.subr.bf16.mxu0 0
    %758 = vmatpush1.bf16.msra.mxu0 0
    %759 = vmatprep.subr.bf16.mxu0 0
    %760 = vmatpush1.bf16.msra.mxu0 0
    %761 = vmatprep.subr.bf16.mxu0 0
    %762 = vmatpush1.bf16.msra.mxu0 0
    %763 = vmatprep.subr.bf16.mxu0 0
    %764 = vmatpush1.bf16.msra.mxu0 0
    %765 = vmatprep.subr.bf16.mxu0 0
    %766 = vmatpush1.bf16.msra.mxu0 0
    %767 = vmatprep.subr.bf16.mxu0 0
    %768 = vmatpush1.bf16.msra.mxu0 0
    %769 = vmatprep.mubr.bf16.mxu0 0
    %770 = vmatmul.mubr.bf16.gmra.mrb[0].mxu0 %v732
    %v771 = vpop.f32.mrb[0].mxu0
    %v772 = vadd.f32 0.0, %v771
    %v773 = vpop.f32.mrb[0].mxu0
    %v774 = vpop.f32.mrb[0].mxu0
    %v775 = vpop.f32.mrb[0].mxu0
    %776 = vdwg.mxu0
    %777 = vrot.lane.b32.xlu0 %v193, 112
    %v778 = vpop.permute.xlu0 %777
    %v780 = vsel %vm201, %v674, 0
    %v783 = vsel %vm685, %v778, 0
    %785 = vmatprep.subr.bf16.mxu0 0
    %786 = vmatpush1.bf16.msra.mxu0 %v783
    %787 = vmatprep.subr.bf16.mxu0 0
    %788 = vmatpush1.bf16.msra.mxu0 0
    %789 = vmatprep.subr.bf16.mxu0 0
    %790 = vmatpush1.bf16.msra.mxu0 0
    %791 = vmatprep.subr.bf16.mxu0 0
    %792 = vmatpush1.bf16.msra.mxu0 0
    %793 = vmatprep.subr.bf16.mxu0 0
    %794 = vmatpush1.bf16.msra.mxu0 0
    %795 = vmatprep.subr.bf16.mxu0 0
    %796 = vmatpush1.bf16.msra.mxu0 0
    %797 = vmatprep.subr.bf16.mxu0 0
    %798 = vmatpush1.bf16.msra.mxu0 0
    %799 = vmatprep.subr.bf16.mxu0 0
    %800 = vmatpush1.bf16.msra.mxu0 0
    %801 = vmatprep.subr.bf16.mxu0 0
    %802 = vmatpush1.bf16.msra.mxu0 0
    %803 = vmatprep.subr.bf16.mxu0 0
    %804 = vmatpush1.bf16.msra.mxu0 0
    %805 = vmatprep.subr.bf16.mxu0 0
    %806 = vmatpush1.bf16.msra.mxu0 0
    %807 = vmatprep.subr.bf16.mxu0 0
    %808 = vmatpush1.bf16.msra.mxu0 0
    %809 = vmatprep.subr.bf16.mxu0 0
    %810 = vmatpush1.bf16.msra.mxu0 0
    %811 = vmatprep.subr.bf16.mxu0 0
    %812 = vmatpush1.bf16.msra.mxu0 0
    %813 = vmatprep.subr.bf16.mxu0 0
    %814 = vmatpush1.bf16.msra.mxu0 0
    %815 = vmatprep.subr.bf16.mxu0 0
    %816 = vmatpush1.bf16.msra.mxu0 0
    %817 = vmatprep.mubr.bf16.mxu0 0
    %818 = vmatmul.mubr.bf16.gmra.mrb[0].mxu0 %v780
    %v819 = vpop.f32.mrb[0].mxu0
    %v820 = vadd.f32 0.0, %v819
    %v821 = vpop.f32.mrb[0].mxu0
    %v822 = vpop.f32.mrb[0].mxu0
    %v823 = vpop.f32.mrb[0].mxu0
    %824 = vdwg.mxu0
    %825 = vrot.lane.b32.xlu0 %v194, 112
    %v826 = vpop.permute.xlu0 %825
    %v828 = vsel %vm201, %v675, 0
    %v831 = vsel %vm685, %v826, 0
    %833 = vmatprep.subr.bf16.mxu0 0
    %834 = vmatpush1.bf16.msra.mxu0 %v831
    %835 = vmatprep.subr.bf16.mxu0 0
    %836 = vmatpush1.bf16.msra.mxu0 0
    %837 = vmatprep.subr.bf16.mxu0 0
    %838 = vmatpush1.bf16.msra.mxu0 0
    %839 = vmatprep.subr.bf16.mxu0 0
    %840 = vmatpush1.bf16.msra.mxu0 0
    %841 = vmatprep.subr.bf16.mxu0 0
    %842 = vmatpush1.bf16.msra.mxu0 0
    %843 = vmatprep.subr.bf16.mxu0 0
    %844 = vmatpush1.bf16.msra.mxu0 0
    %845 = vmatprep.subr.bf16.mxu0 0
    %846 = vmatpush1.bf16.msra.mxu0 0
    %847 = vmatprep.subr.bf16.mxu0 0
    %848 = vmatpush1.bf16.msra.mxu0 0
    %849 = vmatprep.subr.bf16.mxu0 0
    %850 = vmatpush1.bf16.msra.mxu0 0
    %851 = vmatprep.subr.bf16.mxu0 0
    %852 = vmatpush1.bf16.msra.mxu0 0
    %853 = vmatprep.subr.bf16.mxu0 0
    %854 = vmatpush1.bf16.msra.mxu0 0
    %855 = vmatprep.subr.bf16.mxu0 0
    %856 = vmatpush1.bf16.msra.mxu0 0
    %857 = vmatprep.subr.bf16.mxu0 0
    %858 = vmatpush1.bf16.msra.mxu0 0
    %859 = vmatprep.subr.bf16.mxu0 0
    %860 = vmatpush1.bf16.msra.mxu0 0
    %861 = vmatprep.subr.bf16.mxu0 0
    %862 = vmatpush1.bf16.msra.mxu0 0
    %863 = vmatprep.subr.bf16.mxu0 0
    %864 = vmatpush1.bf16.msra.mxu0 0
    %865 = vmatprep.mubr.bf16.mxu0 0
    %866 = vmatmul.mubr.bf16.gmra.mrb[0].mxu0 %v828
    %v867 = vpop.f32.mrb[0].mxu0
    %v868 = vadd.f32 0.0, %v867
    %v869 = vpop.f32.mrb[0].mxu0
    %v870 = vpop.f32.mrb[0].mxu0
    %v871 = vpop.f32.mrb[0].mxu0
    %872 = vdwg.mxu0
    %873 = vrot.lane.b32.xlu0 %v195, 112
    %v874 = vpop.permute.xlu0 %873
    %v876 = vsel %vm201, %v676, 0
    %v879 = vsel %vm685, %v874, 0
    %881 = vmatprep.subr.bf16.mxu0 0
    %882 = vmatpush1.bf16.msra.mxu0 %v879
    %883 = vmatprep.subr.bf16.mxu0 0
    %884 = vmatpush1.bf16.msra.mxu0 0
    %885 = vmatprep.subr.bf16.mxu0 0
    %886 = vmatpush1.bf16.msra.mxu0 0
    %887 = vmatprep.subr.bf16.mxu0 0
    %888 = vmatpush1.bf16.msra.mxu0 0
    %889 = vmatprep.subr.bf16.mxu0 0
    %890 = vmatpush1.bf16.msra.mxu0 0
    %891 = vmatprep.subr.bf16.mxu0 0
    %892 = vmatpush1.bf16.msra.mxu0 0
    %893 = vmatprep.subr.bf16.mxu0 0
    %894 = vmatpush1.bf16.msra.mxu0 0
    %895 = vmatprep.subr.bf16.mxu0 0
    %896 = vmatpush1.bf16.msra.mxu0 0
    %897 = vmatprep.subr.bf16.mxu0 0
    %898 = vmatpush1.bf16.msra.mxu0 0
    %899 = vmatprep.subr.bf16.mxu0 0
    %900 = vmatpush1.bf16.msra.mxu0 0
    %901 = vmatprep.subr.bf16.mxu0 0
    %902 = vmatpush1.bf16.msra.mxu0 0
    %903 = vmatprep.subr.bf16.mxu0 0
    %904 = vmatpush1.bf16.msra.mxu0 0
    %905 = vmatprep.subr.bf16.mxu0 0
    %906 = vmatpush1.bf16.msra.mxu0 0
    %907 = vmatprep.subr.bf16.mxu0 0
    %908 = vmatpush1.bf16.msra.mxu0 0
    %909 = vmatprep.subr.bf16.mxu0 0
    %910 = vmatpush1.bf16.msra.mxu0 0
    %911 = vmatprep.subr.bf16.mxu0 0
    %912 = vmatpush1.bf16.msra.mxu0 0
    %913 = vmatprep.mubr.bf16.mxu0 0
    %914 = vmatmul.mubr.bf16.gmra.mrb[0].mxu0 %v876
    %v915 = vpop.f32.mrb[0].mxu0
    %v916 = vadd.f32 0.0, %v915
    %v917 = vpop.f32.mrb[0].mxu0
    %v918 = vpop.f32.mrb[0].mxu0
    %v919 = vpop.f32.mrb[0].mxu0
    %920 = vdwg.mxu0
    %921 = vrot.lane.b32.xlu0 %v196, 112
    %v922 = vpop.permute.xlu0 %921
    %v924 = vsel %vm201, %v677, 0
    %v927 = vsel %vm685, %v922, 0
    %929 = vmatprep.subr.bf16.mxu0 0
    %930 = vmatpush1.bf16.msra.mxu0 %v927
    %931 = vmatprep.subr.bf16.mxu0 0
    %932 = vmatpush1.bf16.msra.mxu0 0
    %933 = vmatprep.subr.bf16.mxu0 0
    %934 = vmatpush1.bf16.msra.mxu0 0
    %935 = vmatprep.subr.bf16.mxu0 0
    %936 = vmatpush1.bf16.msra.mxu0 0
    %937 = vmatprep.subr.bf16.mxu0 0
    %938 = vmatpush1.bf16.msra.mxu0 0
    %939 = vmatprep.subr.bf16.mxu0 0
    %940 = vmatpush1.bf16.msra.mxu0 0
    %941 = vmatprep.subr.bf16.mxu0 0
    %942 = vmatpush1.bf16.msra.mxu0 0
    %943 = vmatprep.subr.bf16.mxu0 0
    %944 = vmatpush1.bf16.msra.mxu0 0
    %945 = vmatprep.subr.bf16.mxu0 0
    %946 = vmatpush1.bf16.msra.mxu0 0
    %947 = vmatprep.subr.bf16.mxu0 0
    %948 = vmatpush1.bf16.msra.mxu0 0
    %949 = vmatprep.subr.bf16.mxu0 0
    %950 = vmatpush1.bf16.msra.mxu0 0
    %951 = vmatprep.subr.bf16.mxu0 0
    %952 = vmatpush1.bf16.msra.mxu0 0
    %953 = vmatprep.subr.bf16.mxu0 0
    %954 = vmatpush1.bf16.msra.mxu0 0
    %955 = vmatprep.subr.bf16.mxu0 0
    %956 = vmatpush1.bf16.msra.mxu0 0
    %957 = vmatprep.subr.bf16.mxu0 0
    %958 = vmatpush1.bf16.msra.mxu0 0
    %959 = vmatprep.subr.bf16.mxu0 0
    %960 = vmatpush1.bf16.msra.mxu0 0
    %961 = vmatprep.mubr.bf16.mxu0 0
    %962 = vmatmul.mubr.bf16.gmra.mrb[0].mxu0 %v924
    %v963 = vpop.f32.mrb[0].mxu0
    %v964 = vadd.f32 0.0, %v963
    %v965 = vpop.f32.mrb[0].mxu0
    %v966 = vpop.f32.mrb[0].mxu0
    %v967 = vpop.f32.mrb[0].mxu0
    %968 = vdwg.mxu0
    %969 = vrot.lane.b32.xlu0 %v197, 112
    %v970 = vpop.permute.xlu0 %969
    %v972 = vsel %vm201, %v678, 0
    %v975 = vsel %vm685, %v970, 0
    %977 = vmatprep.subr.bf16.mxu0 0
    %978 = vmatpush1.bf16.msra.mxu0 %v975
    %979 = vmatprep.subr.bf16.mxu0 0
    %980 = vmatpush1.bf16.msra.mxu0 0
    %981 = vmatprep.subr.bf16.mxu0 0
    %982 = vmatpush1.bf16.msra.mxu0 0
    %983 = vmatprep.subr.bf16.mxu0 0
    %984 = vmatpush1.bf16.msra.mxu0 0
    %985 = vmatprep.subr.bf16.mxu0 0
    %986 = vmatpush1.bf16.msra.mxu0 0
    %987 = vmatprep.subr.bf16.mxu0 0
    %988 = vmatpush1.bf16.msra.mxu0 0
    %989 = vmatprep.subr.bf16.mxu0 0
    %990 = vmatpush1.bf16.msra.mxu0 0
    %991 = vmatprep.subr.bf16.mxu0 0
    %992 = vmatpush1.bf16.msra.mxu0 0
    %993 = vmatprep.subr.bf16.mxu0 0
    %994 = vmatpush1.bf16.msra.mxu0 0
    %995 = vmatprep.subr.bf16.mxu0 0
    %996 = vmatpush1.bf16.msra.mxu0 0
    %997 = vmatprep.subr.bf16.mxu0 0
    %998 = vmatpush1.bf16.msra.mxu0 0
    %999 = vmatprep.subr.bf16.mxu0 0
    %1000 = vmatpush1.bf16.msra.mxu0 0
    %1001 = vmatprep.subr.bf16.mxu0 0
    %1002 = vmatpush1.bf16.msra.mxu0 0
    %1003 = vmatprep.subr.bf16.mxu0 0
    %1004 = vmatpush1.bf16.msra.mxu0 0
    %1005 = vmatprep.subr.bf16.mxu0 0
    %1006 = vmatpush1.bf16.msra.mxu0 0
    %1007 = vmatprep.subr.bf16.mxu0 0
    %1008 = vmatpush1.bf16.msra.mxu0 0
    %1009 = vmatprep.mubr.bf16.mxu0 0
    %1010 = vmatmul.mubr.bf16.gmra.mrb[0].mxu0 %v972
    %v1011 = vpop.f32.mrb[0].mxu0
    %v1012 = vadd.f32 0.0, %v1011
    %v1013 = vpop.f32.mrb[0].mxu0
    %v1014 = vpop.f32.mrb[0].mxu0
    %v1015 = vpop.f32.mrb[0].mxu0
    %1016 = vdwg.mxu0
    %1017 = vrot.lane.b32.xlu0 %v198, 112
    %v1018 = vpop.permute.xlu0 %1017
    %v1020 = vsel %vm201, %v679, 0
    %v1023 = vsel %vm685, %v1018, 0
    %1025 = vmatprep.subr.bf16.mxu0 0
    %1026 = vmatpush1.bf16.msra.mxu0 %v1023
    %1027 = vmatprep.subr.bf16.mxu0 0
    %1028 = vmatpush1.bf16.msra.mxu0 0
    %1029 = vmatprep.subr.bf16.mxu0 0
    %1030 = vmatpush1.bf16.msra.mxu0 0
    %1031 = vmatprep.subr.bf16.mxu0 0
    %1032 = vmatpush1.bf16.msra.mxu0 0
    %1033 = vmatprep.subr.bf16.mxu0 0
    %1034 = vmatpush1.bf16.msra.mxu0 0
    %1035 = vmatprep.subr.bf16.mxu0 0
    %1036 = vmatpush1.bf16.msra.mxu0 0
    %1037 = vmatprep.subr.bf16.mxu0 0
    %1038 = vmatpush1.bf16.msra.mxu0 0
    %1039 = vmatprep.subr.bf16.mxu0 0
    %1040 = vmatpush1.bf16.msra.mxu0 0
    %1041 = vmatprep.subr.bf16.mxu0 0
    %1042 = vmatpush1.bf16.msra.mxu0 0
    %1043 = vmatprep.subr.bf16.mxu0 0
    %1044 = vmatpush1.bf16.msra.mxu0 0
    %1045 = vmatprep.subr.bf16.mxu0 0
    %1046 = vmatpush1.bf16.msra.mxu0 0
    %1047 = vmatprep.subr.bf16.mxu0 0
    %1048 = vmatpush1.bf16.msra.mxu0 0
    %1049 = vmatprep.subr.bf16.mxu0 0
    %1050 = vmatpush1.bf16.msra.mxu0 0
    %1051 = vmatprep.subr.bf16.mxu0 0
    %1052 = vmatpush1.bf16.msra.mxu0 0
    %1053 = vmatprep.subr.bf16.mxu0 0
    %1054 = vmatpush1.bf16.msra.mxu0 0
    %1055 = vmatprep.subr.bf16.mxu0 0
    %1056 = vmatpush1.bf16.msra.mxu0 0
    %1057 = vmatprep.mubr.bf16.mxu0 0
    %1058 = vmatmul.mubr.bf16.gmra.mrb[0].mxu0 %v1020
    %v1059 = vpop.f32.mrb[0].mxu0
    %v1060 = vadd.f32 0.0, %v1059
    %v1061 = vpop.f32.mrb[0].mxu0
    %v1062 = vpop.f32.mrb[0].mxu0
    %v1063 = vpop.f32.mrb[0].mxu0
    %1064 = vdwg.mxu0
    %v1065 = vpack.c.bf16 %v772, %v724
    %v1066 = vpack.c.bf16 %v868, %v820
    %v1067 = vpack.c.bf16 %v964, %v916
    %v1068 = vpack.c.bf16 %v1060, %v1012
    %v1069 = vld [vmem:[#allocation7] sm:$0xf]
    %v1070 = vld [vmem:[#allocation7 + $0x4] sm:$0xf]
    %v1071 = vld [vmem:[#allocation7 + $0x8] sm:$0xf]
    %v1072 = vld [vmem:[#allocation7 + $0xc] sm:$0xf]
    %v1074 = vsel %vm201, %v1065, 0
    %v1077 = vsel %vm685, %v1069, 0
    %1079 = vmatprep.subr.bf16.mxu0 0
    %1080 = vmatpush1.bf16.msra.mxu0 %v1077
    %1081 = vmatprep.subr.bf16.mxu0 0
    %1082 = vmatpush1.bf16.msra.mxu0 0
    %1083 = vmatprep.subr.bf16.mxu0 0
    %1084 = vmatpush1.bf16.msra.mxu0 0
    %1085 = vmatprep.subr.bf16.mxu0 0
    %1086 = vmatpush1.bf16.msra.mxu0 0
    %1087 = vmatprep.subr.bf16.mxu0 0
    %1088 = vmatpush1.bf16.msra.mxu0 0
    %1089 = vmatprep.subr.bf16.mxu0 0
    %1090 = vmatpush1.bf16.msra.mxu0 0
    %1091 = vmatprep.subr.bf16.mxu0 0
    %1092 = vmatpush1.bf16.msra.mxu0 0
    %1093 = vmatprep.subr.bf16.mxu0 0
    %1094 = vmatpush1.bf16.msra.mxu0 0
    %1095 = vmatprep.subr.bf16.mxu0 0
    %1096 = vmatpush1.bf16.msra.mxu0 0
    %1097 = vmatprep.subr.bf16.mxu0 0
    %1098 = vmatpush1.bf16.msra.mxu0 0
    %1099 = vmatprep.subr.bf16.mxu0 0
    %1100 = vmatpush1.bf16.msra.mxu0 0
    %1101 = vmatprep.subr.bf16.mxu0 0
    %1102 = vmatpush1.bf16.msra.mxu0 0
    %1103 = vmatprep.subr.bf16.mxu0 0
    %1104 = vmatpush1.bf16.msra.mxu0 0
    %1105 = vmatprep.subr.bf16.mxu0 0
    %1106 = vmatpush1.bf16.msra.mxu0 0
    %1107 = vmatprep.subr.bf16.mxu0 0
    %1108 = vmatpush1.bf16.msra.mxu0 0
    %1109 = vmatprep.subr.bf16.mxu0 0
    %1110 = vmatpush1.bf16.msra.mxu0 0
    %1111 = vmatprep.mubr.bf16.mxu0 0
    %1112 = vmatmul.mubr.bf16.gmra.mrb[0].mxu0 %v1074
    %v1113 = vpop.f32.mrb[0].mxu0
    %v1114 = vadd.f32 0.0, %v1113
    %v1115 = vpop.f32.mrb[0].mxu0
    %v1116 = vpop.f32.mrb[0].mxu0
    %v1117 = vadd.f32 0.0, %v1116
    %v1118 = vpop.f32.mrb[0].mxu0
    %1119 = vdwg.mxu0
    %v1121 = vsel %vm201, %v1066, 0
    %v1124 = vsel %vm685, %v1070, 0
    %1126 = vmatprep.subr.bf16.mxu0 0
    %1127 = vmatpush1.bf16.msra.mxu0 %v1124
    %1128 = vmatprep.subr.bf16.mxu0 0
    %1129 = vmatpush1.bf16.msra.mxu0 0
    %1130 = vmatprep.subr.bf16.mxu0 0
    %1131 = vmatpush1.bf16.msra.mxu0 0
    %1132 = vmatprep.subr.bf16.mxu0 0
    %1133 = vmatpush1.bf16.msra.mxu0 0
    %1134 = vmatprep.subr.bf16.mxu0 0
    %1135 = vmatpush1.bf16.msra.mxu0 0
    %1136 = vmatprep.subr.bf16.mxu0 0
    %1137 = vmatpush1.bf16.msra.mxu0 0
    %1138 = vmatprep.subr.bf16.mxu0 0
    %1139 = vmatpush1.bf16.msra.mxu0 0
    %1140 = vmatprep.subr.bf16.mxu0 0
    %1141 = vmatpush1.bf16.msra.mxu0 0
    %1142 = vmatprep.subr.bf16.mxu0 0
    %1143 = vmatpush1.bf16.msra.mxu0 0
    %1144 = vmatprep.subr.bf16.mxu0 0
    %1145 = vmatpush1.bf16.msra.mxu0 0
    %1146 = vmatprep.subr.bf16.mxu0 0
    %1147 = vmatpush1.bf16.msra.mxu0 0
    %1148 = vmatprep.subr.bf16.mxu0 0
    %1149 = vmatpush1.bf16.msra.mxu0 0
    %1150 = vmatprep.subr.bf16.mxu0 0
    %1151 = vmatpush1.bf16.msra.mxu0 0
    %1152 = vmatprep.subr.bf16.mxu0 0
    %1153 = vmatpush1.bf16.msra.mxu0 0
    %1154 = vmatprep.subr.bf16.mxu0 0
    %1155 = vmatpush1.bf16.msra.mxu0 0
    %1156 = vmatprep.subr.bf16.mxu0 0
    %1157 = vmatpush1.bf16.msra.mxu0 0
    %1158 = vmatprep.mubr.bf16.mxu0 0
    %1159 = vmatmul.mubr.bf16.gmra.mrb[0].mxu0 %v1121
    %v1160 = vpop.f32.mrb[0].mxu0
    %v1161 = vadd.f32 0.0, %v1160
    %v1162 = vpop.f32.mrb[0].mxu0
    %v1163 = vpop.f32.mrb[0].mxu0
    %v1164 = vadd.f32 0.0, %v1163
    %v1165 = vpop.f32.mrb[0].mxu0
    %1166 = vdwg.mxu0
    %v1168 = vsel %vm201, %v1067, 0
    %v1171 = vsel %vm685, %v1071, 0
    %1173 = vmatprep.subr.bf16.mxu0 0
    %1174 = vmatpush1.bf16.msra.mxu0 %v1171
    %1175 = vmatprep.subr.bf16.mxu0 0
    %1176 = vmatpush1.bf16.msra.mxu0 0
    %1177 = vmatprep.subr.bf16.mxu0 0
    %1178 = vmatpush1.bf16.msra.mxu0 0
    %1179 = vmatprep.subr.bf16.mxu0 0
    %1180 = vmatpush1.bf16.msra.mxu0 0
    %1181 = vmatprep.subr.bf16.mxu0 0
    %1182 = vmatpush1.bf16.msra.mxu0 0
    %1183 = vmatprep.subr.bf16.mxu0 0
    %1184 = vmatpush1.bf16.msra.mxu0 0
    %1185 = vmatprep.subr.bf16.mxu0 0
    %1186 = vmatpush1.bf16.msra.mxu0 0
    %1187 = vmatprep.subr.bf16.mxu0 0
    %1188 = vmatpush1.bf16.msra.mxu0 0
    %1189 = vmatprep.subr.bf16.mxu0 0
    %1190 = vmatpush1.bf16.msra.mxu0 0
    %1191 = vmatprep.subr.bf16.mxu0 0
    %1192 = vmatpush1.bf16.msra.mxu0 0
    %1193 = vmatprep.subr.bf16.mxu0 0
    %1194 = vmatpush1.bf16.msra.mxu0 0
    %1195 = vmatprep.subr.bf16.mxu0 0
    %1196 = vmatpush1.bf16.msra.mxu0 0
    %1197 = vmatprep.subr.bf16.mxu0 0
    %1198 = vmatpush1.bf16.msra.mxu0 0
    %1199 = vmatprep.subr.bf16.mxu0 0
    %1200 = vmatpush1.bf16.msra.mxu0 0
    %1201 = vmatprep.subr.bf16.mxu0 0
    %1202 = vmatpush1.bf16.msra.mxu0 0
    %1203 = vmatprep.subr.bf16.mxu0 0
    %1204 = vmatpush1.bf16.msra.mxu0 0
    %1205 = vmatprep.mubr.bf16.mxu0 0
    %1206 = vmatmul.mubr.bf16.gmra.mrb[0].mxu0 %v1168
    %v1207 = vpop.f32.mrb[0].mxu0
    %v1208 = vadd.f32 0.0, %v1207
    %v1209 = vpop.f32.mrb[0].mxu0
    %v1210 = vpop.f32.mrb[0].mxu0
    %v1211 = vadd.f32 0.0, %v1210
    %v1212 = vpop.f32.mrb[0].mxu0
    %1213 = vdwg.mxu0
    %v1215 = vsel %vm201, %v1068, 0
    %v1218 = vsel %vm685, %v1072, 0
    %1220 = vmatprep.subr.bf16.mxu0 0
    %1221 = vmatpush1.bf16.msra.mxu0 %v1218
    %1222 = vmatprep.subr.bf16.mxu0 0
    %1223 = vmatpush1.bf16.msra.mxu0 0
    %1224 = vmatprep.subr.bf16.mxu0 0
    %1225 = vmatpush1.bf16.msra.mxu0 0
    %1226 = vmatprep.subr.bf16.mxu0 0
    %1227 = vmatpush1.bf16.msra.mxu0 0
    %1228 = vmatprep.subr.bf16.mxu0 0
    %1229 = vmatpush1.bf16.msra.mxu0 0
    %1230 = vmatprep.subr.bf16.mxu0 0
    %1231 = vmatpush1.bf16.msra.mxu0 0
    %1232 = vmatprep.subr.bf16.mxu0 0
    %1233 = vmatpush1.bf16.msra.mxu0 0
    %1234 = vmatprep.subr.bf16.mxu0 0
    %1235 = vmatpush1.bf16.msra.mxu0 0
    %1236 = vmatprep.subr.bf16.mxu0 0
    %1237 = vmatpush1.bf16.msra.mxu0 0
    %1238 = vmatprep.subr.bf16.mxu0 0
    %1239 = vmatpush1.bf16.msra.mxu0 0
    %1240 = vmatprep.subr.bf16.mxu0 0
    %1241 = vmatpush1.bf16.msra.mxu0 0
    %1242 = vmatprep.subr.bf16.mxu0 0
    %1243 = vmatpush1.bf16.msra.mxu0 0
    %1244 = vmatprep.subr.bf16.mxu0 0
    %1245 = vmatpush1.bf16.msra.mxu0 0
    %1246 = vmatprep.subr.bf16.mxu0 0
    %1247 = vmatpush1.bf16.msra.mxu0 0
    %1248 = vmatprep.subr.bf16.mxu0 0
    %1249 = vmatpush1.bf16.msra.mxu0 0
    %1250 = vmatprep.subr.bf16.mxu0 0
    %1251 = vmatpush1.bf16.msra.mxu0 0
    %1252 = vmatprep.mubr.bf16.mxu0 0
    %1253 = vmatmul.mubr.bf16.gmra.mrb[0].mxu0 %v1215
    %v1254 = vpop.f32.mrb[0].mxu0
    %v1255 = vadd.f32 0.0, %v1254
    %v1256 = vpop.f32.mrb[0].mxu0
    %v1257 = vpop.f32.mrb[0].mxu0
    %v1258 = vadd.f32 0.0, %v1257
    %v1259 = vpop.f32.mrb[0].mxu0
    %1260 = vdwg.mxu0
    %v1261 = vadd.f32 %v67, %v1114
    %v1262 = vadd.f32 %v67, %v1117
    %v1263 = vadd.f32 %v1261, %v1161
    %v1264 = vadd.f32 %v1262, %v1164
    %v1265 = vadd.f32 %v1263, %v1208
    %v1266 = vadd.f32 %v1264, %v1211
    %v1267 = vadd.f32 %v1265, %v1255
    %v1268 = vadd.f32 %v1266, %v1258
    %v1269 = vpack.c.bf16 %v1268, %v1267
    %v1270 = vld [vmem:[#allocation5 + $0x4] sm:$0xf]
    %v1271 = vld [vmem:[#allocation5 + $0x10] sm:$0xf]
    %v1272 = vld [vmem:[#allocation5 + $0x1c] sm:$0xf]
    %v1273 = vld [vmem:[#allocation5 + $0x28] sm:$0xf]
    %v1274 = vld [vmem:[#allocation5 + $0x34] sm:$0xf]
    %v1275 = vld [vmem:[#allocation5 + $0x40] sm:$0xf]
    %v1276 = vld [vmem:[#allocation5 + $0x4c] sm:$0xf]
    %v1277 = vld [vmem:[#allocation5 + $0x58] sm:$0xf]
    %v1278 = vld [vmem:[#allocation5 + $0x64] sm:$0xf]
    %v1279 = vld [vmem:[#allocation5 + $0x70] sm:$0xf]
    %v1280 = vld [vmem:[#allocation5 + $0x7c] sm:$0xf]
    %v1281 = vld [vmem:[#allocation5 + $0x88] sm:$0xf]
    %v1282 = vld [vmem:[#allocation5 + $0x94] sm:$0xf]
    %v1283 = vld [vmem:[#allocation5 + $0xa0] sm:$0xf]
    %v1284 = vld [vmem:[#allocation5 + $0xac] sm:$0xf]
    %v1285 = vld [vmem:[#allocation5 + $0xb8] sm:$0xf]
    %v1302 = vunpack.c.l.b16 %v1270
    %v1303 = vunpack.c.l.b16 %v1271
    %v1304 = vunpack.c.l.b16 %v1272
    %v1305 = vunpack.c.l.b16 %v1273
    %v1306 = vunpack.c.l.b16 %v1274
    %v1307 = vunpack.c.l.b16 %v1275
    %v1308 = vunpack.c.l.b16 %v1276
    %v1309 = vunpack.c.l.b16 %v1277
    %v1310 = vunpack.c.l.b16 %v1278
    %v1311 = vunpack.c.l.b16 %v1279
    %v1312 = vunpack.c.l.b16 %v1280
    %v1313 = vunpack.c.l.b16 %v1281
    %v1314 = vunpack.c.l.b16 %v1282
    %v1315 = vunpack.c.l.b16 %v1283
    %v1316 = vunpack.c.l.b16 %v1284
    %v1317 = vunpack.c.l.b16 %v1285
    %v1318 = vpack.c.b16 %v1303, %v1302
    %v1319 = vpack.c.b16 %v1305, %v1304
    %v1320 = vpack.c.b16 %v1307, %v1306
    %v1321 = vpack.c.b16 %v1309, %v1308
    %v1322 = vpack.c.b16 %v1311, %v1310
    %v1323 = vpack.c.b16 %v1313, %v1312
    %v1324 = vpack.c.b16 %v1315, %v1314
    %v1325 = vpack.c.b16 %v1317, %v1316
    %1334 = vmatprep.subr.bf16.mxu0 0
    %1335 = vmatpush1.bf16.msra.mxu0 %v1318
    %1336 = vmatprep.subr.bf16.mxu0 0
    %1337 = vmatpush1.bf16.msra.mxu0 %v1319
    %1338 = vmatprep.subr.bf16.mxu0 0
    %1339 = vmatpush1.bf16.msra.mxu0 %v1320
    %1340 = vmatprep.subr.bf16.mxu0 0
    %1341 = vmatpush1.bf16.msra.mxu0 %v1321
    %1342 = vmatprep.subr.bf16.mxu0 0
    %1343 = vmatpush1.bf16.msra.mxu0 %v1322
    %1344 = vmatprep.subr.bf16.mxu0 0
    %1345 = vmatpush1.bf16.msra.mxu0 %v1323
    %1346 = vmatprep.subr.bf16.mxu0 0
    %1347 = vmatpush1.bf16.msra.mxu0 %v1324
    %1348 = vmatprep.subr.bf16.mxu0 0
    %1349 = vmatpush1.bf16.msra.mxu0 %v1325
    %1350 = vmatprep.subr.bf16.mxu0 0
    %1351 = vmatpush1.bf16.msra.mxu0 0
    %1352 = vmatprep.subr.bf16.mxu0 0
    %1353 = vmatpush1.bf16.msra.mxu0 0
    %1354 = vmatprep.subr.bf16.mxu0 0
    %1355 = vmatpush1.bf16.msra.mxu0 0
    %1356 = vmatprep.subr.bf16.mxu0 0
    %1357 = vmatpush1.bf16.msra.mxu0 0
    %1358 = vmatprep.subr.bf16.mxu0 0
    %1359 = vmatpush1.bf16.msra.mxu0 0
    %1360 = vmatprep.subr.bf16.mxu0 0
    %1361 = vmatpush1.bf16.msra.mxu0 0
    %1362 = vmatprep.subr.bf16.mxu0 0
    %1363 = vmatpush1.bf16.msra.mxu0 0
    %1364 = vmatprep.subr.bf16.mxu0 0
    %1365 = vmatpush1.bf16.msra.mxu0 0
    %1366 = vmatprep.mubr.bf16.mxu0 0
    %1367 = vmatmul.mubr.bf16.gmra.mrb[0].mxu0 %v1269
    %v1368 = vpop.f32.mrb[0].mxu0
    %v1369 = vadd.f32 0.0, %v1368
    %v1370 = vpop.f32.mrb[0].mxu0
    %v1371 = vpop.f32.mrb[0].mxu0
    %v1372 = vadd.f32 0.0, %v1371
    %v1373 = vpop.f32.mrb[0].mxu0
    %1374 = vdwg.mxu0
    %v1375 = vmax.f32 %v1369, 0.0
    %v1376 = vmax.f32 %v1372, 0.0
    %v1377 = vpack.c.bf16 %v1376, %v1375
    %v1378 = vld [vmem:[#allocation5 + $0x8] sm:$0xf]
    %v1379 = vld [vmem:[#allocation5 + $0x14] sm:$0xf]
    %v1380 = vld [vmem:[#allocation5 + $0x20] sm:$0xf]
    %v1381 = vld [vmem:[#allocation5 + $0x2c] sm:$0xf]
    %v1382 = vld [vmem:[#allocation5 + $0x38] sm:$0xf]
    %v1383 = vld [vmem:[#allocation5 + $0x44] sm:$0xf]
    %v1384 = vld [vmem:[#allocation5 + $0x50] sm:$0xf]
    %v1385 = vld [vmem:[#allocation5 + $0x5c] sm:$0xf]
    %v1386 = vld [vmem:[#allocation5 + $0x68] sm:$0xf]
    %v1387 = vld [vmem:[#allocation5 + $0x74] sm:$0xf]
    %v1388 = vld [vmem:[#allocation5 + $0x80] sm:$0xf]
    %v1389 = vld [vmem:[#allocation5 + $0x8c] sm:$0xf]
    %v1390 = vld [vmem:[#allocation5 + $0x98] sm:$0xf]
    %v1391 = vld [vmem:[#allocation5 + $0xa4] sm:$0xf]
    %v1392 = vld [vmem:[#allocation5 + $0xb0] sm:$0xf]
    %v1393 = vld [vmem:[#allocation5 + $0xbc] sm:$0xf]
    %v1410 = vunpack.c.l.b16 %v1378
    %v1411 = vunpack.c.l.b16 %v1379
    %v1412 = vunpack.c.l.b16 %v1380
    %v1413 = vunpack.c.l.b16 %v1381
    %v1414 = vunpack.c.l.b16 %v1382
    %v1415 = vunpack.c.l.b16 %v1383
    %v1416 = vunpack.c.l.b16 %v1384
    %v1417 = vunpack.c.l.b16 %v1385
    %v1418 = vunpack.c.l.b16 %v1386
    %v1419 = vunpack.c.l.b16 %v1387
    %v1420 = vunpack.c.l.b16 %v1388
    %v1421 = vunpack.c.l.b16 %v1389
    %v1422 = vunpack.c.l.b16 %v1390
    %v1423 = vunpack.c.l.b16 %v1391
    %v1424 = vunpack.c.l.b16 %v1392
    %v1425 = vunpack.c.l.b16 %v1393
    %v1426 = vpack.c.b16 %v1411, %v1410
    %v1427 = vpack.c.b16 %v1413, %v1412
    %v1428 = vpack.c.b16 %v1415, %v1414
    %v1429 = vpack.c.b16 %v1417, %v1416
    %v1430 = vpack.c.b16 %v1419, %v1418
    %v1431 = vpack.c.b16 %v1421, %v1420
    %v1432 = vpack.c.b16 %v1423, %v1422
    %v1433 = vpack.c.b16 %v1425, %v1424
    %1442 = vmatprep.subr.bf16.mxu0 0
    %1443 = vmatpush1.bf16.msra.mxu0 %v1426
    %1444 = vmatprep.subr.bf16.mxu0 0
    %1445 = vmatpush1.bf16.msra.mxu0 %v1427
    %1446 = vmatprep.subr.bf16.mxu0 0
    %1447 = vmatpush1.bf16.msra.mxu0 %v1428
    %1448 = vmatprep.subr.bf16.mxu0 0
    %1449 = vmatpush1.bf16.msra.mxu0 %v1429
    %1450 = vmatprep.subr.bf16.mxu0 0
    %1451 = vmatpush1.bf16.msra.mxu0 %v1430
    %1452 = vmatprep.subr.bf16.mxu0 0
    %1453 = vmatpush1.bf16.msra.mxu0 %v1431
    %1454 = vmatprep.subr.bf16.mxu0 0
    %1455 = vmatpush1.bf16.msra.mxu0 %v1432
    %1456 = vmatprep.subr.bf16.mxu0 0
    %1457 = vmatpush1.bf16.msra.mxu0 %v1433
    %1458 = vmatprep.subr.bf16.mxu0 0
    %1459 = vmatpush1.bf16.msra.mxu0 0
    %1460 = vmatprep.subr.bf16.mxu0 0
    %1461 = vmatpush1.bf16.msra.mxu0 0
    %1462 = vmatprep.subr.bf16.mxu0 0
    %1463 = vmatpush1.bf16.msra.mxu0 0
    %1464 = vmatprep.subr.bf16.mxu0 0
    %1465 = vmatpush1.bf16.msra.mxu0 0
    %1466 = vmatprep.subr.bf16.mxu0 0
    %1467 = vmatpush1.bf16.msra.mxu0 0
    %1468 = vmatprep.subr.bf16.mxu0 0
    %1469 = vmatpush1.bf16.msra.mxu0 0
    %1470 = vmatprep.subr.bf16.mxu0 0
    %1471 = vmatpush1.bf16.msra.mxu0 0
    %1472 = vmatprep.subr.bf16.mxu0 0
    %1473 = vmatpush1.bf16.msra.mxu0 0
    %1474 = vmatprep.mubr.bf16.mxu0 0
    %1475 = vmatmul.mubr.bf16.gmra.mrb[0].mxu0 %v1377
    %v1476 = vpop.f32.mrb[0].mxu0
    %v1477 = vadd.f32 0.0, %v1476
    %v1478 = vpop.f32.mrb[0].mxu0
    %v1479 = vpop.f32.mrb[0].mxu0
    %v1480 = vadd.f32 0.0, %v1479
    %v1481 = vpop.f32.mrb[0].mxu0
    %1482 = vdwg.mxu0
    %v1483 = vpack.c.bf16 %v1480, %v1477
    %v1484 = vld [vmem:[#allocation5] sm:$0xf]
    %v1485 = vld [vmem:[#allocation5 + $0xc] sm:$0xf]
    %v1486 = vld [vmem:[#allocation5 + $0x18] sm:$0xf]
    %v1487 = vld [vmem:[#allocation5 + $0x24] sm:$0xf]
    %v1488 = vld [vmem:[#allocation5 + $0x30] sm:$0xf]
    %v1489 = vld [vmem:[#allocation5 + $0x3c] sm:$0xf]
    %v1490 = vld [vmem:[#allocation5 + $0x48] sm:$0xf]
    %v1491 = vld [vmem:[#allocation5 + $0x54] sm:$0xf]
    %v1492 = vld [vmem:[#allocation5 + $0x60] sm:$0xf]
    %v1493 = vld [vmem:[#allocation5 + $0x6c] sm:$0xf]
    %v1494 = vld [vmem:[#allocation5 + $0x78] sm:$0xf]
    %v1495 = vld [vmem:[#allocation5 + $0x84] sm:$0xf]
    %v1496 = vld [vmem:[#allocation5 + $0x90] sm:$0xf]
    %v1497 = vld [vmem:[#allocation5 + $0x9c] sm:$0xf]
    %v1498 = vld [vmem:[#allocation5 + $0xa8] sm:$0xf]
    %v1499 = vld [vmem:[#allocation5 + $0xb4] sm:$0xf]
    %v1516 = vunpack.c.l.b16 %v1484
    %v1517 = vunpack.c.l.b16 %v1485
    %v1518 = vunpack.c.l.b16 %v1486
    %v1519 = vunpack.c.l.b16 %v1487
    %v1520 = vunpack.c.l.b16 %v1488
    %v1521 = vunpack.c.l.b16 %v1489
    %v1522 = vunpack.c.l.b16 %v1490
    %v1523 = vunpack.c.l.b16 %v1491
    %v1524 = vunpack.c.l.b16 %v1492
    %v1525 = vunpack.c.l.b16 %v1493
    %v1526 = vunpack.c.l.b16 %v1494
    %v1527 = vunpack.c.l.b16 %v1495
    %v1528 = vunpack.c.l.b16 %v1496
    %v1529 = vunpack.c.l.b16 %v1497
    %v1530 = vunpack.c.l.b16 %v1498
    %v1531 = vunpack.c.l.b16 %v1499
    %v1532 = vpack.c.b16 %v1517, %v1516
    %v1533 = vpack.c.b16 %v1519, %v1518
    %v1534 = vpack.c.b16 %v1521, %v1520
    %v1535 = vpack.c.b16 %v1523, %v1522
    %v1536 = vpack.c.b16 %v1525, %v1524
    %v1537 = vpack.c.b16 %v1527, %v1526
    %v1538 = vpack.c.b16 %v1529, %v1528
    %v1539 = vpack.c.b16 %v1531, %v1530
    %1548 = vmatprep.subr.bf16.mxu0 0
    %1549 = vmatpush1.bf16.msra.mxu0 %v1532
    %1550 = vmatprep.subr.bf16.mxu0 0
    %1551 = vmatpush1.bf16.msra.mxu0 %v1533
    %1552 = vmatprep.subr.bf16.mxu0 0
    %1553 = vmatpush1.bf16.msra.mxu0 %v1534
    %1554 = vmatprep.subr.bf16.mxu0 0
    %1555 = vmatpush1.bf16.msra.mxu0 %v1535
    %1556 = vmatprep.subr.bf16.mxu0 0
    %1557 = vmatpush1.bf16.msra.mxu0 %v1536
    %1558 = vmatprep.subr.bf16.mxu0 0
    %1559 = vmatpush1.bf16.msra.mxu0 %v1537
    %1560 = vmatprep.subr.bf16.mxu0 0
    %1561 = vmatpush1.bf16.msra.mxu0 %v1538
    %1562 = vmatprep.subr.bf16.mxu0 0
    %1563 = vmatpush1.bf16.msra.mxu0 %v1539
    %1564 = vmatprep.subr.bf16.mxu0 0
    %1565 = vmatpush1.bf16.msra.mxu0 0
    %1566 = vmatprep.subr.bf16.mxu0 0
    %1567 = vmatpush1.bf16.msra.mxu0 0
    %1568 = vmatprep.subr.bf16.mxu0 0
    %1569 = vmatpush1.bf16.msra.mxu0 0
    %1570 = vmatprep.subr.bf16.mxu0 0
    %1571 = vmatpush1.bf16.msra.mxu0 0
    %1572 = vmatprep.subr.bf16.mxu0 0
    %1573 = vmatpush1.bf16.msra.mxu0 0
    %1574 = vmatprep.subr.bf16.mxu0 0
    %1575 = vmatpush1.bf16.msra.mxu0 0
    %1576 = vmatprep.subr.bf16.mxu0 0
    %1577 = vmatpush1.bf16.msra.mxu0 0
    %1578 = vmatprep.subr.bf16.mxu0 0
    %1579 = vmatpush1.bf16.msra.mxu0 0
    %1580 = vmatprep.mubr.bf16.mxu0 0
    %1581 = vmatmul.mubr.bf16.gmra.mrb[0].mxu0 %v1483
    %v1582 = vpop.f32.mrb[0].mxu0
    %v1583 = vadd.f32 0.0, %v1582
    %v1584 = vpop.f32.mrb[0].mxu0
    %v1585 = vpop.f32.mrb[0].mxu0
    %v1586 = vadd.f32 0.0, %v1585
    %v1587 = vpop.f32.mrb[0].mxu0
    %1588 = vdwg.mxu0
    %v1589 = vpack.c.bf16 %v1586, %v1583
    %1591 = vrot.lane.b32.xlu0 %v1589, 104
    %v1592 = vpop.permute.xlu0 %1591
    %1593 = vrot.lane.b32.xlu0 %v1589, 80
    %v1594 = vpop.permute.xlu0 %1593
    %1595 = vrot.lane.b32.xlu0 %v1589, 56
    %v1596 = vpop.permute.xlu0 %1595
    %v1597 = vunpack.c.l.b16 %v1589
    %v1598 = vunpack.c.h.b16 %v1589
    %v1599 = vunpack.c.l.b16 %v1592
    %v1600 = vunpack.c.h.b16 %v1592
    %v1601 = vunpack.c.l.b16 %v1594
    %v1602 = vunpack.c.h.b16 %v1594
    %v1603 = vunpack.c.l.b16 %v1596
    %v1604 = vunpack.c.h.b16 %v1596
    %v1605 = vpack.c.b16 %v1597, %v1597
    %v1606 = vpack.c.b16 %v1598, %v1598
    %v1607 = vpack.c.b16 %v1599, %v1599
    %v1608 = vpack.c.b16 %v1600, %v1600
    %v1609 = vpack.c.b16 %v1601, %v1601
    %v1610 = vpack.c.b16 %v1602, %v1602
    %v1611 = vpack.c.b16 %v1603, %v1603
    %v1612 = vpack.c.b16 %v1604, %v1604
    %1613 = vrot.lane.b32.xlu0 %v1605, 120
    %v1614 = vpop.permute.xlu0 %1613
    %v1616 = vsel %vm201, %v1605, 0
    %v1619 = vsel %vm201, %v1614, 0
    %1621 = vmatprep.subr.bf16.mxu0 0
    %1622 = vmatpush1.bf16.xpose.msra.mxu0 %v1619
    %1623 = vmatprep.subr.bf16.mxu0 0
    %1624 = vmatpush1.bf16.xpose.msra.mxu0 0
    %1625 = vmatprep.subr.bf16.mxu0 0
    %1626 = vmatpush1.bf16.xpose.msra.mxu0 0
    %1627 = vmatprep.subr.bf16.mxu0 0
    %1628 = vmatpush1.bf16.xpose.msra.mxu0 0
    %1629 = vmatprep.subr.bf16.mxu0 0
    %1630 = vmatpush1.bf16.xpose.msra.mxu0 0
    %1631 = vmatprep.subr.bf16.mxu0 0
    %1632 = vmatpush1.bf16.xpose.msra.mxu0 0
    %1633 = vmatprep.subr.bf16.mxu0 0
    %1634 = vmatpush1.bf16.xpose.msra.mxu0 0
    %1635 = vmatprep.subr.bf16.mxu0 0
    %1636 = vmatpush1.bf16.xpose.msra.mxu0 0
    %1637 = vmatprep.subr.bf16.mxu0 0
    %1638 = vmatpush1.bf16.xpose.msra.mxu0 0
    %1639 = vmatprep.subr.bf16.mxu0 0
    %1640 = vmatpush1.bf16.xpose.msra.mxu0 0
    %1641 = vmatprep.subr.bf16.mxu0 0
    %1642 = vmatpush1.bf16.xpose.msra.mxu0 0
    %1643 = vmatprep.subr.bf16.mxu0 0
    %1644 = vmatpush1.bf16.xpose.msra.mxu0 0
    %1645 = vmatprep.subr.bf16.mxu0 0
    %1646 = vmatpush1.bf16.xpose.msra.mxu0 0
    %1647 = vmatprep.subr.bf16.mxu0 0
    %1648 = vmatpush1.bf16.xpose.msra.mxu0 0
    %1649 = vmatprep.subr.bf16.mxu0 0
    %1650 = vmatpush1.bf16.xpose.msra.mxu0 0
    %1651 = vmatprep.subr.bf16.mxu0 0
    %1652 = vmatpush1.bf16.xpose.msra.mxu0 0
    %1653 = vmatprep.mubr.bf16.mxu0 0
    %1654 = vmatmul.mubr.bf16.gmra.mrb[0].mxu0 %v1616
    %v1655 = vpop.f32.mrb[0].mxu0
    %v1656 = vadd.f32 0.0, %v1655
    %v1657 = vpop.f32.mrb[0].mxu0
    %v1658 = vpop.f32.mrb[0].mxu0
    %v1659 = vpop.f32.mrb[0].mxu0
    %1660 = vdwg.mxu0
    %1661 = vrot.lane.b32.xlu0 %v1606, 120
    %v1662 = vpop.permute.xlu0 %1661
    %v1664 = vsel %vm201, %v1606, 0
    %v1667 = vsel %vm201, %v1662, 0
    %1669 = vmatprep.subr.bf16.mxu0 0
    %1670 = vmatpush1.bf16.xpose.msra.mxu0 %v1667
    %1671 = vmatprep.subr.bf16.mxu0 0
    %1672 = vmatpush1.bf16.xpose.msra.mxu0 0
    %1673 = vmatprep.subr.bf16.mxu0 0
    %1674 = vmatpush1.bf16.xpose.msra.mxu0 0
    %1675 = vmatprep.subr.bf16.mxu0 0
    %1676 = vmatpush1.bf16.xpose.msra.mxu0 0
    %1677 = vmatprep.subr.bf16.mxu0 0
    %1678 = vmatpush1.bf16.xpose.msra.mxu0 0
    %1679 = vmatprep.subr.bf16.mxu0 0
    %1680 = vmatpush1.bf16.xpose.msra.mxu0 0
    %1681 = vmatprep.subr.bf16.mxu0 0
    %1682 = vmatpush1.bf16.xpose.msra.mxu0 0
    %1683 = vmatprep.subr.bf16.mxu0 0
    %1684 = vmatpush1.bf16.xpose.msra.mxu0 0
    %1685 = vmatprep.subr.bf16.mxu0 0
    %1686 = vmatpush1.bf16.xpose.msra.mxu0 0
    %1687 = vmatprep.subr.bf16.mxu0 0
    %1688 = vmatpush1.bf16.xpose.msra.mxu0 0
    %1689 = vmatprep.subr.bf16.mxu0 0
    %1690 = vmatpush1.bf16.xpose.msra.mxu0 0
    %1691 = vmatprep.subr.bf16.mxu0 0
    %1692 = vmatpush1.bf16.xpose.msra.mxu0 0
    %1693 = vmatprep.subr.bf16.mxu0 0
    %1694 = vmatpush1.bf16.xpose.msra.mxu0 0
    %1695 = vmatprep.subr.bf16.mxu0 0
    %1696 = vmatpush1.bf16.xpose.msra.mxu0 0
    %1697 = vmatprep.subr.bf16.mxu0 0
    %1698 = vmatpush1.bf16.xpose.msra.mxu0 0
    %1699 = vmatprep.subr.bf16.mxu0 0
    %1700 = vmatpush1.bf16.xpose.msra.mxu0 0
    %1701 = vmatprep.mubr.bf16.mxu0 0
    %1702 = vmatmul.mubr.bf16.gmra.mrb[0].mxu0 %v1664
    %v1703 = vpop.f32.mrb[0].mxu0
    %v1704 = vadd.f32 0.0, %v1703
    %v1705 = vpop.f32.mrb[0].mxu0
    %v1706 = vpop.f32.mrb[0].mxu0
    %v1707 = vpop.f32.mrb[0].mxu0
    %1708 = vdwg.mxu0
    %1709 = vrot.lane.b32.xlu0 %v1607, 120
    %v1710 = vpop.permute.xlu0 %1709
    %v1712 = vsel %vm201, %v1607, 0
    %v1715 = vsel %vm201, %v1710, 0
    %1717 = vmatprep.subr.bf16.mxu0 0
    %1718 = vmatpush1.bf16.xpose.msra.mxu0 %v1715
    %1719 = vmatprep.subr.bf16.mxu0 0
    %1720 = vmatpush1.bf16.xpose.msra.mxu0 0
    %1721 = vmatprep.subr.bf16.mxu0 0
    %1722 = vmatpush1.bf16.xpose.msra.mxu0 0
    %1723 = vmatprep.subr.bf16.mxu0 0
    %1724 = vmatpush1.bf16.xpose.msra.mxu0 0
    %1725 = vmatprep.subr.bf16.mxu0 0
    %1726 = vmatpush1.bf16.xpose.msra.mxu0 0
    %1727 = vmatprep.subr.bf16.mxu0 0
    %1728 = vmatpush1.bf16.xpose.msra.mxu0 0
    %1729 = vmatprep.subr.bf16.mxu0 0
    %1730 = vmatpush1.bf16.xpose.msra.mxu0 0
    %1731 = vmatprep.subr.bf16.mxu0 0
    %1732 = vmatpush1.bf16.xpose.msra.mxu0 0
    %1733 = vmatprep.subr.bf16.mxu0 0
    %1734 = vmatpush1.bf16.xpose.msra.mxu0 0
    %1735 = vmatprep.subr.bf16.mxu0 0
    %1736 = vmatpush1.bf16.xpose.msra.mxu0 0
    %1737 = vmatprep.subr.bf16.mxu0 0
    %1738 = vmatpush1.bf16.xpose.msra.mxu0 0
    %1739 = vmatprep.subr.bf16.mxu0 0
    %1740 = vmatpush1.bf16.xpose.msra.mxu0 0
    %1741 = vmatprep.subr.bf16.mxu0 0
    %1742 = vmatpush1.bf16.xpose.msra.mxu0 0
    %1743 = vmatprep.subr.bf16.mxu0 0
    %1744 = vmatpush1.bf16.xpose.msra.mxu0 0
    %1745 = vmatprep.subr.bf16.mxu0 0
    %1746 = vmatpush1.bf16.xpose.msra.mxu0 0
    %1747 = vmatprep.subr.bf16.mxu0 0
    %1748 = vmatpush1.bf16.xpose.msra.mxu0 0
    %1749 = vmatprep.mubr.bf16.mxu0 0
    %1750 = vmatmul.mubr.bf16.gmra.mrb[0].mxu0 %v1712
    %v1751 = vpop.f32.mrb[0].mxu0
    %v1752 = vadd.f32 0.0, %v1751
    %v1753 = vpop.f32.mrb[0].mxu0
    %v1754 = vpop.f32.mrb[0].mxu0
    %v1755 = vpop.f32.mrb[0].mxu0
    %1756 = vdwg.mxu0
    %1757 = vrot.lane.b32.xlu0 %v1608, 120
    %v1758 = vpop.permute.xlu0 %1757
    %v1760 = vsel %vm201, %v1608, 0
    %v1763 = vsel %vm201, %v1758, 0
    %1765 = vmatprep.subr.bf16.mxu0 0
    %1766 = vmatpush1.bf16.xpose.msra.mxu0 %v1763
    %1767 = vmatprep.subr.bf16.mxu0 0
    %1768 = vmatpush1.bf16.xpose.msra.mxu0 0
    %1769 = vmatprep.subr.bf16.mxu0 0
    %1770 = vmatpush1.bf16.xpose.msra.mxu0 0
    %1771 = vmatprep.subr.bf16.mxu0 0
    %1772 = vmatpush1.bf16.xpose.msra.mxu0 0
    %1773 = vmatprep.subr.bf16.mxu0 0
    %1774 = vmatpush1.bf16.xpose.msra.mxu0 0
    %1775 = vmatprep.subr.bf16.mxu0 0
    %1776 = vmatpush1.bf16.xpose.msra.mxu0 0
    %1777 = vmatprep.subr.bf16.mxu0 0
    %1778 = vmatpush1.bf16.xpose.msra.mxu0 0
    %1779 = vmatprep.subr.bf16.mxu0 0
    %1780 = vmatpush1.bf16.xpose.msra.mxu0 0
    %1781 = vmatprep.subr.bf16.mxu0 0
    %1782 = vmatpush1.bf16.xpose.msra.mxu0 0
    %1783 = vmatprep.subr.bf16.mxu0 0
    %1784 = vmatpush1.bf16.xpose.msra.mxu0 0
    %1785 = vmatprep.subr.bf16.mxu0 0
    %1786 = vmatpush1.bf16.xpose.msra.mxu0 0
    %1787 = vmatprep.subr.bf16.mxu0 0
    %1788 = vmatpush1.bf16.xpose.msra.mxu0 0
    %1789 = vmatprep.subr.bf16.mxu0 0
    %1790 = vmatpush1.bf16.xpose.msra.mxu0 0
    %1791 = vmatprep.subr.bf16.mxu0 0
    %1792 = vmatpush1.bf16.xpose.msra.mxu0 0
    %1793 = vmatprep.subr.bf16.mxu0 0
    %1794 = vmatpush1.bf16.xpose.msra.mxu0 0
    %1795 = vmatprep.subr.bf16.mxu0 0
    %1796 = vmatpush1.bf16.xpose.msra.mxu0 0
    %1797 = vmatprep.mubr.bf16.mxu0 0
    %1798 = vmatmul.mubr.bf16.gmra.mrb[0].mxu0 %v1760
    %v1799 = vpop.f32.mrb[0].mxu0
    %v1800 = vadd.f32 0.0, %v1799
    %v1801 = vpop.f32.mrb[0].mxu0
    %v1802 = vpop.f32.mrb[0].mxu0
    %v1803 = vpop.f32.mrb[0].mxu0
    %1804 = vdwg.mxu0
    %1805 = vrot.lane.b32.xlu0 %v1609, 120
    %v1806 = vpop.permute.xlu0 %1805
    %v1808 = vsel %vm201, %v1609, 0
    %v1811 = vsel %vm201, %v1806, 0
    %1813 = vmatprep.subr.bf16.mxu0 0
    %1814 = vmatpush1.bf16.xpose.msra.mxu0 %v1811
    %1815 = vmatprep.subr.bf16.mxu0 0
    %1816 = vmatpush1.bf16.xpose.msra.mxu0 0
    %1817 = vmatprep.subr.bf16.mxu0 0
    %1818 = vmatpush1.bf16.xpose.msra.mxu0 0
    %1819 = vmatprep.subr.bf16.mxu0 0
    %1820 = vmatpush1.bf16.xpose.msra.mxu0 0
    %1821 = vmatprep.subr.bf16.mxu0 0
    %1822 = vmatpush1.bf16.xpose.msra.mxu0 0
    %1823 = vmatprep.subr.bf16.mxu0 0
    %1824 = vmatpush1.bf16.xpose.msra.mxu0 0
    %1825 = vmatprep.subr.bf16.mxu0 0
    %1826 = vmatpush1.bf16.xpose.msra.mxu0 0
    %1827 = vmatprep.subr.bf16.mxu0 0
    %1828 = vmatpush1.bf16.xpose.msra.mxu0 0
    %1829 = vmatprep.subr.bf16.mxu0 0
    %1830 = vmatpush1.bf16.xpose.msra.mxu0 0
    %1831 = vmatprep.subr.bf16.mxu0 0
    %1832 = vmatpush1.bf16.xpose.msra.mxu0 0
    %1833 = vmatprep.subr.bf16.mxu0 0
    %1834 = vmatpush1.bf16.xpose.msra.mxu0 0
    %1835 = vmatprep.subr.bf16.mxu0 0
    %1836 = vmatpush1.bf16.xpose.msra.mxu0 0
    %1837 = vmatprep.subr.bf16.mxu0 0
    %1838 = vmatpush1.bf16.xpose.msra.mxu0 0
    %1839 = vmatprep.subr.bf16.mxu0 0
    %1840 = vmatpush1.bf16.xpose.msra.mxu0 0
    %1841 = vmatprep.subr.bf16.mxu0 0
    %1842 = vmatpush1.bf16.xpose.msra.mxu0 0
    %1843 = vmatprep.subr.bf16.mxu0 0
    %1844 = vmatpush1.bf16.xpose.msra.mxu0 0
    %1845 = vmatprep.mubr.bf16.mxu0 0
    %1846 = vmatmul.mubr.bf16.gmra.mrb[0].mxu0 %v1808
    %v1847 = vpop.f32.mrb[0].mxu0
    %v1848 = vadd.f32 0.0, %v1847
    %v1849 = vpop.f32.mrb[0].mxu0
    %v1850 = vpop.f32.mrb[0].mxu0
    %v1851 = vpop.f32.mrb[0].mxu0
    %1852 = vdwg.mxu0
    %1853 = vrot.lane.b32.xlu0 %v1610, 120
    %v1854 = vpop.permute.xlu0 %1853
    %v1856 = vsel %vm201, %v1610, 0
    %v1859 = vsel %vm201, %v1854, 0
    %1861 = vmatprep.subr.bf16.mxu0 0
    %1862 = vmatpush1.bf16.xpose.msra.mxu0 %v1859
    %1863 = vmatprep.subr.bf16.mxu0 0
    %1864 = vmatpush1.bf16.xpose.msra.mxu0 0
    %1865 = vmatprep.subr.bf16.mxu0 0
    %1866 = vmatpush1.bf16.xpose.msra.mxu0 0
    %1867 = vmatprep.subr.bf16.mxu0 0
    %1868 = vmatpush1.bf16.xpose.msra.mxu0 0
    %1869 = vmatprep.subr.bf16.mxu0 0
    %1870 = vmatpush1.bf16.xpose.msra.mxu0 0
    %1871 = vmatprep.subr.bf16.mxu0 0
    %1872 = vmatpush1.bf16.xpose.msra.mxu0 0
    %1873 = vmatprep.subr.bf16.mxu0 0
    %1874 = vmatpush1.bf16.xpose.msra.mxu0 0
    %1875 = vmatprep.subr.bf16.mxu0 0
    %1876 = vmatpush1.bf16.xpose.msra.mxu0 0
    %1877 = vmatprep.subr.bf16.mxu0 0
    %1878 = vmatpush1.bf16.xpose.msra.mxu0 0
    %1879 = vmatprep.subr.bf16.mxu0 0
    %1880 = vmatpush1.bf16.xpose.msra.mxu0 0
    %1881 = vmatprep.subr.bf16.mxu0 0
    %1882 = vmatpush1.bf16.xpose.msra.mxu0 0
    %1883 = vmatprep.subr.bf16.mxu0 0
    %1884 = vmatpush1.bf16.xpose.msra.mxu0 0
    %1885 = vmatprep.subr.bf16.mxu0 0
    %1886 = vmatpush1.bf16.xpose.msra.mxu0 0
    %1887 = vmatprep.subr.bf16.mxu0 0
    %1888 = vmatpush1.bf16.xpose.msra.mxu0 0
    %1889 = vmatprep.subr.bf16.mxu0 0
    %1890 = vmatpush1.bf16.xpose.msra.mxu0 0
    %1891 = vmatprep.subr.bf16.mxu0 0
    %1892 = vmatpush1.bf16.xpose.msra.mxu0 0
    %1893 = vmatprep.mubr.bf16.mxu0 0
    %1894 = vmatmul.mubr.bf16.gmra.mrb[0].mxu0 %v1856
    %v1895 = vpop.f32.mrb[0].mxu0
    %v1896 = vadd.f32 0.0, %v1895
    %v1897 = vpop.f32.mrb[0].mxu0
    %v1898 = vpop.f32.mrb[0].mxu0
    %v1899 = vpop.f32.mrb[0].mxu0
    %1900 = vdwg.mxu0
    %1901 = vrot.lane.b32.xlu0 %v1611, 120
    %v1902 = vpop.permute.xlu0 %1901
    %v1904 = vsel %vm201, %v1611, 0
    %v1907 = vsel %vm201, %v1902, 0
    %1909 = vmatprep.subr.bf16.mxu0 0
    %1910 = vmatpush1.bf16.xpose.msra.mxu0 %v1907
    %1911 = vmatprep.subr.bf16.mxu0 0
    %1912 = vmatpush1.bf16.xpose.msra.mxu0 0
    %1913 = vmatprep.subr.bf16.mxu0 0
    %1914 = vmatpush1.bf16.xpose.msra.mxu0 0
    %1915 = vmatprep.subr.bf16.mxu0 0
    %1916 = vmatpush1.bf16.xpose.msra.mxu0 0
    %1917 = vmatprep.subr.bf16.mxu0 0
    %1918 = vmatpush1.bf16.xpose.msra.mxu0 0
    %1919 = vmatprep.subr.bf16.mxu0 0
    %1920 = vmatpush1.bf16.xpose.msra.mxu0 0
    %1921 = vmatprep.subr.bf16.mxu0 0
    %1922 = vmatpush1.bf16.xpose.msra.mxu0 0
    %1923 = vmatprep.subr.bf16.mxu0 0
    %1924 = vmatpush1.bf16.xpose.msra.mxu0 0
    %1925 = vmatprep.subr.bf16.mxu0 0
    %1926 = vmatpush1.bf16.xpose.msra.mxu0 0
    %1927 = vmatprep.subr.bf16.mxu0 0
    %1928 = vmatpush1.bf16.xpose.msra.mxu0 0
    %1929 = vmatprep.subr.bf16.mxu0 0
    %1930 = vmatpush1.bf16.xpose.msra.mxu0 0
    %1931 = vmatprep.subr.bf16.mxu0 0
    %1932 = vmatpush1.bf16.xpose.msra.mxu0 0
    %1933 = vmatprep.subr.bf16.mxu0 0
    %1934 = vmatpush1.bf16.xpose.msra.mxu0 0
    %1935 = vmatprep.subr.bf16.mxu0 0
    %1936 = vmatpush1.bf16.xpose.msra.mxu0 0
    %1937 = vmatprep.subr.bf16.mxu0 0
    %1938 = vmatpush1.bf16.xpose.msra.mxu0 0
    %1939 = vmatprep.subr.bf16.mxu0 0
    %1940 = vmatpush1.bf16.xpose.msra.mxu0 0
    %1941 = vmatprep.mubr.bf16.mxu0 0
    %1942 = vmatmul.mubr.bf16.gmra.mrb[0].mxu0 %v1904
    %v1943 = vpop.f32.mrb[0].mxu0
    %v1944 = vadd.f32 0.0, %v1943
    %v1945 = vpop.f32.mrb[0].mxu0
    %v1946 = vpop.f32.mrb[0].mxu0
    %v1947 = vpop.f32.mrb[0].mxu0
    %1948 = vdwg.mxu0
    %1949 = vrot.lane.b32.xlu0 %v1612, 120
    %v1950 = vpop.permute.xlu0 %1949
    %v1952 = vsel %vm201, %v1612, 0
    %v1955 = vsel %vm201, %v1950, 0
    %1957 = vmatprep.subr.bf16.mxu0 0
    %1958 = vmatpush1.bf16.xpose.msra.mxu0 %v1955
    %1959 = vmatprep.subr.bf16.mxu0 0
    %1960 = vmatpush1.bf16.xpose.msra.mxu0 0
    %1961 = vmatprep.subr.bf16.mxu0 0
    %1962 = vmatpush1.bf16.xpose.msra.mxu0 0
    %1963 = vmatprep.subr.bf16.mxu0 0
    %1964 = vmatpush1.bf16.xpose.msra.mxu0 0
    %1965 = vmatprep.subr.bf16.mxu0 0
    %1966 = vmatpush1.bf16.xpose.msra.mxu0 0
    %1967 = vmatprep.subr.bf16.mxu0 0
    %1968 = vmatpush1.bf16.xpose.msra.mxu0 0
    %1969 = vmatprep.subr.bf16.mxu0 0
    %1970 = vmatpush1.bf16.xpose.msra.mxu0 0
    %1971 = vmatprep.subr.bf16.mxu0 0
    %1972 = vmatpush1.bf16.xpose.msra.mxu0 0
    %1973 = vmatprep.subr.bf16.mxu0 0
    %1974 = vmatpush1.bf16.xpose.msra.mxu0 0
    %1975 = vmatprep.subr.bf16.mxu0 0
    %1976 = vmatpush1.bf16.xpose.msra.mxu0 0
    %1977 = vmatprep.subr.bf16.mxu0 0
    %1978 = vmatpush1.bf16.xpose.msra.mxu0 0
    %1979 = vmatprep.subr.bf16.mxu0 0
    %1980 = vmatpush1.bf16.xpose.msra.mxu0 0
    %1981 = vmatprep.subr.bf16.mxu0 0
    %1982 = vmatpush1.bf16.xpose.msra.mxu0 0
    %1983 = vmatprep.subr.bf16.mxu0 0
    %1984 = vmatpush1.bf16.xpose.msra.mxu0 0
    %1985 = vmatprep.subr.bf16.mxu0 0
    %1986 = vmatpush1.bf16.xpose.msra.mxu0 0
    %1987 = vmatprep.subr.bf16.mxu0 0
    %1988 = vmatpush1.bf16.xpose.msra.mxu0 0
    %1989 = vmatprep.mubr.bf16.mxu0 0
    %1990 = vmatmul.mubr.bf16.gmra.mrb[0].mxu0 %v1952
    %v1991 = vpop.f32.mrb[0].mxu0
    %v1992 = vadd.f32 0.0, %v1991
    %v1993 = vpop.f32.mrb[0].mxu0
    %v1994 = vpop.f32.mrb[0].mxu0
    %v1995 = vpop.f32.mrb[0].mxu0
    %1996 = vdwg.mxu0
    %v1997 = vsel %vm201, %v1656, -inf
    %1998 = vmax.xlane.f32.xlu0 %v1997
    %v1999 = vpop.xlane.xlu0 %1998
    %v2000 = vsel %vm201, %v1704, -inf
    %2001 = vmax.xlane.f32.xlu0 %v2000
    %v2002 = vpop.xlane.xlu0 %2001
    %v2003 = vsel %vm201, %v1752, -inf
    %2004 = vmax.xlane.f32.xlu0 %v2003
    %v2005 = vpop.xlane.xlu0 %2004
    %v2006 = vsel %vm201, %v1800, -inf
    %2007 = vmax.xlane.f32.xlu0 %v2006
    %v2008 = vpop.xlane.xlu0 %2007
    %v2009 = vsel %vm201, %v1848, -inf
    %2010 = vmax.xlane.f32.xlu0 %v2009
    %v2011 = vpop.xlane.xlu0 %2010
    %v2012 = vsel %vm201, %v1896, -inf
    %2013 = vmax.xlane.f32.xlu0 %v2012
    %v2014 = vpop.xlane.xlu0 %2013
    %v2015 = vsel %vm201, %v1944, -inf
    %2016 = vmax.xlane.f32.xlu0 %v2015
    %v2017 = vpop.xlane.xlu0 %2016
    %v2018 = vsel %vm201, %v1992, -inf
    %2019 = vmax.xlane.f32.xlu0 %v2018
    %v2020 = vpop.xlane.xlu0 %2019
    %v2021 = vsub.f32 %v1656, %v1999
    %v2022 = vsub.f32 %v1704, %v2002
    %v2023 = vsub.f32 %v1752, %v2005
    %v2024 = vsub.f32 %v1800, %v2008
    %v2025 = vsub.f32 %v1848, %v2011
    %v2026 = vsub.f32 %v1896, %v2014
    %v2027 = vsub.f32 %v1944, %v2017
    %v2028 = vsub.f32 %v1992, %v2020
    %v2029 = vmul.f32 %v2021, 1.442695
    %v2030 = vpow.pop %v2029
    %v2031 = vmul.f32 %v2022, 1.442695
    %v2032 = vpow.pop %v2031
    %v2033 = vmul.f32 %v2023, 1.442695
    %v2034 = vpow.pop %v2033
    %v2035 = vmul.f32 %v2024, 1.442695
    %v2036 = vpow.pop %v2035
    %v2037 = vmul.f32 %v2025, 1.442695
    %v2038 = vpow.pop %v2037
    %v2039 = vmul.f32 %v2026, 1.442695
    %v2040 = vpow.pop %v2039
    %v2041 = vmul.f32 %v2027, 1.442695
    %v2042 = vpow.pop %v2041
    %v2043 = vmul.f32 %v2028, 1.442695
    %v2044 = vpow.pop %v2043
    %v2045 = vsel %vm201, %v2030, 0.0
    %2046 = vadd.xlane.f32.xlu0 %v2045
    %v2047 = vpop.xlane.xlu0 %2046
    %v2048 = vsel %vm201, %v2032, 0.0
    %2049 = vadd.xlane.f32.xlu0 %v2048
    %v2050 = vpop.xlane.xlu0 %2049
    %v2051 = vsel %vm201, %v2034, 0.0
    %2052 = vadd.xlane.f32.xlu0 %v2051
    %v2053 = vpop.xlane.xlu0 %2052
    %v2054 = vsel %vm201, %v2036, 0.0
    %2055 = vadd.xlane.f32.xlu0 %v2054
    %v2056 = vpop.xlane.xlu0 %2055
    %v2057 = vsel %vm201, %v2038, 0.0
    %2058 = vadd.xlane.f32.xlu0 %v2057
    %v2059 = vpop.xlane.xlu0 %2058
    %v2060 = vsel %vm201, %v2040, 0.0
    %2061 = vadd.xlane.f32.xlu0 %v2060
    %v2062 = vpop.xlane.xlu0 %2061
    %v2063 = vsel %vm201, %v2042, 0.0
    %2064 = vadd.xlane.f32.xlu0 %v2063
    %v2065 = vpop.xlane.xlu0 %2064
    %v2066 = vsel %vm201, %v2044, 0.0
    %2067 = vadd.xlane.f32.xlu0 %v2066
    %v2068 = vpop.xlane.xlu0 %2067
    %v2069 = vrcp.pop %v2047
    %v2070 = vrcp.pop %v2050
    %v2071 = vrcp.pop %v2053
    %v2072 = vrcp.pop %v2056
    %v2073 = vrcp.pop %v2059
    %v2074 = vrcp.pop %v2062
    %v2075 = vrcp.pop %v2065
    %v2076 = vrcp.pop %v2068
    %v2077 = vmul.f32 %v2030, %v2069
    %v2078 = vmul.f32 %v2032, %v2070
    %v2079 = vmul.f32 %v2034, %v2071
    %v2080 = vmul.f32 %v2036, %v2072
    %v2081 = vmul.f32 %v2038, %v2073
    %v2082 = vmul.f32 %v2040, %v2074
    %v2083 = vmul.f32 %v2042, %v2075
    %v2084 = vmul.f32 %v2044, %v2076
    %v2085 = vpack.c.bf16 %v2077, %v2077
    %v2086 = vpack.c.bf16 %v2078, %v2078
    %v2087 = vpack.c.bf16 %v2079, %v2079
    %v2088 = vpack.c.bf16 %v2080, %v2080
    %v2089 = vpack.c.bf16 %v2081, %v2081
    %v2090 = vpack.c.bf16 %v2082, %v2082
    %v2091 = vpack.c.bf16 %v2083, %v2083
    %v2092 = vpack.c.bf16 %v2084, %v2084
    %2093 = vrot.lane.b32.xlu0 %v1605, 112
    %v2094 = vpop.permute.xlu0 %2093
    %v2096 = vsel %vm201, %v2085, 0
    %v2099 = vsel %vm685, %v2094, 0
    %2101 = vmatprep.subr.bf16.mxu0 0
    %2102 = vmatpush1.bf16.msra.mxu0 %v2099
    %2103 = vmatprep.subr.bf16.mxu0 0
    %2104 = vmatpush1.bf16.msra.mxu0 0
    %2105 = vmatprep.subr.bf16.mxu0 0
    %2106 = vmatpush1.bf16.msra.mxu0 0
    %2107 = vmatprep.subr.bf16.mxu0 0
    %2108 = vmatpush1.bf16.msra.mxu0 0
    %2109 = vmatprep.subr.bf16.mxu0 0
    %2110 = vmatpush1.bf16.msra.mxu0 0
    %2111 = vmatprep.subr.bf16.mxu0 0
    %2112 = vmatpush1.bf16.msra.mxu0 0
    %2113 = vmatprep.subr.bf16.mxu0 0
    %2114 = vmatpush1.bf16.msra.mxu0 0
    %2115 = vmatprep.subr.bf16.mxu0 0
    %2116 = vmatpush1.bf16.msra.mxu0 0
    %2117 = vmatprep.subr.bf16.mxu0 0
    %2118 = vmatpush1.bf16.msra.mxu0 0
    %2119 = vmatprep.subr.bf16.mxu0 0
    %2120 = vmatpush1.bf16.msra.mxu0 0
    %2121 = vmatprep.subr.bf16.mxu0 0
    %2122 = vmatpush1.bf16.msra.mxu0 0
    %2123 = vmatprep.subr.bf16.mxu0 0
    %2124 = vmatpush1.bf16.msra.mxu0 0
    %2125 = vmatprep.subr.bf16.mxu0 0
    %2126 = vmatpush1.bf16.msra.mxu0 0
    %2127 = vmatprep.subr.bf16.mxu0 0
    %2128 = vmatpush1.bf16.msra.mxu0 0
    %2129 = vmatprep.subr.bf16.mxu0 0
    %2130 = vmatpush1.bf16.msra.mxu0 0
    %2131 = vmatprep.subr.bf16.mxu0 0
    %2132 = vmatpush1.bf16.msra.mxu0 0
    %2133 = vmatprep.mubr.bf16.mxu0 0
    %2134 = vmatmul.mubr.bf16.gmra.mrb[0].mxu0 %v2096
    %v2135 = vpop.f32.mrb[0].mxu0
    %v2136 = vadd.f32 0.0, %v2135
    %v2137 = vpop.f32.mrb[0].mxu0
    %v2138 = vpop.f32.mrb[0].mxu0
    %v2139 = vpop.f32.mrb[0].mxu0
    %2140 = vdwg.mxu0
    %2141 = vrot.lane.b32.xlu0 %v1606, 112
    %v2142 = vpop.permute.xlu0 %2141
    %v2144 = vsel %vm201, %v2086, 0
    %v2147 = vsel %vm685, %v2142, 0
    %2149 = vmatprep.subr.bf16.mxu0 0
    %2150 = vmatpush1.bf16.msra.mxu0 %v2147
    %2151 = vmatprep.subr.bf16.mxu0 0
    %2152 = vmatpush1.bf16.msra.mxu0 0
    %2153 = vmatprep.subr.bf16.mxu0 0
    %2154 = vmatpush1.bf16.msra.mxu0 0
    %2155 = vmatprep.subr.bf16.mxu0 0
    %2156 = vmatpush1.bf16.msra.mxu0 0
    %2157 = vmatprep.subr.bf16.mxu0 0
    %2158 = vmatpush1.bf16.msra.mxu0 0
    %2159 = vmatprep.subr.bf16.mxu0 0
    %2160 = vmatpush1.bf16.msra.mxu0 0
    %2161 = vmatprep.subr.bf16.mxu0 0
    %2162 = vmatpush1.bf16.msra.mxu0 0
    %2163 = vmatprep.subr.bf16.mxu0 0
    %2164 = vmatpush1.bf16.msra.mxu0 0
    %2165 = vmatprep.subr.bf16.mxu0 0
    %2166 = vmatpush1.bf16.msra.mxu0 0
    %2167 = vmatprep.subr.bf16.mxu0 0
    %2168 = vmatpush1.bf16.msra.mxu0 0
    %2169 = vmatprep.subr.bf16.mxu0 0
    %2170 = vmatpush1.bf16.msra.mxu0 0
    %2171 = vmatprep.subr.bf16.mxu0 0
    %2172 = vmatpush1.bf16.msra.mxu0 0
    %2173 = vmatprep.subr.bf16.mxu0 0
    %2174 = vmatpush1.bf16.msra.mxu0 0
    %2175 = vmatprep.subr.bf16.mxu0 0
    %2176 = vmatpush1.bf16.msra.mxu0 0
    %2177 = vmatprep.subr.bf16.mxu0 0
    %2178 = vmatpush1.bf16.msra.mxu0 0
    %2179 = vmatprep.subr.bf16.mxu0 0
    %2180 = vmatpush1.bf16.msra.mxu0 0
    %2181 = vmatprep.mubr.bf16.mxu0 0
    %2182 = vmatmul.mubr.bf16.gmra.mrb[0].mxu0 %v2144
    %v2183 = vpop.f32.mrb[0].mxu0
    %v2184 = vadd.f32 0.0, %v2183
    %v2185 = vpop.f32.mrb[0].mxu0
    %v2186 = vpop.f32.mrb[0].mxu0
    %v2187 = vpop.f32.mrb[0].mxu0
    %2188 = vdwg.mxu0
    %2189 = vrot.lane.b32.xlu0 %v1607, 112
    %v2190 = vpop.permute.xlu0 %2189
    %v2192 = vsel %vm201, %v2087, 0
    %v2195 = vsel %vm685, %v2190, 0
    %2197 = vmatprep.subr.bf16.mxu0 0
    %2198 = vmatpush1.bf16.msra.mxu0 %v2195
    %2199 = vmatprep.subr.bf16.mxu0 0
    %2200 = vmatpush1.bf16.msra.mxu0 0
    %2201 = vmatprep.subr.bf16.mxu0 0
    %2202 = vmatpush1.bf16.msra.mxu0 0
    %2203 = vmatprep.subr.bf16.mxu0 0
    %2204 = vmatpush1.bf16.msra.mxu0 0
    %2205 = vmatprep.subr.bf16.mxu0 0
    %2206 = vmatpush1.bf16.msra.mxu0 0
    %2207 = vmatprep.subr.bf16.mxu0 0
    %2208 = vmatpush1.bf16.msra.mxu0 0
    %2209 = vmatprep.subr.bf16.mxu0 0
    %2210 = vmatpush1.bf16.msra.mxu0 0
    %2211 = vmatprep.subr.bf16.mxu0 0
    %2212 = vmatpush1.bf16.msra.mxu0 0
    %2213 = vmatprep.subr.bf16.mxu0 0
    %2214 = vmatpush1.bf16.msra.mxu0 0
    %2215 = vmatprep.subr.bf16.mxu0 0
    %2216 = vmatpush1.bf16.msra.mxu0 0
    %2217 = vmatprep.subr.bf16.mxu0 0
    %2218 = vmatpush1.bf16.msra.mxu0 0
    %2219 = vmatprep.subr.bf16.mxu0 0
    %2220 = vmatpush1.bf16.msra.mxu0 0
    %2221 = vmatprep.subr.bf16.mxu0 0
    %2222 = vmatpush1.bf16.msra.mxu0 0
    %2223 = vmatprep.subr.bf16.mxu0 0
    %2224 = vmatpush1.bf16.msra.mxu0 0
    %2225 = vmatprep.subr.bf16.mxu0 0
    %2226 = vmatpush1.bf16.msra.mxu0 0
    %2227 = vmatprep.subr.bf16.mxu0 0
    %2228 = vmatpush1.bf16.msra.mxu0 0
    %2229 = vmatprep.mubr.bf16.mxu0 0
    %2230 = vmatmul.mubr.bf16.gmra.mrb[0].mxu0 %v2192
    %v2231 = vpop.f32.mrb[0].mxu0
    %v2232 = vadd.f32 0.0, %v2231
    %v2233 = vpop.f32.mrb[0].mxu0
    %v2234 = vpop.f32.mrb[0].mxu0
    %v2235 = vpop.f32.mrb[0].mxu0
    %2236 = vdwg.mxu0
    %2237 = vrot.lane.b32.xlu0 %v1608, 112
    %v2238 = vpop.permute.xlu0 %2237
    %v2240 = vsel %vm201, %v2088, 0
    %v2243 = vsel %vm685, %v2238, 0
    %2245 = vmatprep.subr.bf16.mxu0 0
    %2246 = vmatpush1.bf16.msra.mxu0 %v2243
    %2247 = vmatprep.subr.bf16.mxu0 0
    %2248 = vmatpush1.bf16.msra.mxu0 0
    %2249 = vmatprep.subr.bf16.mxu0 0
    %2250 = vmatpush1.bf16.msra.mxu0 0
    %2251 = vmatprep.subr.bf16.mxu0 0
    %2252 = vmatpush1.bf16.msra.mxu0 0
    %2253 = vmatprep.subr.bf16.mxu0 0
    %2254 = vmatpush1.bf16.msra.mxu0 0
    %2255 = vmatprep.subr.bf16.mxu0 0
    %2256 = vmatpush1.bf16.msra.mxu0 0
    %2257 = vmatprep.subr.bf16.mxu0 0
    %2258 = vmatpush1.bf16.msra.mxu0 0
    %2259 = vmatprep.subr.bf16.mxu0 0
    %2260 = vmatpush1.bf16.msra.mxu0 0
    %2261 = vmatprep.subr.bf16.mxu0 0
    %2262 = vmatpush1.bf16.msra.mxu0 0
    %2263 = vmatprep.subr.bf16.mxu0 0
    %2264 = vmatpush1.bf16.msra.mxu0 0
    %2265 = vmatprep.subr.bf16.mxu0 0
    %2266 = vmatpush1.bf16.msra.mxu0 0
    %2267 = vmatprep.subr.bf16.mxu0 0
    %2268 = vmatpush1.bf16.msra.mxu0 0
    %2269 = vmatprep.subr.bf16.mxu0 0
    %2270 = vmatpush1.bf16.msra.mxu0 0
    %2271 = vmatprep.subr.bf16.mxu0 0
    %2272 = vmatpush1.bf16.msra.mxu0 0
    %2273 = vmatprep.subr.bf16.mxu0 0
    %2274 = vmatpush1.bf16.msra.mxu0 0
    %2275 = vmatprep.subr.bf16.mxu0 0
    %2276 = vmatpush1.bf16.msra.mxu0 0
    %2277 = vmatprep.mubr.bf16.mxu0 0
    %2278 = vmatmul.mubr.bf16.gmra.mrb[0].mxu0 %v2240
    %v2279 = vpop.f32.mrb[0].mxu0
    %v2280 = vadd.f32 0.0, %v2279
    %v2281 = vpop.f32.mrb[0].mxu0
    %v2282 = vpop.f32.mrb[0].mxu0
    %v2283 = vpop.f32.mrb[0].mxu0
    %2284 = vdwg.mxu0
    %2285 = vrot.lane.b32.xlu0 %v1609, 112
    %v2286 = vpop.permute.xlu0 %2285
    %v2288 = vsel %vm201, %v2089, 0
    %v2291 = vsel %vm685, %v2286, 0
    %2293 = vmatprep.subr.bf16.mxu0 0
    %2294 = vmatpush1.bf16.msra.mxu0 %v2291
    %2295 = vmatprep.subr.bf16.mxu0 0
    %2296 = vmatpush1.bf16.msra.mxu0 0
    %2297 = vmatprep.subr.bf16.mxu0 0
    %2298 = vmatpush1.bf16.msra.mxu0 0
    %2299 = vmatprep.subr.bf16.mxu0 0
    %2300 = vmatpush1.bf16.msra.mxu0 0
    %2301 = vmatprep.subr.bf16.mxu0 0
    %2302 = vmatpush1.bf16.msra.mxu0 0
    %2303 = vmatprep.subr.bf16.mxu0 0
    %2304 = vmatpush1.bf16.msra.mxu0 0
    %2305 = vmatprep.subr.bf16.mxu0 0
    %2306 = vmatpush1.bf16.msra.mxu0 0
    %2307 = vmatprep.subr.bf16.mxu0 0
    %2308 = vmatpush1.bf16.msra.mxu0 0
    %2309 = vmatprep.subr.bf16.mxu0 0
    %2310 = vmatpush1.bf16.msra.mxu0 0
    %2311 = vmatprep.subr.bf16.mxu0 0
    %2312 = vmatpush1.bf16.msra.mxu0 0
    %2313 = vmatprep.subr.bf16.mxu0 0
    %2314 = vmatpush1.bf16.msra.mxu0 0
    %2315 = vmatprep.subr.bf16.mxu0 0
    %2316 = vmatpush1.bf16.msra.mxu0 0
    %2317 = vmatprep.subr.bf16.mxu0 0
    %2318 = vmatpush1.bf16.msra.mxu0 0
    %2319 = vmatprep.subr.bf16.mxu0 0
    %2320 = vmatpush1.bf16.msra.mxu0 0
    %2321 = vmatprep.subr.bf16.mxu0 0
    %2322 = vmatpush1.bf16.msra.mxu0 0
    %2323 = vmatprep.subr.bf16.mxu0 0
    %2324 = vmatpush1.bf16.msra.mxu0 0
    %2325 = vmatprep.mubr.bf16.mxu0 0
    %2326 = vmatmul.mubr.bf16.gmra.mrb[0].mxu0 %v2288
    %v2327 = vpop.f32.mrb[0].mxu0
    %v2328 = vadd.f32 0.0, %v2327
    %v2329 = vpop.f32.mrb[0].mxu0
    %v2330 = vpop.f32.mrb[0].mxu0
    %v2331 = vpop.f32.mrb[0].mxu0
    %2332 = vdwg.mxu0
    %2333 = vrot.lane.b32.xlu0 %v1610, 112
    %v2334 = vpop.permute.xlu0 %2333
    %v2336 = vsel %vm201, %v2090, 0
    %v2339 = vsel %vm685, %v2334, 0
    %2341 = vmatprep.subr.bf16.mxu0 0
    %2342 = vmatpush1.bf16.msra.mxu0 %v2339
    %2343 = vmatprep.subr.bf16.mxu0 0
    %2344 = vmatpush1.bf16.msra.mxu0 0
    %2345 = vmatprep.subr.bf16.mxu0 0
    %2346 = vmatpush1.bf16.msra.mxu0 0
    %2347 = vmatprep.subr.bf16.mxu0 0
    %2348 = vmatpush1.bf16.msra.mxu0 0
    %2349 = vmatprep.subr.bf16.mxu0 0
    %2350 = vmatpush1.bf16.msra.mxu0 0
    %2351 = vmatprep.subr.bf16.mxu0 0
    %2352 = vmatpush1.bf16.msra.mxu0 0
    %2353 = vmatprep.subr.bf16.mxu0 0
    %2354 = vmatpush1.bf16.msra.mxu0 0
    %2355 = vmatprep.subr.bf16.mxu0 0
    %2356 = vmatpush1.bf16.msra.mxu0 0
    %2357 = vmatprep.subr.bf16.mxu0 0
    %2358 = vmatpush1.bf16.msra.mxu0 0
    %2359 = vmatprep.subr.bf16.mxu0 0
    %2360 = vmatpush1.bf16.msra.mxu0 0
    %2361 = vmatprep.subr.bf16.mxu0 0
    %2362 = vmatpush1.bf16.msra.mxu0 0
    %2363 = vmatprep.subr.bf16.mxu0 0
    %2364 = vmatpush1.bf16.msra.mxu0 0
    %2365 = vmatprep.subr.bf16.mxu0 0
    %2366 = vmatpush1.bf16.msra.mxu0 0
    %2367 = vmatprep.subr.bf16.mxu0 0
    %2368 = vmatpush1.bf16.msra.mxu0 0
    %2369 = vmatprep.subr.bf16.mxu0 0
    %2370 = vmatpush1.bf16.msra.mxu0 0
    %2371 = vmatprep.subr.bf16.mxu0 0
    %2372 = vmatpush1.bf16.msra.mxu0 0
    %2373 = vmatprep.mubr.bf16.mxu0 0
    %2374 = vmatmul.mubr.bf16.gmra.mrb[0].mxu0 %v2336
    %v2375 = vpop.f32.mrb[0].mxu0
    %v2376 = vadd.f32 0.0, %v2375
    %v2377 = vpop.f32.mrb[0].mxu0
    %v2378 = vpop.f32.mrb[0].mxu0
    %v2379 = vpop.f32.mrb[0].mxu0
    %2380 = vdwg.mxu0
    %2381 = vrot.lane.b32.xlu0 %v1611, 112
    %v2382 = vpop.permute.xlu0 %2381
    %v2384 = vsel %vm201, %v2091, 0
    %v2387 = vsel %vm685, %v2382, 0
    %2389 = vmatprep.subr.bf16.mxu0 0
    %2390 = vmatpush1.bf16.msra.mxu0 %v2387
    %2391 = vmatprep.subr.bf16.mxu0 0
    %2392 = vmatpush1.bf16.msra.mxu0 0
    %2393 = vmatprep.subr.bf16.mxu0 0
    %2394 = vmatpush1.bf16.msra.mxu0 0
    %2395 = vmatprep.subr.bf16.mxu0 0
    %2396 = vmatpush1.bf16.msra.mxu0 0
    %2397 = vmatprep.subr.bf16.mxu0 0
    %2398 = vmatpush1.bf16.msra.mxu0 0
    %2399 = vmatprep.subr.bf16.mxu0 0
    %2400 = vmatpush1.bf16.msra.mxu0 0
    %2401 = vmatprep.subr.bf16.mxu0 0
    %2402 = vmatpush1.bf16.msra.mxu0 0
    %2403 = vmatprep.subr.bf16.mxu0 0
    %2404 = vmatpush1.bf16.msra.mxu0 0
    %2405 = vmatprep.subr.bf16.mxu0 0
    %2406 = vmatpush1.bf16.msra.mxu0 0
    %2407 = vmatprep.subr.bf16.mxu0 0
    %2408 = vmatpush1.bf16.msra.mxu0 0
    %2409 = vmatprep.subr.bf16.mxu0 0
    %2410 = vmatpush1.bf16.msra.mxu0 0
    %2411 = vmatprep.subr.bf16.mxu0 0
    %2412 = vmatpush1.bf16.msra.mxu0 0
    %2413 = vmatprep.subr.bf16.mxu0 0
    %2414 = vmatpush1.bf16.msra.mxu0 0
    %2415 = vmatprep.subr.bf16.mxu0 0
    %2416 = vmatpush1.bf16.msra.mxu0 0
    %2417 = vmatprep.subr.bf16.mxu0 0
    %2418 = vmatpush1.bf16.msra.mxu0 0
    %2419 = vmatprep.subr.bf16.mxu0 0
    %2420 = vmatpush1.bf16.msra.mxu0 0
    %2421 = vmatprep.mubr.bf16.mxu0 0
    %2422 = vmatmul.mubr.bf16.gmra.mrb[0].mxu0 %v2384
    %v2423 = vpop.f32.mrb[0].mxu0
    %v2424 = vadd.f32 0.0, %v2423
    %v2425 = vpop.f32.mrb[0].mxu0
    %v2426 = vpop.f32.mrb[0].mxu0
    %v2427 = vpop.f32.mrb[0].mxu0
    %2428 = vdwg.mxu0
    %2429 = vrot.lane.b32.xlu0 %v1612, 112
    %v2430 = vpop.permute.xlu0 %2429
    %v2432 = vsel %vm201, %v2092, 0
    %v2435 = vsel %vm685, %v2430, 0
    %2437 = vmatprep.subr.bf16.mxu0 0
    %2438 = vmatpush1.bf16.msra.mxu0 %v2435
    %2439 = vmatprep.subr.bf16.mxu0 0
    %2440 = vmatpush1.bf16.msra.mxu0 0
    %2441 = vmatprep.subr.bf16.mxu0 0
    %2442 = vmatpush1.bf16.msra.mxu0 0
    %2443 = vmatprep.subr.bf16.mxu0 0
    %2444 = vmatpush1.bf16.msra.mxu0 0
    %2445 = vmatprep.subr.bf16.mxu0 0
    %2446 = vmatpush1.bf16.msra.mxu0 0
    %2447 = vmatprep.subr.bf16.mxu0 0
    %2448 = vmatpush1.bf16.msra.mxu0 0
    %2449 = vmatprep.subr.bf16.mxu0 0
    %2450 = vmatpush1.bf16.msra.mxu0 0
    %2451 = vmatprep.subr.bf16.mxu0 0
    %2452 = vmatpush1.bf16.msra.mxu0 0
    %2453 = vmatprep.subr.bf16.mxu0 0
    %2454 = vmatpush1.bf16.msra.mxu0 0
    %2455 = vmatprep.subr.bf16.mxu0 0
    %2456 = vmatpush1.bf16.msra.mxu0 0
    %2457 = vmatprep.subr.bf16.mxu0 0
    %2458 = vmatpush1.bf16.msra.mxu0 0
    %2459 = vmatprep.subr.bf16.mxu0 0
    %2460 = vmatpush1.bf16.msra.mxu0 0
    %2461 = vmatprep.subr.bf16.mxu0 0
    %2462 = vmatpush1.bf16.msra.mxu0 0
    %2463 = vmatprep.subr.bf16.mxu0 0
    %2464 = vmatpush1.bf16.msra.mxu0 0
    %2465 = vmatprep.subr.bf16.mxu0 0
    %2466 = vmatpush1.bf16.msra.mxu0 0
    %2467 = vmatprep.subr.bf16.mxu0 0
    %2468 = vmatpush1.bf16.msra.mxu0 0
    %2469 = vmatprep.mubr.bf16.mxu0 0
    %2470 = vmatmul.mubr.bf16.gmra.mrb[0].mxu0 %v2432
    %v2471 = vpop.f32.mrb[0].mxu0
    %v2472 = vadd.f32 0.0, %v2471
    %v2473 = vpop.f32.mrb[0].mxu0
    %v2474 = vpop.f32.mrb[0].mxu0
    %v2475 = vpop.f32.mrb[0].mxu0
    %2476 = vdwg.mxu0
    %v2477 = vpack.c.bf16 %v2184, %v2136
    %v2478 = vpack.c.bf16 %v2280, %v2232
    %v2479 = vpack.c.bf16 %v2376, %v2328
    %v2480 = vpack.c.bf16 %v2472, %v2424
    %v2481 = vld [vmem:[#allocation7] sm:$0xf]
    %v2482 = vld [vmem:[#allocation7 + $0x4] sm:$0xf]
    %v2483 = vld [vmem:[#allocation7 + $0x8] sm:$0xf]
    %v2484 = vld [vmem:[#allocation7 + $0xc] sm:$0xf]
    %v2486 = vsel %vm201, %v2477, 0
    %v2489 = vsel %vm685, %v2481, 0
    %2491 = vmatprep.subr.bf16.mxu0 0
    %2492 = vmatpush1.bf16.msra.mxu0 %v2489
    %2493 = vmatprep.subr.bf16.mxu0 0
    %2494 = vmatpush1.bf16.msra.mxu0 0
    %2495 = vmatprep.subr.bf16.mxu0 0
    %2496 = vmatpush1.bf16.msra.mxu0 0
    %2497 = vmatprep.subr.bf16.mxu0 0
    %2498 = vmatpush1.bf16.msra.mxu0 0
    %2499 = vmatprep.subr.bf16.mxu0 0
    %2500 = vmatpush1.bf16.msra.mxu0 0
    %2501 = vmatprep.subr.bf16.mxu0 0
    %2502 = vmatpush1.bf16.msra.mxu0 0
    %2503 = vmatprep.subr.bf16.mxu0 0
    %2504 = vmatpush1.bf16.msra.mxu0 0
    %2505 = vmatprep.subr.bf16.mxu0 0
    %2506 = vmatpush1.bf16.msra.mxu0 0
    %2507 = vmatprep.subr.bf16.mxu0 0
    %2508 = vmatpush1.bf16.msra.mxu0 0
    %2509 = vmatprep.subr.bf16.mxu0 0
    %2510 = vmatpush1.bf16.msra.mxu0 0
    %2511 = vmatprep.subr.bf16.mxu0 0
    %2512 = vmatpush1.bf16.msra.mxu0 0
    %2513 = vmatprep.subr.bf16.mxu0 0
    %2514 = vmatpush1.bf16.msra.mxu0 0
    %2515 = vmatprep.subr.bf16.mxu0 0
    %2516 = vmatpush1.bf16.msra.mxu0 0
    %2517 = vmatprep.subr.bf16.mxu0 0
    %2518 = vmatpush1.bf16.msra.mxu0 0
    %2519 = vmatprep.subr.bf16.mxu0 0
    %2520 = vmatpush1.bf16.msra.mxu0 0
    %2521 = vmatprep.subr.bf16.mxu0 0
    %2522 = vmatpush1.bf16.msra.mxu0 0
    %2523 = vmatprep.mubr.bf16.mxu0 0
    %2524 = vmatmul.mubr.bf16.gmra.mrb[0].mxu0 %v2486
    %v2525 = vpop.f32.mrb[0].mxu0
    %v2526 = vadd.f32 0.0, %v2525
    %v2527 = vpop.f32.mrb[0].mxu0
    %v2528 = vpop.f32.mrb[0].mxu0
    %v2529 = vadd.f32 0.0, %v2528
    %v2530 = vpop.f32.mrb[0].mxu0
    %2531 = vdwg.mxu0
    %v2533 = vsel %vm201, %v2478, 0
    %v2536 = vsel %vm685, %v2482, 0
    %2538 = vmatprep.subr.bf16.mxu0 0
    %2539 = vmatpush1.bf16.msra.mxu0 %v2536
    %2540 = vmatprep.subr.bf16.mxu0 0
    %2541 = vmatpush1.bf16.msra.mxu0 0
    %2542 = vmatprep.subr.bf16.mxu0 0
    %2543 = vmatpush1.bf16.msra.mxu0 0
    %2544 = vmatprep.subr.bf16.mxu0 0
    %2545 = vmatpush1.bf16.msra.mxu0 0
    %2546 = vmatprep.subr.bf16.mxu0 0
    %2547 = vmatpush1.bf16.msra.mxu0 0
    %2548 = vmatprep.subr.bf16.mxu0 0
    %2549 = vmatpush1.bf16.msra.mxu0 0
    %2550 = vmatprep.subr.bf16.mxu0 0
    %2551 = vmatpush1.bf16.msra.mxu0 0
    %2552 = vmatprep.subr.bf16.mxu0 0
    %2553 = vmatpush1.bf16.msra.mxu0 0
    %2554 = vmatprep.subr.bf16.mxu0 0
    %2555 = vmatpush1.bf16.msra.mxu0 0
    %2556 = vmatprep.subr.bf16.mxu0 0
    %2557 = vmatpush1.bf16.msra.mxu0 0
    %2558 = vmatprep.subr.bf16.mxu0 0
    %2559 = vmatpush1.bf16.msra.mxu0 0
    %2560 = vmatprep.subr.bf16.mxu0 0
    %2561 = vmatpush1.bf16.msra.mxu0 0
    %2562 = vmatprep.subr.bf16.mxu0 0
    %2563 = vmatpush1.bf16.msra.mxu0 0
    %2564 = vmatprep.subr.bf16.mxu0 0
    %2565 = vmatpush1.bf16.msra.mxu0 0
    %2566 = vmatprep.subr.bf16.mxu0 0
    %2567 = vmatpush1.bf16.msra.mxu0 0
    %2568 = vmatprep.subr.bf16.mxu0 0
    %2569 = vmatpush1.bf16.msra.mxu0 0
    %2570 = vmatprep.mubr.bf16.mxu0 0
    %2571 = vmatmul.mubr.bf16.gmra.mrb[0].mxu0 %v2533
    %v2572 = vpop.f32.mrb[0].mxu0
    %v2573 = vadd.f32 0.0, %v2572
    %v2574 = vpop.f32.mrb[0].mxu0
    %v2575 = vpop.f32.mrb[0].mxu0
    %v2576 = vadd.f32 0.0, %v2575
    %v2577 = vpop.f32.mrb[0].mxu0
    %2578 = vdwg.mxu0
    %v2580 = vsel %vm201, %v2479, 0
    %v2583 = vsel %vm685, %v2483, 0
    %2585 = vmatprep.subr.bf16.mxu0 0
    %2586 = vmatpush1.bf16.msra.mxu0 %v2583
    %2587 = vmatprep.subr.bf16.mxu0 0
    %2588 = vmatpush1.bf16.msra.mxu0 0
    %2589 = vmatprep.subr.bf16.mxu0 0
    %2590 = vmatpush1.bf16.msra.mxu0 0
    %2591 = vmatprep.subr.bf16.mxu0 0
    %2592 = vmatpush1.bf16.msra.mxu0 0
    %2593 = vmatprep.subr.bf16.mxu0 0
    %2594 = vmatpush1.bf16.msra.mxu0 0
    %2595 = vmatprep.subr.bf16.mxu0 0
    %2596 = vmatpush1.bf16.msra.mxu0 0
    %2597 = vmatprep.subr.bf16.mxu0 0
    %2598 = vmatpush1.bf16.msra.mxu0 0
    %2599 = vmatprep.subr.bf16.mxu0 0
    %2600 = vmatpush1.bf16.msra.mxu0 0
    %2601 = vmatprep.subr.bf16.mxu0 0
    %2602 = vmatpush1.bf16.msra.mxu0 0
    %2603 = vmatprep.subr.bf16.mxu0 0
    %2604 = vmatpush1.bf16.msra.mxu0 0
    %2605 = vmatprep.subr.bf16.mxu0 0
    %2606 = vmatpush1.bf16.msra.mxu0 0
    %2607 = vmatprep.subr.bf16.mxu0 0
    %2608 = vmatpush1.bf16.msra.mxu0 0
    %2609 = vmatprep.subr.bf16.mxu0 0
    %2610 = vmatpush1.bf16.msra.mxu0 0
    %2611 = vmatprep.subr.bf16.mxu0 0
    %2612 = vmatpush1.bf16.msra.mxu0 0
    %2613 = vmatprep.subr.bf16.mxu0 0
    %2614 = vmatpush1.bf16.msra.mxu0 0
    %2615 = vmatprep.subr.bf16.mxu0 0
    %2616 = vmatpush1.bf16.msra.mxu0 0
    %2617 = vmatprep.mubr.bf16.mxu0 0
    %2618 = vmatmul.mubr.bf16.gmra.mrb[0].mxu0 %v2580
    %v2619 = vpop.f32.mrb[0].mxu0
    %v2620 = vadd.f32 0.0, %v2619
    %v2621 = vpop.f32.mrb[0].mxu0
    %v2622 = vpop.f32.mrb[0].mxu0
    %v2623 = vadd.f32 0.0, %v2622
    %v2624 = vpop.f32.mrb[0].mxu0
    %2625 = vdwg.mxu0
    %v2627 = vsel %vm201, %v2480, 0
    %v2630 = vsel %vm685, %v2484, 0
    %2632 = vmatprep.subr.bf16.mxu0 0
    %2633 = vmatpush1.bf16.msra.mxu0 %v2630
    %2634 = vmatprep.subr.bf16.mxu0 0
    %2635 = vmatpush1.bf16.msra.mxu0 0
    %2636 = vmatprep.subr.bf16.mxu0 0
    %2637 = vmatpush1.bf16.msra.mxu0 0
    %2638 = vmatprep.subr.bf16.mxu0 0
    %2639 = vmatpush1.bf16.msra.mxu0 0
    %2640 = vmatprep.subr.bf16.mxu0 0
    %2641 = vmatpush1.bf16.msra.mxu0 0
    %2642 = vmatprep.subr.bf16.mxu0 0
    %2643 = vmatpush1.bf16.msra.mxu0 0
    %2644 = vmatprep.subr.bf16.mxu0 0
    %2645 = vmatpush1.bf16.msra.mxu0 0
    %2646 = vmatprep.subr.bf16.mxu0 0
    %2647 = vmatpush1.bf16.msra.mxu0 0
    %2648 = vmatprep.subr.bf16.mxu0 0
    %2649 = vmatpush1.bf16.msra.mxu0 0
    %2650 = vmatprep.subr.bf16.mxu0 0
    %2651 = vmatpush1.bf16.msra.mxu0 0
    %2652 = vmatprep.subr.bf16.mxu0 0
    %2653 = vmatpush1.bf16.msra.mxu0 0
    %2654 = vmatprep.subr.bf16.mxu0 0
    %2655 = vmatpush1.bf16.msra.mxu0 0
    %2656 = vmatprep.subr.bf16.mxu0 0
    %2657 = vmatpush1.bf16.msra.mxu0 0
    %2658 = vmatprep.subr.bf16.mxu0 0
    %2659 = vmatpush1.bf16.msra.mxu0 0
    %2660 = vmatprep.subr.bf16.mxu0 0
    %2661 = vmatpush1.bf16.msra.mxu0 0
    %2662 = vmatprep.subr.bf16.mxu0 0
    %2663 = vmatpush1.bf16.msra.mxu0 0
    %2664 = vmatprep.mubr.bf16.mxu0 0
    %2665 = vmatmul.mubr.bf16.gmra.mrb[0].mxu0 %v2627
    %v2666 = vpop.f32.mrb[0].mxu0
    %v2667 = vadd.f32 0.0, %v2666
    %v2668 = vpop.f32.mrb[0].mxu0
    %v2669 = vpop.f32.mrb[0].mxu0
    %v2670 = vadd.f32 0.0, %v2669
    %v2671 = vpop.f32.mrb[0].mxu0
    %2672 = vdwg.mxu0
    %v2673 = vadd.f32 %v67, %v2526
    %v2674 = vadd.f32 %v67, %v2529
    %v2675 = vadd.f32 %v2673, %v2573
    %v2676 = vadd.f32 %v2674, %v2576
    %v2677 = vadd.f32 %v2675, %v2620
    %v2678 = vadd.f32 %v2676, %v2623
    %v2679 = vadd.f32 %v2677, %v2667
    %v2680 = vadd.f32 %v2678, %v2670
    %v2681 = vpack.c.bf16 %v2680, %v2679
    %v2682 = vld [vmem:[#allocation5 + $0x4] sm:$0xf]
    %v2683 = vld [vmem:[#allocation5 + $0x10] sm:$0xf]
    %v2684 = vld [vmem:[#allocation5 + $0x1c] sm:$0xf]
    %v2685 = vld [vmem:[#allocation5 + $0x28] sm:$0xf]
    %v2686 = vld [vmem:[#allocation5 + $0x34] sm:$0xf]
    %v2687 = vld [vmem:[#allocation5 + $0x40] sm:$0xf]
    %v2688 = vld [vmem:[#allocation5 + $0x4c] sm:$0xf]
    %v2689 = vld [vmem:[#allocation5 + $0x58] sm:$0xf]
    %v2690 = vld [vmem:[#allocation5 + $0x64] sm:$0xf]
    %v2691 = vld [vmem:[#allocation5 + $0x70] sm:$0xf]
    %v2692 = vld [vmem:[#allocation5 + $0x7c] sm:$0xf]
    %v2693 = vld [vmem:[#allocation5 + $0x88] sm:$0xf]
    %v2694 = vld [vmem:[#allocation5 + $0x94] sm:$0xf]
    %v2695 = vld [vmem:[#allocation5 + $0xa0] sm:$0xf]
    %v2696 = vld [vmem:[#allocation5 + $0xac] sm:$0xf]
    %v2697 = vld [vmem:[#allocation5 + $0xb8] sm:$0xf]
    %v2714 = vunpack.c.l.b16 %v2682
    %v2715 = vunpack.c.l.b16 %v2683
    %v2716 = vunpack.c.l.b16 %v2684
    %v2717 = vunpack.c.l.b16 %v2685
    %v2718 = vunpack.c.l.b16 %v2686
    %v2719 = vunpack.c.l.b16 %v2687
    %v2720 = vunpack.c.l.b16 %v2688
    %v2721 = vunpack.c.l.b16 %v2689
    %v2722 = vunpack.c.l.b16 %v2690
    %v2723 = vunpack.c.l.b16 %v2691
    %v2724 = vunpack.c.l.b16 %v2692
    %v2725 = vunpack.c.l.b16 %v2693
    %v2726 = vunpack.c.l.b16 %v2694
    %v2727 = vunpack.c.l.b16 %v2695
    %v2728 = vunpack.c.l.b16 %v2696
    %v2729 = vunpack.c.l.b16 %v2697
    %v2730 = vpack.c.b16 %v2715, %v2714
    %v2731 = vpack.c.b16 %v2717, %v2716
    %v2732 = vpack.c.b16 %v2719, %v2718
    %v2733 = vpack.c.b16 %v2721, %v2720
    %v2734 = vpack.c.b16 %v2723, %v2722
    %v2735 = vpack.c.b16 %v2725, %v2724
    %v2736 = vpack.c.b16 %v2727, %v2726
    %v2737 = vpack.c.b16 %v2729, %v2728
    %2746 = vmatprep.subr.bf16.mxu0 0
    %2747 = vmatpush1.bf16.msra.mxu0 %v2730
    %2748 = vmatprep.subr.bf16.mxu0 0
    %2749 = vmatpush1.bf16.msra.mxu0 %v2731
    %2750 = vmatprep.subr.bf16.mxu0 0
    %2751 = vmatpush1.bf16.msra.mxu0 %v2732
    %2752 = vmatprep.subr.bf16.mxu0 0
    %2753 = vmatpush1.bf16.msra.mxu0 %v2733
    %2754 = vmatprep.subr.bf16.mxu0 0
    %2755 = vmatpush1.bf16.msra.mxu0 %v2734
    %2756 = vmatprep.subr.bf16.mxu0 0
    %2757 = vmatpush1.bf16.msra.mxu0 %v2735
    %2758 = vmatprep.subr.bf16.mxu0 0
    %2759 = vmatpush1.bf16.msra.mxu0 %v2736
    %2760 = vmatprep.subr.bf16.mxu0 0
    %2761 = vmatpush1.bf16.msra.mxu0 %v2737
    %2762 = vmatprep.subr.bf16.mxu0 0
    %2763 = vmatpush1.bf16.msra.mxu0 0
    %2764 = vmatprep.subr.bf16.mxu0 0
    %2765 = vmatpush1.bf16.msra.mxu0 0
    %2766 = vmatprep.subr.bf16.mxu0 0
    %2767 = vmatpush1.bf16.msra.mxu0 0
    %2768 = vmatprep.subr.bf16.mxu0 0
    %2769 = vmatpush1.bf16.msra.mxu0 0
    %2770 = vmatprep.subr.bf16.mxu0 0
    %2771 = vmatpush1.bf16.msra.mxu0 0
    %2772 = vmatprep.subr.bf16.mxu0 0
    %2773 = vmatpush1.bf16.msra.mxu0 0
    %2774 = vmatprep.subr.bf16.mxu0 0
    %2775 = vmatpush1.bf16.msra.mxu0 0
    %2776 = vmatprep.subr.bf16.mxu0 0
    %2777 = vmatpush1.bf16.msra.mxu0 0
    %2778 = vmatprep.mubr.bf16.mxu0 0
    %2779 = vmatmul.mubr.bf16.gmra.mrb[0].mxu0 %v2681
    %v2780 = vpop.f32.mrb[0].mxu0
    %v2781 = vadd.f32 0.0, %v2780
    %v2782 = vpop.f32.mrb[0].mxu0
    %v2783 = vpop.f32.mrb[0].mxu0
    %v2784 = vadd.f32 0.0, %v2783
    %v2785 = vpop.f32.mrb[0].mxu0
    %2786 = vdwg.mxu0
    %v2787 = vmax.f32 %v2781, 0.0
    %v2788 = vmax.f32 %v2784, 0.0
    %v2789 = vpack.c.bf16 %v2788, %v2787
    %v2790 = vld [vmem:[#allocation5 + $0x8] sm:$0xf]
    %v2791 = vld [vmem:[#allocation5 + $0x14] sm:$0xf]
    %v2792 = vld [vmem:[#allocation5 + $0x20] sm:$0xf]
    %v2793 = vld [vmem:[#allocation5 + $0x2c] sm:$0xf]
    %v2794 = vld [vmem:[#allocation5 + $0x38] sm:$0xf]
    %v2795 = vld [vmem:[#allocation5 + $0x44] sm:$0xf]
    %v2796 = vld [vmem:[#allocation5 + $0x50] sm:$0xf]
    %v2797 = vld [vmem:[#allocation5 + $0x5c] sm:$0xf]
    %v2798 = vld [vmem:[#allocation5 + $0x68] sm:$0xf]
    %v2799 = vld [vmem:[#allocation5 + $0x74] sm:$0xf]
    %v2800 = vld [vmem:[#allocation5 + $0x80] sm:$0xf]
    %v2801 = vld [vmem:[#allocation5 + $0x8c] sm:$0xf]
    %v2802 = vld [vmem:[#allocation5 + $0x98] sm:$0xf]
    %v2803 = vld [vmem:[#allocation5 + $0xa4] sm:$0xf]
    %v2804 = vld [vmem:[#allocation5 + $0xb0] sm:$0xf]
    %v2805 = vld [vmem:[#allocation5 + $0xbc] sm:$0xf]
    %v2822 = vunpack.c.l.b16 %v2790
    %v2823 = vunpack.c.l.b16 %v2791
    %v2824 = vunpack.c.l.b16 %v2792
    %v2825 = vunpack.c.l.b16 %v2793
    %v2826 = vunpack.c.l.b16 %v2794
    %v2827 = vunpack.c.l.b16 %v2795
    %v2828 = vunpack.c.l.b16 %v2796
    %v2829 = vunpack.c.l.b16 %v2797
    %v2830 = vunpack.c.l.b16 %v2798
    %v2831 = vunpack.c.l.b16 %v2799
    %v2832 = vunpack.c.l.b16 %v2800
    %v2833 = vunpack.c.l.b16 %v2801
    %v2834 = vunpack.c.l.b16 %v2802
    %v2835 = vunpack.c.l.b16 %v2803
    %v2836 = vunpack.c.l.b16 %v2804
    %v2837 = vunpack.c.l.b16 %v2805
    %v2838 = vpack.c.b16 %v2823, %v2822
    %v2839 = vpack.c.b16 %v2825, %v2824
    %v2840 = vpack.c.b16 %v2827, %v2826
    %v2841 = vpack.c.b16 %v2829, %v2828
    %v2842 = vpack.c.b16 %v2831, %v2830
    %v2843 = vpack.c.b16 %v2833, %v2832
    %v2844 = vpack.c.b16 %v2835, %v2834
    %v2845 = vpack.c.b16 %v2837, %v2836
    %2854 = vmatprep.subr.bf16.mxu0 0
    %2855 = vmatpush1.bf16.msra.mxu0 %v2838
    %2856 = vmatprep.subr.bf16.mxu0 0
    %2857 = vmatpush1.bf16.msra.mxu0 %v2839
    %2858 = vmatprep.subr.bf16.mxu0 0
    %2859 = vmatpush1.bf16.msra.mxu0 %v2840
    %2860 = vmatprep.subr.bf16.mxu0 0
    %2861 = vmatpush1.bf16.msra.mxu0 %v2841
    %2862 = vmatprep.subr.bf16.mxu0 0
    %2863 = vmatpush1.bf16.msra.mxu0 %v2842
    %2864 = vmatprep.subr.bf16.mxu0 0
    %2865 = vmatpush1.bf16.msra.mxu0 %v2843
    %2866 = vmatprep.subr.bf16.mxu0 0
    %2867 = vmatpush1.bf16.msra.mxu0 %v2844
    %2868 = vmatprep.subr.bf16.mxu0 0
    %2869 = vmatpush1.bf16.msra.mxu0 %v2845
    %2870 = vmatprep.subr.bf16.mxu0 0
    %2871 = vmatpush1.bf16.msra.mxu0 0
    %2872 = vmatprep.subr.bf16.mxu0 0
    %2873 = vmatpush1.bf16.msra.mxu0 0
    %2874 = vmatprep.subr.bf16.mxu0 0
    %2875 = vmatpush1.bf16.msra.mxu0 0
    %2876 = vmatprep.subr.bf16.mxu0 0
    %2877 = vmatpush1.bf16.msra.mxu0 0
    %2878 = vmatprep.subr.bf16.mxu0 0
    %2879 = vmatpush1.bf16.msra.mxu0 0
    %2880 = vmatprep.subr.bf16.mxu0 0
    %2881 = vmatpush1.bf16.msra.mxu0 0
    %2882 = vmatprep.subr.bf16.mxu0 0
    %2883 = vmatpush1.bf16.msra.mxu0 0
    %2884 = vmatprep.subr.bf16.mxu0 0
    %2885 = vmatpush1.bf16.msra.mxu0 0
    %2886 = vmatprep.mubr.bf16.mxu0 0
    %2887 = vmatmul.mubr.bf16.gmra.mrb[0].mxu0 %v2789
    %v2888 = vpop.f32.mrb[0].mxu0
    %v2889 = vadd.f32 0.0, %v2888
    %v2890 = vpop.f32.mrb[0].mxu0
    %v2891 = vpop.f32.mrb[0].mxu0
    %v2892 = vadd.f32 0.0, %v2891
    %v2893 = vpop.f32.mrb[0].mxu0
    %2894 = vdwg.mxu0
    %v2895 = vpack.c.bf16 %v2892, %v2889
    %v2896 = vld [vmem:[#allocation5] sm:$0xf]
    %v2897 = vld [vmem:[#allocation5 + $0xc] sm:$0xf]
    %v2898 = vld [vmem:[#allocation5 + $0x18] sm:$0xf]
    %v2899 = vld [vmem:[#allocation5 + $0x24] sm:$0xf]
    %v2900 = vld [vmem:[#allocation5 + $0x30] sm:$0xf]
    %v2901 = vld [vmem:[#allocation5 + $0x3c] sm:$0xf]
    %v2902 = vld [vmem:[#allocation5 + $0x48] sm:$0xf]
    %v2903 = vld [vmem:[#allocation5 + $0x54] sm:$0xf]
    %v2904 = vld [vmem:[#allocation5 + $0x60] sm:$0xf]
    %v2905 = vld [vmem:[#allocation5 + $0x6c] sm:$0xf]
    %v2906 = vld [vmem:[#allocation5 + $0x78] sm:$0xf]
    %v2907 = vld [vmem:[#allocation5 + $0x84] sm:$0xf]
    %v2908 = vld [vmem:[#allocation5 + $0x90] sm:$0xf]
    %v2909 = vld [vmem:[#allocation5 + $0x9c] sm:$0xf]
    %v2910 = vld [vmem:[#allocation5 + $0xa8] sm:$0xf]
    %v2911 = vld [vmem:[#allocation5 + $0xb4] sm:$0xf]
    %v2928 = vunpack.c.l.b16 %v2896
    %v2929 = vunpack.c.l.b16 %v2897
    %v2930 = vunpack.c.l.b16 %v2898
    %v2931 = vunpack.c.l.b16 %v2899
    %v2932 = vunpack.c.l.b16 %v2900
    %v2933 = vunpack.c.l.b16 %v2901
    %v2934 = vunpack.c.l.b16 %v2902
    %v2935 = vunpack.c.l.b16 %v2903
    %v2936 = vunpack.c.l.b16 %v2904
    %v2937 = vunpack.c.l.b16 %v2905
    %v2938 = vunpack.c.l.b16 %v2906
    %v2939 = vunpack.c.l.b16 %v2907
    %v2940 = vunpack.c.l.b16 %v2908
    %v2941 = vunpack.c.l.b16 %v2909
    %v2942 = vunpack.c.l.b16 %v2910
    %v2943 = vunpack.c.l.b16 %v2911
    %v2944 = vpack.c.b16 %v2929, %v2928
    %v2945 = vpack.c.b16 %v2931, %v2930
    %v2946 = vpack.c.b16 %v2933, %v2932
    %v2947 = vpack.c.b16 %v2935, %v2934
    %v2948 = vpack.c.b16 %v2937, %v2936
    %v2949 = vpack.c.b16 %v2939, %v2938
    %v2950 = vpack.c.b16 %v2941, %v2940
    %v2951 = vpack.c.b16 %v2943, %v2942
    %2960 = vmatprep.subr.bf16.mxu0 0
    %2961 = vmatpush1.bf16.msra.mxu0 %v2944
    %2962 = vmatprep.subr.bf16.mxu0 0
    %2963 = vmatpush1.bf16.msra.mxu0 %v2945
    %2964 = vmatprep.subr.bf16.mxu0 0
    %2965 = vmatpush1.bf16.msra.mxu0 %v2946
    %2966 = vmatprep.subr.bf16.mxu0 0
    %2967 = vmatpush1.bf16.msra.mxu0 %v2947
    %2968 = vmatprep.subr.bf16.mxu0 0
    %2969 = vmatpush1.bf16.msra.mxu0 %v2948
    %2970 = vmatprep.subr.bf16.mxu0 0
    %2971 = vmatpush1.bf16.msra.mxu0 %v2949
    %2972 = vmatprep.subr.bf16.mxu0 0
    %2973 = vmatpush1.bf16.msra.mxu0 %v2950
    %2974 = vmatprep.subr.bf16.mxu0 0
    %2975 = vmatpush1.bf16.msra.mxu0 %v2951
    %2976 = vmatprep.subr.bf16.mxu0 0
    %2977 = vmatpush1.bf16.msra.mxu0 0
    %2978 = vmatprep.subr.bf16.mxu0 0
    %2979 = vmatpush1.bf16.msra.mxu0 0
    %2980 = vmatprep.subr.bf16.mxu0 0
    %2981 = vmatpush1.bf16.msra.mxu0 0
    %2982 = vmatprep.subr.bf16.mxu0 0
    %2983 = vmatpush1.bf16.msra.mxu0 0
    %2984 = vmatprep.subr.bf16.mxu0 0
    %2985 = vmatpush1.bf16.msra.mxu0 0
    %2986 = vmatprep.subr.bf16.mxu0 0
    %2987 = vmatpush1.bf16.msra.mxu0 0
    %2988 = vmatprep.subr.bf16.mxu0 0
    %2989 = vmatpush1.bf16.msra.mxu0 0
    %2990 = vmatprep.subr.bf16.mxu0 0
    %2991 = vmatpush1.bf16.msra.mxu0 0
    %2992 = vmatprep.mubr.bf16.mxu0 0
    %2993 = vmatmul.mubr.bf16.gmra.mrb[0].mxu0 %v2895
    %v2994 = vpop.f32.mrb[0].mxu0
    %v2995 = vadd.f32 0.0, %v2994
    %v2996 = vpop.f32.mrb[0].mxu0
    %v2997 = vpop.f32.mrb[0].mxu0
    %v2998 = vadd.f32 0.0, %v2997
    %v2999 = vpop.f32.mrb[0].mxu0
    %3000 = vdwg.mxu0
    %v3001 = vpack.c.bf16 %v2998, %v2995
    %3003 = vrot.lane.b32.xlu0 %v3001, 104
    %v3004 = vpop.permute.xlu0 %3003
    %3005 = vrot.lane.b32.xlu0 %v3001, 80
    %v3006 = vpop.permute.xlu0 %3005
    %3007 = vrot.lane.b32.xlu0 %v3001, 56
    %v3008 = vpop.permute.xlu0 %3007
    %v3009 = vunpack.c.l.b16 %v3001
    %v3010 = vunpack.c.h.b16 %v3001
    %v3011 = vunpack.c.l.b16 %v3004
    %v3012 = vunpack.c.h.b16 %v3004
    %v3013 = vunpack.c.l.b16 %v3006
    %v3014 = vunpack.c.h.b16 %v3006
    %v3015 = vunpack.c.l.b16 %v3008
    %v3016 = vunpack.c.h.b16 %v3008
    %v3017 = vpack.c.b16 %v3009, %v3009
    %v3018 = vpack.c.b16 %v3010, %v3010
    %v3019 = vpack.c.b16 %v3011, %v3011
    %v3020 = vpack.c.b16 %v3012, %v3012
    %v3021 = vpack.c.b16 %v3013, %v3013
    %v3022 = vpack.c.b16 %v3014, %v3014
    %v3023 = vpack.c.b16 %v3015, %v3015
    %v3024 = vpack.c.b16 %v3016, %v3016
    %3025 = vrot.lane.b32.xlu0 %v3017, 120
    %v3026 = vpop.permute.xlu0 %3025
    %v3028 = vsel %vm201, %v3017, 0
    %v3031 = vsel %vm201, %v3026, 0
    %3033 = vmatprep.subr.bf16.mxu0 0
    %3034 = vmatpush1.bf16.xpose.msra.mxu0 %v3031
    %3035 = vmatprep.subr.bf16.mxu0 0
    %3036 = vmatpush1.bf16.xpose.msra.mxu0 0
    %3037 = vmatprep.subr.bf16.mxu0 0
    %3038 = vmatpush1.bf16.xpose.msra.mxu0 0
    %3039 = vmatprep.subr.bf16.mxu0 0
    %3040 = vmatpush1.bf16.xpose.msra.mxu0 0
    %3041 = vmatprep.subr.bf16.mxu0 0
    %3042 = vmatpush1.bf16.xpose.msra.mxu0 0
    %3043 = vmatprep.subr.bf16.mxu0 0
    %3044 = vmatpush1.bf16.xpose.msra.mxu0 0
    %3045 = vmatprep.subr.bf16.mxu0 0
    %3046 = vmatpush1.bf16.xpose.msra.mxu0 0
    %3047 = vmatprep.subr.bf16.mxu0 0
    %3048 = vmatpush1.bf16.xpose.msra.mxu0 0
    %3049 = vmatprep.subr.bf16.mxu0 0
    %3050 = vmatpush1.bf16.xpose.msra.mxu0 0
    %3051 = vmatprep.subr.bf16.mxu0 0
    %3052 = vmatpush1.bf16.xpose.msra.mxu0 0
    %3053 = vmatprep.subr.bf16.mxu0 0
    %3054 = vmatpush1.bf16.xpose.msra.mxu0 0
    %3055 = vmatprep.subr.bf16.mxu0 0
    %3056 = vmatpush1.bf16.xpose.msra.mxu0 0
    %3057 = vmatprep.subr.bf16.mxu0 0
    %3058 = vmatpush1.bf16.xpose.msra.mxu0 0
    %3059 = vmatprep.subr.bf16.mxu0 0
    %3060 = vmatpush1.bf16.xpose.msra.mxu0 0
    %3061 = vmatprep.subr.bf16.mxu0 0
    %3062 = vmatpush1.bf16.xpose.msra.mxu0 0
    %3063 = vmatprep.subr.bf16.mxu0 0
    %3064 = vmatpush1.bf16.xpose.msra.mxu0 0
    %3065 = vmatprep.mubr.bf16.mxu0 0
    %3066 = vmatmul.mubr.bf16.gmra.mrb[0].mxu0 %v3028
    %v3067 = vpop.f32.mrb[0].mxu0
    %v3068 = vadd.f32 0.0, %v3067
    %v3069 = vpop.f32.mrb[0].mxu0
    %v3070 = vpop.f32.mrb[0].mxu0
    %v3071 = vpop.f32.mrb[0].mxu0
    %3072 = vdwg.mxu0
    %3073 = vrot.lane.b32.xlu0 %v3018, 120
    %v3074 = vpop.permute.xlu0 %3073
    %v3076 = vsel %vm201, %v3018, 0
    %v3079 = vsel %vm201, %v3074, 0
    %3081 = vmatprep.subr.bf16.mxu0 0
    %3082 = vmatpush1.bf16.xpose.msra.mxu0 %v3079
    %3083 = vmatprep.subr.bf16.mxu0 0
    %3084 = vmatpush1.bf16.xpose.msra.mxu0 0
    %3085 = vmatprep.subr.bf16.mxu0 0
    %3086 = vmatpush1.bf16.xpose.msra.mxu0 0
    %3087 = vmatprep.subr.bf16.mxu0 0
    %3088 = vmatpush1.bf16.xpose.msra.mxu0 0
    %3089 = vmatprep.subr.bf16.mxu0 0
    %3090 = vmatpush1.bf16.xpose.msra.mxu0 0
    %3091 = vmatprep.subr.bf16.mxu0 0
    %3092 = vmatpush1.bf16.xpose.msra.mxu0 0
    %3093 = vmatprep.subr.bf16.mxu0 0
    %3094 = vmatpush1.bf16.xpose.msra.mxu0 0
    %3095 = vmatprep.subr.bf16.mxu0 0
    %3096 = vmatpush1.bf16.xpose.msra.mxu0 0
    %3097 = vmatprep.subr.bf16.mxu0 0
    %3098 = vmatpush1.bf16.xpose.msra.mxu0 0
    %3099 = vmatprep.subr.bf16.mxu0 0
    %3100 = vmatpush1.bf16.xpose.msra.mxu0 0
    %3101 = vmatprep.subr.bf16.mxu0 0
    %3102 = vmatpush1.bf16.xpose.msra.mxu0 0
    %3103 = vmatprep.subr.bf16.mxu0 0
    %3104 = vmatpush1.bf16.xpose.msra.mxu0 0
    %3105 = vmatprep.subr.bf16.mxu0 0
    %3106 = vmatpush1.bf16.xpose.msra.mxu0 0
    %3107 = vmatprep.subr.bf16.mxu0 0
    %3108 = vmatpush1.bf16.xpose.msra.mxu0 0
    %3109 = vmatprep.subr.bf16.mxu0 0
    %3110 = vmatpush1.bf16.xpose.msra.mxu0 0
    %3111 = vmatprep.subr.bf16.mxu0 0
    %3112 = vmatpush1.bf16.xpose.msra.mxu0 0
    %3113 = vmatprep.mubr.bf16.mxu0 0
    %3114 = vmatmul.mubr.bf16.gmra.mrb[0].mxu0 %v3076
    %v3115 = vpop.f32.mrb[0].mxu0
    %v3116 = vadd.f32 0.0, %v3115
    %v3117 = vpop.f32.mrb[0].mxu0
    %v3118 = vpop.f32.mrb[0].mxu0
    %v3119 = vpop.f32.mrb[0].mxu0
    %3120 = vdwg.mxu0
    %3121 = vrot.lane.b32.xlu0 %v3019, 120
    %v3122 = vpop.permute.xlu0 %3121
    %v3124 = vsel %vm201, %v3019, 0
    %v3127 = vsel %vm201, %v3122, 0
    %3129 = vmatprep.subr.bf16.mxu0 0
    %3130 = vmatpush1.bf16.xpose.msra.mxu0 %v3127
    %3131 = vmatprep.subr.bf16.mxu0 0
    %3132 = vmatpush1.bf16.xpose.msra.mxu0 0
    %3133 = vmatprep.subr.bf16.mxu0 0
    %3134 = vmatpush1.bf16.xpose.msra.mxu0 0
    %3135 = vmatprep.subr.bf16.mxu0 0
    %3136 = vmatpush1.bf16.xpose.msra.mxu0 0
    %3137 = vmatprep.subr.bf16.mxu0 0
    %3138 = vmatpush1.bf16.xpose.msra.mxu0 0
    %3139 = vmatprep.subr.bf16.mxu0 0
    %3140 = vmatpush1.bf16.xpose.msra.mxu0 0
    %3141 = vmatprep.subr.bf16.mxu0 0
    %3142 = vmatpush1.bf16.xpose.msra.mxu0 0
    %3143 = vmatprep.subr.bf16.mxu0 0
    %3144 = vmatpush1.bf16.xpose.msra.mxu0 0
    %3145 = vmatprep.subr.bf16.mxu0 0
    %3146 = vmatpush1.bf16.xpose.msra.mxu0 0
    %3147 = vmatprep.subr.bf16.mxu0 0
    %3148 = vmatpush1.bf16.xpose.msra.mxu0 0
    %3149 = vmatprep.subr.bf16.mxu0 0
    %3150 = vmatpush1.bf16.xpose.msra.mxu0 0
    %3151 = vmatprep.subr.bf16.mxu0 0
    %3152 = vmatpush1.bf16.xpose.msra.mxu0 0
    %3153 = vmatprep.subr.bf16.mxu0 0
    %3154 = vmatpush1.bf16.xpose.msra.mxu0 0
    %3155 = vmatprep.subr.bf16.mxu0 0
    %3156 = vmatpush1.bf16.xpose.msra.mxu0 0
    %3157 = vmatprep.subr.bf16.mxu0 0
    %3158 = vmatpush1.bf16.xpose.msra.mxu0 0
    %3159 = vmatprep.subr.bf16.mxu0 0
    %3160 = vmatpush1.bf16.xpose.msra.mxu0 0
    %3161 = vmatprep.mubr.bf16.mxu0 0
    %3162 = vmatmul.mubr.bf16.gmra.mrb[0].mxu0 %v3124
    %v3163 = vpop.f32.mrb[0].mxu0
    %v3164 = vadd.f32 0.0, %v3163
    %v3165 = vpop.f32.mrb[0].mxu0
    %v3166 = vpop.f32.mrb[0].mxu0
    %v3167 = vpop.f32.mrb[0].mxu0
    %3168 = vdwg.mxu0
    %3169 = vrot.lane.b32.xlu0 %v3020, 120
    %v3170 = vpop.permute.xlu0 %3169
    %v3172 = vsel %vm201, %v3020, 0
    %v3175 = vsel %vm201, %v3170, 0
    %3177 = vmatprep.subr.bf16.mxu0 0
    %3178 = vmatpush1.bf16.xpose.msra.mxu0 %v3175
    %3179 = vmatprep.subr.bf16.mxu0 0
    %3180 = vmatpush1.bf16.xpose.msra.mxu0 0
    %3181 = vmatprep.subr.bf16.mxu0 0
    %3182 = vmatpush1.bf16.xpose.msra.mxu0 0
    %3183 = vmatprep.subr.bf16.mxu0 0
    %3184 = vmatpush1.bf16.xpose.msra.mxu0 0
    %3185 = vmatprep.subr.bf16.mxu0 0
    %3186 = vmatpush1.bf16.xpose.msra.mxu0 0
    %3187 = vmatprep.subr.bf16.mxu0 0
    %3188 = vmatpush1.bf16.xpose.msra.mxu0 0
    %3189 = vmatprep.subr.bf16.mxu0 0
    %3190 = vmatpush1.bf16.xpose.msra.mxu0 0
    %3191 = vmatprep.subr.bf16.mxu0 0
    %3192 = vmatpush1.bf16.xpose.msra.mxu0 0
    %3193 = vmatprep.subr.bf16.mxu0 0
    %3194 = vmatpush1.bf16.xpose.msra.mxu0 0
    %3195 = vmatprep.subr.bf16.mxu0 0
    %3196 = vmatpush1.bf16.xpose.msra.mxu0 0
    %3197 = vmatprep.subr.bf16.mxu0 0
    %3198 = vmatpush1.bf16.xpose.msra.mxu0 0
    %3199 = vmatprep.subr.bf16.mxu0 0
    %3200 = vmatpush1.bf16.xpose.msra.mxu0 0
    %3201 = vmatprep.subr.bf16.mxu0 0
    %3202 = vmatpush1.bf16.xpose.msra.mxu0 0
    %3203 = vmatprep.subr.bf16.mxu0 0
    %3204 = vmatpush1.bf16.xpose.msra.mxu0 0
    %3205 = vmatprep.subr.bf16.mxu0 0
    %3206 = vmatpush1.bf16.xpose.msra.mxu0 0
    %3207 = vmatprep.subr.bf16.mxu0 0
    %3208 = vmatpush1.bf16.xpose.msra.mxu0 0
    %3209 = vmatprep.mubr.bf16.mxu0 0
    %3210 = vmatmul.mubr.bf16.gmra.mrb[0].mxu0 %v3172
    %v3211 = vpop.f32.mrb[0].mxu0
    %v3212 = vadd.f32 0.0, %v3211
    %v3213 = vpop.f32.mrb[0].mxu0
    %v3214 = vpop.f32.mrb[0].mxu0
    %v3215 = vpop.f32.mrb[0].mxu0
    %3216 = vdwg.mxu0
    %3217 = vrot.lane.b32.xlu0 %v3021, 120
    %v3218 = vpop.permute.xlu0 %3217
    %v3220 = vsel %vm201, %v3021, 0
    %v3223 = vsel %vm201, %v3218, 0
    %3225 = vmatprep.subr.bf16.mxu0 0
    %3226 = vmatpush1.bf16.xpose.msra.mxu0 %v3223
    %3227 = vmatprep.subr.bf16.mxu0 0
    %3228 = vmatpush1.bf16.xpose.msra.mxu0 0
    %3229 = vmatprep.subr.bf16.mxu0 0
    %3230 = vmatpush1.bf16.xpose.msra.mxu0 0
    %3231 = vmatprep.subr.bf16.mxu0 0
    %3232 = vmatpush1.bf16.xpose.msra.mxu0 0
    %3233 = vmatprep.subr.bf16.mxu0 0
    %3234 = vmatpush1.bf16.xpose.msra.mxu0 0
    %3235 = vmatprep.subr.bf16.mxu0 0
    %3236 = vmatpush1.bf16.xpose.msra.mxu0 0
    %3237 = vmatprep.subr.bf16.mxu0 0
    %3238 = vmatpush1.bf16.xpose.msra.mxu0 0
    %3239 = vmatprep.subr.bf16.mxu0 0
    %3240 = vmatpush1.bf16.xpose.msra.mxu0 0
    %3241 = vmatprep.subr.bf16.mxu0 0
    %3242 = vmatpush1.bf16.xpose.msra.mxu0 0
    %3243 = vmatprep.subr.bf16.mxu0 0
    %3244 = vmatpush1.bf16.xpose.msra.mxu0 0
    %3245 = vmatprep.subr.bf16.mxu0 0
    %3246 = vmatpush1.bf16.xpose.msra.mxu0 0
    %3247 = vmatprep.subr.bf16.mxu0 0
    %3248 = vmatpush1.bf16.xpose.msra.mxu0 0
    %3249 = vmatprep.subr.bf16.mxu0 0
    %3250 = vmatpush1.bf16.xpose.msra.mxu0 0
    %3251 = vmatprep.subr.bf16.mxu0 0
    %3252 = vmatpush1.bf16.xpose.msra.mxu0 0
    %3253 = vmatprep.subr.bf16.mxu0 0
    %3254 = vmatpush1.bf16.xpose.msra.mxu0 0
    %3255 = vmatprep.subr.bf16.mxu0 0
    %3256 = vmatpush1.bf16.xpose.msra.mxu0 0
    %3257 = vmatprep.mubr.bf16.mxu0 0
    %3258 = vmatmul.mubr.bf16.gmra.mrb[0].mxu0 %v3220
    %v3259 = vpop.f32.mrb[0].mxu0
    %v3260 = vadd.f32 0.0, %v3259
    %v3261 = vpop.f32.mrb[0].mxu0
    %v3262 = vpop.f32.mrb[0].mxu0
    %v3263 = vpop.f32.mrb[0].mxu0
    %3264 = vdwg.mxu0
    %3265 = vrot.lane.b32.xlu0 %v3022, 120
    %v3266 = vpop.permute.xlu0 %3265
    %v3268 = vsel %vm201, %v3022, 0
    %v3271 = vsel %vm201, %v3266, 0
    %3273 = vmatprep.subr.bf16.mxu0 0
    %3274 = vmatpush1.bf16.xpose.msra.mxu0 %v3271
    %3275 = vmatprep.subr.bf16.mxu0 0
    %3276 = vmatpush1.bf16.xpose.msra.mxu0 0
    %3277 = vmatprep.subr.bf16.mxu0 0
    %3278 = vmatpush1.bf16.xpose.msra.mxu0 0
    %3279 = vmatprep.subr.bf16.mxu0 0
    %3280 = vmatpush1.bf16.xpose.msra.mxu0 0
    %3281 = vmatprep.subr.bf16.mxu0 0
    %3282 = vmatpush1.bf16.xpose.msra.mxu0 0
    %3283 = vmatprep.subr.bf16.mxu0 0
    %3284 = vmatpush1.bf16.xpose.msra.mxu0 0
    %3285 = vmatprep.subr.bf16.mxu0 0
    %3286 = vmatpush1.bf16.xpose.msra.mxu0 0
    %3287 = vmatprep.subr.bf16.mxu0 0
    %3288 = vmatpush1.bf16.xpose.msra.mxu0 0
    %3289 = vmatprep.subr.bf16.mxu0 0
    %3290 = vmatpush1.bf16.xpose.msra.mxu0 0
    %3291 = vmatprep.subr.bf16.mxu0 0
    %3292 = vmatpush1.bf16.xpose.msra.mxu0 0
    %3293 = vmatprep.subr.bf16.mxu0 0
    %3294 = vmatpush1.bf16.xpose.msra.mxu0 0
    %3295 = vmatprep.subr.bf16.mxu0 0
    %3296 = vmatpush1.bf16.xpose.msra.mxu0 0
    %3297 = vmatprep.subr.bf16.mxu0 0
    %3298 = vmatpush1.bf16.xpose.msra.mxu0 0
    %3299 = vmatprep.subr.bf16.mxu0 0
    %3300 = vmatpush1.bf16.xpose.msra.mxu0 0
    %3301 = vmatprep.subr.bf16.mxu0 0
    %3302 = vmatpush1.bf16.xpose.msra.mxu0 0
    %3303 = vmatprep.subr.bf16.mxu0 0
    %3304 = vmatpush1.bf16.xpose.msra.mxu0 0
    %3305 = vmatprep.mubr.bf16.mxu0 0
    %3306 = vmatmul.mubr.bf16.gmra.mrb[0].mxu0 %v3268
    %v3307 = vpop.f32.mrb[0].mxu0
    %v3308 = vadd.f32 0.0, %v3307
    %v3309 = vpop.f32.mrb[0].mxu0
    %v3310 = vpop.f32.mrb[0].mxu0
    %v3311 = vpop.f32.mrb[0].mxu0
    %3312 = vdwg.mxu0
    %3313 = vrot.lane.b32.xlu0 %v3023, 120
    %v3314 = vpop.permute.xlu0 %3313
    %v3316 = vsel %vm201, %v3023, 0
    %v3319 = vsel %vm201, %v3314, 0
    %3321 = vmatprep.subr.bf16.mxu0 0
    %3322 = vmatpush1.bf16.xpose.msra.mxu0 %v3319
    %3323 = vmatprep.subr.bf16.mxu0 0
    %3324 = vmatpush1.bf16.xpose.msra.mxu0 0
    %3325 = vmatprep.subr.bf16.mxu0 0
    %3326 = vmatpush1.bf16.xpose.msra.mxu0 0
    %3327 = vmatprep.subr.bf16.mxu0 0
    %3328 = vmatpush1.bf16.xpose.msra.mxu0 0
    %3329 = vmatprep.subr.bf16.mxu0 0
    %3330 = vmatpush1.bf16.xpose.msra.mxu0 0
    %3331 = vmatprep.subr.bf16.mxu0 0
    %3332 = vmatpush1.bf16.xpose.msra.mxu0 0
    %3333 = vmatprep.subr.bf16.mxu0 0
    %3334 = vmatpush1.bf16.xpose.msra.mxu0 0
    %3335 = vmatprep.subr.bf16.mxu0 0
    %3336 = vmatpush1.bf16.xpose.msra.mxu0 0
    %3337 = vmatprep.subr.bf16.mxu0 0
    %3338 = vmatpush1.bf16.xpose.msra.mxu0 0
    %3339 = vmatprep.subr.bf16.mxu0 0
    %3340 = vmatpush1.bf16.xpose.msra.mxu0 0
    %3341 = vmatprep.subr.bf16.mxu0 0
    %3342 = vmatpush1.bf16.xpose.msra.mxu0 0
    %3343 = vmatprep.subr.bf16.mxu0 0
    %3344 = vmatpush1.bf16.xpose.msra.mxu0 0
    %3345 = vmatprep.subr.bf16.mxu0 0
    %3346 = vmatpush1.bf16.xpose.msra.mxu0 0
    %3347 = vmatprep.subr.bf16.mxu0 0
    %3348 = vmatpush1.bf16.xpose.msra.mxu0 0
    %3349 = vmatprep.subr.bf16.mxu0 0
    %3350 = vmatpush1.bf16.xpose.msra.mxu0 0
    %3351 = vmatprep.subr.bf16.mxu0 0
    %3352 = vmatpush1.bf16.xpose.msra.mxu0 0
    %3353 = vmatprep.mubr.bf16.mxu0 0
    %3354 = vmatmul.mubr.bf16.gmra.mrb[0].mxu0 %v3316
    %v3355 = vpop.f32.mrb[0].mxu0
    %v3356 = vadd.f32 0.0, %v3355
    %v3357 = vpop.f32.mrb[0].mxu0
    %v3358 = vpop.f32.mrb[0].mxu0
    %v3359 = vpop.f32.mrb[0].mxu0
    %3360 = vdwg.mxu0
    %3361 = vrot.lane.b32.xlu0 %v3024, 120
    %v3362 = vpop.permute.xlu0 %3361
    %v3364 = vsel %vm201, %v3024, 0
    %v3367 = vsel %vm201, %v3362, 0
    %3369 = vmatprep.subr.bf16.mxu0 0
    %3370 = vmatpush1.bf16.xpose.msra.mxu0 %v3367
    %3371 = vmatprep.subr.bf16.mxu0 0
    %3372 = vmatpush1.bf16.xpose.msra.mxu0 0
    %3373 = vmatprep.subr.bf16.mxu0 0
    %3374 = vmatpush1.bf16.xpose.msra.mxu0 0
    %3375 = vmatprep.subr.bf16.mxu0 0
    %3376 = vmatpush1.bf16.xpose.msra.mxu0 0
    %3377 = vmatprep.subr.bf16.mxu0 0
    %3378 = vmatpush1.bf16.xpose.msra.mxu0 0
    %3379 = vmatprep.subr.bf16.mxu0 0
    %3380 = vmatpush1.bf16.xpose.msra.mxu0 0
    %3381 = vmatprep.subr.bf16.mxu0 0
    %3382 = vmatpush1.bf16.xpose.msra.mxu0 0
    %3383 = vmatprep.subr.bf16.mxu0 0
    %3384 = vmatpush1.bf16.xpose.msra.mxu0 0
    %3385 = vmatprep.subr.bf16.mxu0 0
    %3386 = vmatpush1.bf16.xpose.msra.mxu0 0
    %3387 = vmatprep.subr.bf16.mxu0 0
    %3388 = vmatpush1.bf16.xpose.msra.mxu0 0
    %3389 = vmatprep.subr.bf16.mxu0 0
    %3390 = vmatpush1.bf16.xpose.msra.mxu0 0
    %3391 = vmatprep.subr.bf16.mxu0 0
    %3392 = vmatpush1.bf16.xpose.msra.mxu0 0
    %3393 = vmatprep.subr.bf16.mxu0 0
    %3394 = vmatpush1.bf16.xpose.msra.mxu0 0
    %3395 = vmatprep.subr.bf16.mxu0 0
    %3396 = vmatpush1.bf16.xpose.msra.mxu0 0
    %3397 = vmatprep.subr.bf16.mxu0 0
    %3398 = vmatpush1.bf16.xpose.msra.mxu0 0
    %3399 = vmatprep.subr.bf16.mxu0 0
    %3400 = vmatpush1.bf16.xpose.msra.mxu0 0
    %3401 = vmatprep.mubr.bf16.mxu0 0
    %3402 = vmatmul.mubr.bf16.gmra.mrb[0].mxu0 %v3364
    %v3403 = vpop.f32.mrb[0].mxu0
    %v3404 = vadd.f32 0.0, %v3403
    %v3405 = vpop.f32.mrb[0].mxu0
    %v3406 = vpop.f32.mrb[0].mxu0
    %v3407 = vpop.f32.mrb[0].mxu0
    %3408 = vdwg.mxu0
    %v3409 = vsel %vm201, %v3068, -inf
    %3410 = vmax.xlane.f32.xlu0 %v3409
    %v3411 = vpop.xlane.xlu0 %3410
    %v3412 = vsel %vm201, %v3116, -inf
    %3413 = vmax.xlane.f32.xlu0 %v3412
    %v3414 = vpop.xlane.xlu0 %3413
    %v3415 = vsel %vm201, %v3164, -inf
    %3416 = vmax.xlane.f32.xlu0 %v3415
    %v3417 = vpop.xlane.xlu0 %3416
    %v3418 = vsel %vm201, %v3212, -inf
    %3419 = vmax.xlane.f32.xlu0 %v3418
    %v3420 = vpop.xlane.xlu0 %3419
    %v3421 = vsel %vm201, %v3260, -inf
    %3422 = vmax.xlane.f32.xlu0 %v3421
    %v3423 = vpop.xlane.xlu0 %3422
    %v3424 = vsel %vm201, %v3308, -inf
    %3425 = vmax.xlane.f32.xlu0 %v3424
    %v3426 = vpop.xlane.xlu0 %3425
    %v3427 = vsel %vm201, %v3356, -inf
    %3428 = vmax.xlane.f32.xlu0 %v3427
    %v3429 = vpop.xlane.xlu0 %3428
    %v3430 = vsel %vm201, %v3404, -inf
    %3431 = vmax.xlane.f32.xlu0 %v3430
    %v3432 = vpop.xlane.xlu0 %3431
    %v3433 = vsub.f32 %v3068, %v3411
    %v3434 = vsub.f32 %v3116, %v3414
    %v3435 = vsub.f32 %v3164, %v3417
    %v3436 = vsub.f32 %v3212, %v3420
    %v3437 = vsub.f32 %v3260, %v3423
    %v3438 = vsub.f32 %v3308, %v3426
    %v3439 = vsub.f32 %v3356, %v3429
    %v3440 = vsub.f32 %v3404, %v3432
    %v3441 = vmul.f32 %v3433, 1.442695
    %v3442 = vpow.pop %v3441
    %v3443 = vmul.f32 %v3434, 1.442695
    %v3444 = vpow.pop %v3443
    %v3445 = vmul.f32 %v3435, 1.442695
    %v3446 = vpow.pop %v3445
    %v3447 = vmul.f32 %v3436, 1.442695
    %v3448 = vpow.pop %v3447
    %v3449 = vmul.f32 %v3437, 1.442695
    %v3450 = vpow.pop %v3449
    %v3451 = vmul.f32 %v3438, 1.442695
    %v3452 = vpow.pop %v3451
    %v3453 = vmul.f32 %v3439, 1.442695
    %v3454 = vpow.pop %v3453
    %v3455 = vmul.f32 %v3440, 1.442695
    %v3456 = vpow.pop %v3455
    %v3457 = vsel %vm201, %v3442, 0.0
    %3458 = vadd.xlane.f32.xlu0 %v3457
    %v3459 = vpop.xlane.xlu0 %3458
    %v3460 = vsel %vm201, %v3444, 0.0
    %3461 = vadd.xlane.f32.xlu0 %v3460
    %v3462 = vpop.xlane.xlu0 %3461
    %v3463 = vsel %vm201, %v3446, 0.0
    %3464 = vadd.xlane.f32.xlu0 %v3463
    %v3465 = vpop.xlane.xlu0 %3464
    %v3466 = vsel %vm201, %v3448, 0.0
    %3467 = vadd.xlane.f32.xlu0 %v3466
    %v3468 = vpop.xlane.xlu0 %3467
    %v3469 = vsel %vm201, %v3450, 0.0
    %3470 = vadd.xlane.f32.xlu0 %v3469
    %v3471 = vpop.xlane.xlu0 %3470
    %v3472 = vsel %vm201, %v3452, 0.0
    %3473 = vadd.xlane.f32.xlu0 %v3472
    %v3474 = vpop.xlane.xlu0 %3473
    %v3475 = vsel %vm201, %v3454, 0.0
    %3476 = vadd.xlane.f32.xlu0 %v3475
    %v3477 = vpop.xlane.xlu0 %3476
    %v3478 = vsel %vm201, %v3456, 0.0
    %3479 = vadd.xlane.f32.xlu0 %v3478
    %v3480 = vpop.xlane.xlu0 %3479
    %v3481 = vrcp.pop %v3459
    %v3482 = vrcp.pop %v3462
    %v3483 = vrcp.pop %v3465
    %v3484 = vrcp.pop %v3468
    %v3485 = vrcp.pop %v3471
    %v3486 = vrcp.pop %v3474
    %v3487 = vrcp.pop %v3477
    %v3488 = vrcp.pop %v3480
    %v3489 = vmul.f32 %v3442, %v3481
    %v3490 = vmul.f32 %v3444, %v3482
    %v3491 = vmul.f32 %v3446, %v3483
    %v3492 = vmul.f32 %v3448, %v3484
    %v3493 = vmul.f32 %v3450, %v3485
    %v3494 = vmul.f32 %v3452, %v3486
    %v3495 = vmul.f32 %v3454, %v3487
    %v3496 = vmul.f32 %v3456, %v3488
    %v3497 = vpack.c.bf16 %v3489, %v3489
    %v3498 = vpack.c.bf16 %v3490, %v3490
    %v3499 = vpack.c.bf16 %v3491, %v3491
    %v3500 = vpack.c.bf16 %v3492, %v3492
    %v3501 = vpack.c.bf16 %v3493, %v3493
    %v3502 = vpack.c.bf16 %v3494, %v3494
    %v3503 = vpack.c.bf16 %v3495, %v3495
    %v3504 = vpack.c.bf16 %v3496, %v3496
    %3505 = vrot.lane.b32.xlu0 %v3017, 112
    %v3506 = vpop.permute.xlu0 %3505
    %v3508 = vsel %vm201, %v3497, 0
    %v3511 = vsel %vm685, %v3506, 0
    %3513 = vmatprep.subr.bf16.mxu0 0
    %3514 = vmatpush1.bf16.msra.mxu0 %v3511
    %3515 = vmatprep.subr.bf16.mxu0 0
    %3516 = vmatpush1.bf16.msra.mxu0 0
    %3517 = vmatprep.subr.bf16.mxu0 0
    %3518 = vmatpush1.bf16.msra.mxu0 0
    %3519 = vmatprep.subr.bf16.mxu0 0
    %3520 = vmatpush1.bf16.msra.mxu0 0
    %3521 = vmatprep.subr.bf16.mxu0 0
    %3522 = vmatpush1.bf16.msra.mxu0 0
    %3523 = vmatprep.subr.bf16.mxu0 0
    %3524 = vmatpush1.bf16.msra.mxu0 0
    %3525 = vmatprep.subr.bf16.mxu0 0
    %3526 = vmatpush1.bf16.msra.mxu0 0
    %3527 = vmatprep.subr.bf16.mxu0 0
    %3528 = vmatpush1.bf16.msra.mxu0 0
    %3529 = vmatprep.subr.bf16.mxu0 0
    %3530 = vmatpush1.bf16.msra.mxu0 0
    %3531 = vmatprep.subr.bf16.mxu0 0
    %3532 = vmatpush1.bf16.msra.mxu0 0
    %3533 = vmatprep.subr.bf16.mxu0 0
    %3534 = vmatpush1.bf16.msra.mxu0 0
    %3535 = vmatprep.subr.bf16.mxu0 0
    %3536 = vmatpush1.bf16.msra.mxu0 0
    %3537 = vmatprep.subr.bf16.mxu0 0
    %3538 = vmatpush1.bf16.msra.mxu0 0
    %3539 = vmatprep.subr.bf16.mxu0 0
    %3540 = vmatpush1.bf16.msra.mxu0 0
    %3541 = vmatprep.subr.bf16.mxu0 0
    %3542 = vmatpush1.bf16.msra.mxu0 0
    %3543 = vmatprep.subr.bf16.mxu0 0
    %3544 = vmatpush1.bf16.msra.mxu0 0
    %3545 = vmatprep.mubr.bf16.mxu0 0
    %3546 = vmatmul.mubr.bf16.gmra.mrb[0].mxu0 %v3508
    %v3547 = vpop.f32.mrb[0].mxu0
    %v3548 = vadd.f32 0.0, %v3547
    %v3549 = vpop.f32.mrb[0].mxu0
    %v3550 = vpop.f32.mrb[0].mxu0
    %v3551 = vpop.f32.mrb[0].mxu0
    %3552 = vdwg.mxu0
    %3553 = vrot.lane.b32.xlu0 %v3018, 112
    %v3554 = vpop.permute.xlu0 %3553
    %v3556 = vsel %vm201, %v3498, 0
    %v3559 = vsel %vm685, %v3554, 0
    %3561 = vmatprep.subr.bf16.mxu0 0
    %3562 = vmatpush1.bf16.msra.mxu0 %v3559
    %3563 = vmatprep.subr.bf16.mxu0 0
    %3564 = vmatpush1.bf16.msra.mxu0 0
    %3565 = vmatprep.subr.bf16.mxu0 0
    %3566 = vmatpush1.bf16.msra.mxu0 0
    %3567 = vmatprep.subr.bf16.mxu0 0
    %3568 = vmatpush1.bf16.msra.mxu0 0
    %3569 = vmatprep.subr.bf16.mxu0 0
    %3570 = vmatpush1.bf16.msra.mxu0 0
    %3571 = vmatprep.subr.bf16.mxu0 0
    %3572 = vmatpush1.bf16.msra.mxu0 0
    %3573 = vmatprep.subr.bf16.mxu0 0
    %3574 = vmatpush1.bf16.msra.mxu0 0
    %3575 = vmatprep.subr.bf16.mxu0 0
    %3576 = vmatpush1.bf16.msra.mxu0 0
    %3577 = vmatprep.subr.bf16.mxu0 0
    %3578 = vmatpush1.bf16.msra.mxu0 0
    %3579 = vmatprep.subr.bf16.mxu0 0
    %3580 = vmatpush1.bf16.msra.mxu0 0
    %3581 = vmatprep.subr.bf16.mxu0 0
    %3582 = vmatpush1.bf16.msra.mxu0 0
    %3583 = vmatprep.subr.bf16.mxu0 0
    %3584 = vmatpush1.bf16.msra.mxu0 0
    %3585 = vmatprep.subr.bf16.mxu0 0
    %3586 = vmatpush1.bf16.msra.mxu0 0
    %3587 = vmatprep.subr.bf16.mxu0 0
    %3588 = vmatpush1.bf16.msra.mxu0 0
    %3589 = vmatprep.subr.bf16.mxu0 0
    %3590 = vmatpush1.bf16.msra.mxu0 0
    %3591 = vmatprep.subr.bf16.mxu0 0
    %3592 = vmatpush1.bf16.msra.mxu0 0
    %3593 = vmatprep.mubr.bf16.mxu0 0
    %3594 = vmatmul.mubr.bf16.gmra.mrb[0].mxu0 %v3556
    %v3595 = vpop.f32.mrb[0].mxu0
    %v3596 = vadd.f32 0.0, %v3595
    %v3597 = vpop.f32.mrb[0].mxu0
    %v3598 = vpop.f32.mrb[0].mxu0
    %v3599 = vpop.f32.mrb[0].mxu0
    %3600 = vdwg.mxu0
    %3601 = vrot.lane.b32.xlu0 %v3019, 112
    %v3602 = vpop.permute.xlu0 %3601
    %v3604 = vsel %vm201, %v3499, 0
    %v3607 = vsel %vm685, %v3602, 0
    %3609 = vmatprep.subr.bf16.mxu0 0
    %3610 = vmatpush1.bf16.msra.mxu0 %v3607
    %3611 = vmatprep.subr.bf16.mxu0 0
    %3612 = vmatpush1.bf16.msra.mxu0 0
    %3613 = vmatprep.subr.bf16.mxu0 0
    %3614 = vmatpush1.bf16.msra.mxu0 0
    %3615 = vmatprep.subr.bf16.mxu0 0
    %3616 = vmatpush1.bf16.msra.mxu0 0
    %3617 = vmatprep.subr.bf16.mxu0 0
    %3618 = vmatpush1.bf16.msra.mxu0 0
    %3619 = vmatprep.subr.bf16.mxu0 0
    %3620 = vmatpush1.bf16.msra.mxu0 0
    %3621 = vmatprep.subr.bf16.mxu0 0
    %3622 = vmatpush1.bf16.msra.mxu0 0
    %3623 = vmatprep.subr.bf16.mxu0 0
    %3624 = vmatpush1.bf16.msra.mxu0 0
    %3625 = vmatprep.subr.bf16.mxu0 0
    %3626 = vmatpush1.bf16.msra.mxu0 0
    %3627 = vmatprep.subr.bf16.mxu0 0
    %3628 = vmatpush1.bf16.msra.mxu0 0
    %3629 = vmatprep.subr.bf16.mxu0 0
    %3630 = vmatpush1.bf16.msra.mxu0 0
    %3631 = vmatprep.subr.bf16.mxu0 0
    %3632 = vmatpush1.bf16.msra.mxu0 0
    %3633 = vmatprep.subr.bf16.mxu0 0
    %3634 = vmatpush1.bf16.msra.mxu0 0
    %3635 = vmatprep.subr.bf16.mxu0 0
    %3636 = vmatpush1.bf16.msra.mxu0 0
    %3637 = vmatprep.subr.bf16.mxu0 0
    %3638 = vmatpush1.bf16.msra.mxu0 0
    %3639 = vmatprep.subr.bf16.mxu0 0
    %3640 = vmatpush1.bf16.msra.mxu0 0
    %3641 = vmatprep.mubr.bf16.mxu0 0
    %3642 = vmatmul.mubr.bf16.gmra.mrb[0].mxu0 %v3604
    %v3643 = vpop.f32.mrb[0].mxu0
    %v3644 = vadd.f32 0.0, %v3643
    %v3645 = vpop.f32.mrb[0].mxu0
    %v3646 = vpop.f32.mrb[0].mxu0
    %v3647 = vpop.f32.mrb[0].mxu0
    %3648 = vdwg.mxu0
    %3649 = vrot.lane.b32.xlu0 %v3020, 112
    %v3650 = vpop.permute.xlu0 %3649
    %v3652 = vsel %vm201, %v3500, 0
    %v3655 = vsel %vm685, %v3650, 0
    %3657 = vmatprep.subr.bf16.mxu0 0
    %3658 = vmatpush1.bf16.msra.mxu0 %v3655
    %3659 = vmatprep.subr.bf16.mxu0 0
    %3660 = vmatpush1.bf16.msra.mxu0 0
    %3661 = vmatprep.subr.bf16.mxu0 0
    %3662 = vmatpush1.bf16.msra.mxu0 0
    %3663 = vmatprep.subr.bf16.mxu0 0
    %3664 = vmatpush1.bf16.msra.mxu0 0
    %3665 = vmatprep.subr.bf16.mxu0 0
    %3666 = vmatpush1.bf16.msra.mxu0 0
    %3667 = vmatprep.subr.bf16.mxu0 0
    %3668 = vmatpush1.bf16.msra.mxu0 0
    %3669 = vmatprep.subr.bf16.mxu0 0
    %3670 = vmatpush1.bf16.msra.mxu0 0
    %3671 = vmatprep.subr.bf16.mxu0 0
    %3672 = vmatpush1.bf16.msra.mxu0 0
    %3673 = vmatprep.subr.bf16.mxu0 0
    %3674 = vmatpush1.bf16.msra.mxu0 0
    %3675 = vmatprep.subr.bf16.mxu0 0
    %3676 = vmatpush1.bf16.msra.mxu0 0
    %3677 = vmatprep.subr.bf16.mxu0 0
    %3678 = vmatpush1.bf16.msra.mxu0 0
    %3679 = vmatprep.subr.bf16.mxu0 0
    %3680 = vmatpush1.bf16.msra.mxu0 0
    %3681 = vmatprep.subr.bf16.mxu0 0
    %3682 = vmatpush1.bf16.msra.mxu0 0
    %3683 = vmatprep.subr.bf16.mxu0 0
    %3684 = vmatpush1.bf16.msra.mxu0 0
    %3685 = vmatprep.subr.bf16.mxu0 0
    %3686 = vmatpush1.bf16.msra.mxu0 0
    %3687 = vmatprep.subr.bf16.mxu0 0
    %3688 = vmatpush1.bf16.msra.mxu0 0
    %3689 = vmatprep.mubr.bf16.mxu0 0
    %3690 = vmatmul.mubr.bf16.gmra.mrb[0].mxu0 %v3652
    %v3691 = vpop.f32.mrb[0].mxu0
    %v3692 = vadd.f32 0.0, %v3691
    %v3693 = vpop.f32.mrb[0].mxu0
    %v3694 = vpop.f32.mrb[0].mxu0
    %v3695 = vpop.f32.mrb[0].mxu0
    %3696 = vdwg.mxu0
    %3697 = vrot.lane.b32.xlu0 %v3021, 112
    %v3698 = vpop.permute.xlu0 %3697
    %v3700 = vsel %vm201, %v3501, 0
    %v3703 = vsel %vm685, %v3698, 0
    %3705 = vmatprep.subr.bf16.mxu0 0
    %3706 = vmatpush1.bf16.msra.mxu0 %v3703
    %3707 = vmatprep.subr.bf16.mxu0 0
    %3708 = vmatpush1.bf16.msra.mxu0 0
    %3709 = vmatprep.subr.bf16.mxu0 0
    %3710 = vmatpush1.bf16.msra.mxu0 0
    %3711 = vmatprep.subr.bf16.mxu0 0
    %3712 = vmatpush1.bf16.msra.mxu0 0
    %3713 = vmatprep.subr.bf16.mxu0 0
    %3714 = vmatpush1.bf16.msra.mxu0 0
    %3715 = vmatprep.subr.bf16.mxu0 0
    %3716 = vmatpush1.bf16.msra.mxu0 0
    %3717 = vmatprep.subr.bf16.mxu0 0
    %3718 = vmatpush1.bf16.msra.mxu0 0
    %3719 = vmatprep.subr.bf16.mxu0 0
    %3720 = vmatpush1.bf16.msra.mxu0 0
    %3721 = vmatprep.subr.bf16.mxu0 0
    %3722 = vmatpush1.bf16.msra.mxu0 0
    %3723 = vmatprep.subr.bf16.mxu0 0
    %3724 = vmatpush1.bf16.msra.mxu0 0
    %3725 = vmatprep.subr.bf16.mxu0 0
    %3726 = vmatpush1.bf16.msra.mxu0 0
    %3727 = vmatprep.subr.bf16.mxu0 0
    %3728 = vmatpush1.bf16.msra.mxu0 0
    %3729 = vmatprep.subr.bf16.mxu0 0
    %3730 = vmatpush1.bf16.msra.mxu0 0
    %3731 = vmatprep.subr.bf16.mxu0 0
    %3732 = vmatpush1.bf16.msra.mxu0 0
    %3733 = vmatprep.subr.bf16.mxu0 0
    %3734 = vmatpush1.bf16.msra.mxu0 0
    %3735 = vmatprep.subr.bf16.mxu0 0
    %3736 = vmatpush1.bf16.msra.mxu0 0
    %3737 = vmatprep.mubr.bf16.mxu0 0
    %3738 = vmatmul.mubr.bf16.gmra.mrb[0].mxu0 %v3700
    %v3739 = vpop.f32.mrb[0].mxu0
    %v3740 = vadd.f32 0.0, %v3739
    %v3741 = vpop.f32.mrb[0].mxu0
    %v3742 = vpop.f32.mrb[0].mxu0
    %v3743 = vpop.f32.mrb[0].mxu0
    %3744 = vdwg.mxu0
    %3745 = vrot.lane.b32.xlu0 %v3022, 112
    %v3746 = vpop.permute.xlu0 %3745
    %v3748 = vsel %vm201, %v3502, 0
    %v3751 = vsel %vm685, %v3746, 0
    %3753 = vmatprep.subr.bf16.mxu0 0
    %3754 = vmatpush1.bf16.msra.mxu0 %v3751
    %3755 = vmatprep.subr.bf16.mxu0 0
    %3756 = vmatpush1.bf16.msra.mxu0 0
    %3757 = vmatprep.subr.bf16.mxu0 0
    %3758 = vmatpush1.bf16.msra.mxu0 0
    %3759 = vmatprep.subr.bf16.mxu0 0
    %3760 = vmatpush1.bf16.msra.mxu0 0
    %3761 = vmatprep.subr.bf16.mxu0 0
    %3762 = vmatpush1.bf16.msra.mxu0 0
    %3763 = vmatprep.subr.bf16.mxu0 0
    %3764 = vmatpush1.bf16.msra.mxu0 0
    %3765 = vmatprep.subr.bf16.mxu0 0
    %3766 = vmatpush1.bf16.msra.mxu0 0
    %3767 = vmatprep.subr.bf16.mxu0 0
    %3768 = vmatpush1.bf16.msra.mxu0 0
    %3769 = vmatprep.subr.bf16.mxu0 0
    %3770 = vmatpush1.bf16.msra.mxu0 0
    %3771 = vmatprep.subr.bf16.mxu0 0
    %3772 = vmatpush1.bf16.msra.mxu0 0
    %3773 = vmatprep.subr.bf16.mxu0 0
    %3774 = vmatpush1.bf16.msra.mxu0 0
    %3775 = vmatprep.subr.bf16.mxu0 0
    %3776 = vmatpush1.bf16.msra.mxu0 0
    %3777 = vmatprep.subr.bf16.mxu0 0
    %3778 = vmatpush1.bf16.msra.mxu0 0
    %3779 = vmatprep.subr.bf16.mxu0 0
    %3780 = vmatpush1.bf16.msra.mxu0 0
    %3781 = vmatprep.subr.bf16.mxu0 0
    %3782 = vmatpush1.bf16.msra.mxu0 0
    %3783 = vmatprep.subr.bf16.mxu0 0
    %3784 = vmatpush1.bf16.msra.mxu0 0
    %3785 = vmatprep.mubr.bf16.mxu0 0
    %3786 = vmatmul.mubr.bf16.gmra.mrb[0].mxu0 %v3748
    %v3787 = vpop.f32.mrb[0].mxu0
    %v3788 = vadd.f32 0.0, %v3787
    %v3789 = vpop.f32.mrb[0].mxu0
    %v3790 = vpop.f32.mrb[0].mxu0
    %v3791 = vpop.f32.mrb[0].mxu0
    %3792 = vdwg.mxu0
    %3793 = vrot.lane.b32.xlu0 %v3023, 112
    %v3794 = vpop.permute.xlu0 %3793
    %v3796 = vsel %vm201, %v3503, 0
    %v3799 = vsel %vm685, %v3794, 0
    %3801 = vmatprep.subr.bf16.mxu0 0
    %3802 = vmatpush1.bf16.msra.mxu0 %v3799
    %3803 = vmatprep.subr.bf16.mxu0 0
    %3804 = vmatpush1.bf16.msra.mxu0 0
    %3805 = vmatprep.subr.bf16.mxu0 0
    %3806 = vmatpush1.bf16.msra.mxu0 0
    %3807 = vmatprep.subr.bf16.mxu0 0
    %3808 = vmatpush1.bf16.msra.mxu0 0
    %3809 = vmatprep.subr.bf16.mxu0 0
    %3810 = vmatpush1.bf16.msra.mxu0 0
    %3811 = vmatprep.subr.bf16.mxu0 0
    %3812 = vmatpush1.bf16.msra.mxu0 0
    %3813 = vmatprep.subr.bf16.mxu0 0
    %3814 = vmatpush1.bf16.msra.mxu0 0
    %3815 = vmatprep.subr.bf16.mxu0 0
    %3816 = vmatpush1.bf16.msra.mxu0 0
    %3817 = vmatprep.subr.bf16.mxu0 0
    %3818 = vmatpush1.bf16.msra.mxu0 0
    %3819 = vmatprep.subr.bf16.mxu0 0
    %3820 = vmatpush1.bf16.msra.mxu0 0
    %3821 = vmatprep.subr.bf16.mxu0 0
    %3822 = vmatpush1.bf16.msra.mxu0 0
    %3823 = vmatprep.subr.bf16.mxu0 0
    %3824 = vmatpush1.bf16.msra.mxu0 0
    %3825 = vmatprep.subr.bf16.mxu0 0
    %3826 = vmatpush1.bf16.msra.mxu0 0
    %3827 = vmatprep.subr.bf16.mxu0 0
    %3828 = vmatpush1.bf16.msra.mxu0 0
    %3829 = vmatprep.subr.bf16.mxu0 0
    %3830 = vmatpush1.bf16.msra.mxu0 0
    %3831 = vmatprep.subr.bf16.mxu0 0
    %3832 = vmatpush1.bf16.msra.mxu0 0
    %3833 = vmatprep.mubr.bf16.mxu0 0
    %3834 = vmatmul.mubr.bf16.gmra.mrb[0].mxu0 %v3796
    %v3835 = vpop.f32.mrb[0].mxu0
    %v3836 = vadd.f32 0.0, %v3835
    %v3837 = vpop.f32.mrb[0].mxu0
    %v3838 = vpop.f32.mrb[0].mxu0
    %v3839 = vpop.f32.mrb[0].mxu0
    %3840 = vdwg.mxu0
    %3841 = vrot.lane.b32.xlu0 %v3024, 112
    %v3842 = vpop.permute.xlu0 %3841
    %v3844 = vsel %vm201, %v3504, 0
    %v3847 = vsel %vm685, %v3842, 0
    %3849 = vmatprep.subr.bf16.mxu0 0
    %3850 = vmatpush1.bf16.msra.mxu0 %v3847
    %3851 = vmatprep.subr.bf16.mxu0 0
    %3852 = vmatpush1.bf16.msra.mxu0 0
    %3853 = vmatprep.subr.bf16.mxu0 0
    %3854 = vmatpush1.bf16.msra.mxu0 0
    %3855 = vmatprep.subr.bf16.mxu0 0
    %3856 = vmatpush1.bf16.msra.mxu0 0
    %3857 = vmatprep.subr.bf16.mxu0 0
    %3858 = vmatpush1.bf16.msra.mxu0 0
    %3859 = vmatprep.subr.bf16.mxu0 0
    %3860 = vmatpush1.bf16.msra.mxu0 0
    %3861 = vmatprep.subr.bf16.mxu0 0
    %3862 = vmatpush1.bf16.msra.mxu0 0
    %3863 = vmatprep.subr.bf16.mxu0 0
    %3864 = vmatpush1.bf16.msra.mxu0 0
    %3865 = vmatprep.subr.bf16.mxu0 0
    %3866 = vmatpush1.bf16.msra.mxu0 0
    %3867 = vmatprep.subr.bf16.mxu0 0
    %3868 = vmatpush1.bf16.msra.mxu0 0
    %3869 = vmatprep.subr.bf16.mxu0 0
    %3870 = vmatpush1.bf16.msra.mxu0 0
    %3871 = vmatprep.subr.bf16.mxu0 0
    %3872 = vmatpush1.bf16.msra.mxu0 0
    %3873 = vmatprep.subr.bf16.mxu0 0
    %3874 = vmatpush1.bf16.msra.mxu0 0
    %3875 = vmatprep.subr.bf16.mxu0 0
    %3876 = vmatpush1.bf16.msra.mxu0 0
    %3877 = vmatprep.subr.bf16.mxu0 0
    %3878 = vmatpush1.bf16.msra.mxu0 0
    %3879 = vmatprep.subr.bf16.mxu0 0
    %3880 = vmatpush1.bf16.msra.mxu0 0
    %3881 = vmatprep.mubr.bf16.mxu0 0
    %3882 = vmatmul.mubr.bf16.gmra.mrb[0].mxu0 %v3844
    %v3883 = vpop.f32.mrb[0].mxu0
    %v3884 = vadd.f32 0.0, %v3883
    %v3885 = vpop.f32.mrb[0].mxu0
    %v3886 = vpop.f32.mrb[0].mxu0
    %v3887 = vpop.f32.mrb[0].mxu0
    %3888 = vdwg.mxu0
    %v3889 = vpack.c.bf16 %v3596, %v3548
    %v3890 = vpack.c.bf16 %v3692, %v3644
    %v3891 = vpack.c.bf16 %v3788, %v3740
    %v3892 = vpack.c.bf16 %v3884, %v3836
    %v3893 = vld [vmem:[#allocation7] sm:$0xf]
    %v3894 = vld [vmem:[#allocation7 + $0x4] sm:$0xf]
    %v3895 = vld [vmem:[#allocation7 + $0x8] sm:$0xf]
    %v3896 = vld [vmem:[#allocation7 + $0xc] sm:$0xf]
    %v3898 = vsel %vm201, %v3889, 0
    %v3901 = vsel %vm685, %v3893, 0
    %3903 = vmatprep.subr.bf16.mxu0 0
    %3904 = vmatpush1.bf16.msra.mxu0 %v3901
    %3905 = vmatprep.subr.bf16.mxu0 0
    %3906 = vmatpush1.bf16.msra.mxu0 0
    %3907 = vmatprep.subr.bf16.mxu0 0
    %3908 = vmatpush1.bf16.msra.mxu0 0
    %3909 = vmatprep.subr.bf16.mxu0 0
    %3910 = vmatpush1.bf16.msra.mxu0 0
    %3911 = vmatprep.subr.bf16.mxu0 0
    %3912 = vmatpush1.bf16.msra.mxu0 0
    %3913 = vmatprep.subr.bf16.mxu0 0
    %3914 = vmatpush1.bf16.msra.mxu0 0
    %3915 = vmatprep.subr.bf16.mxu0 0
    %3916 = vmatpush1.bf16.msra.mxu0 0
    %3917 = vmatprep.subr.bf16.mxu0 0
    %3918 = vmatpush1.bf16.msra.mxu0 0
    %3919 = vmatprep.subr.bf16.mxu0 0
    %3920 = vmatpush1.bf16.msra.mxu0 0
    %3921 = vmatprep.subr.bf16.mxu0 0
    %3922 = vmatpush1.bf16.msra.mxu0 0
    %3923 = vmatprep.subr.bf16.mxu0 0
    %3924 = vmatpush1.bf16.msra.mxu0 0
    %3925 = vmatprep.subr.bf16.mxu0 0
    %3926 = vmatpush1.bf16.msra.mxu0 0
    %3927 = vmatprep.subr.bf16.mxu0 0
    %3928 = vmatpush1.bf16.msra.mxu0 0
    %3929 = vmatprep.subr.bf16.mxu0 0
    %3930 = vmatpush1.bf16.msra.mxu0 0
    %3931 = vmatprep.subr.bf16.mxu0 0
    %3932 = vmatpush1.bf16.msra.mxu0 0
    %3933 = vmatprep.subr.bf16.mxu0 0
    %3934 = vmatpush1.bf16.msra.mxu0 0
    %3935 = vmatprep.mubr.bf16.mxu0 0
    %3936 = vmatmul.mubr.bf16.gmra.mrb[0].mxu0 %v3898
    %v3937 = vpop.f32.mrb[0].mxu0
    %v3938 = vadd.f32 0.0, %v3937
    %v3939 = vpop.f32.mrb[0].mxu0
    %v3940 = vpop.f32.mrb[0].mxu0
    %v3941 = vadd.f32 0.0, %v3940
    %v3942 = vpop.f32.mrb[0].mxu0
    %3943 = vdwg.mxu0
    %v3945 = vsel %vm201, %v3890, 0
    %v3948 = vsel %vm685, %v3894, 0
    %3950 = vmatprep.subr.bf16.mxu0 0
    %3951 = vmatpush1.bf16.msra.mxu0 %v3948
    %3952 = vmatprep.subr.bf16.mxu0 0
    %3953 = vmatpush1.bf16.msra.mxu0 0
    %3954 = vmatprep.subr.bf16.mxu0 0
    %3955 = vmatpush1.bf16.msra.mxu0 0
    %3956 = vmatprep.subr.bf16.mxu0 0
    %3957 = vmatpush1.bf16.msra.mxu0 0
    %3958 = vmatprep.subr.bf16.mxu0 0
    %3959 = vmatpush1.bf16.msra.mxu0 0
    %3960 = vmatprep.subr.bf16.mxu0 0
    %3961 = vmatpush1.bf16.msra.mxu0 0
    %3962 = vmatprep.subr.bf16.mxu0 0
    %3963 = vmatpush1.bf16.msra.mxu0 0
    %3964 = vmatprep.subr.bf16.mxu0 0
    %3965 = vmatpush1.bf16.msra.mxu0 0
    %3966 = vmatprep.subr.bf16.mxu0 0
    %3967 = vmatpush1.bf16.msra.mxu0 0
    %3968 = vmatprep.subr.bf16.mxu0 0
    %3969 = vmatpush1.bf16.msra.mxu0 0
    %3970 = vmatprep.subr.bf16.mxu0 0
    %3971 = vmatpush1.bf16.msra.mxu0 0
    %3972 = vmatprep.subr.bf16.mxu0 0
    %3973 = vmatpush1.bf16.msra.mxu0 0
    %3974 = vmatprep.subr.bf16.mxu0 0
    %3975 = vmatpush1.bf16.msra.mxu0 0
    %3976 = vmatprep.subr.bf16.mxu0 0
    %3977 = vmatpush1.bf16.msra.mxu0 0
    %3978 = vmatprep.subr.bf16.mxu0 0
    %3979 = vmatpush1.bf16.msra.mxu0 0
    %3980 = vmatprep.subr.bf16.mxu0 0
    %3981 = vmatpush1.bf16.msra.mxu0 0
    %3982 = vmatprep.mubr.bf16.mxu0 0
    %3983 = vmatmul.mubr.bf16.gmra.mrb[0].mxu0 %v3945
    %v3984 = vpop.f32.mrb[0].mxu0
    %v3985 = vadd.f32 0.0, %v3984
    %v3986 = vpop.f32.mrb[0].mxu0
    %v3987 = vpop.f32.mrb[0].mxu0
    %v3988 = vadd.f32 0.0, %v3987
    %v3989 = vpop.f32.mrb[0].mxu0
    %3990 = vdwg.mxu0
    %v3992 = vsel %vm201, %v3891, 0
    %v3995 = vsel %vm685, %v3895, 0
    %3997 = vmatprep.subr.bf16.mxu0 0
    %3998 = vmatpush1.bf16.msra.mxu0 %v3995
    %3999 = vmatprep.subr.bf16.mxu0 0
    %4000 = vmatpush1.bf16.msra.mxu0 0
    %4001 = vmatprep.subr.bf16.mxu0 0
    %4002 = vmatpush1.bf16.msra.mxu0 0
    %4003 = vmatprep.subr.bf16.mxu0 0
    %4004 = vmatpush1.bf16.msra.mxu0 0
    %4005 = vmatprep.subr.bf16.mxu0 0
    %4006 = vmatpush1.bf16.msra.mxu0 0
    %4007 = vmatprep.subr.bf16.mxu0 0
    %4008 = vmatpush1.bf16.msra.mxu0 0
    %4009 = vmatprep.subr.bf16.mxu0 0
    %4010 = vmatpush1.bf16.msra.mxu0 0
    %4011 = vmatprep.subr.bf16.mxu0 0
    %4012 = vmatpush1.bf16.msra.mxu0 0
    %4013 = vmatprep.subr.bf16.mxu0 0
    %4014 = vmatpush1.bf16.msra.mxu0 0
    %4015 = vmatprep.subr.bf16.mxu0 0
    %4016 = vmatpush1.bf16.msra.mxu0 0
    %4017 = vmatprep.subr.bf16.mxu0 0
    %4018 = vmatpush1.bf16.msra.mxu0 0
    %4019 = vmatprep.subr.bf16.mxu0 0
    %4020 = vmatpush1.bf16.msra.mxu0 0
    %4021 = vmatprep.subr.bf16.mxu0 0
    %4022 = vmatpush1.bf16.msra.mxu0 0
    %4023 = vmatprep.subr.bf16.mxu0 0
    %4024 = vmatpush1.bf16.msra.mxu0 0
    %4025 = vmatprep.subr.bf16.mxu0 0
    %4026 = vmatpush1.bf16.msra.mxu0 0
    %4027 = vmatprep.subr.bf16.mxu0 0
    %4028 = vmatpush1.bf16.msra.mxu0 0
    %4029 = vmatprep.mubr.bf16.mxu0 0
    %4030 = vmatmul.mubr.bf16.gmra.mrb[0].mxu0 %v3992
    %v4031 = vpop.f32.mrb[0].mxu0
    %v4032 = vadd.f32 0.0, %v4031
    %v4033 = vpop.f32.mrb[0].mxu0
    %v4034 = vpop.f32.mrb[0].mxu0
    %v4035 = vadd.f32 0.0, %v4034
    %v4036 = vpop.f32.mrb[0].mxu0
    %4037 = vdwg.mxu0
    %v4039 = vsel %vm201, %v3892, 0
    %v4042 = vsel %vm685, %v3896, 0
    %4044 = vmatprep.subr.bf16.mxu0 0
    %4045 = vmatpush1.bf16.msra.mxu0 %v4042
    %4046 = vmatprep.subr.bf16.mxu0 0
    %4047 = vmatpush1.bf16.msra.mxu0 0
    %4048 = vmatprep.subr.bf16.mxu0 0
    %4049 = vmatpush1.bf16.msra.mxu0 0
    %4050 = vmatprep.subr.bf16.mxu0 0
    %4051 = vmatpush1.bf16.msra.mxu0 0
    %4052 = vmatprep.subr.bf16.mxu0 0
    %4053 = vmatpush1.bf16.msra.mxu0 0
    %4054 = vmatprep.subr.bf16.mxu0 0
    %4055 = vmatpush1.bf16.msra.mxu0 0
    %4056 = vmatprep.subr.bf16.mxu0 0
    %4057 = vmatpush1.bf16.msra.mxu0 0
    %4058 = vmatprep.subr.bf16.mxu0 0
    %4059 = vmatpush1.bf16.msra.mxu0 0
    %4060 = vmatprep.subr.bf16.mxu0 0
    %4061 = vmatpush1.bf16.msra.mxu0 0
    %4062 = vmatprep.subr.bf16.mxu0 0
    %4063 = vmatpush1.bf16.msra.mxu0 0
    %4064 = vmatprep.subr.bf16.mxu0 0
    %4065 = vmatpush1.bf16.msra.mxu0 0
    %4066 = vmatprep.subr.bf16.mxu0 0
    %4067 = vmatpush1.bf16.msra.mxu0 0
    %4068 = vmatprep.subr.bf16.mxu0 0
    %4069 = vmatpush1.bf16.msra.mxu0 0
    %4070 = vmatprep.subr.bf16.mxu0 0
    %4071 = vmatpush1.bf16.msra.mxu0 0
    %4072 = vmatprep.subr.bf16.mxu0 0
    %4073 = vmatpush1.bf16.msra.mxu0 0
    %4074 = vmatprep.subr.bf16.mxu0 0
    %4075 = vmatpush1.bf16.msra.mxu0 0
    %4076 = vmatprep.mubr.bf16.mxu0 0
    %4077 = vmatmul.mubr.bf16.gmra.mrb[0].mxu0 %v4039
    %v4078 = vpop.f32.mrb[0].mxu0
    %v4079 = vadd.f32 0.0, %v4078
    %v4080 = vpop.f32.mrb[0].mxu0
    %v4081 = vpop.f32.mrb[0].mxu0
    %v4082 = vadd.f32 0.0, %v4081
    %v4083 = vpop.f32.mrb[0].mxu0
    %4084 = vdwg.mxu0
    %v4085 = vadd.f32 %v67, %v3938
    %v4086 = vadd.f32 %v67, %v3941
    %v4087 = vadd.f32 %v4085, %v3985
    %v4088 = vadd.f32 %v4086, %v3988
    %v4089 = vadd.f32 %v4087, %v4032
    %v4090 = vadd.f32 %v4088, %v4035
    %v4091 = vadd.f32 %v4089, %v4079
    %v4092 = vadd.f32 %v4090, %v4082
    %v4093 = vpack.c.bf16 %v4092, %v4091
    %v4094 = vld [vmem:[#allocation5 + $0x4] sm:$0xf]
    %v4095 = vld [vmem:[#allocation5 + $0x10] sm:$0xf]
    %v4096 = vld [vmem:[#allocation5 + $0x1c] sm:$0xf]
    %v4097 = vld [vmem:[#allocation5 + $0x28] sm:$0xf]
    %v4098 = vld [vmem:[#allocation5 + $0x34] sm:$0xf]
    %v4099 = vld [vmem:[#allocation5 + $0x40] sm:$0xf]
    %v4100 = vld [vmem:[#allocation5 + $0x4c] sm:$0xf]
    %v4101 = vld [vmem:[#allocation5 + $0x58] sm:$0xf]
    %v4102 = vld [vmem:[#allocation5 + $0x64] sm:$0xf]
    %v4103 = vld [vmem:[#allocation5 + $0x70] sm:$0xf]
    %v4104 = vld [vmem:[#allocation5 + $0x7c] sm:$0xf]
    %v4105 = vld [vmem:[#allocation5 + $0x88] sm:$0xf]
    %v4106 = vld [vmem:[#allocation5 + $0x94] sm:$0xf]
    %v4107 = vld [vmem:[#allocation5 + $0xa0] sm:$0xf]
    %v4108 = vld [vmem:[#allocation5 + $0xac] sm:$0xf]
    %v4109 = vld [vmem:[#allocation5 + $0xb8] sm:$0xf]
    %v4126 = vunpack.c.l.b16 %v4094
    %v4127 = vunpack.c.l.b16 %v4095
    %v4128 = vunpack.c.l.b16 %v4096
    %v4129 = vunpack.c.l.b16 %v4097
    %v4130 = vunpack.c.l.b16 %v4098
    %v4131 = vunpack.c.l.b16 %v4099
    %v4132 = vunpack.c.l.b16 %v4100
    %v4133 = vunpack.c.l.b16 %v4101
    %v4134 = vunpack.c.l.b16 %v4102
    %v4135 = vunpack.c.l.b16 %v4103
    %v4136 = vunpack.c.l.b16 %v4104
    %v4137 = vunpack.c.l.b16 %v4105
    %v4138 = vunpack.c.l.b16 %v4106
    %v4139 = vunpack.c.l.b16 %v4107
    %v4140 = vunpack.c.l.b16 %v4108
    %v4141 = vunpack.c.l.b16 %v4109
    %v4142 = vpack.c.b16 %v4127, %v4126
    %v4143 = vpack.c.b16 %v4129, %v4128
    %v4144 = vpack.c.b16 %v4131, %v4130
    %v4145 = vpack.c.b16 %v4133, %v4132
    %v4146 = vpack.c.b16 %v4135, %v4134
    %v4147 = vpack.c.b16 %v4137, %v4136
    %v4148 = vpack.c.b16 %v4139, %v4138
    %v4149 = vpack.c.b16 %v4141, %v4140
    %4158 = vmatprep.subr.bf16.mxu0 0
    %4159 = vmatpush1.bf16.msra.mxu0 %v4142
    %4160 = vmatprep.subr.bf16.mxu0 0
    %4161 = vmatpush1.bf16.msra.mxu0 %v4143
    %4162 = vmatprep.subr.bf16.mxu0 0
    %4163 = vmatpush1.bf16.msra.mxu0 %v4144
    %4164 = vmatprep.subr.bf16.mxu0 0
    %4165 = vmatpush1.bf16.msra.mxu0 %v4145
    %4166 = vmatprep.subr.bf16.mxu0 0
    %4167 = vmatpush1.bf16.msra.mxu0 %v4146
    %4168 = vmatprep.subr.bf16.mxu0 0
    %4169 = vmatpush1.bf16.msra.mxu0 %v4147
    %4170 = vmatprep.subr.bf16.mxu0 0
    %4171 = vmatpush1.bf16.msra.mxu0 %v4148
    %4172 = vmatprep.subr.bf16.mxu0 0
    %4173 = vmatpush1.bf16.msra.mxu0 %v4149
    %4174 = vmatprep.subr.bf16.mxu0 0
    %4175 = vmatpush1.bf16.msra.mxu0 0
    %4176 = vmatprep.subr.bf16.mxu0 0
    %4177 = vmatpush1.bf16.msra.mxu0 0
    %4178 = vmatprep.subr.bf16.mxu0 0
    %4179 = vmatpush1.bf16.msra.mxu0 0
    %4180 = vmatprep.subr.bf16.mxu0 0
    %4181 = vmatpush1.bf16.msra.mxu0 0
    %4182 = vmatprep.subr.bf16.mxu0 0
    %4183 = vmatpush1.bf16.msra.mxu0 0
    %4184 = vmatprep.subr.bf16.mxu0 0
    %4185 = vmatpush1.bf16.msra.mxu0 0
    %4186 = vmatprep.subr.bf16.mxu0 0
    %4187 = vmatpush1.bf16.msra.mxu0 0
    %4188 = vmatprep.subr.bf16.mxu0 0
    %4189 = vmatpush1.bf16.msra.mxu0 0
    %4190 = vmatprep.mubr.bf16.mxu0 0
    %4191 = vmatmul.mubr.bf16.gmra.mrb[0].mxu0 %v4093
    %v4192 = vpop.f32.mrb[0].mxu0
    %v4193 = vadd.f32 0.0, %v4192
    %v4194 = vpop.f32.mrb[0].mxu0
    %v4195 = vpop.f32.mrb[0].mxu0
    %v4196 = vadd.f32 0.0, %v4195
    %v4197 = vpop.f32.mrb[0].mxu0
    %4198 = vdwg.mxu0
    %v4199 = vmax.f32 %v4193, 0.0
    %v4200 = vmax.f32 %v4196, 0.0
    %v4201 = vpack.c.bf16 %v4200, %v4199
    %v4202 = vld [vmem:[#allocation5 + $0x8] sm:$0xf]
    %v4203 = vld [vmem:[#allocation5 + $0x14] sm:$0xf]
    %v4204 = vld [vmem:[#allocation5 + $0x20] sm:$0xf]
    %v4205 = vld [vmem:[#allocation5 + $0x2c] sm:$0xf]
    %v4206 = vld [vmem:[#allocation5 + $0x38] sm:$0xf]
    %v4207 = vld [vmem:[#allocation5 + $0x44] sm:$0xf]
    %v4208 = vld [vmem:[#allocation5 + $0x50] sm:$0xf]
    %v4209 = vld [vmem:[#allocation5 + $0x5c] sm:$0xf]
    %v4210 = vld [vmem:[#allocation5 + $0x68] sm:$0xf]
    %v4211 = vld [vmem:[#allocation5 + $0x74] sm:$0xf]
    %v4212 = vld [vmem:[#allocation5 + $0x80] sm:$0xf]
    %v4213 = vld [vmem:[#allocation5 + $0x8c] sm:$0xf]
    %v4214 = vld [vmem:[#allocation5 + $0x98] sm:$0xf]
    %v4215 = vld [vmem:[#allocation5 + $0xa4] sm:$0xf]
    %v4216 = vld [vmem:[#allocation5 + $0xb0] sm:$0xf]
    %v4217 = vld [vmem:[#allocation5 + $0xbc] sm:$0xf]
    %v4234 = vunpack.c.l.b16 %v4202
    %v4235 = vunpack.c.l.b16 %v4203
    %v4236 = vunpack.c.l.b16 %v4204
    %v4237 = vunpack.c.l.b16 %v4205
    %v4238 = vunpack.c.l.b16 %v4206
    %v4239 = vunpack.c.l.b16 %v4207
    %v4240 = vunpack.c.l.b16 %v4208
    %v4241 = vunpack.c.l.b16 %v4209
    %v4242 = vunpack.c.l.b16 %v4210
    %v4243 = vunpack.c.l.b16 %v4211
    %v4244 = vunpack.c.l.b16 %v4212
    %v4245 = vunpack.c.l.b16 %v4213
    %v4246 = vunpack.c.l.b16 %v4214
    %v4247 = vunpack.c.l.b16 %v4215
    %v4248 = vunpack.c.l.b16 %v4216
    %v4249 = vunpack.c.l.b16 %v4217
    %v4250 = vpack.c.b16 %v4235, %v4234
    %v4251 = vpack.c.b16 %v4237, %v4236
    %v4252 = vpack.c.b16 %v4239, %v4238
    %v4253 = vpack.c.b16 %v4241, %v4240
    %v4254 = vpack.c.b16 %v4243, %v4242
    %v4255 = vpack.c.b16 %v4245, %v4244
    %v4256 = vpack.c.b16 %v4247, %v4246
    %v4257 = vpack.c.b16 %v4249, %v4248
    %4266 = vmatprep.subr.bf16.mxu0 0
    %4267 = vmatpush1.bf16.msra.mxu0 %v4250
    %4268 = vmatprep.subr.bf16.mxu0 0
    %4269 = vmatpush1.bf16.msra.mxu0 %v4251
    %4270 = vmatprep.subr.bf16.mxu0 0
    %4271 = vmatpush1.bf16.msra.mxu0 %v4252
    %4272 = vmatprep.subr.bf16.mxu0 0
    %4273 = vmatpush1.bf16.msra.mxu0 %v4253
    %4274 = vmatprep.subr.bf16.mxu0 0
    %4275 = vmatpush1.bf16.msra.mxu0 %v4254
    %4276 = vmatprep.subr.bf16.mxu0 0
    %4277 = vmatpush1.bf16.msra.mxu0 %v4255
    %4278 = vmatprep.subr.bf16.mxu0 0
    %4279 = vmatpush1.bf16.msra.mxu0 %v4256
    %4280 = vmatprep.subr.bf16.mxu0 0
    %4281 = vmatpush1.bf16.msra.mxu0 %v4257
    %4282 = vmatprep.subr.bf16.mxu0 0
    %4283 = vmatpush1.bf16.msra.mxu0 0
    %4284 = vmatprep.subr.bf16.mxu0 0
    %4285 = vmatpush1.bf16.msra.mxu0 0
    %4286 = vmatprep.subr.bf16.mxu0 0
    %4287 = vmatpush1.bf16.msra.mxu0 0
    %4288 = vmatprep.subr.bf16.mxu0 0
    %4289 = vmatpush1.bf16.msra.mxu0 0
    %4290 = vmatprep.subr.bf16.mxu0 0
    %4291 = vmatpush1.bf16.msra.mxu0 0
    %4292 = vmatprep.subr.bf16.mxu0 0
    %4293 = vmatpush1.bf16.msra.mxu0 0
    %4294 = vmatprep.subr.bf16.mxu0 0
    %4295 = vmatpush1.bf16.msra.mxu0 0
    %4296 = vmatprep.subr.bf16.mxu0 0
    %4297 = vmatpush1.bf16.msra.mxu0 0
    %4298 = vmatprep.mubr.bf16.mxu0 0
    %4299 = vmatmul.mubr.bf16.gmra.mrb[0].mxu0 %v4201
    %v4300 = vpop.f32.mrb[0].mxu0
    %v4301 = vadd.f32 0.0, %v4300
    %v4302 = vpop.f32.mrb[0].mxu0
    %v4303 = vpop.f32.mrb[0].mxu0
    %v4304 = vadd.f32 0.0, %v4303
    %v4305 = vpop.f32.mrb[0].mxu0
    %4306 = vdwg.mxu0
    %v4307 = vpack.c.bf16 %v4304, %v4301
    %v4308 = vld [vmem:[#allocation5] sm:$0xf]
    %v4309 = vld [vmem:[#allocation5 + $0xc] sm:$0xf]
    %v4310 = vld [vmem:[#allocation5 + $0x18] sm:$0xf]
    %v4311 = vld [vmem:[#allocation5 + $0x24] sm:$0xf]
    %v4312 = vld [vmem:[#allocation5 + $0x30] sm:$0xf]
    %v4313 = vld [vmem:[#allocation5 + $0x3c] sm:$0xf]
    %v4314 = vld [vmem:[#allocation5 + $0x48] sm:$0xf]
    %v4315 = vld [vmem:[#allocation5 + $0x54] sm:$0xf]
    %v4316 = vld [vmem:[#allocation5 + $0x60] sm:$0xf]
    %v4317 = vld [vmem:[#allocation5 + $0x6c] sm:$0xf]
    %v4318 = vld [vmem:[#allocation5 + $0x78] sm:$0xf]
    %v4319 = vld [vmem:[#allocation5 + $0x84] sm:$0xf]
    %v4320 = vld [vmem:[#allocation5 + $0x90] sm:$0xf]
    %v4321 = vld [vmem:[#allocation5 + $0x9c] sm:$0xf]
    %v4322 = vld [vmem:[#allocation5 + $0xa8] sm:$0xf]
    %v4323 = vld [vmem:[#allocation5 + $0xb4] sm:$0xf]
    %v4340 = vunpack.c.l.b16 %v4308
    %v4341 = vunpack.c.l.b16 %v4309
    %v4342 = vunpack.c.l.b16 %v4310
    %v4343 = vunpack.c.l.b16 %v4311
    %v4344 = vunpack.c.l.b16 %v4312
    %v4345 = vunpack.c.l.b16 %v4313
    %v4346 = vunpack.c.l.b16 %v4314
    %v4347 = vunpack.c.l.b16 %v4315
    %v4348 = vunpack.c.l.b16 %v4316
    %v4349 = vunpack.c.l.b16 %v4317
    %v4350 = vunpack.c.l.b16 %v4318
    %v4351 = vunpack.c.l.b16 %v4319
    %v4352 = vunpack.c.l.b16 %v4320
    %v4353 = vunpack.c.l.b16 %v4321
    %v4354 = vunpack.c.l.b16 %v4322
    %v4355 = vunpack.c.l.b16 %v4323
    %v4356 = vpack.c.b16 %v4341, %v4340
    %v4357 = vpack.c.b16 %v4343, %v4342
    %v4358 = vpack.c.b16 %v4345, %v4344
    %v4359 = vpack.c.b16 %v4347, %v4346
    %v4360 = vpack.c.b16 %v4349, %v4348
    %v4361 = vpack.c.b16 %v4351, %v4350
    %v4362 = vpack.c.b16 %v4353, %v4352
    %v4363 = vpack.c.b16 %v4355, %v4354
    %4372 = vmatprep.subr.bf16.mxu0 0
    %4373 = vmatpush1.bf16.msra.mxu0 %v4356
    %4374 = vmatprep.subr.bf16.mxu0 0
    %4375 = vmatpush1.bf16.msra.mxu0 %v4357
    %4376 = vmatprep.subr.bf16.mxu0 0
    %4377 = vmatpush1.bf16.msra.mxu0 %v4358
    %4378 = vmatprep.subr.bf16.mxu0 0
    %4379 = vmatpush1.bf16.msra.mxu0 %v4359
    %4380 = vmatprep.subr.bf16.mxu0 0
    %4381 = vmatpush1.bf16.msra.mxu0 %v4360
    %4382 = vmatprep.subr.bf16.mxu0 0
    %4383 = vmatpush1.bf16.msra.mxu0 %v4361
    %4384 = vmatprep.subr.bf16.mxu0 0
    %4385 = vmatpush1.bf16.msra.mxu0 %v4362
    %4386 = vmatprep.subr.bf16.mxu0 0
    %4387 = vmatpush1.bf16.msra.mxu0 %v4363
    %4388 = vmatprep.subr.bf16.mxu0 0
    %4389 = vmatpush1.bf16.msra.mxu0 0
    %4390 = vmatprep.subr.bf16.mxu0 0
    %4391 = vmatpush1.bf16.msra.mxu0 0
    %4392 = vmatprep.subr.bf16.mxu0 0
    %4393 = vmatpush1.bf16.msra.mxu0 0
    %4394 = vmatprep.subr.bf16.mxu0 0
    %4395 = vmatpush1.bf16.msra.mxu0 0
    %4396 = vmatprep.subr.bf16.mxu0 0
    %4397 = vmatpush1.bf16.msra.mxu0 0
    %4398 = vmatprep.subr.bf16.mxu0 0
    %4399 = vmatpush1.bf16.msra.mxu0 0
    %4400 = vmatprep.subr.bf16.mxu0 0
    %4401 = vmatpush1.bf16.msra.mxu0 0
    %4402 = vmatprep.subr.bf16.mxu0 0
    %4403 = vmatpush1.bf16.msra.mxu0 0
    %4404 = vmatprep.mubr.bf16.mxu0 0
    %4405 = vmatmul.mubr.bf16.gmra.mrb[0].mxu0 %v4307
    %v4406 = vpop.f32.mrb[0].mxu0
    %v4407 = vadd.f32 0.0, %v4406
    %v4408 = vpop.f32.mrb[0].mxu0
    %v4409 = vpop.f32.mrb[0].mxu0
    %v4410 = vadd.f32 0.0, %v4409
    %v4411 = vpop.f32.mrb[0].mxu0
    %4412 = vdwg.mxu0
    %v4413 = vpack.c.bf16 %v4410, %v4407
    %4415 = vrot.lane.b32.xlu0 %v4413, 104
    %v4416 = vpop.permute.xlu0 %4415
    %4417 = vrot.lane.b32.xlu0 %v4413, 80
    %v4418 = vpop.permute.xlu0 %4417
    %4419 = vrot.lane.b32.xlu0 %v4413, 56
    %v4420 = vpop.permute.xlu0 %4419
    %v4421 = vunpack.c.l.b16 %v4413
    %v4422 = vunpack.c.h.b16 %v4413
    %v4423 = vunpack.c.l.b16 %v4416
    %v4424 = vunpack.c.h.b16 %v4416
    %v4425 = vunpack.c.l.b16 %v4418
    %v4426 = vunpack.c.h.b16 %v4418
    %v4427 = vunpack.c.l.b16 %v4420
    %v4428 = vunpack.c.h.b16 %v4420
    %v4429 = vpack.c.b16 %v4421, %v4421
    %v4430 = vpack.c.b16 %v4422, %v4422
    %v4431 = vpack.c.b16 %v4423, %v4423
    %v4432 = vpack.c.b16 %v4424, %v4424
    %v4433 = vpack.c.b16 %v4425, %v4425
    %v4434 = vpack.c.b16 %v4426, %v4426
    %v4435 = vpack.c.b16 %v4427, %v4427
    %v4436 = vpack.c.b16 %v4428, %v4428
    %4437 = vrot.lane.b32.xlu0 %v4429, 120
    %v4438 = vpop.permute.xlu0 %4437
    %v4440 = vsel %vm201, %v4429, 0
    %v4443 = vsel %vm201, %v4438, 0
    %4445 = vmatprep.subr.bf16.mxu0 0
    %4446 = vmatpush1.bf16.xpose.msra.mxu0 %v4443
    %4447 = vmatprep.subr.bf16.mxu0 0
    %4448 = vmatpush1.bf16.xpose.msra.mxu0 0
    %4449 = vmatprep.subr.bf16.mxu0 0
    %4450 = vmatpush1.bf16.xpose.msra.mxu0 0
    %4451 = vmatprep.subr.bf16.mxu0 0
    %4452 = vmatpush1.bf16.xpose.msra.mxu0 0
    %4453 = vmatprep.subr.bf16.mxu0 0
    %4454 = vmatpush1.bf16.xpose.msra.mxu0 0
    %4455 = vmatprep.subr.bf16.mxu0 0
    %4456 = vmatpush1.bf16.xpose.msra.mxu0 0
    %4457 = vmatprep.subr.bf16.mxu0 0
    %4458 = vmatpush1.bf16.xpose.msra.mxu0 0
    %4459 = vmatprep.subr.bf16.mxu0 0
    %4460 = vmatpush1.bf16.xpose.msra.mxu0 0
    %4461 = vmatprep.subr.bf16.mxu0 0
    %4462 = vmatpush1.bf16.xpose.msra.mxu0 0
    %4463 = vmatprep.subr.bf16.mxu0 0
    %4464 = vmatpush1.bf16.xpose.msra.mxu0 0
    %4465 = vmatprep.subr.bf16.mxu0 0
    %4466 = vmatpush1.bf16.xpose.msra.mxu0 0
    %4467 = vmatprep.subr.bf16.mxu0 0
    %4468 = vmatpush1.bf16.xpose.msra.mxu0 0
    %4469 = vmatprep.subr.bf16.mxu0 0
    %4470 = vmatpush1.bf16.xpose.msra.mxu0 0
    %4471 = vmatprep.subr.bf16.mxu0 0
    %4472 = vmatpush1.bf16.xpose.msra.mxu0 0
    %4473 = vmatprep.subr.bf16.mxu0 0
    %4474 = vmatpush1.bf16.xpose.msra.mxu0 0
    %4475 = vmatprep.subr.bf16.mxu0 0
    %4476 = vmatpush1.bf16.xpose.msra.mxu0 0
    %4477 = vmatprep.mubr.bf16.mxu0 0
    %4478 = vmatmul.mubr.bf16.gmra.mrb[0].mxu0 %v4440
    %v4479 = vpop.f32.mrb[0].mxu0
    %v4480 = vadd.f32 0.0, %v4479
    %v4481 = vpop.f32.mrb[0].mxu0
    %v4482 = vpop.f32.mrb[0].mxu0
    %v4483 = vpop.f32.mrb[0].mxu0
    %4484 = vdwg.mxu0
    %4485 = vrot.lane.b32.xlu0 %v4430, 120
    %v4486 = vpop.permute.xlu0 %4485
    %v4488 = vsel %vm201, %v4430, 0
    %v4491 = vsel %vm201, %v4486, 0
    %4493 = vmatprep.subr.bf16.mxu0 0
    %4494 = vmatpush1.bf16.xpose.msra.mxu0 %v4491
    %4495 = vmatprep.subr.bf16.mxu0 0
    %4496 = vmatpush1.bf16.xpose.msra.mxu0 0
    %4497 = vmatprep.subr.bf16.mxu0 0
    %4498 = vmatpush1.bf16.xpose.msra.mxu0 0
    %4499 = vmatprep.subr.bf16.mxu0 0
    %4500 = vmatpush1.bf16.xpose.msra.mxu0 0
    %4501 = vmatprep.subr.bf16.mxu0 0
    %4502 = vmatpush1.bf16.xpose.msra.mxu0 0
    %4503 = vmatprep.subr.bf16.mxu0 0
    %4504 = vmatpush1.bf16.xpose.msra.mxu0 0
    %4505 = vmatprep.subr.bf16.mxu0 0
    %4506 = vmatpush1.bf16.xpose.msra.mxu0 0
    %4507 = vmatprep.subr.bf16.mxu0 0
    %4508 = vmatpush1.bf16.xpose.msra.mxu0 0
    %4509 = vmatprep.subr.bf16.mxu0 0
    %4510 = vmatpush1.bf16.xpose.msra.mxu0 0
    %4511 = vmatprep.subr.bf16.mxu0 0
    %4512 = vmatpush1.bf16.xpose.msra.mxu0 0
    %4513 = vmatprep.subr.bf16.mxu0 0
    %4514 = vmatpush1.bf16.xpose.msra.mxu0 0
    %4515 = vmatprep.subr.bf16.mxu0 0
    %4516 = vmatpush1.bf16.xpose.msra.mxu0 0
    %4517 = vmatprep.subr.bf16.mxu0 0
    %4518 = vmatpush1.bf16.xpose.msra.mxu0 0
    %4519 = vmatprep.subr.bf16.mxu0 0
    %4520 = vmatpush1.bf16.xpose.msra.mxu0 0
    %4521 = vmatprep.subr.bf16.mxu0 0
    %4522 = vmatpush1.bf16.xpose.msra.mxu0 0
    %4523 = vmatprep.subr.bf16.mxu0 0
    %4524 = vmatpush1.bf16.xpose.msra.mxu0 0
    %4525 = vmatprep.mubr.bf16.mxu0 0
    %4526 = vmatmul.mubr.bf16.gmra.mrb[0].mxu0 %v4488
    %v4527 = vpop.f32.mrb[0].mxu0
    %v4528 = vadd.f32 0.0, %v4527
    %v4529 = vpop.f32.mrb[0].mxu0
    %v4530 = vpop.f32.mrb[0].mxu0
    %v4531 = vpop.f32.mrb[0].mxu0
    %4532 = vdwg.mxu0
    %4533 = vrot.lane.b32.xlu0 %v4431, 120
    %v4534 = vpop.permute.xlu0 %4533
    %v4536 = vsel %vm201, %v4431, 0
    %v4539 = vsel %vm201, %v4534, 0
    %4541 = vmatprep.subr.bf16.mxu0 0
    %4542 = vmatpush1.bf16.xpose.msra.mxu0 %v4539
    %4543 = vmatprep.subr.bf16.mxu0 0
    %4544 = vmatpush1.bf16.xpose.msra.mxu0 0
    %4545 = vmatprep.subr.bf16.mxu0 0
    %4546 = vmatpush1.bf16.xpose.msra.mxu0 0
    %4547 = vmatprep.subr.bf16.mxu0 0
    %4548 = vmatpush1.bf16.xpose.msra.mxu0 0
    %4549 = vmatprep.subr.bf16.mxu0 0
    %4550 = vmatpush1.bf16.xpose.msra.mxu0 0
    %4551 = vmatprep.subr.bf16.mxu0 0
    %4552 = vmatpush1.bf16.xpose.msra.mxu0 0
    %4553 = vmatprep.subr.bf16.mxu0 0
    %4554 = vmatpush1.bf16.xpose.msra.mxu0 0
    %4555 = vmatprep.subr.bf16.mxu0 0
    %4556 = vmatpush1.bf16.xpose.msra.mxu0 0
    %4557 = vmatprep.subr.bf16.mxu0 0
    %4558 = vmatpush1.bf16.xpose.msra.mxu0 0
    %4559 = vmatprep.subr.bf16.mxu0 0
    %4560 = vmatpush1.bf16.xpose.msra.mxu0 0
    %4561 = vmatprep.subr.bf16.mxu0 0
    %4562 = vmatpush1.bf16.xpose.msra.mxu0 0
    %4563 = vmatprep.subr.bf16.mxu0 0
    %4564 = vmatpush1.bf16.xpose.msra.mxu0 0
    %4565 = vmatprep.subr.bf16.mxu0 0
    %4566 = vmatpush1.bf16.xpose.msra.mxu0 0
    %4567 = vmatprep.subr.bf16.mxu0 0
    %4568 = vmatpush1.bf16.xpose.msra.mxu0 0
    %4569 = vmatprep.subr.bf16.mxu0 0
    %4570 = vmatpush1.bf16.xpose.msra.mxu0 0
    %4571 = vmatprep.subr.bf16.mxu0 0
    %4572 = vmatpush1.bf16.xpose.msra.mxu0 0
    %4573 = vmatprep.mubr.bf16.mxu0 0
    %4574 = vmatmul.mubr.bf16.gmra.mrb[0].mxu0 %v4536
    %v4575 = vpop.f32.mrb[0].mxu0
    %v4576 = vadd.f32 0.0, %v4575
    %v4577 = vpop.f32.mrb[0].mxu0
    %v4578 = vpop.f32.mrb[0].mxu0
    %v4579 = vpop.f32.mrb[0].mxu0
    %4580 = vdwg.mxu0
    %4581 = vrot.lane.b32.xlu0 %v4432, 120
    %v4582 = vpop.permute.xlu0 %4581
    %v4584 = vsel %vm201, %v4432, 0
    %v4587 = vsel %vm201, %v4582, 0
    %4589 = vmatprep.subr.bf16.mxu0 0
    %4590 = vmatpush1.bf16.xpose.msra.mxu0 %v4587
    %4591 = vmatprep.subr.bf16.mxu0 0
    %4592 = vmatpush1.bf16.xpose.msra.mxu0 0
    %4593 = vmatprep.subr.bf16.mxu0 0
    %4594 = vmatpush1.bf16.xpose.msra.mxu0 0
    %4595 = vmatprep.subr.bf16.mxu0 0
    %4596 = vmatpush1.bf16.xpose.msra.mxu0 0
    %4597 = vmatprep.subr.bf16.mxu0 0
    %4598 = vmatpush1.bf16.xpose.msra.mxu0 0
    %4599 = vmatprep.subr.bf16.mxu0 0
    %4600 = vmatpush1.bf16.xpose.msra.mxu0 0
    %4601 = vmatprep.subr.bf16.mxu0 0
    %4602 = vmatpush1.bf16.xpose.msra.mxu0 0
    %4603 = vmatprep.subr.bf16.mxu0 0
    %4604 = vmatpush1.bf16.xpose.msra.mxu0 0
    %4605 = vmatprep.subr.bf16.mxu0 0
    %4606 = vmatpush1.bf16.xpose.msra.mxu0 0
    %4607 = vmatprep.subr.bf16.mxu0 0
    %4608 = vmatpush1.bf16.xpose.msra.mxu0 0
    %4609 = vmatprep.subr.bf16.mxu0 0
    %4610 = vmatpush1.bf16.xpose.msra.mxu0 0
    %4611 = vmatprep.subr.bf16.mxu0 0
    %4612 = vmatpush1.bf16.xpose.msra.mxu0 0
    %4613 = vmatprep.subr.bf16.mxu0 0
    %4614 = vmatpush1.bf16.xpose.msra.mxu0 0
    %4615 = vmatprep.subr.bf16.mxu0 0
    %4616 = vmatpush1.bf16.xpose.msra.mxu0 0
    %4617 = vmatprep.subr.bf16.mxu0 0
    %4618 = vmatpush1.bf16.xpose.msra.mxu0 0
    %4619 = vmatprep.subr.bf16.mxu0 0
    %4620 = vmatpush1.bf16.xpose.msra.mxu0 0
    %4621 = vmatprep.mubr.bf16.mxu0 0
    %4622 = vmatmul.mubr.bf16.gmra.mrb[0].mxu0 %v4584
    %v4623 = vpop.f32.mrb[0].mxu0
    %v4624 = vadd.f32 0.0, %v4623
    %v4625 = vpop.f32.mrb[0].mxu0
    %v4626 = vpop.f32.mrb[0].mxu0
    %v4627 = vpop.f32.mrb[0].mxu0
    %4628 = vdwg.mxu0
    %4629 = vrot.lane.b32.xlu0 %v4433, 120
    %v4630 = vpop.permute.xlu0 %4629
    %v4632 = vsel %vm201, %v4433, 0
    %v4635 = vsel %vm201, %v4630, 0
    %4637 = vmatprep.subr.bf16.mxu0 0
    %4638 = vmatpush1.bf16.xpose.msra.mxu0 %v4635
    %4639 = vmatprep.subr.bf16.mxu0 0
    %4640 = vmatpush1.bf16.xpose.msra.mxu0 0
    %4641 = vmatprep.subr.bf16.mxu0 0
    %4642 = vmatpush1.bf16.xpose.msra.mxu0 0
    %4643 = vmatprep.subr.bf16.mxu0 0
    %4644 = vmatpush1.bf16.xpose.msra.mxu0 0
    %4645 = vmatprep.subr.bf16.mxu0 0
    %4646 = vmatpush1.bf16.xpose.msra.mxu0 0
    %4647 = vmatprep.subr.bf16.mxu0 0
    %4648 = vmatpush1.bf16.xpose.msra.mxu0 0
    %4649 = vmatprep.subr.bf16.mxu0 0
    %4650 = vmatpush1.bf16.xpose.msra.mxu0 0
    %4651 = vmatprep.subr.bf16.mxu0 0
    %4652 = vmatpush1.bf16.xpose.msra.mxu0 0
    %4653 = vmatprep.subr.bf16.mxu0 0
    %4654 = vmatpush1.bf16.xpose.msra.mxu0 0
    %4655 = vmatprep.subr.bf16.mxu0 0
    %4656 = vmatpush1.bf16.xpose.msra.mxu0 0
    %4657 = vmatprep.subr.bf16.mxu0 0
    %4658 = vmatpush1.bf16.xpose.msra.mxu0 0
    %4659 = vmatprep.subr.bf16.mxu0 0
    %4660 = vmatpush1.bf16.xpose.msra.mxu0 0
    %4661 = vmatprep.subr.bf16.mxu0 0
    %4662 = vmatpush1.bf16.xpose.msra.mxu0 0
    %4663 = vmatprep.subr.bf16.mxu0 0
    %4664 = vmatpush1.bf16.xpose.msra.mxu0 0
    %4665 = vmatprep.subr.bf16.mxu0 0
    %4666 = vmatpush1.bf16.xpose.msra.mxu0 0
    %4667 = vmatprep.subr.bf16.mxu0 0
    %4668 = vmatpush1.bf16.xpose.msra.mxu0 0
    %4669 = vmatprep.mubr.bf16.mxu0 0
    %4670 = vmatmul.mubr.bf16.gmra.mrb[0].mxu0 %v4632
    %v4671 = vpop.f32.mrb[0].mxu0
    %v4672 = vadd.f32 0.0, %v4671
    %v4673 = vpop.f32.mrb[0].mxu0
    %v4674 = vpop.f32.mrb[0].mxu0
    %v4675 = vpop.f32.mrb[0].mxu0
    %4676 = vdwg.mxu0
    %4677 = vrot.lane.b32.xlu0 %v4434, 120
    %v4678 = vpop.permute.xlu0 %4677
    %v4680 = vsel %vm201, %v4434, 0
    %v4683 = vsel %vm201, %v4678, 0
    %4685 = vmatprep.subr.bf16.mxu0 0
    %4686 = vmatpush1.bf16.xpose.msra.mxu0 %v4683
    %4687 = vmatprep.subr.bf16.mxu0 0
    %4688 = vmatpush1.bf16.xpose.msra.mxu0 0
    %4689 = vmatprep.subr.bf16.mxu0 0
    %4690 = vmatpush1.bf16.xpose.msra.mxu0 0
    %4691 = vmatprep.subr.bf16.mxu0 0
    %4692 = vmatpush1.bf16.xpose.msra.mxu0 0
    %4693 = vmatprep.subr.bf16.mxu0 0
    %4694 = vmatpush1.bf16.xpose.msra.mxu0 0
    %4695 = vmatprep.subr.bf16.mxu0 0
    %4696 = vmatpush1.bf16.xpose.msra.mxu0 0
    %4697 = vmatprep.subr.bf16.mxu0 0
    %4698 = vmatpush1.bf16.xpose.msra.mxu0 0
    %4699 = vmatprep.subr.bf16.mxu0 0
    %4700 = vmatpush1.bf16.xpose.msra.mxu0 0
    %4701 = vmatprep.subr.bf16.mxu0 0
    %4702 = vmatpush1.bf16.xpose.msra.mxu0 0
    %4703 = vmatprep.subr.bf16.mxu0 0
    %4704 = vmatpush1.bf16.xpose.msra.mxu0 0
    %4705 = vmatprep.subr.bf16.mxu0 0
    %4706 = vmatpush1.bf16.xpose.msra.mxu0 0
    %4707 = vmatprep.subr.bf16.mxu0 0
    %4708 = vmatpush1.bf16.xpose.msra.mxu0 0
    %4709 = vmatprep.subr.bf16.mxu0 0
    %4710 = vmatpush1.bf16.xpose.msra.mxu0 0
    %4711 = vmatprep.subr.bf16.mxu0 0
    %4712 = vmatpush1.bf16.xpose.msra.mxu0 0
    %4713 = vmatprep.subr.bf16.mxu0 0
    %4714 = vmatpush1.bf16.xpose.msra.mxu0 0
    %4715 = vmatprep.subr.bf16.mxu0 0
    %4716 = vmatpush1.bf16.xpose.msra.mxu0 0
    %4717 = vmatprep.mubr.bf16.mxu0 0
    %4718 = vmatmul.mubr.bf16.gmra.mrb[0].mxu0 %v4680
    %v4719 = vpop.f32.mrb[0].mxu0
    %v4720 = vadd.f32 0.0, %v4719
    %v4721 = vpop.f32.mrb[0].mxu0
    %v4722 = vpop.f32.mrb[0].mxu0
    %v4723 = vpop.f32.mrb[0].mxu0
    %4724 = vdwg.mxu0
    %4725 = vrot.lane.b32.xlu0 %v4435, 120
    %v4726 = vpop.permute.xlu0 %4725
    %v4728 = vsel %vm201, %v4435, 0
    %v4731 = vsel %vm201, %v4726, 0
    %4733 = vmatprep.subr.bf16.mxu0 0
    %4734 = vmatpush1.bf16.xpose.msra.mxu0 %v4731
    %4735 = vmatprep.subr.bf16.mxu0 0
    %4736 = vmatpush1.bf16.xpose.msra.mxu0 0
    %4737 = vmatprep.subr.bf16.mxu0 0
    %4738 = vmatpush1.bf16.xpose.msra.mxu0 0
    %4739 = vmatprep.subr.bf16.mxu0 0
    %4740 = vmatpush1.bf16.xpose.msra.mxu0 0
    %4741 = vmatprep.subr.bf16.mxu0 0
    %4742 = vmatpush1.bf16.xpose.msra.mxu0 0
    %4743 = vmatprep.subr.bf16.mxu0 0
    %4744 = vmatpush1.bf16.xpose.msra.mxu0 0
    %4745 = vmatprep.subr.bf16.mxu0 0
    %4746 = vmatpush1.bf16.xpose.msra.mxu0 0
    %4747 = vmatprep.subr.bf16.mxu0 0
    %4748 = vmatpush1.bf16.xpose.msra.mxu0 0
    %4749 = vmatprep.subr.bf16.mxu0 0
    %4750 = vmatpush1.bf16.xpose.msra.mxu0 0
    %4751 = vmatprep.subr.bf16.mxu0 0
    %4752 = vmatpush1.bf16.xpose.msra.mxu0 0
    %4753 = vmatprep.subr.bf16.mxu0 0
    %4754 = vmatpush1.bf16.xpose.msra.mxu0 0
    %4755 = vmatprep.subr.bf16.mxu0 0
    %4756 = vmatpush1.bf16.xpose.msra.mxu0 0
    %4757 = vmatprep.subr.bf16.mxu0 0
    %4758 = vmatpush1.bf16.xpose.msra.mxu0 0
    %4759 = vmatprep.subr.bf16.mxu0 0
    %4760 = vmatpush1.bf16.xpose.msra.mxu0 0
    %4761 = vmatprep.subr.bf16.mxu0 0
    %4762 = vmatpush1.bf16.xpose.msra.mxu0 0
    %4763 = vmatprep.subr.bf16.mxu0 0
    %4764 = vmatpush1.bf16.xpose.msra.mxu0 0
    %4765 = vmatprep.mubr.bf16.mxu0 0
    %4766 = vmatmul.mubr.bf16.gmra.mrb[0].mxu0 %v4728
    %v4767 = vpop.f32.mrb[0].mxu0
    %v4768 = vadd.f32 0.0, %v4767
    %v4769 = vpop.f32.mrb[0].mxu0
    %v4770 = vpop.f32.mrb[0].mxu0
    %v4771 = vpop.f32.mrb[0].mxu0
    %4772 = vdwg.mxu0
    %4773 = vrot.lane.b32.xlu0 %v4436, 120
    %v4774 = vpop.permute.xlu0 %4773
    %v4776 = vsel %vm201, %v4436, 0
    %v4779 = vsel %vm201, %v4774, 0
    %4781 = vmatprep.subr.bf16.mxu0 0
    %4782 = vmatpush1.bf16.xpose.msra.mxu0 %v4779
    %4783 = vmatprep.subr.bf16.mxu0 0
    %4784 = vmatpush1.bf16.xpose.msra.mxu0 0
    %4785 = vmatprep.subr.bf16.mxu0 0
    %4786 = vmatpush1.bf16.xpose.msra.mxu0 0
    %4787 = vmatprep.subr.bf16.mxu0 0
    %4788 = vmatpush1.bf16.xpose.msra.mxu0 0
    %4789 = vmatprep.subr.bf16.mxu0 0
    %4790 = vmatpush1.bf16.xpose.msra.mxu0 0
    %4791 = vmatprep.subr.bf16.mxu0 0
    %4792 = vmatpush1.bf16.xpose.msra.mxu0 0
    %4793 = vmatprep.subr.bf16.mxu0 0
    %4794 = vmatpush1.bf16.xpose.msra.mxu0 0
    %4795 = vmatprep.subr.bf16.mxu0 0
    %4796 = vmatpush1.bf16.xpose.msra.mxu0 0
    %4797 = vmatprep.subr.bf16.mxu0 0
    %4798 = vmatpush1.bf16.xpose.msra.mxu0 0
    %4799 = vmatprep.subr.bf16.mxu0 0
    %4800 = vmatpush1.bf16.xpose.msra.mxu0 0
    %4801 = vmatprep.subr.bf16.mxu0 0
    %4802 = vmatpush1.bf16.xpose.msra.mxu0 0
    %4803 = vmatprep.subr.bf16.mxu0 0
    %4804 = vmatpush1.bf16.xpose.msra.mxu0 0
    %4805 = vmatprep.subr.bf16.mxu0 0
    %4806 = vmatpush1.bf16.xpose.msra.mxu0 0
    %4807 = vmatprep.subr.bf16.mxu0 0
    %4808 = vmatpush1.bf16.xpose.msra.mxu0 0
    %4809 = vmatprep.subr.bf16.mxu0 0
    %4810 = vmatpush1.bf16.xpose.msra.mxu0 0
    %4811 = vmatprep.subr.bf16.mxu0 0
    %4812 = vmatpush1.bf16.xpose.msra.mxu0 0
    %4813 = vmatprep.mubr.bf16.mxu0 0
    %4814 = vmatmul.mubr.bf16.gmra.mrb[0].mxu0 %v4776
    %v4815 = vpop.f32.mrb[0].mxu0
    %v4816 = vadd.f32 0.0, %v4815
    %v4817 = vpop.f32.mrb[0].mxu0
    %v4818 = vpop.f32.mrb[0].mxu0
    %v4819 = vpop.f32.mrb[0].mxu0
    %4820 = vdwg.mxu0
    %v4821 = vsel %vm201, %v4480, -inf
    %4822 = vmax.xlane.f32.xlu0 %v4821
    %v4823 = vpop.xlane.xlu0 %4822
    %v4824 = vsel %vm201, %v4528, -inf
    %4825 = vmax.xlane.f32.xlu0 %v4824
    %v4826 = vpop.xlane.xlu0 %4825
    %v4827 = vsel %vm201, %v4576, -inf
    %4828 = vmax.xlane.f32.xlu0 %v4827
    %v4829 = vpop.xlane.xlu0 %4828
    %v4830 = vsel %vm201, %v4624, -inf
    %4831 = vmax.xlane.f32.xlu0 %v4830
    %v4832 = vpop.xlane.xlu0 %4831
    %v4833 = vsel %vm201, %v4672, -inf
    %4834 = vmax.xlane.f32.xlu0 %v4833
    %v4835 = vpop.xlane.xlu0 %4834
    %v4836 = vsel %vm201, %v4720, -inf
    %4837 = vmax.xlane.f32.xlu0 %v4836
    %v4838 = vpop.xlane.xlu0 %4837
    %v4839 = vsel %vm201, %v4768, -inf
    %4840 = vmax.xlane.f32.xlu0 %v4839
    %v4841 = vpop.xlane.xlu0 %4840
    %v4842 = vsel %vm201, %v4816, -inf
    %4843 = vmax.xlane.f32.xlu0 %v4842
    %v4844 = vpop.xlane.xlu0 %4843
    %v4845 = vsub.f32 %v4480, %v4823
    %v4846 = vsub.f32 %v4528, %v4826
    %v4847 = vsub.f32 %v4576, %v4829
    %v4848 = vsub.f32 %v4624, %v4832
    %v4849 = vsub.f32 %v4672, %v4835
    %v4850 = vsub.f32 %v4720, %v4838
    %v4851 = vsub.f32 %v4768, %v4841
    %v4852 = vsub.f32 %v4816, %v4844
    %v4853 = vmul.f32 %v4845, 1.442695
    %v4854 = vpow.pop %v4853
    %v4855 = vmul.f32 %v4846, 1.442695
    %v4856 = vpow.pop %v4855
    %v4857 = vmul.f32 %v4847, 1.442695
    %v4858 = vpow.pop %v4857
    %v4859 = vmul.f32 %v4848, 1.442695
    %v4860 = vpow.pop %v4859
    %v4861 = vmul.f32 %v4849, 1.442695
    %v4862 = vpow.pop %v4861
    %v4863 = vmul.f32 %v4850, 1.442695
    %v4864 = vpow.pop %v4863
    %v4865 = vmul.f32 %v4851, 1.442695
    %v4866 = vpow.pop %v4865
    %v4867 = vmul.f32 %v4852, 1.442695
    %v4868 = vpow.pop %v4867
    %v4869 = vsel %vm201, %v4854, 0.0
    %4870 = vadd.xlane.f32.xlu0 %v4869
    %v4871 = vpop.xlane.xlu0 %4870
    %v4872 = vsel %vm201, %v4856, 0.0
    %4873 = vadd.xlane.f32.xlu0 %v4872
    %v4874 = vpop.xlane.xlu0 %4873
    %v4875 = vsel %vm201, %v4858, 0.0
    %4876 = vadd.xlane.f32.xlu0 %v4875
    %v4877 = vpop.xlane.xlu0 %4876
    %v4878 = vsel %vm201, %v4860, 0.0
    %4879 = vadd.xlane.f32.xlu0 %v4878
    %v4880 = vpop.xlane.xlu0 %4879
    %v4881 = vsel %vm201, %v4862, 0.0
    %4882 = vadd.xlane.f32.xlu0 %v4881
    %v4883 = vpop.xlane.xlu0 %4882
    %v4884 = vsel %vm201, %v4864, 0.0
    %4885 = vadd.xlane.f32.xlu0 %v4884
    %v4886 = vpop.xlane.xlu0 %4885
    %v4887 = vsel %vm201, %v4866, 0.0
    %4888 = vadd.xlane.f32.xlu0 %v4887
    %v4889 = vpop.xlane.xlu0 %4888
    %v4890 = vsel %vm201, %v4868, 0.0
    %4891 = vadd.xlane.f32.xlu0 %v4890
    %v4892 = vpop.xlane.xlu0 %4891
    %v4893 = vrcp.pop %v4871
    %v4894 = vrcp.pop %v4874
    %v4895 = vrcp.pop %v4877
    %v4896 = vrcp.pop %v4880
    %v4897 = vrcp.pop %v4883
    %v4898 = vrcp.pop %v4886
    %v4899 = vrcp.pop %v4889
    %v4900 = vrcp.pop %v4892
    %v4901 = vmul.f32 %v4854, %v4893
    %v4902 = vmul.f32 %v4856, %v4894
    %v4903 = vmul.f32 %v4858, %v4895
    %v4904 = vmul.f32 %v4860, %v4896
    %v4905 = vmul.f32 %v4862, %v4897
    %v4906 = vmul.f32 %v4864, %v4898
    %v4907 = vmul.f32 %v4866, %v4899
    %v4908 = vmul.f32 %v4868, %v4900
    %v4909 = vpack.c.bf16 %v4901, %v4901
    %v4910 = vpack.c.bf16 %v4902, %v4902
    %v4911 = vpack.c.bf16 %v4903, %v4903
    %v4912 = vpack.c.bf16 %v4904, %v4904
    %v4913 = vpack.c.bf16 %v4905, %v4905
    %v4914 = vpack.c.bf16 %v4906, %v4906
    %v4915 = vpack.c.bf16 %v4907, %v4907
    %v4916 = vpack.c.bf16 %v4908, %v4908
    %4917 = vrot.lane.b32.xlu0 %v4429, 112
    %v4918 = vpop.permute.xlu0 %4917
    %v4920 = vsel %vm201, %v4909, 0
    %v4923 = vsel %vm685, %v4918, 0
    %4925 = vmatprep.subr.bf16.mxu0 0
    %4926 = vmatpush1.bf16.msra.mxu0 %v4923
    %4927 = vmatprep.subr.bf16.mxu0 0
    %4928 = vmatpush1.bf16.msra.mxu0 0
    %4929 = vmatprep.subr.bf16.mxu0 0
    %4930 = vmatpush1.bf16.msra.mxu0 0
    %4931 = vmatprep.subr.bf16.mxu0 0
    %4932 = vmatpush1.bf16.msra.mxu0 0
    %4933 = vmatprep.subr.bf16.mxu0 0
    %4934 = vmatpush1.bf16.msra.mxu0 0
    %4935 = vmatprep.subr.bf16.mxu0 0
    %4936 = vmatpush1.bf16.msra.mxu0 0
    %4937 = vmatprep.subr.bf16.mxu0 0
    %4938 = vmatpush1.bf16.msra.mxu0 0
    %4939 = vmatprep.subr.bf16.mxu0 0
    %4940 = vmatpush1.bf16.msra.mxu0 0
    %4941 = vmatprep.subr.bf16.mxu0 0
    %4942 = vmatpush1.bf16.msra.mxu0 0
    %4943 = vmatprep.subr.bf16.mxu0 0
    %4944 = vmatpush1.bf16.msra.mxu0 0
    %4945 = vmatprep.subr.bf16.mxu0 0
    %4946 = vmatpush1.bf16.msra.mxu0 0
    %4947 = vmatprep.subr.bf16.mxu0 0
    %4948 = vmatpush1.bf16.msra.mxu0 0
    %4949 = vmatprep.subr.bf16.mxu0 0
    %4950 = vmatpush1.bf16.msra.mxu0 0
    %4951 = vmatprep.subr.bf16.mxu0 0
    %4952 = vmatpush1.bf16.msra.mxu0 0
    %4953 = vmatprep.subr.bf16.mxu0 0
    %4954 = vmatpush1.bf16.msra.mxu0 0
    %4955 = vmatprep.subr.bf16.mxu0 0
    %4956 = vmatpush1.bf16.msra.mxu0 0
    %4957 = vmatprep.mubr.bf16.mxu0 0
    %4958 = vmatmul.mubr.bf16.gmra.mrb[0].mxu0 %v4920
    %v4959 = vpop.f32.mrb[0].mxu0
    %v4960 = vadd.f32 0.0, %v4959
    %v4961 = vpop.f32.mrb[0].mxu0
    %v4962 = vpop.f32.mrb[0].mxu0
    %v4963 = vpop.f32.mrb[0].mxu0
    %4964 = vdwg.mxu0
    %4965 = vrot.lane.b32.xlu0 %v4430, 112
    %v4966 = vpop.permute.xlu0 %4965
    %v4968 = vsel %vm201, %v4910, 0
    %v4971 = vsel %vm685, %v4966, 0
    %4973 = vmatprep.subr.bf16.mxu0 0
    %4974 = vmatpush1.bf16.msra.mxu0 %v4971
    %4975 = vmatprep.subr.bf16.mxu0 0
    %4976 = vmatpush1.bf16.msra.mxu0 0
    %4977 = vmatprep.subr.bf16.mxu0 0
    %4978 = vmatpush1.bf16.msra.mxu0 0
    %4979 = vmatprep.subr.bf16.mxu0 0
    %4980 = vmatpush1.bf16.msra.mxu0 0
    %4981 = vmatprep.subr.bf16.mxu0 0
    %4982 = vmatpush1.bf16.msra.mxu0 0
    %4983 = vmatprep.subr.bf16.mxu0 0
    %4984 = vmatpush1.bf16.msra.mxu0 0
    %4985 = vmatprep.subr.bf16.mxu0 0
    %4986 = vmatpush1.bf16.msra.mxu0 0
    %4987 = vmatprep.subr.bf16.mxu0 0
    %4988 = vmatpush1.bf16.msra.mxu0 0
    %4989 = vmatprep.subr.bf16.mxu0 0
    %4990 = vmatpush1.bf16.msra.mxu0 0
    %4991 = vmatprep.subr.bf16.mxu0 0
    %4992 = vmatpush1.bf16.msra.mxu0 0
    %4993 = vmatprep.subr.bf16.mxu0 0
    %4994 = vmatpush1.bf16.msra.mxu0 0
    %4995 = vmatprep.subr.bf16.mxu0 0
    %4996 = vmatpush1.bf16.msra.mxu0 0
    %4997 = vmatprep.subr.bf16.mxu0 0
    %4998 = vmatpush1.bf16.msra.mxu0 0
    %4999 = vmatprep.subr.bf16.mxu0 0
    %5000 = vmatpush1.bf16.msra.mxu0 0
    %5001 = vmatprep.subr.bf16.mxu0 0
    %5002 = vmatpush1.bf16.msra.mxu0 0
    %5003 = vmatprep.subr.bf16.mxu0 0
    %5004 = vmatpush1.bf16.msra.mxu0 0
    %5005 = vmatprep.mubr.bf16.mxu0 0
    %5006 = vmatmul.mubr.bf16.gmra.mrb[0].mxu0 %v4968
    %v5007 = vpop.f32.mrb[0].mxu0
    %v5008 = vadd.f32 0.0, %v5007
    %v5009 = vpop.f32.mrb[0].mxu0
    %v5010 = vpop.f32.mrb[0].mxu0
    %v5011 = vpop.f32.mrb[0].mxu0
    %5012 = vdwg.mxu0
    %5013 = vrot.lane.b32.xlu0 %v4431, 112
    %v5014 = vpop.permute.xlu0 %5013
    %v5016 = vsel %vm201, %v4911, 0
    %v5019 = vsel %vm685, %v5014, 0
    %5021 = vmatprep.subr.bf16.mxu0 0
    %5022 = vmatpush1.bf16.msra.mxu0 %v5019
    %5023 = vmatprep.subr.bf16.mxu0 0
    %5024 = vmatpush1.bf16.msra.mxu0 0
    %5025 = vmatprep.subr.bf16.mxu0 0
    %5026 = vmatpush1.bf16.msra.mxu0 0
    %5027 = vmatprep.subr.bf16.mxu0 0
    %5028 = vmatpush1.bf16.msra.mxu0 0
    %5029 = vmatprep.subr.bf16.mxu0 0
    %5030 = vmatpush1.bf16.msra.mxu0 0
    %5031 = vmatprep.subr.bf16.mxu0 0
    %5032 = vmatpush1.bf16.msra.mxu0 0
    %5033 = vmatprep.subr.bf16.mxu0 0
    %5034 = vmatpush1.bf16.msra.mxu0 0
    %5035 = vmatprep.subr.bf16.mxu0 0
    %5036 = vmatpush1.bf16.msra.mxu0 0
    %5037 = vmatprep.subr.bf16.mxu0 0
    %5038 = vmatpush1.bf16.msra.mxu0 0
    %5039 = vmatprep.subr.bf16.mxu0 0
    %5040 = vmatpush1.bf16.msra.mxu0 0
    %5041 = vmatprep.subr.bf16.mxu0 0
    %5042 = vmatpush1.bf16.msra.mxu0 0
    %5043 = vmatprep.subr.bf16.mxu0 0
    %5044 = vmatpush1.bf16.msra.mxu0 0
    %5045 = vmatprep.subr.bf16.mxu0 0
    %5046 = vmatpush1.bf16.msra.mxu0 0
    %5047 = vmatprep.subr.bf16.mxu0 0
    %5048 = vmatpush1.bf16.msra.mxu0 0
    %5049 = vmatprep.subr.bf16.mxu0 0
    %5050 = vmatpush1.bf16.msra.mxu0 0
    %5051 = vmatprep.subr.bf16.mxu0 0
    %5052 = vmatpush1.bf16.msra.mxu0 0
    %5053 = vmatprep.mubr.bf16.mxu0 0
    %5054 = vmatmul.mubr.bf16.gmra.mrb[0].mxu0 %v5016
    %v5055 = vpop.f32.mrb[0].mxu0
    %v5056 = vadd.f32 0.0, %v5055
    %v5057 = vpop.f32.mrb[0].mxu0
    %v5058 = vpop.f32.mrb[0].mxu0
    %v5059 = vpop.f32.mrb[0].mxu0
    %5060 = vdwg.mxu0
    %5061 = vrot.lane.b32.xlu0 %v4432, 112
    %v5062 = vpop.permute.xlu0 %5061
    %v5064 = vsel %vm201, %v4912, 0
    %v5067 = vsel %vm685, %v5062, 0
    %5069 = vmatprep.subr.bf16.mxu0 0
    %5070 = vmatpush1.bf16.msra.mxu0 %v5067
    %5071 = vmatprep.subr.bf16.mxu0 0
    %5072 = vmatpush1.bf16.msra.mxu0 0
    %5073 = vmatprep.subr.bf16.mxu0 0
    %5074 = vmatpush1.bf16.msra.mxu0 0
    %5075 = vmatprep.subr.bf16.mxu0 0
    %5076 = vmatpush1.bf16.msra.mxu0 0
    %5077 = vmatprep.subr.bf16.mxu0 0
    %5078 = vmatpush1.bf16.msra.mxu0 0
    %5079 = vmatprep.subr.bf16.mxu0 0
    %5080 = vmatpush1.bf16.msra.mxu0 0
    %5081 = vmatprep.subr.bf16.mxu0 0
    %5082 = vmatpush1.bf16.msra.mxu0 0
    %5083 = vmatprep.subr.bf16.mxu0 0
    %5084 = vmatpush1.bf16.msra.mxu0 0
    %5085 = vmatprep.subr.bf16.mxu0 0
    %5086 = vmatpush1.bf16.msra.mxu0 0
    %5087 = vmatprep.subr.bf16.mxu0 0
    %5088 = vmatpush1.bf16.msra.mxu0 0
    %5089 = vmatprep.subr.bf16.mxu0 0
    %5090 = vmatpush1.bf16.msra.mxu0 0
    %5091 = vmatprep.subr.bf16.mxu0 0
    %5092 = vmatpush1.bf16.msra.mxu0 0
    %5093 = vmatprep.subr.bf16.mxu0 0
    %5094 = vmatpush1.bf16.msra.mxu0 0
    %5095 = vmatprep.subr.bf16.mxu0 0
    %5096 = vmatpush1.bf16.msra.mxu0 0
    %5097 = vmatprep.subr.bf16.mxu0 0
    %5098 = vmatpush1.bf16.msra.mxu0 0
    %5099 = vmatprep.subr.bf16.mxu0 0
    %5100 = vmatpush1.bf16.msra.mxu0 0
    %5101 = vmatprep.mubr.bf16.mxu0 0
    %5102 = vmatmul.mubr.bf16.gmra.mrb[0].mxu0 %v5064
    %v5103 = vpop.f32.mrb[0].mxu0
    %v5104 = vadd.f32 0.0, %v5103
    %v5105 = vpop.f32.mrb[0].mxu0
    %v5106 = vpop.f32.mrb[0].mxu0
    %v5107 = vpop.f32.mrb[0].mxu0
    %5108 = vdwg.mxu0
    %5109 = vrot.lane.b32.xlu0 %v4433, 112
    %v5110 = vpop.permute.xlu0 %5109
    %v5112 = vsel %vm201, %v4913, 0
    %v5115 = vsel %vm685, %v5110, 0
    %5117 = vmatprep.subr.bf16.mxu0 0
    %5118 = vmatpush1.bf16.msra.mxu0 %v5115
    %5119 = vmatprep.subr.bf16.mxu0 0
    %5120 = vmatpush1.bf16.msra.mxu0 0
    %5121 = vmatprep.subr.bf16.mxu0 0
    %5122 = vmatpush1.bf16.msra.mxu0 0
    %5123 = vmatprep.subr.bf16.mxu0 0
    %5124 = vmatpush1.bf16.msra.mxu0 0
    %5125 = vmatprep.subr.bf16.mxu0 0
    %5126 = vmatpush1.bf16.msra.mxu0 0
    %5127 = vmatprep.subr.bf16.mxu0 0
    %5128 = vmatpush1.bf16.msra.mxu0 0
    %5129 = vmatprep.subr.bf16.mxu0 0
    %5130 = vmatpush1.bf16.msra.mxu0 0
    %5131 = vmatprep.subr.bf16.mxu0 0
    %5132 = vmatpush1.bf16.msra.mxu0 0
    %5133 = vmatprep.subr.bf16.mxu0 0
    %5134 = vmatpush1.bf16.msra.mxu0 0
    %5135 = vmatprep.subr.bf16.mxu0 0
    %5136 = vmatpush1.bf16.msra.mxu0 0
    %5137 = vmatprep.subr.bf16.mxu0 0
    %5138 = vmatpush1.bf16.msra.mxu0 0
    %5139 = vmatprep.subr.bf16.mxu0 0
    %5140 = vmatpush1.bf16.msra.mxu0 0
    %5141 = vmatprep.subr.bf16.mxu0 0
    %5142 = vmatpush1.bf16.msra.mxu0 0
    %5143 = vmatprep.subr.bf16.mxu0 0
    %5144 = vmatpush1.bf16.msra.mxu0 0
    %5145 = vmatprep.subr.bf16.mxu0 0
    %5146 = vmatpush1.bf16.msra.mxu0 0
    %5147 = vmatprep.subr.bf16.mxu0 0
    %5148 = vmatpush1.bf16.msra.mxu0 0
    %5149 = vmatprep.mubr.bf16.mxu0 0
    %5150 = vmatmul.mubr.bf16.gmra.mrb[0].mxu0 %v5112
    %v5151 = vpop.f32.mrb[0].mxu0
    %v5152 = vadd.f32 0.0, %v5151
    %v5153 = vpop.f32.mrb[0].mxu0
    %v5154 = vpop.f32.mrb[0].mxu0
    %v5155 = vpop.f32.mrb[0].mxu0
    %5156 = vdwg.mxu0
    %5157 = vrot.lane.b32.xlu0 %v4434, 112
    %v5158 = vpop.permute.xlu0 %5157
    %v5160 = vsel %vm201, %v4914, 0
    %v5163 = vsel %vm685, %v5158, 0
    %5165 = vmatprep.subr.bf16.mxu0 0
    %5166 = vmatpush1.bf16.msra.mxu0 %v5163
    %5167 = vmatprep.subr.bf16.mxu0 0
    %5168 = vmatpush1.bf16.msra.mxu0 0
    %5169 = vmatprep.subr.bf16.mxu0 0
    %5170 = vmatpush1.bf16.msra.mxu0 0
    %5171 = vmatprep.subr.bf16.mxu0 0
    %5172 = vmatpush1.bf16.msra.mxu0 0
    %5173 = vmatprep.subr.bf16.mxu0 0
    %5174 = vmatpush1.bf16.msra.mxu0 0
    %5175 = vmatprep.subr.bf16.mxu0 0
    %5176 = vmatpush1.bf16.msra.mxu0 0
    %5177 = vmatprep.subr.bf16.mxu0 0
    %5178 = vmatpush1.bf16.msra.mxu0 0
    %5179 = vmatprep.subr.bf16.mxu0 0
    %5180 = vmatpush1.bf16.msra.mxu0 0
    %5181 = vmatprep.subr.bf16.mxu0 0
    %5182 = vmatpush1.bf16.msra.mxu0 0
    %5183 = vmatprep.subr.bf16.mxu0 0
    %5184 = vmatpush1.bf16.msra.mxu0 0
    %5185 = vmatprep.subr.bf16.mxu0 0
    %5186 = vmatpush1.bf16.msra.mxu0 0
    %5187 = vmatprep.subr.bf16.mxu0 0
    %5188 = vmatpush1.bf16.msra.mxu0 0
    %5189 = vmatprep.subr.bf16.mxu0 0
    %5190 = vmatpush1.bf16.msra.mxu0 0
    %5191 = vmatprep.subr.bf16.mxu0 0
    %5192 = vmatpush1.bf16.msra.mxu0 0
    %5193 = vmatprep.subr.bf16.mxu0 0
    %5194 = vmatpush1.bf16.msra.mxu0 0
    %5195 = vmatprep.subr.bf16.mxu0 0
    %5196 = vmatpush1.bf16.msra.mxu0 0
    %5197 = vmatprep.mubr.bf16.mxu0 0
    %5198 = vmatmul.mubr.bf16.gmra.mrb[0].mxu0 %v5160
    %v5199 = vpop.f32.mrb[0].mxu0
    %v5200 = vadd.f32 0.0, %v5199
    %v5201 = vpop.f32.mrb[0].mxu0
    %v5202 = vpop.f32.mrb[0].mxu0
    %v5203 = vpop.f32.mrb[0].mxu0
    %5204 = vdwg.mxu0
    %5205 = vrot.lane.b32.xlu0 %v4435, 112
    %v5206 = vpop.permute.xlu0 %5205
    %v5208 = vsel %vm201, %v4915, 0
    %v5211 = vsel %vm685, %v5206, 0
    %5213 = vmatprep.subr.bf16.mxu0 0
    %5214 = vmatpush1.bf16.msra.mxu0 %v5211
    %5215 = vmatprep.subr.bf16.mxu0 0
    %5216 = vmatpush1.bf16.msra.mxu0 0
    %5217 = vmatprep.subr.bf16.mxu0 0
    %5218 = vmatpush1.bf16.msra.mxu0 0
    %5219 = vmatprep.subr.bf16.mxu0 0
    %5220 = vmatpush1.bf16.msra.mxu0 0
    %5221 = vmatprep.subr.bf16.mxu0 0
    %5222 = vmatpush1.bf16.msra.mxu0 0
    %5223 = vmatprep.subr.bf16.mxu0 0
    %5224 = vmatpush1.bf16.msra.mxu0 0
    %5225 = vmatprep.subr.bf16.mxu0 0
    %5226 = vmatpush1.bf16.msra.mxu0 0
    %5227 = vmatprep.subr.bf16.mxu0 0
    %5228 = vmatpush1.bf16.msra.mxu0 0
    %5229 = vmatprep.subr.bf16.mxu0 0
    %5230 = vmatpush1.bf16.msra.mxu0 0
    %5231 = vmatprep.subr.bf16.mxu0 0
    %5232 = vmatpush1.bf16.msra.mxu0 0
    %5233 = vmatprep.subr.bf16.mxu0 0
    %5234 = vmatpush1.bf16.msra.mxu0 0
    %5235 = vmatprep.subr.bf16.mxu0 0
    %5236 = vmatpush1.bf16.msra.mxu0 0
    %5237 = vmatprep.subr.bf16.mxu0 0
    %5238 = vmatpush1.bf16.msra.mxu0 0
    %5239 = vmatprep.subr.bf16.mxu0 0
    %5240 = vmatpush1.bf16.msra.mxu0 0
    %5241 = vmatprep.subr.bf16.mxu0 0
    %5242 = vmatpush1.bf16.msra.mxu0 0
    %5243 = vmatprep.subr.bf16.mxu0 0
    %5244 = vmatpush1.bf16.msra.mxu0 0
    %5245 = vmatprep.mubr.bf16.mxu0 0
    %5246 = vmatmul.mubr.bf16.gmra.mrb[0].mxu0 %v5208
    %v5247 = vpop.f32.mrb[0].mxu0
    %v5248 = vadd.f32 0.0, %v5247
    %v5249 = vpop.f32.mrb[0].mxu0
    %v5250 = vpop.f32.mrb[0].mxu0
    %v5251 = vpop.f32.mrb[0].mxu0
    %5252 = vdwg.mxu0
    %5253 = vrot.lane.b32.xlu0 %v4436, 112
    %v5254 = vpop.permute.xlu0 %5253
    %v5256 = vsel %vm201, %v4916, 0
    %v5259 = vsel %vm685, %v5254, 0
    %5261 = vmatprep.subr.bf16.mxu0 0
    %5262 = vmatpush1.bf16.msra.mxu0 %v5259
    %5263 = vmatprep.subr.bf16.mxu0 0
    %5264 = vmatpush1.bf16.msra.mxu0 0
    %5265 = vmatprep.subr.bf16.mxu0 0
    %5266 = vmatpush1.bf16.msra.mxu0 0
    %5267 = vmatprep.subr.bf16.mxu0 0
    %5268 = vmatpush1.bf16.msra.mxu0 0
    %5269 = vmatprep.subr.bf16.mxu0 0
    %5270 = vmatpush1.bf16.msra.mxu0 0
    %5271 = vmatprep.subr.bf16.mxu0 0
    %5272 = vmatpush1.bf16.msra.mxu0 0
    %5273 = vmatprep.subr.bf16.mxu0 0
    %5274 = vmatpush1.bf16.msra.mxu0 0
    %5275 = vmatprep.subr.bf16.mxu0 0
    %5276 = vmatpush1.bf16.msra.mxu0 0
    %5277 = vmatprep.subr.bf16.mxu0 0
    %5278 = vmatpush1.bf16.msra.mxu0 0
    %5279 = vmatprep.subr.bf16.mxu0 0
    %5280 = vmatpush1.bf16.msra.mxu0 0
    %5281 = vmatprep.subr.bf16.mxu0 0
    %5282 = vmatpush1.bf16.msra.mxu0 0
    %5283 = vmatprep.subr.bf16.mxu0 0
    %5284 = vmatpush1.bf16.msra.mxu0 0
    %5285 = vmatprep.subr.bf16.mxu0 0
    %5286 = vmatpush1.bf16.msra.mxu0 0
    %5287 = vmatprep.subr.bf16.mxu0 0
    %5288 = vmatpush1.bf16.msra.mxu0 0
    %5289 = vmatprep.subr.bf16.mxu0 0
    %5290 = vmatpush1.bf16.msra.mxu0 0
    %5291 = vmatprep.subr.bf16.mxu0 0
    %5292 = vmatpush1.bf16.msra.mxu0 0
    %5293 = vmatprep.mubr.bf16.mxu0 0
    %5294 = vmatmul.mubr.bf16.gmra.mrb[0].mxu0 %v5256
    %v5295 = vpop.f32.mrb[0].mxu0
    %v5296 = vadd.f32 0.0, %v5295
    %v5297 = vpop.f32.mrb[0].mxu0
    %v5298 = vpop.f32.mrb[0].mxu0
    %v5299 = vpop.f32.mrb[0].mxu0
    %5300 = vdwg.mxu0
    %v5301 = vpack.c.bf16 %v5008, %v4960
    %v5302 = vpack.c.bf16 %v5104, %v5056
    %v5303 = vpack.c.bf16 %v5200, %v5152
    %v5304 = vpack.c.bf16 %v5296, %v5248
    %v5305 = vld [vmem:[#allocation7] sm:$0xf]
    %v5306 = vld [vmem:[#allocation7 + $0x4] sm:$0xf]
    %v5307 = vld [vmem:[#allocation7 + $0x8] sm:$0xf]
    %v5308 = vld [vmem:[#allocation7 + $0xc] sm:$0xf]
    %v5310 = vsel %vm201, %v5301, 0
    %v5313 = vsel %vm685, %v5305, 0
    %5315 = vmatprep.subr.bf16.mxu0 0
    %5316 = vmatpush1.bf16.msra.mxu0 %v5313
    %5317 = vmatprep.subr.bf16.mxu0 0
    %5318 = vmatpush1.bf16.msra.mxu0 0
    %5319 = vmatprep.subr.bf16.mxu0 0
    %5320 = vmatpush1.bf16.msra.mxu0 0
    %5321 = vmatprep.subr.bf16.mxu0 0
    %5322 = vmatpush1.bf16.msra.mxu0 0
    %5323 = vmatprep.subr.bf16.mxu0 0
    %5324 = vmatpush1.bf16.msra.mxu0 0
    %5325 = vmatprep.subr.bf16.mxu0 0
    %5326 = vmatpush1.bf16.msra.mxu0 0
    %5327 = vmatprep.subr.bf16.mxu0 0
    %5328 = vmatpush1.bf16.msra.mxu0 0
    %5329 = vmatprep.subr.bf16.mxu0 0
    %5330 = vmatpush1.bf16.msra.mxu0 0
    %5331 = vmatprep.subr.bf16.mxu0 0
    %5332 = vmatpush1.bf16.msra.mxu0 0
    %5333 = vmatprep.subr.bf16.mxu0 0
    %5334 = vmatpush1.bf16.msra.mxu0 0
    %5335 = vmatprep.subr.bf16.mxu0 0
    %5336 = vmatpush1.bf16.msra.mxu0 0
    %5337 = vmatprep.subr.bf16.mxu0 0
    %5338 = vmatpush1.bf16.msra.mxu0 0
    %5339 = vmatprep.subr.bf16.mxu0 0
    %5340 = vmatpush1.bf16.msra.mxu0 0
    %5341 = vmatprep.subr.bf16.mxu0 0
    %5342 = vmatpush1.bf16.msra.mxu0 0
    %5343 = vmatprep.subr.bf16.mxu0 0
    %5344 = vmatpush1.bf16.msra.mxu0 0
    %5345 = vmatprep.subr.bf16.mxu0 0
    %5346 = vmatpush1.bf16.msra.mxu0 0
    %5347 = vmatprep.mubr.bf16.mxu0 0
    %5348 = vmatmul.mubr.bf16.gmra.mrb[0].mxu0 %v5310
    %v5349 = vpop.f32.mrb[0].mxu0
    %v5350 = vadd.f32 0.0, %v5349
    %v5351 = vpop.f32.mrb[0].mxu0
    %v5352 = vpop.f32.mrb[0].mxu0
    %v5353 = vadd.f32 0.0, %v5352
    %v5354 = vpop.f32.mrb[0].mxu0
    %5355 = vdwg.mxu0
    %v5357 = vsel %vm201, %v5302, 0
    %v5360 = vsel %vm685, %v5306, 0
    %5362 = vmatprep.subr.bf16.mxu0 0
    %5363 = vmatpush1.bf16.msra.mxu0 %v5360
    %5364 = vmatprep.subr.bf16.mxu0 0
    %5365 = vmatpush1.bf16.msra.mxu0 0
    %5366 = vmatprep.subr.bf16.mxu0 0
    %5367 = vmatpush1.bf16.msra.mxu0 0
    %5368 = vmatprep.subr.bf16.mxu0 0
    %5369 = vmatpush1.bf16.msra.mxu0 0
    %5370 = vmatprep.subr.bf16.mxu0 0
    %5371 = vmatpush1.bf16.msra.mxu0 0
    %5372 = vmatprep.subr.bf16.mxu0 0
    %5373 = vmatpush1.bf16.msra.mxu0 0
    %5374 = vmatprep.subr.bf16.mxu0 0
    %5375 = vmatpush1.bf16.msra.mxu0 0
    %5376 = vmatprep.subr.bf16.mxu0 0
    %5377 = vmatpush1.bf16.msra.mxu0 0
    %5378 = vmatprep.subr.bf16.mxu0 0
    %5379 = vmatpush1.bf16.msra.mxu0 0
    %5380 = vmatprep.subr.bf16.mxu0 0
    %5381 = vmatpush1.bf16.msra.mxu0 0
    %5382 = vmatprep.subr.bf16.mxu0 0
    %5383 = vmatpush1.bf16.msra.mxu0 0
    %5384 = vmatprep.subr.bf16.mxu0 0
    %5385 = vmatpush1.bf16.msra.mxu0 0
    %5386 = vmatprep.subr.bf16.mxu0 0
    %5387 = vmatpush1.bf16.msra.mxu0 0
    %5388 = vmatprep.subr.bf16.mxu0 0
    %5389 = vmatpush1.bf16.msra.mxu0 0
    %5390 = vmatprep.subr.bf16.mxu0 0
    %5391 = vmatpush1.bf16.msra.mxu0 0
    %5392 = vmatprep.subr.bf16.mxu0 0
    %5393 = vmatpush1.bf16.msra.mxu0 0
    %5394 = vmatprep.mubr.bf16.mxu0 0
    %5395 = vmatmul.mubr.bf16.gmra.mrb[0].mxu0 %v5357
    %v5396 = vpop.f32.mrb[0].mxu0
    %v5397 = vadd.f32 0.0, %v5396
    %v5398 = vpop.f32.mrb[0].mxu0
    %v5399 = vpop.f32.mrb[0].mxu0
    %v5400 = vadd.f32 0.0, %v5399
    %v5401 = vpop.f32.mrb[0].mxu0
    %5402 = vdwg.mxu0
    %v5404 = vsel %vm201, %v5303, 0
    %v5407 = vsel %vm685, %v5307, 0
    %5409 = vmatprep.subr.bf16.mxu0 0
    %5410 = vmatpush1.bf16.msra.mxu0 %v5407
    %5411 = vmatprep.subr.bf16.mxu0 0
    %5412 = vmatpush1.bf16.msra.mxu0 0
    %5413 = vmatprep.subr.bf16.mxu0 0
    %5414 = vmatpush1.bf16.msra.mxu0 0
    %5415 = vmatprep.subr.bf16.mxu0 0
    %5416 = vmatpush1.bf16.msra.mxu0 0
    %5417 = vmatprep.subr.bf16.mxu0 0
    %5418 = vmatpush1.bf16.msra.mxu0 0
    %5419 = vmatprep.subr.bf16.mxu0 0
    %5420 = vmatpush1.bf16.msra.mxu0 0
    %5421 = vmatprep.subr.bf16.mxu0 0
    %5422 = vmatpush1.bf16.msra.mxu0 0
    %5423 = vmatprep.subr.bf16.mxu0 0
    %5424 = vmatpush1.bf16.msra.mxu0 0
    %5425 = vmatprep.subr.bf16.mxu0 0
    %5426 = vmatpush1.bf16.msra.mxu0 0
    %5427 = vmatprep.subr.bf16.mxu0 0
    %5428 = vmatpush1.bf16.msra.mxu0 0
    %5429 = vmatprep.subr.bf16.mxu0 0
    %5430 = vmatpush1.bf16.msra.mxu0 0
    %5431 = vmatprep.subr.bf16.mxu0 0
    %5432 = vmatpush1.bf16.msra.mxu0 0
    %5433 = vmatprep.subr.bf16.mxu0 0
    %5434 = vmatpush1.bf16.msra.mxu0 0
    %5435 = vmatprep.subr.bf16.mxu0 0
    %5436 = vmatpush1.bf16.msra.mxu0 0
    %5437 = vmatprep.subr.bf16.mxu0 0
    %5438 = vmatpush1.bf16.msra.mxu0 0
    %5439 = vmatprep.subr.bf16.mxu0 0
    %5440 = vmatpush1.bf16.msra.mxu0 0
    %5441 = vmatprep.mubr.bf16.mxu0 0
    %5442 = vmatmul.mubr.bf16.gmra.mrb[0].mxu0 %v5404
    %v5443 = vpop.f32.mrb[0].mxu0
    %v5444 = vadd.f32 0.0, %v5443
    %v5445 = vpop.f32.mrb[0].mxu0
    %v5446 = vpop.f32.mrb[0].mxu0
    %v5447 = vadd.f32 0.0, %v5446
    %v5448 = vpop.f32.mrb[0].mxu0
    %5449 = vdwg.mxu0
    %v5451 = vsel %vm201, %v5304, 0
    %v5454 = vsel %vm685, %v5308, 0
    %5456 = vmatprep.subr.bf16.mxu0 0
    %5457 = vmatpush1.bf16.msra.mxu0 %v5454
    %5458 = vmatprep.subr.bf16.mxu0 0
    %5459 = vmatpush1.bf16.msra.mxu0 0
    %5460 = vmatprep.subr.bf16.mxu0 0
    %5461 = vmatpush1.bf16.msra.mxu0 0
    %5462 = vmatprep.subr.bf16.mxu0 0
    %5463 = vmatpush1.bf16.msra.mxu0 0
    %5464 = vmatprep.subr.bf16.mxu0 0
    %5465 = vmatpush1.bf16.msra.mxu0 0
    %5466 = vmatprep.subr.bf16.mxu0 0
    %5467 = vmatpush1.bf16.msra.mxu0 0
    %5468 = vmatprep.subr.bf16.mxu0 0
    %5469 = vmatpush1.bf16.msra.mxu0 0
    %5470 = vmatprep.subr.bf16.mxu0 0
    %5471 = vmatpush1.bf16.msra.mxu0 0
    %5472 = vmatprep.subr.bf16.mxu0 0
    %5473 = vmatpush1.bf16.msra.mxu0 0
    %5474 = vmatprep.subr.bf16.mxu0 0
    %5475 = vmatpush1.bf16.msra.mxu0 0
    %5476 = vmatprep.subr.bf16.mxu0 0
    %5477 = vmatpush1.bf16.msra.mxu0 0
    %5478 = vmatprep.subr.bf16.mxu0 0
    %5479 = vmatpush1.bf16.msra.mxu0 0
    %5480 = vmatprep.subr.bf16.mxu0 0
    %5481 = vmatpush1.bf16.msra.mxu0 0
    %5482 = vmatprep.subr.bf16.mxu0 0
    %5483 = vmatpush1.bf16.msra.mxu0 0
    %5484 = vmatprep.subr.bf16.mxu0 0
    %5485 = vmatpush1.bf16.msra.mxu0 0
    %5486 = vmatprep.subr.bf16.mxu0 0
    %5487 = vmatpush1.bf16.msra.mxu0 0
    %5488 = vmatprep.mubr.bf16.mxu0 0
    %5489 = vmatmul.mubr.bf16.gmra.mrb[0].mxu0 %v5451
    %v5490 = vpop.f32.mrb[0].mxu0
    %v5491 = vadd.f32 0.0, %v5490
    %v5492 = vpop.f32.mrb[0].mxu0
    %v5493 = vpop.f32.mrb[0].mxu0
    %v5494 = vadd.f32 0.0, %v5493
    %v5495 = vpop.f32.mrb[0].mxu0
    %5496 = vdwg.mxu0
    %v5497 = vadd.f32 %v67, %v5350
    %v5498 = vadd.f32 %v67, %v5353
    %v5499 = vadd.f32 %v5497, %v5397
    %v5500 = vadd.f32 %v5498, %v5400
    %v5501 = vadd.f32 %v5499, %v5444
    %v5502 = vadd.f32 %v5500, %v5447
    %v5503 = vadd.f32 %v5501, %v5491
    %v5504 = vadd.f32 %v5502, %v5494
    %v5505 = vpack.c.bf16 %v5504, %v5503
    %v5506 = vld [vmem:[#allocation5 + $0x4] sm:$0xf]
    %v5507 = vld [vmem:[#allocation5 + $0x10] sm:$0xf]
    %v5508 = vld [vmem:[#allocation5 + $0x1c] sm:$0xf]
    %v5509 = vld [vmem:[#allocation5 + $0x28] sm:$0xf]
    %v5510 = vld [vmem:[#allocation5 + $0x34] sm:$0xf]
    %v5511 = vld [vmem:[#allocation5 + $0x40] sm:$0xf]
    %v5512 = vld [vmem:[#allocation5 + $0x4c] sm:$0xf]
    %v5513 = vld [vmem:[#allocation5 + $0x58] sm:$0xf]
    %v5514 = vld [vmem:[#allocation5 + $0x64] sm:$0xf]
    %v5515 = vld [vmem:[#allocation5 + $0x70] sm:$0xf]
    %v5516 = vld [vmem:[#allocation5 + $0x7c] sm:$0xf]
    %v5517 = vld [vmem:[#allocation5 + $0x88] sm:$0xf]
    %v5518 = vld [vmem:[#allocation5 + $0x94] sm:$0xf]
    %v5519 = vld [vmem:[#allocation5 + $0xa0] sm:$0xf]
    %v5520 = vld [vmem:[#allocation5 + $0xac] sm:$0xf]
    %v5521 = vld [vmem:[#allocation5 + $0xb8] sm:$0xf]
    %v5538 = vunpack.c.l.b16 %v5506
    %v5539 = vunpack.c.l.b16 %v5507
    %v5540 = vunpack.c.l.b16 %v5508
    %v5541 = vunpack.c.l.b16 %v5509
    %v5542 = vunpack.c.l.b16 %v5510
    %v5543 = vunpack.c.l.b16 %v5511
    %v5544 = vunpack.c.l.b16 %v5512
    %v5545 = vunpack.c.l.b16 %v5513
    %v5546 = vunpack.c.l.b16 %v5514
    %v5547 = vunpack.c.l.b16 %v5515
    %v5548 = vunpack.c.l.b16 %v5516
    %v5549 = vunpack.c.l.b16 %v5517
    %v5550 = vunpack.c.l.b16 %v5518
    %v5551 = vunpack.c.l.b16 %v5519
    %v5552 = vunpack.c.l.b16 %v5520
    %v5553 = vunpack.c.l.b16 %v5521
    %v5554 = vpack.c.b16 %v5539, %v5538
    %v5555 = vpack.c.b16 %v5541, %v5540
    %v5556 = vpack.c.b16 %v5543, %v5542
    %v5557 = vpack.c.b16 %v5545, %v5544
    %v5558 = vpack.c.b16 %v5547, %v5546
    %v5559 = vpack.c.b16 %v5549, %v5548
    %v5560 = vpack.c.b16 %v5551, %v5550
    %v5561 = vpack.c.b16 %v5553, %v5552
    %5570 = vmatprep.subr.bf16.mxu0 0
    %5571 = vmatpush1.bf16.msra.mxu0 %v5554
    %5572 = vmatprep.subr.bf16.mxu0 0
    %5573 = vmatpush1.bf16.msra.mxu0 %v5555
    %5574 = vmatprep.subr.bf16.mxu0 0
    %5575 = vmatpush1.bf16.msra.mxu0 %v5556
    %5576 = vmatprep.subr.bf16.mxu0 0
    %5577 = vmatpush1.bf16.msra.mxu0 %v5557
    %5578 = vmatprep.subr.bf16.mxu0 0
    %5579 = vmatpush1.bf16.msra.mxu0 %v5558
    %5580 = vmatprep.subr.bf16.mxu0 0
    %5581 = vmatpush1.bf16.msra.mxu0 %v5559
    %5582 = vmatprep.subr.bf16.mxu0 0
    %5583 = vmatpush1.bf16.msra.mxu0 %v5560
    %5584 = vmatprep.subr.bf16.mxu0 0
    %5585 = vmatpush1.bf16.msra.mxu0 %v5561
    %5586 = vmatprep.subr.bf16.mxu0 0
    %5587 = vmatpush1.bf16.msra.mxu0 0
    %5588 = vmatprep.subr.bf16.mxu0 0
    %5589 = vmatpush1.bf16.msra.mxu0 0
    %5590 = vmatprep.subr.bf16.mxu0 0
    %5591 = vmatpush1.bf16.msra.mxu0 0
    %5592 = vmatprep.subr.bf16.mxu0 0
    %5593 = vmatpush1.bf16.msra.mxu0 0
    %5594 = vmatprep.subr.bf16.mxu0 0
    %5595 = vmatpush1.bf16.msra.mxu0 0
    %5596 = vmatprep.subr.bf16.mxu0 0
    %5597 = vmatpush1.bf16.msra.mxu0 0
    %5598 = vmatprep.subr.bf16.mxu0 0
    %5599 = vmatpush1.bf16.msra.mxu0 0
    %5600 = vmatprep.subr.bf16.mxu0 0
    %5601 = vmatpush1.bf16.msra.mxu0 0
    %5602 = vmatprep.mubr.bf16.mxu0 0
    %5603 = vmatmul.mubr.bf16.gmra.mrb[0].mxu0 %v5505
    %v5604 = vpop.f32.mrb[0].mxu0
    %v5605 = vadd.f32 0.0, %v5604
    %v5606 = vpop.f32.mrb[0].mxu0
    %v5607 = vpop.f32.mrb[0].mxu0
    %v5608 = vadd.f32 0.0, %v5607
    %v5609 = vpop.f32.mrb[0].mxu0
    %5610 = vdwg.mxu0
    %v5611 = vmax.f32 %v5605, 0.0
    %v5612 = vmax.f32 %v5608, 0.0
    %v5613 = vpack.c.bf16 %v5612, %v5611
    %v5614 = vld [vmem:[#allocation5 + $0x8] sm:$0xf]
    %v5615 = vld [vmem:[#allocation5 + $0x14] sm:$0xf]
    %v5616 = vld [vmem:[#allocation5 + $0x20] sm:$0xf]
    %v5617 = vld [vmem:[#allocation5 + $0x2c] sm:$0xf]
    %v5618 = vld [vmem:[#allocation5 + $0x38] sm:$0xf]
    %v5619 = vld [vmem:[#allocation5 + $0x44] sm:$0xf]
    %v5620 = vld [vmem:[#allocation5 + $0x50] sm:$0xf]
    %v5621 = vld [vmem:[#allocation5 + $0x5c] sm:$0xf]
    %v5622 = vld [vmem:[#allocation5 + $0x68] sm:$0xf]
    %v5623 = vld [vmem:[#allocation5 + $0x74] sm:$0xf]
    %v5624 = vld [vmem:[#allocation5 + $0x80] sm:$0xf]
    %v5625 = vld [vmem:[#allocation5 + $0x8c] sm:$0xf]
    %v5626 = vld [vmem:[#allocation5 + $0x98] sm:$0xf]
    %v5627 = vld [vmem:[#allocation5 + $0xa4] sm:$0xf]
    %v5628 = vld [vmem:[#allocation5 + $0xb0] sm:$0xf]
    %v5629 = vld [vmem:[#allocation5 + $0xbc] sm:$0xf]
    %v5646 = vunpack.c.l.b16 %v5614
    %v5647 = vunpack.c.l.b16 %v5615
    %v5648 = vunpack.c.l.b16 %v5616
    %v5649 = vunpack.c.l.b16 %v5617
    %v5650 = vunpack.c.l.b16 %v5618
    %v5651 = vunpack.c.l.b16 %v5619
    %v5652 = vunpack.c.l.b16 %v5620
    %v5653 = vunpack.c.l.b16 %v5621
    %v5654 = vunpack.c.l.b16 %v5622
    %v5655 = vunpack.c.l.b16 %v5623
    %v5656 = vunpack.c.l.b16 %v5624
    %v5657 = vunpack.c.l.b16 %v5625
    %v5658 = vunpack.c.l.b16 %v5626
    %v5659 = vunpack.c.l.b16 %v5627
    %v5660 = vunpack.c.l.b16 %v5628
    %v5661 = vunpack.c.l.b16 %v5629
    %v5662 = vpack.c.b16 %v5647, %v5646
    %v5663 = vpack.c.b16 %v5649, %v5648
    %v5664 = vpack.c.b16 %v5651, %v5650
    %v5665 = vpack.c.b16 %v5653, %v5652
    %v5666 = vpack.c.b16 %v5655, %v5654
    %v5667 = vpack.c.b16 %v5657, %v5656
    %v5668 = vpack.c.b16 %v5659, %v5658
    %v5669 = vpack.c.b16 %v5661, %v5660
    %5678 = vmatprep.subr.bf16.mxu0 0
    %5679 = vmatpush1.bf16.msra.mxu0 %v5662
    %5680 = vmatprep.subr.bf16.mxu0 0
    %5681 = vmatpush1.bf16.msra.mxu0 %v5663
    %5682 = vmatprep.subr.bf16.mxu0 0
    %5683 = vmatpush1.bf16.msra.mxu0 %v5664
    %5684 = vmatprep.subr.bf16.mxu0 0
    %5685 = vmatpush1.bf16.msra.mxu0 %v5665
    %5686 = vmatprep.subr.bf16.mxu0 0
    %5687 = vmatpush1.bf16.msra.mxu0 %v5666
    %5688 = vmatprep.subr.bf16.mxu0 0
    %5689 = vmatpush1.bf16.msra.mxu0 %v5667
    %5690 = vmatprep.subr.bf16.mxu0 0
    %5691 = vmatpush1.bf16.msra.mxu0 %v5668
    %5692 = vmatprep.subr.bf16.mxu0 0
    %5693 = vmatpush1.bf16.msra.mxu0 %v5669
    %5694 = vmatprep.subr.bf16.mxu0 0
    %5695 = vmatpush1.bf16.msra.mxu0 0
    %5696 = vmatprep.subr.bf16.mxu0 0
    %5697 = vmatpush1.bf16.msra.mxu0 0
    %5698 = vmatprep.subr.bf16.mxu0 0
    %5699 = vmatpush1.bf16.msra.mxu0 0
    %5700 = vmatprep.subr.bf16.mxu0 0
    %5701 = vmatpush1.bf16.msra.mxu0 0
    %5702 = vmatprep.subr.bf16.mxu0 0
    %5703 = vmatpush1.bf16.msra.mxu0 0
    %5704 = vmatprep.subr.bf16.mxu0 0
    %5705 = vmatpush1.bf16.msra.mxu0 0
    %5706 = vmatprep.subr.bf16.mxu0 0
    %5707 = vmatpush1.bf16.msra.mxu0 0
    %5708 = vmatprep.subr.bf16.mxu0 0
    %5709 = vmatpush1.bf16.msra.mxu0 0
    %5710 = vmatprep.mubr.bf16.mxu0 0
    %5711 = vmatmul.mubr.bf16.gmra.mrb[0].mxu0 %v5613
    %v5712 = vpop.f32.mrb[0].mxu0
    %v5713 = vadd.f32 0.0, %v5712
    %v5714 = vpop.f32.mrb[0].mxu0
    %v5715 = vpop.f32.mrb[0].mxu0
    %v5716 = vadd.f32 0.0, %v5715
    %v5717 = vpop.f32.mrb[0].mxu0
    %5718 = vdwg.mxu0
    %v5719 = vpack.c.bf16 %v5716, %v5713
    %v5720 = vld [vmem:[#allocation5] sm:$0xf]
    %v5721 = vld [vmem:[#allocation5 + $0xc] sm:$0xf]
    %v5722 = vld [vmem:[#allocation5 + $0x18] sm:$0xf]
    %v5723 = vld [vmem:[#allocation5 + $0x24] sm:$0xf]
    %v5724 = vld [vmem:[#allocation5 + $0x30] sm:$0xf]
    %v5725 = vld [vmem:[#allocation5 + $0x3c] sm:$0xf]
    %v5726 = vld [vmem:[#allocation5 + $0x48] sm:$0xf]
    %v5727 = vld [vmem:[#allocation5 + $0x54] sm:$0xf]
    %v5728 = vld [vmem:[#allocation5 + $0x60] sm:$0xf]
    %v5729 = vld [vmem:[#allocation5 + $0x6c] sm:$0xf]
    %v5730 = vld [vmem:[#allocation5 + $0x78] sm:$0xf]
    %v5731 = vld [vmem:[#allocation5 + $0x84] sm:$0xf]
    %v5732 = vld [vmem:[#allocation5 + $0x90] sm:$0xf]
    %v5733 = vld [vmem:[#allocation5 + $0x9c] sm:$0xf]
    %v5734 = vld [vmem:[#allocation5 + $0xa8] sm:$0xf]
    %v5735 = vld [vmem:[#allocation5 + $0xb4] sm:$0xf]
    %v5752 = vunpack.c.l.b16 %v5720
    %v5753 = vunpack.c.l.b16 %v5721
    %v5754 = vunpack.c.l.b16 %v5722
    %v5755 = vunpack.c.l.b16 %v5723
    %v5756 = vunpack.c.l.b16 %v5724
    %v5757 = vunpack.c.l.b16 %v5725
    %v5758 = vunpack.c.l.b16 %v5726
    %v5759 = vunpack.c.l.b16 %v5727
    %v5760 = vunpack.c.l.b16 %v5728
    %v5761 = vunpack.c.l.b16 %v5729
    %v5762 = vunpack.c.l.b16 %v5730
    %v5763 = vunpack.c.l.b16 %v5731
    %v5764 = vunpack.c.l.b16 %v5732
    %v5765 = vunpack.c.l.b16 %v5733
    %v5766 = vunpack.c.l.b16 %v5734
    %v5767 = vunpack.c.l.b16 %v5735
    %v5768 = vpack.c.b16 %v5753, %v5752
    %v5769 = vpack.c.b16 %v5755, %v5754
    %v5770 = vpack.c.b16 %v5757, %v5756
    %v5771 = vpack.c.b16 %v5759, %v5758
    %v5772 = vpack.c.b16 %v5761, %v5760
    %v5773 = vpack.c.b16 %v5763, %v5762
    %v5774 = vpack.c.b16 %v5765, %v5764
    %v5775 = vpack.c.b16 %v5767, %v5766
    %5784 = vmatprep.subr.bf16.mxu0 0
    %5785 = vmatpush1.bf16.msra.mxu0 %v5768
    %5786 = vmatprep.subr.bf16.mxu0 0
    %5787 = vmatpush1.bf16.msra.mxu0 %v5769
    %5788 = vmatprep.subr.bf16.mxu0 0
    %5789 = vmatpush1.bf16.msra.mxu0 %v5770
    %5790 = vmatprep.subr.bf16.mxu0 0
    %5791 = vmatpush1.bf16.msra.mxu0 %v5771
    %5792 = vmatprep.subr.bf16.mxu0 0
    %5793 = vmatpush1.bf16.msra.mxu0 %v5772
    %5794 = vmatprep.subr.bf16.mxu0 0
    %5795 = vmatpush1.bf16.msra.mxu0 %v5773
    %5796 = vmatprep.subr.bf16.mxu0 0
    %5797 = vmatpush1.bf16.msra.mxu0 %v5774
    %5798 = vmatprep.subr.bf16.mxu0 0
    %5799 = vmatpush1.bf16.msra.mxu0 %v5775
    %5800 = vmatprep.subr.bf16.mxu0 0
    %5801 = vmatpush1.bf16.msra.mxu0 0
    %5802 = vmatprep.subr.bf16.mxu0 0
    %5803 = vmatpush1.bf16.msra.mxu0 0
    %5804 = vmatprep.subr.bf16.mxu0 0
    %5805 = vmatpush1.bf16.msra.mxu0 0
    %5806 = vmatprep.subr.bf16.mxu0 0
    %5807 = vmatpush1.bf16.msra.mxu0 0
    %5808 = vmatprep.subr.bf16.mxu0 0
    %5809 = vmatpush1.bf16.msra.mxu0 0
    %5810 = vmatprep.subr.bf16.mxu0 0
    %5811 = vmatpush1.bf16.msra.mxu0 0
    %5812 = vmatprep.subr.bf16.mxu0 0
    %5813 = vmatpush1.bf16.msra.mxu0 0
    %5814 = vmatprep.subr.bf16.mxu0 0
    %5815 = vmatpush1.bf16.msra.mxu0 0
    %5816 = vmatprep.mubr.bf16.mxu0 0
    %5817 = vmatmul.mubr.bf16.gmra.mrb[0].mxu0 %v5719
    %v5818 = vpop.f32.mrb[0].mxu0
    %v5819 = vadd.f32 0.0, %v5818
    %v5820 = vpop.f32.mrb[0].mxu0
    %v5821 = vpop.f32.mrb[0].mxu0
    %v5822 = vadd.f32 0.0, %v5821
    %v5823 = vpop.f32.mrb[0].mxu0
    %5824 = vdwg.mxu0
    %v5825 = vpack.c.bf16 %v5822, %v5819
    %5827 = vrot.lane.b32.xlu0 %v5825, 104
    %v5828 = vpop.permute.xlu0 %5827
    %5829 = vrot.lane.b32.xlu0 %v5825, 80
    %v5830 = vpop.permute.xlu0 %5829
    %5831 = vrot.lane.b32.xlu0 %v5825, 56
    %v5832 = vpop.permute.xlu0 %5831
    %v5833 = vunpack.c.l.b16 %v5825
    %v5834 = vunpack.c.h.b16 %v5825
    %v5835 = vunpack.c.l.b16 %v5828
    %v5836 = vunpack.c.h.b16 %v5828
    %v5837 = vunpack.c.l.b16 %v5830
    %v5838 = vunpack.c.h.b16 %v5830
    %v5839 = vunpack.c.l.b16 %v5832
    %v5840 = vunpack.c.h.b16 %v5832
    %v5841 = vpack.c.b16 %v5833, %v5833
    %v5842 = vpack.c.b16 %v5834, %v5834
    %v5843 = vpack.c.b16 %v5835, %v5835
    %v5844 = vpack.c.b16 %v5836, %v5836
    %v5845 = vpack.c.b16 %v5837, %v5837
    %v5846 = vpack.c.b16 %v5838, %v5838
    %v5847 = vpack.c.b16 %v5839, %v5839
    %v5848 = vpack.c.b16 %v5840, %v5840
    %5849 = vrot.lane.b32.xlu0 %v5841, 120
    %v5850 = vpop.permute.xlu0 %5849
    %v5852 = vsel %vm201, %v5841, 0
    %v5855 = vsel %vm201, %v5850, 0
    %5857 = vmatprep.subr.bf16.mxu0 0
    %5858 = vmatpush1.bf16.xpose.msra.mxu0 %v5855
    %5859 = vmatprep.subr.bf16.mxu0 0
    %5860 = vmatpush1.bf16.xpose.msra.mxu0 0
    %5861 = vmatprep.subr.bf16.mxu0 0
    %5862 = vmatpush1.bf16.xpose.msra.mxu0 0
    %5863 = vmatprep.subr.bf16.mxu0 0
    %5864 = vmatpush1.bf16.xpose.msra.mxu0 0
    %5865 = vmatprep.subr.bf16.mxu0 0
    %5866 = vmatpush1.bf16.xpose.msra.mxu0 0
    %5867 = vmatprep.subr.bf16.mxu0 0
    %5868 = vmatpush1.bf16.xpose.msra.mxu0 0
    %5869 = vmatprep.subr.bf16.mxu0 0
    %5870 = vmatpush1.bf16.xpose.msra.mxu0 0
    %5871 = vmatprep.subr.bf16.mxu0 0
    %5872 = vmatpush1.bf16.xpose.msra.mxu0 0
    %5873 = vmatprep.subr.bf16.mxu0 0
    %5874 = vmatpush1.bf16.xpose.msra.mxu0 0
    %5875 = vmatprep.subr.bf16.mxu0 0
    %5876 = vmatpush1.bf16.xpose.msra.mxu0 0
    %5877 = vmatprep.subr.bf16.mxu0 0
    %5878 = vmatpush1.bf16.xpose.msra.mxu0 0
    %5879 = vmatprep.subr.bf16.mxu0 0
    %5880 = vmatpush1.bf16.xpose.msra.mxu0 0
    %5881 = vmatprep.subr.bf16.mxu0 0
    %5882 = vmatpush1.bf16.xpose.msra.mxu0 0
    %5883 = vmatprep.subr.bf16.mxu0 0
    %5884 = vmatpush1.bf16.xpose.msra.mxu0 0
    %5885 = vmatprep.subr.bf16.mxu0 0
    %5886 = vmatpush1.bf16.xpose.msra.mxu0 0
    %5887 = vmatprep.subr.bf16.mxu0 0
    %5888 = vmatpush1.bf16.xpose.msra.mxu0 0
    %5889 = vmatprep.mubr.bf16.mxu0 0
    %5890 = vmatmul.mubr.bf16.gmra.mrb[0].mxu0 %v5852
    %v5891 = vpop.f32.mrb[0].mxu0
    %v5892 = vadd.f32 0.0, %v5891
    %v5893 = vpop.f32.mrb[0].mxu0
    %v5894 = vpop.f32.mrb[0].mxu0
    %v5895 = vpop.f32.mrb[0].mxu0
    %5896 = vdwg.mxu0
    %5897 = vrot.lane.b32.xlu0 %v5842, 120
    %v5898 = vpop.permute.xlu0 %5897
    %v5900 = vsel %vm201, %v5842, 0
    %v5903 = vsel %vm201, %v5898, 0
    %5905 = vmatprep.subr.bf16.mxu0 0
    %5906 = vmatpush1.bf16.xpose.msra.mxu0 %v5903
    %5907 = vmatprep.subr.bf16.mxu0 0
    %5908 = vmatpush1.bf16.xpose.msra.mxu0 0
    %5909 = vmatprep.subr.bf16.mxu0 0
    %5910 = vmatpush1.bf16.xpose.msra.mxu0 0
    %5911 = vmatprep.subr.bf16.mxu0 0
    %5912 = vmatpush1.bf16.xpose.msra.mxu0 0
    %5913 = vmatprep.subr.bf16.mxu0 0
    %5914 = vmatpush1.bf16.xpose.msra.mxu0 0
    %5915 = vmatprep.subr.bf16.mxu0 0
    %5916 = vmatpush1.bf16.xpose.msra.mxu0 0
    %5917 = vmatprep.subr.bf16.mxu0 0
    %5918 = vmatpush1.bf16.xpose.msra.mxu0 0
    %5919 = vmatprep.subr.bf16.mxu0 0
    %5920 = vmatpush1.bf16.xpose.msra.mxu0 0
    %5921 = vmatprep.subr.bf16.mxu0 0
    %5922 = vmatpush1.bf16.xpose.msra.mxu0 0
    %5923 = vmatprep.subr.bf16.mxu0 0
    %5924 = vmatpush1.bf16.xpose.msra.mxu0 0
    %5925 = vmatprep.subr.bf16.mxu0 0
    %5926 = vmatpush1.bf16.xpose.msra.mxu0 0
    %5927 = vmatprep.subr.bf16.mxu0 0
    %5928 = vmatpush1.bf16.xpose.msra.mxu0 0
    %5929 = vmatprep.subr.bf16.mxu0 0
    %5930 = vmatpush1.bf16.xpose.msra.mxu0 0
    %5931 = vmatprep.subr.bf16.mxu0 0
    %5932 = vmatpush1.bf16.xpose.msra.mxu0 0
    %5933 = vmatprep.subr.bf16.mxu0 0
    %5934 = vmatpush1.bf16.xpose.msra.mxu0 0
    %5935 = vmatprep.subr.bf16.mxu0 0
    %5936 = vmatpush1.bf16.xpose.msra.mxu0 0
    %5937 = vmatprep.mubr.bf16.mxu0 0
    %5938 = vmatmul.mubr.bf16.gmra.mrb[0].mxu0 %v5900
    %v5939 = vpop.f32.mrb[0].mxu0
    %v5940 = vadd.f32 0.0, %v5939
    %v5941 = vpop.f32.mrb[0].mxu0
    %v5942 = vpop.f32.mrb[0].mxu0
    %v5943 = vpop.f32.mrb[0].mxu0
    %5944 = vdwg.mxu0
    %5945 = vrot.lane.b32.xlu0 %v5843, 120
    %v5946 = vpop.permute.xlu0 %5945
    %v5948 = vsel %vm201, %v5843, 0
    %v5951 = vsel %vm201, %v5946, 0
    %5953 = vmatprep.subr.bf16.mxu0 0
    %5954 = vmatpush1.bf16.xpose.msra.mxu0 %v5951
    %5955 = vmatprep.subr.bf16.mxu0 0
    %5956 = vmatpush1.bf16.xpose.msra.mxu0 0
    %5957 = vmatprep.subr.bf16.mxu0 0
    %5958 = vmatpush1.bf16.xpose.msra.mxu0 0
    %5959 = vmatprep.subr.bf16.mxu0 0
    %5960 = vmatpush1.bf16.xpose.msra.mxu0 0
    %5961 = vmatprep.subr.bf16.mxu0 0
    %5962 = vmatpush1.bf16.xpose.msra.mxu0 0
    %5963 = vmatprep.subr.bf16.mxu0 0
    %5964 = vmatpush1.bf16.xpose.msra.mxu0 0
    %5965 = vmatprep.subr.bf16.mxu0 0
    %5966 = vmatpush1.bf16.xpose.msra.mxu0 0
    %5967 = vmatprep.subr.bf16.mxu0 0
    %5968 = vmatpush1.bf16.xpose.msra.mxu0 0
    %5969 = vmatprep.subr.bf16.mxu0 0
    %5970 = vmatpush1.bf16.xpose.msra.mxu0 0
    %5971 = vmatprep.subr.bf16.mxu0 0
    %5972 = vmatpush1.bf16.xpose.msra.mxu0 0
    %5973 = vmatprep.subr.bf16.mxu0 0
    %5974 = vmatpush1.bf16.xpose.msra.mxu0 0
    %5975 = vmatprep.subr.bf16.mxu0 0
    %5976 = vmatpush1.bf16.xpose.msra.mxu0 0
    %5977 = vmatprep.subr.bf16.mxu0 0
    %5978 = vmatpush1.bf16.xpose.msra.mxu0 0
    %5979 = vmatprep.subr.bf16.mxu0 0
    %5980 = vmatpush1.bf16.xpose.msra.mxu0 0
    %5981 = vmatprep.subr.bf16.mxu0 0
    %5982 = vmatpush1.bf16.xpose.msra.mxu0 0
    %5983 = vmatprep.subr.bf16.mxu0 0
    %5984 = vmatpush1.bf16.xpose.msra.mxu0 0
    %5985 = vmatprep.mubr.bf16.mxu0 0
    %5986 = vmatmul.mubr.bf16.gmra.mrb[0].mxu0 %v5948
    %v5987 = vpop.f32.mrb[0].mxu0
    %v5988 = vadd.f32 0.0, %v5987
    %v5989 = vpop.f32.mrb[0].mxu0
    %v5990 = vpop.f32.mrb[0].mxu0
    %v5991 = vpop.f32.mrb[0].mxu0
    %5992 = vdwg.mxu0
    %5993 = vrot.lane.b32.xlu0 %v5844, 120
    %v5994 = vpop.permute.xlu0 %5993
    %v5996 = vsel %vm201, %v5844, 0
    %v5999 = vsel %vm201, %v5994, 0
    %6001 = vmatprep.subr.bf16.mxu0 0
    %6002 = vmatpush1.bf16.xpose.msra.mxu0 %v5999
    %6003 = vmatprep.subr.bf16.mxu0 0
    %6004 = vmatpush1.bf16.xpose.msra.mxu0 0
    %6005 = vmatprep.subr.bf16.mxu0 0
    %6006 = vmatpush1.bf16.xpose.msra.mxu0 0
    %6007 = vmatprep.subr.bf16.mxu0 0
    %6008 = vmatpush1.bf16.xpose.msra.mxu0 0
    %6009 = vmatprep.subr.bf16.mxu0 0
    %6010 = vmatpush1.bf16.xpose.msra.mxu0 0
    %6011 = vmatprep.subr.bf16.mxu0 0
    %6012 = vmatpush1.bf16.xpose.msra.mxu0 0
    %6013 = vmatprep.subr.bf16.mxu0 0
    %6014 = vmatpush1.bf16.xpose.msra.mxu0 0
    %6015 = vmatprep.subr.bf16.mxu0 0
    %6016 = vmatpush1.bf16.xpose.msra.mxu0 0
    %6017 = vmatprep.subr.bf16.mxu0 0
    %6018 = vmatpush1.bf16.xpose.msra.mxu0 0
    %6019 = vmatprep.subr.bf16.mxu0 0
    %6020 = vmatpush1.bf16.xpose.msra.mxu0 0
    %6021 = vmatprep.subr.bf16.mxu0 0
    %6022 = vmatpush1.bf16.xpose.msra.mxu0 0
    %6023 = vmatprep.subr.bf16.mxu0 0
    %6024 = vmatpush1.bf16.xpose.msra.mxu0 0
    %6025 = vmatprep.subr.bf16.mxu0 0
    %6026 = vmatpush1.bf16.xpose.msra.mxu0 0
    %6027 = vmatprep.subr.bf16.mxu0 0
    %6028 = vmatpush1.bf16.xpose.msra.mxu0 0
    %6029 = vmatprep.subr.bf16.mxu0 0
    %6030 = vmatpush1.bf16.xpose.msra.mxu0 0
    %6031 = vmatprep.subr.bf16.mxu0 0
    %6032 = vmatpush1.bf16.xpose.msra.mxu0 0
    %6033 = vmatprep.mubr.bf16.mxu0 0
    %6034 = vmatmul.mubr.bf16.gmra.mrb[0].mxu0 %v5996
    %v6035 = vpop.f32.mrb[0].mxu0
    %v6036 = vadd.f32 0.0, %v6035
    %v6037 = vpop.f32.mrb[0].mxu0
    %v6038 = vpop.f32.mrb[0].mxu0
    %v6039 = vpop.f32.mrb[0].mxu0
    %6040 = vdwg.mxu0
    %6041 = vrot.lane.b32.xlu0 %v5845, 120
    %v6042 = vpop.permute.xlu0 %6041
    %v6044 = vsel %vm201, %v5845, 0
    %v6047 = vsel %vm201, %v6042, 0
    %6049 = vmatprep.subr.bf16.mxu0 0
    %6050 = vmatpush1.bf16.xpose.msra.mxu0 %v6047
    %6051 = vmatprep.subr.bf16.mxu0 0
    %6052 = vmatpush1.bf16.xpose.msra.mxu0 0
    %6053 = vmatprep.subr.bf16.mxu0 0
    %6054 = vmatpush1.bf16.xpose.msra.mxu0 0
    %6055 = vmatprep.subr.bf16.mxu0 0
    %6056 = vmatpush1.bf16.xpose.msra.mxu0 0
    %6057 = vmatprep.subr.bf16.mxu0 0
    %6058 = vmatpush1.bf16.xpose.msra.mxu0 0
    %6059 = vmatprep.subr.bf16.mxu0 0
    %6060 = vmatpush1.bf16.xpose.msra.mxu0 0
    %6061 = vmatprep.subr.bf16.mxu0 0
    %6062 = vmatpush1.bf16.xpose.msra.mxu0 0
    %6063 = vmatprep.subr.bf16.mxu0 0
    %6064 = vmatpush1.bf16.xpose.msra.mxu0 0
    %6065 = vmatprep.subr.bf16.mxu0 0
    %6066 = vmatpush1.bf16.xpose.msra.mxu0 0
    %6067 = vmatprep.subr.bf16.mxu0 0
    %6068 = vmatpush1.bf16.xpose.msra.mxu0 0
    %6069 = vmatprep.subr.bf16.mxu0 0
    %6070 = vmatpush1.bf16.xpose.msra.mxu0 0
    %6071 = vmatprep.subr.bf16.mxu0 0
    %6072 = vmatpush1.bf16.xpose.msra.mxu0 0
    %6073 = vmatprep.subr.bf16.mxu0 0
    %6074 = vmatpush1.bf16.xpose.msra.mxu0 0
    %6075 = vmatprep.subr.bf16.mxu0 0
    %6076 = vmatpush1.bf16.xpose.msra.mxu0 0
    %6077 = vmatprep.subr.bf16.mxu0 0
    %6078 = vmatpush1.bf16.xpose.msra.mxu0 0
    %6079 = vmatprep.subr.bf16.mxu0 0
    %6080 = vmatpush1.bf16.xpose.msra.mxu0 0
    %6081 = vmatprep.mubr.bf16.mxu0 0
    %6082 = vmatmul.mubr.bf16.gmra.mrb[0].mxu0 %v6044
    %v6083 = vpop.f32.mrb[0].mxu0
    %v6084 = vadd.f32 0.0, %v6083
    %v6085 = vpop.f32.mrb[0].mxu0
    %v6086 = vpop.f32.mrb[0].mxu0
    %v6087 = vpop.f32.mrb[0].mxu0
    %6088 = vdwg.mxu0
    %6089 = vrot.lane.b32.xlu0 %v5846, 120
    %v6090 = vpop.permute.xlu0 %6089
    %v6092 = vsel %vm201, %v5846, 0
    %v6095 = vsel %vm201, %v6090, 0
    %6097 = vmatprep.subr.bf16.mxu0 0
    %6098 = vmatpush1.bf16.xpose.msra.mxu0 %v6095
    %6099 = vmatprep.subr.bf16.mxu0 0
    %6100 = vmatpush1.bf16.xpose.msra.mxu0 0
    %6101 = vmatprep.subr.bf16.mxu0 0
    %6102 = vmatpush1.bf16.xpose.msra.mxu0 0
    %6103 = vmatprep.subr.bf16.mxu0 0
    %6104 = vmatpush1.bf16.xpose.msra.mxu0 0
    %6105 = vmatprep.subr.bf16.mxu0 0
    %6106 = vmatpush1.bf16.xpose.msra.mxu0 0
    %6107 = vmatprep.subr.bf16.mxu0 0
    %6108 = vmatpush1.bf16.xpose.msra.mxu0 0
    %6109 = vmatprep.subr.bf16.mxu0 0
    %6110 = vmatpush1.bf16.xpose.msra.mxu0 0
    %6111 = vmatprep.subr.bf16.mxu0 0
    %6112 = vmatpush1.bf16.xpose.msra.mxu0 0
    %6113 = vmatprep.subr.bf16.mxu0 0
    %6114 = vmatpush1.bf16.xpose.msra.mxu0 0
    %6115 = vmatprep.subr.bf16.mxu0 0
    %6116 = vmatpush1.bf16.xpose.msra.mxu0 0
    %6117 = vmatprep.subr.bf16.mxu0 0
    %6118 = vmatpush1.bf16.xpose.msra.mxu0 0
    %6119 = vmatprep.subr.bf16.mxu0 0
    %6120 = vmatpush1.bf16.xpose.msra.mxu0 0
    %6121 = vmatprep.subr.bf16.mxu0 0
    %6122 = vmatpush1.bf16.xpose.msra.mxu0 0
    %6123 = vmatprep.subr.bf16.mxu0 0
    %6124 = vmatpush1.bf16.xpose.msra.mxu0 0
    %6125 = vmatprep.subr.bf16.mxu0 0
    %6126 = vmatpush1.bf16.xpose.msra.mxu0 0
    %6127 = vmatprep.subr.bf16.mxu0 0
    %6128 = vmatpush1.bf16.xpose.msra.mxu0 0
    %6129 = vmatprep.mubr.bf16.mxu0 0
    %6130 = vmatmul.mubr.bf16.gmra.mrb[0].mxu0 %v6092
    %v6131 = vpop.f32.mrb[0].mxu0
    %v6132 = vadd.f32 0.0, %v6131
    %v6133 = vpop.f32.mrb[0].mxu0
    %v6134 = vpop.f32.mrb[0].mxu0
    %v6135 = vpop.f32.mrb[0].mxu0
    %6136 = vdwg.mxu0
    %6137 = vrot.lane.b32.xlu0 %v5847, 120
    %v6138 = vpop.permute.xlu0 %6137
    %v6140 = vsel %vm201, %v5847, 0
    %v6143 = vsel %vm201, %v6138, 0
    %6145 = vmatprep.subr.bf16.mxu0 0
    %6146 = vmatpush1.bf16.xpose.msra.mxu0 %v6143
    %6147 = vmatprep.subr.bf16.mxu0 0
    %6148 = vmatpush1.bf16.xpose.msra.mxu0 0
    %6149 = vmatprep.subr.bf16.mxu0 0
    %6150 = vmatpush1.bf16.xpose.msra.mxu0 0
    %6151 = vmatprep.subr.bf16.mxu0 0
    %6152 = vmatpush1.bf16.xpose.msra.mxu0 0
    %6153 = vmatprep.subr.bf16.mxu0 0
    %6154 = vmatpush1.bf16.xpose.msra.mxu0 0
    %6155 = vmatprep.subr.bf16.mxu0 0
    %6156 = vmatpush1.bf16.xpose.msra.mxu0 0
    %6157 = vmatprep.subr.bf16.mxu0 0
    %6158 = vmatpush1.bf16.xpose.msra.mxu0 0
    %6159 = vmatprep.subr.bf16.mxu0 0
    %6160 = vmatpush1.bf16.xpose.msra.mxu0 0
    %6161 = vmatprep.subr.bf16.mxu0 0
    %6162 = vmatpush1.bf16.xpose.msra.mxu0 0
    %6163 = vmatprep.subr.bf16.mxu0 0
    %6164 = vmatpush1.bf16.xpose.msra.mxu0 0
    %6165 = vmatprep.subr.bf16.mxu0 0
    %6166 = vmatpush1.bf16.xpose.msra.mxu0 0
    %6167 = vmatprep.subr.bf16.mxu0 0
    %6168 = vmatpush1.bf16.xpose.msra.mxu0 0
    %6169 = vmatprep.subr.bf16.mxu0 0
    %6170 = vmatpush1.bf16.xpose.msra.mxu0 0
    %6171 = vmatprep.subr.bf16.mxu0 0
    %6172 = vmatpush1.bf16.xpose.msra.mxu0 0
    %6173 = vmatprep.subr.bf16.mxu0 0
    %6174 = vmatpush1.bf16.xpose.msra.mxu0 0
    %6175 = vmatprep.subr.bf16.mxu0 0
    %6176 = vmatpush1.bf16.xpose.msra.mxu0 0
    %6177 = vmatprep.mubr.bf16.mxu0 0
    %6178 = vmatmul.mubr.bf16.gmra.mrb[0].mxu0 %v6140
    %v6179 = vpop.f32.mrb[0].mxu0
    %v6180 = vadd.f32 0.0, %v6179
    %v6181 = vpop.f32.mrb[0].mxu0
    %v6182 = vpop.f32.mrb[0].mxu0
    %v6183 = vpop.f32.mrb[0].mxu0
    %6184 = vdwg.mxu0
    %6185 = vrot.lane.b32.xlu0 %v5848, 120
    %v6186 = vpop.permute.xlu0 %6185
    %v6188 = vsel %vm201, %v5848, 0
    %v6191 = vsel %vm201, %v6186, 0
    %6193 = vmatprep.subr.bf16.mxu0 0
    %6194 = vmatpush1.bf16.xpose.msra.mxu0 %v6191
    %6195 = vmatprep.subr.bf16.mxu0 0
    %6196 = vmatpush1.bf16.xpose.msra.mxu0 0
    %6197 = vmatprep.subr.bf16.mxu0 0
    %6198 = vmatpush1.bf16.xpose.msra.mxu0 0
    %6199 = vmatprep.subr.bf16.mxu0 0
    %6200 = vmatpush1.bf16.xpose.msra.mxu0 0
    %6201 = vmatprep.subr.bf16.mxu0 0
    %6202 = vmatpush1.bf16.xpose.msra.mxu0 0
    %6203 = vmatprep.subr.bf16.mxu0 0
    %6204 = vmatpush1.bf16.xpose.msra.mxu0 0
    %6205 = vmatprep.subr.bf16.mxu0 0
    %6206 = vmatpush1.bf16.xpose.msra.mxu0 0
    %6207 = vmatprep.subr.bf16.mxu0 0
    %6208 = vmatpush1.bf16.xpose.msra.mxu0 0
    %6209 = vmatprep.subr.bf16.mxu0 0
    %6210 = vmatpush1.bf16.xpose.msra.mxu0 0
    %6211 = vmatprep.subr.bf16.mxu0 0
    %6212 = vmatpush1.bf16.xpose.msra.mxu0 0
    %6213 = vmatprep.subr.bf16.mxu0 0
    %6214 = vmatpush1.bf16.xpose.msra.mxu0 0
    %6215 = vmatprep.subr.bf16.mxu0 0
    %6216 = vmatpush1.bf16.xpose.msra.mxu0 0
    %6217 = vmatprep.subr.bf16.mxu0 0
    %6218 = vmatpush1.bf16.xpose.msra.mxu0 0
    %6219 = vmatprep.subr.bf16.mxu0 0
    %6220 = vmatpush1.bf16.xpose.msra.mxu0 0
    %6221 = vmatprep.subr.bf16.mxu0 0
    %6222 = vmatpush1.bf16.xpose.msra.mxu0 0
    %6223 = vmatprep.subr.bf16.mxu0 0
    %6224 = vmatpush1.bf16.xpose.msra.mxu0 0
    %6225 = vmatprep.mubr.bf16.mxu0 0
    %6226 = vmatmul.mubr.bf16.gmra.mrb[0].mxu0 %v6188
    %v6227 = vpop.f32.mrb[0].mxu0
    %v6228 = vadd.f32 0.0, %v6227
    %v6229 = vpop.f32.mrb[0].mxu0
    %v6230 = vpop.f32.mrb[0].mxu0
    %v6231 = vpop.f32.mrb[0].mxu0
    %6232 = vdwg.mxu0
    %v6233 = vsel %vm201, %v5892, -inf
    %6234 = vmax.xlane.f32.xlu0 %v6233
    %v6235 = vpop.xlane.xlu0 %6234
    %v6236 = vsel %vm201, %v5940, -inf
    %6237 = vmax.xlane.f32.xlu0 %v6236
    %v6238 = vpop.xlane.xlu0 %6237
    %v6239 = vsel %vm201, %v5988, -inf
    %6240 = vmax.xlane.f32.xlu0 %v6239
    %v6241 = vpop.xlane.xlu0 %6240
    %v6242 = vsel %vm201, %v6036, -inf
    %6243 = vmax.xlane.f32.xlu0 %v6242
    %v6244 = vpop.xlane.xlu0 %6243
    %v6245 = vsel %vm201, %v6084, -inf
    %6246 = vmax.xlane.f32.xlu0 %v6245
    %v6247 = vpop.xlane.xlu0 %6246
    %v6248 = vsel %vm201, %v6132, -inf
    %6249 = vmax.xlane.f32.xlu0 %v6248
    %v6250 = vpop.xlane.xlu0 %6249
    %v6251 = vsel %vm201, %v6180, -inf
    %6252 = vmax.xlane.f32.xlu0 %v6251
    %v6253 = vpop.xlane.xlu0 %6252
    %v6254 = vsel %vm201, %v6228, -inf
    %6255 = vmax.xlane.f32.xlu0 %v6254
    %v6256 = vpop.xlane.xlu0 %6255
    %v6257 = vsub.f32 %v5892, %v6235
    %v6258 = vsub.f32 %v5940, %v6238
    %v6259 = vsub.f32 %v5988, %v6241
    %v6260 = vsub.f32 %v6036, %v6244
    %v6261 = vsub.f32 %v6084, %v6247
    %v6262 = vsub.f32 %v6132, %v6250
    %v6263 = vsub.f32 %v6180, %v6253
    %v6264 = vsub.f32 %v6228, %v6256
    %v6265 = vmul.f32 %v6257, 1.442695
    %v6266 = vpow.pop %v6265
    %v6267 = vmul.f32 %v6258, 1.442695
    %v6268 = vpow.pop %v6267
    %v6269 = vmul.f32 %v6259, 1.442695
    %v6270 = vpow.pop %v6269
    %v6271 = vmul.f32 %v6260, 1.442695
    %v6272 = vpow.pop %v6271
    %v6273 = vmul.f32 %v6261, 1.442695
    %v6274 = vpow.pop %v6273
    %v6275 = vmul.f32 %v6262, 1.442695
    %v6276 = vpow.pop %v6275
    %v6277 = vmul.f32 %v6263, 1.442695
    %v6278 = vpow.pop %v6277
    %v6279 = vmul.f32 %v6264, 1.442695
    %v6280 = vpow.pop %v6279
    %v6281 = vsel %vm201, %v6266, 0.0
    %6282 = vadd.xlane.f32.xlu0 %v6281
    %v6283 = vpop.xlane.xlu0 %6282
    %v6284 = vsel %vm201, %v6268, 0.0
    %6285 = vadd.xlane.f32.xlu0 %v6284
    %v6286 = vpop.xlane.xlu0 %6285
    %v6287 = vsel %vm201, %v6270, 0.0
    %6288 = vadd.xlane.f32.xlu0 %v6287
    %v6289 = vpop.xlane.xlu0 %6288
    %v6290 = vsel %vm201, %v6272, 0.0
    %6291 = vadd.xlane.f32.xlu0 %v6290
    %v6292 = vpop.xlane.xlu0 %6291
    %v6293 = vsel %vm201, %v6274, 0.0
    %6294 = vadd.xlane.f32.xlu0 %v6293
    %v6295 = vpop.xlane.xlu0 %6294
    %v6296 = vsel %vm201, %v6276, 0.0
    %6297 = vadd.xlane.f32.xlu0 %v6296
    %v6298 = vpop.xlane.xlu0 %6297
    %v6299 = vsel %vm201, %v6278, 0.0
    %6300 = vadd.xlane.f32.xlu0 %v6299
    %v6301 = vpop.xlane.xlu0 %6300
    %v6302 = vsel %vm201, %v6280, 0.0
    %6303 = vadd.xlane.f32.xlu0 %v6302
    %v6304 = vpop.xlane.xlu0 %6303
    %v6305 = vrcp.pop %v6283
    %v6306 = vrcp.pop %v6286
    %v6307 = vrcp.pop %v6289
    %v6308 = vrcp.pop %v6292
    %v6309 = vrcp.pop %v6295
    %v6310 = vrcp.pop %v6298
    %v6311 = vrcp.pop %v6301
    %v6312 = vrcp.pop %v6304
    %v6313 = vmul.f32 %v6266, %v6305
    %v6314 = vmul.f32 %v6268, %v6306
    %v6315 = vmul.f32 %v6270, %v6307
    %v6316 = vmul.f32 %v6272, %v6308
    %v6317 = vmul.f32 %v6274, %v6309
    %v6318 = vmul.f32 %v6276, %v6310
    %v6319 = vmul.f32 %v6278, %v6311
    %v6320 = vmul.f32 %v6280, %v6312
    %v6321 = vpack.c.bf16 %v6313, %v6313
    %v6322 = vpack.c.bf16 %v6314, %v6314
    %v6323 = vpack.c.bf16 %v6315, %v6315
    %v6324 = vpack.c.bf16 %v6316, %v6316
    %v6325 = vpack.c.bf16 %v6317, %v6317
    %v6326 = vpack.c.bf16 %v6318, %v6318
    %v6327 = vpack.c.bf16 %v6319, %v6319
    %v6328 = vpack.c.bf16 %v6320, %v6320
    %6329 = vrot.lane.b32.xlu0 %v5841, 112
    %v6330 = vpop.permute.xlu0 %6329
    %v6332 = vsel %vm201, %v6321, 0
    %v6335 = vsel %vm685, %v6330, 0
    %6337 = vmatprep.subr.bf16.mxu0 0
    %6338 = vmatpush1.bf16.msra.mxu0 %v6335
    %6339 = vmatprep.subr.bf16.mxu0 0
    %6340 = vmatpush1.bf16.msra.mxu0 0
    %6341 = vmatprep.subr.bf16.mxu0 0
    %6342 = vmatpush1.bf16.msra.mxu0 0
    %6343 = vmatprep.subr.bf16.mxu0 0
    %6344 = vmatpush1.bf16.msra.mxu0 0
    %6345 = vmatprep.subr.bf16.mxu0 0
    %6346 = vmatpush1.bf16.msra.mxu0 0
    %6347 = vmatprep.subr.bf16.mxu0 0
    %6348 = vmatpush1.bf16.msra.mxu0 0
    %6349 = vmatprep.subr.bf16.mxu0 0
    %6350 = vmatpush1.bf16.msra.mxu0 0
    %6351 = vmatprep.subr.bf16.mxu0 0
    %6352 = vmatpush1.bf16.msra.mxu0 0
    %6353 = vmatprep.subr.bf16.mxu0 0
    %6354 = vmatpush1.bf16.msra.mxu0 0
    %6355 = vmatprep.subr.bf16.mxu0 0
    %6356 = vmatpush1.bf16.msra.mxu0 0
    %6357 = vmatprep.subr.bf16.mxu0 0
    %6358 = vmatpush1.bf16.msra.mxu0 0
    %6359 = vmatprep.subr.bf16.mxu0 0
    %6360 = vmatpush1.bf16.msra.mxu0 0
    %6361 = vmatprep.subr.bf16.mxu0 0
    %6362 = vmatpush1.bf16.msra.mxu0 0
    %6363 = vmatprep.subr.bf16.mxu0 0
    %6364 = vmatpush1.bf16.msra.mxu0 0
    %6365 = vmatprep.subr.bf16.mxu0 0
    %6366 = vmatpush1.bf16.msra.mxu0 0
    %6367 = vmatprep.subr.bf16.mxu0 0
    %6368 = vmatpush1.bf16.msra.mxu0 0
    %6369 = vmatprep.mubr.bf16.mxu0 0
    %6370 = vmatmul.mubr.bf16.gmra.mrb[0].mxu0 %v6332
    %v6371 = vpop.f32.mrb[0].mxu0
    %v6372 = vadd.f32 0.0, %v6371
    %v6373 = vpop.f32.mrb[0].mxu0
    %v6374 = vpop.f32.mrb[0].mxu0
    %v6375 = vpop.f32.mrb[0].mxu0
    %6376 = vdwg.mxu0
    %6377 = vrot.lane.b32.xlu0 %v5842, 112
    %v6378 = vpop.permute.xlu0 %6377
    %v6380 = vsel %vm201, %v6322, 0
    %v6383 = vsel %vm685, %v6378, 0
    %6385 = vmatprep.subr.bf16.mxu0 0
    %6386 = vmatpush1.bf16.msra.mxu0 %v6383
    %6387 = vmatprep.subr.bf16.mxu0 0
    %6388 = vmatpush1.bf16.msra.mxu0 0
    %6389 = vmatprep.subr.bf16.mxu0 0
    %6390 = vmatpush1.bf16.msra.mxu0 0
    %6391 = vmatprep.subr.bf16.mxu0 0
    %6392 = vmatpush1.bf16.msra.mxu0 0
    %6393 = vmatprep.subr.bf16.mxu0 0
    %6394 = vmatpush1.bf16.msra.mxu0 0
    %6395 = vmatprep.subr.bf16.mxu0 0
    %6396 = vmatpush1.bf16.msra.mxu0 0
    %6397 = vmatprep.subr.bf16.mxu0 0
    %6398 = vmatpush1.bf16.msra.mxu0 0
    %6399 = vmatprep.subr.bf16.mxu0 0
    %6400 = vmatpush1.bf16.msra.mxu0 0
    %6401 = vmatprep.subr.bf16.mxu0 0
    %6402 = vmatpush1.bf16.msra.mxu0 0
    %6403 = vmatprep.subr.bf16.mxu0 0
    %6404 = vmatpush1.bf16.msra.mxu0 0
    %6405 = vmatprep.subr.bf16.mxu0 0
    %6406 = vmatpush1.bf16.msra.mxu0 0
    %6407 = vmatprep.subr.bf16.mxu0 0
    %6408 = vmatpush1.bf16.msra.mxu0 0
    %6409 = vmatprep.subr.bf16.mxu0 0
    %6410 = vmatpush1.bf16.msra.mxu0 0
    %6411 = vmatprep.subr.bf16.mxu0 0
    %6412 = vmatpush1.bf16.msra.mxu0 0
    %6413 = vmatprep.subr.bf16.mxu0 0
    %6414 = vmatpush1.bf16.msra.mxu0 0
    %6415 = vmatprep.subr.bf16.mxu0 0
    %6416 = vmatpush1.bf16.msra.mxu0 0
    %6417 = vmatprep.mubr.bf16.mxu0 0
    %6418 = vmatmul.mubr.bf16.gmra.mrb[0].mxu0 %v6380
    %v6419 = vpop.f32.mrb[0].mxu0
    %v6420 = vadd.f32 0.0, %v6419
    %v6421 = vpop.f32.mrb[0].mxu0
    %v6422 = vpop.f32.mrb[0].mxu0
    %v6423 = vpop.f32.mrb[0].mxu0
    %6424 = vdwg.mxu0
    %6425 = vrot.lane.b32.xlu0 %v5843, 112
    %v6426 = vpop.permute.xlu0 %6425
    %v6428 = vsel %vm201, %v6323, 0
    %v6431 = vsel %vm685, %v6426, 0
    %6433 = vmatprep.subr.bf16.mxu0 0
    %6434 = vmatpush1.bf16.msra.mxu0 %v6431
    %6435 = vmatprep.subr.bf16.mxu0 0
    %6436 = vmatpush1.bf16.msra.mxu0 0
    %6437 = vmatprep.subr.bf16.mxu0 0
    %6438 = vmatpush1.bf16.msra.mxu0 0
    %6439 = vmatprep.subr.bf16.mxu0 0
    %6440 = vmatpush1.bf16.msra.mxu0 0
    %6441 = vmatprep.subr.bf16.mxu0 0
    %6442 = vmatpush1.bf16.msra.mxu0 0
    %6443 = vmatprep.subr.bf16.mxu0 0
    %6444 = vmatpush1.bf16.msra.mxu0 0
    %6445 = vmatprep.subr.bf16.mxu0 0
    %6446 = vmatpush1.bf16.msra.mxu0 0
    %6447 = vmatprep.subr.bf16.mxu0 0
    %6448 = vmatpush1.bf16.msra.mxu0 0
    %6449 = vmatprep.subr.bf16.mxu0 0
    %6450 = vmatpush1.bf16.msra.mxu0 0
    %6451 = vmatprep.subr.bf16.mxu0 0
    %6452 = vmatpush1.bf16.msra.mxu0 0
    %6453 = vmatprep.subr.bf16.mxu0 0
    %6454 = vmatpush1.bf16.msra.mxu0 0
    %6455 = vmatprep.subr.bf16.mxu0 0
    %6456 = vmatpush1.bf16.msra.mxu0 0
    %6457 = vmatprep.subr.bf16.mxu0 0
    %6458 = vmatpush1.bf16.msra.mxu0 0
    %6459 = vmatprep.subr.bf16.mxu0 0
    %6460 = vmatpush1.bf16.msra.mxu0 0
    %6461 = vmatprep.subr.bf16.mxu0 0
    %6462 = vmatpush1.bf16.msra.mxu0 0
    %6463 = vmatprep.subr.bf16.mxu0 0
    %6464 = vmatpush1.bf16.msra.mxu0 0
    %6465 = vmatprep.mubr.bf16.mxu0 0
    %6466 = vmatmul.mubr.bf16.gmra.mrb[0].mxu0 %v6428
    %v6467 = vpop.f32.mrb[0].mxu0
    %v6468 = vadd.f32 0.0, %v6467
    %v6469 = vpop.f32.mrb[0].mxu0
    %v6470 = vpop.f32.mrb[0].mxu0
    %v6471 = vpop.f32.mrb[0].mxu0
    %6472 = vdwg.mxu0
    %6473 = vrot.lane.b32.xlu0 %v5844, 112
    %v6474 = vpop.permute.xlu0 %6473
    %v6476 = vsel %vm201, %v6324, 0
    %v6479 = vsel %vm685, %v6474, 0
    %6481 = vmatprep.subr.bf16.mxu0 0
    %6482 = vmatpush1.bf16.msra.mxu0 %v6479
    %6483 = vmatprep.subr.bf16.mxu0 0
    %6484 = vmatpush1.bf16.msra.mxu0 0
    %6485 = vmatprep.subr.bf16.mxu0 0
    %6486 = vmatpush1.bf16.msra.mxu0 0
    %6487 = vmatprep.subr.bf16.mxu0 0
    %6488 = vmatpush1.bf16.msra.mxu0 0
    %6489 = vmatprep.subr.bf16.mxu0 0
    %6490 = vmatpush1.bf16.msra.mxu0 0
    %6491 = vmatprep.subr.bf16.mxu0 0
    %6492 = vmatpush1.bf16.msra.mxu0 0
    %6493 = vmatprep.subr.bf16.mxu0 0
    %6494 = vmatpush1.bf16.msra.mxu0 0
    %6495 = vmatprep.subr.bf16.mxu0 0
    %6496 = vmatpush1.bf16.msra.mxu0 0
    %6497 = vmatprep.subr.bf16.mxu0 0
    %6498 = vmatpush1.bf16.msra.mxu0 0
    %6499 = vmatprep.subr.bf16.mxu0 0
    %6500 = vmatpush1.bf16.msra.mxu0 0
    %6501 = vmatprep.subr.bf16.mxu0 0
    %6502 = vmatpush1.bf16.msra.mxu0 0
    %6503 = vmatprep.subr.bf16.mxu0 0
    %6504 = vmatpush1.bf16.msra.mxu0 0
    %6505 = vmatprep.subr.bf16.mxu0 0
    %6506 = vmatpush1.bf16.msra.mxu0 0
    %6507 = vmatprep.subr.bf16.mxu0 0
    %6508 = vmatpush1.bf16.msra.mxu0 0
    %6509 = vmatprep.subr.bf16.mxu0 0
    %6510 = vmatpush1.bf16.msra.mxu0 0
    %6511 = vmatprep.subr.bf16.mxu0 0
    %6512 = vmatpush1.bf16.msra.mxu0 0
    %6513 = vmatprep.mubr.bf16.mxu0 0
    %6514 = vmatmul.mubr.bf16.gmra.mrb[0].mxu0 %v6476
    %v6515 = vpop.f32.mrb[0].mxu0
    %v6516 = vadd.f32 0.0, %v6515
    %v6517 = vpop.f32.mrb[0].mxu0
    %v6518 = vpop.f32.mrb[0].mxu0
    %v6519 = vpop.f32.mrb[0].mxu0
    %6520 = vdwg.mxu0
    %6521 = vrot.lane.b32.xlu0 %v5845, 112
    %v6522 = vpop.permute.xlu0 %6521
    %v6524 = vsel %vm201, %v6325, 0
    %v6527 = vsel %vm685, %v6522, 0
    %6529 = vmatprep.subr.bf16.mxu0 0
    %6530 = vmatpush1.bf16.msra.mxu0 %v6527
    %6531 = vmatprep.subr.bf16.mxu0 0
    %6532 = vmatpush1.bf16.msra.mxu0 0
    %6533 = vmatprep.subr.bf16.mxu0 0
    %6534 = vmatpush1.bf16.msra.mxu0 0
    %6535 = vmatprep.subr.bf16.mxu0 0
    %6536 = vmatpush1.bf16.msra.mxu0 0
    %6537 = vmatprep.subr.bf16.mxu0 0
    %6538 = vmatpush1.bf16.msra.mxu0 0
    %6539 = vmatprep.subr.bf16.mxu0 0
    %6540 = vmatpush1.bf16.msra.mxu0 0
    %6541 = vmatprep.subr.bf16.mxu0 0
    %6542 = vmatpush1.bf16.msra.mxu0 0
    %6543 = vmatprep.subr.bf16.mxu0 0
    %6544 = vmatpush1.bf16.msra.mxu0 0
    %6545 = vmatprep.subr.bf16.mxu0 0
    %6546 = vmatpush1.bf16.msra.mxu0 0
    %6547 = vmatprep.subr.bf16.mxu0 0
    %6548 = vmatpush1.bf16.msra.mxu0 0
    %6549 = vmatprep.subr.bf16.mxu0 0
    %6550 = vmatpush1.bf16.msra.mxu0 0
    %6551 = vmatprep.subr.bf16.mxu0 0
    %6552 = vmatpush1.bf16.msra.mxu0 0
    %6553 = vmatprep.subr.bf16.mxu0 0
    %6554 = vmatpush1.bf16.msra.mxu0 0
    %6555 = vmatprep.subr.bf16.mxu0 0
    %6556 = vmatpush1.bf16.msra.mxu0 0
    %6557 = vmatprep.subr.bf16.mxu0 0
    %6558 = vmatpush1.bf16.msra.mxu0 0
    %6559 = vmatprep.subr.bf16.mxu0 0
    %6560 = vmatpush1.bf16.msra.mxu0 0
    %6561 = vmatprep.mubr.bf16.mxu0 0
    %6562 = vmatmul.mubr.bf16.gmra.mrb[0].mxu0 %v6524
    %v6563 = vpop.f32.mrb[0].mxu0
    %v6564 = vadd.f32 0.0, %v6563
    %v6565 = vpop.f32.mrb[0].mxu0
    %v6566 = vpop.f32.mrb[0].mxu0
    %v6567 = vpop.f32.mrb[0].mxu0
    %6568 = vdwg.mxu0
    %6569 = vrot.lane.b32.xlu0 %v5846, 112
    %v6570 = vpop.permute.xlu0 %6569
    %v6572 = vsel %vm201, %v6326, 0
    %v6575 = vsel %vm685, %v6570, 0
    %6577 = vmatprep.subr.bf16.mxu0 0
    %6578 = vmatpush1.bf16.msra.mxu0 %v6575
    %6579 = vmatprep.subr.bf16.mxu0 0
    %6580 = vmatpush1.bf16.msra.mxu0 0
    %6581 = vmatprep.subr.bf16.mxu0 0
    %6582 = vmatpush1.bf16.msra.mxu0 0
    %6583 = vmatprep.subr.bf16.mxu0 0
    %6584 = vmatpush1.bf16.msra.mxu0 0
    %6585 = vmatprep.subr.bf16.mxu0 0
    %6586 = vmatpush1.bf16.msra.mxu0 0
    %6587 = vmatprep.subr.bf16.mxu0 0
    %6588 = vmatpush1.bf16.msra.mxu0 0
    %6589 = vmatprep.subr.bf16.mxu0 0
    %6590 = vmatpush1.bf16.msra.mxu0 0
    %6591 = vmatprep.subr.bf16.mxu0 0
    %6592 = vmatpush1.bf16.msra.mxu0 0
    %6593 = vmatprep.subr.bf16.mxu0 0
    %6594 = vmatpush1.bf16.msra.mxu0 0
    %6595 = vmatprep.subr.bf16.mxu0 0
    %6596 = vmatpush1.bf16.msra.mxu0 0
    %6597 = vmatprep.subr.bf16.mxu0 0
    %6598 = vmatpush1.bf16.msra.mxu0 0
    %6599 = vmatprep.subr.bf16.mxu0 0
    %6600 = vmatpush1.bf16.msra.mxu0 0
    %6601 = vmatprep.subr.bf16.mxu0 0
    %6602 = vmatpush1.bf16.msra.mxu0 0
    %6603 = vmatprep.subr.bf16.mxu0 0
    %6604 = vmatpush1.bf16.msra.mxu0 0
    %6605 = vmatprep.subr.bf16.mxu0 0
    %6606 = vmatpush1.bf16.msra.mxu0 0
    %6607 = vmatprep.subr.bf16.mxu0 0
    %6608 = vmatpush1.bf16.msra.mxu0 0
    %6609 = vmatprep.mubr.bf16.mxu0 0
    %6610 = vmatmul.mubr.bf16.gmra.mrb[0].mxu0 %v6572
    %v6611 = vpop.f32.mrb[0].mxu0
    %v6612 = vadd.f32 0.0, %v6611
    %v6613 = vpop.f32.mrb[0].mxu0
    %v6614 = vpop.f32.mrb[0].mxu0
    %v6615 = vpop.f32.mrb[0].mxu0
    %6616 = vdwg.mxu0
    %6617 = vrot.lane.b32.xlu0 %v5847, 112
    %v6618 = vpop.permute.xlu0 %6617
    %v6620 = vsel %vm201, %v6327, 0
    %v6623 = vsel %vm685, %v6618, 0
    %6625 = vmatprep.subr.bf16.mxu0 0
    %6626 = vmatpush1.bf16.msra.mxu0 %v6623
    %6627 = vmatprep.subr.bf16.mxu0 0
    %6628 = vmatpush1.bf16.msra.mxu0 0
    %6629 = vmatprep.subr.bf16.mxu0 0
    %6630 = vmatpush1.bf16.msra.mxu0 0
    %6631 = vmatprep.subr.bf16.mxu0 0
    %6632 = vmatpush1.bf16.msra.mxu0 0
    %6633 = vmatprep.subr.bf16.mxu0 0
    %6634 = vmatpush1.bf16.msra.mxu0 0
    %6635 = vmatprep.subr.bf16.mxu0 0
    %6636 = vmatpush1.bf16.msra.mxu0 0
    %6637 = vmatprep.subr.bf16.mxu0 0
    %6638 = vmatpush1.bf16.msra.mxu0 0
    %6639 = vmatprep.subr.bf16.mxu0 0
    %6640 = vmatpush1.bf16.msra.mxu0 0
    %6641 = vmatprep.subr.bf16.mxu0 0
    %6642 = vmatpush1.bf16.msra.mxu0 0
    %6643 = vmatprep.subr.bf16.mxu0 0
    %6644 = vmatpush1.bf16.msra.mxu0 0
    %6645 = vmatprep.subr.bf16.mxu0 0
    %6646 = vmatpush1.bf16.msra.mxu0 0
    %6647 = vmatprep.subr.bf16.mxu0 0
    %6648 = vmatpush1.bf16.msra.mxu0 0
    %6649 = vmatprep.subr.bf16.mxu0 0
    %6650 = vmatpush1.bf16.msra.mxu0 0
    %6651 = vmatprep.subr.bf16.mxu0 0
    %6652 = vmatpush1.bf16.msra.mxu0 0
    %6653 = vmatprep.subr.bf16.mxu0 0
    %6654 = vmatpush1.bf16.msra.mxu0 0
    %6655 = vmatprep.subr.bf16.mxu0 0
    %6656 = vmatpush1.bf16.msra.mxu0 0
    %6657 = vmatprep.mubr.bf16.mxu0 0
    %6658 = vmatmul.mubr.bf16.gmra.mrb[0].mxu0 %v6620
    %v6659 = vpop.f32.mrb[0].mxu0
    %v6660 = vadd.f32 0.0, %v6659
    %v6661 = vpop.f32.mrb[0].mxu0
    %v6662 = vpop.f32.mrb[0].mxu0
    %v6663 = vpop.f32.mrb[0].mxu0
    %6664 = vdwg.mxu0
    %6665 = vrot.lane.b32.xlu0 %v5848, 112
    %v6666 = vpop.permute.xlu0 %6665
    %v6668 = vsel %vm201, %v6328, 0
    %v6671 = vsel %vm685, %v6666, 0
    %6673 = vmatprep.subr.bf16.mxu0 0
    %6674 = vmatpush1.bf16.msra.mxu0 %v6671
    %6675 = vmatprep.subr.bf16.mxu0 0
    %6676 = vmatpush1.bf16.msra.mxu0 0
    %6677 = vmatprep.subr.bf16.mxu0 0
    %6678 = vmatpush1.bf16.msra.mxu0 0
    %6679 = vmatprep.subr.bf16.mxu0 0
    %6680 = vmatpush1.bf16.msra.mxu0 0
    %6681 = vmatprep.subr.bf16.mxu0 0
    %6682 = vmatpush1.bf16.msra.mxu0 0
    %6683 = vmatprep.subr.bf16.mxu0 0
    %6684 = vmatpush1.bf16.msra.mxu0 0
    %6685 = vmatprep.subr.bf16.mxu0 0
    %6686 = vmatpush1.bf16.msra.mxu0 0
    %6687 = vmatprep.subr.bf16.mxu0 0
    %6688 = vmatpush1.bf16.msra.mxu0 0
    %6689 = vmatprep.subr.bf16.mxu0 0
    %6690 = vmatpush1.bf16.msra.mxu0 0
    %6691 = vmatprep.subr.bf16.mxu0 0
    %6692 = vmatpush1.bf16.msra.mxu0 0
    %6693 = vmatprep.subr.bf16.mxu0 0
    %6694 = vmatpush1.bf16.msra.mxu0 0
    %6695 = vmatprep.subr.bf16.mxu0 0
    %6696 = vmatpush1.bf16.msra.mxu0 0
    %6697 = vmatprep.subr.bf16.mxu0 0
    %6698 = vmatpush1.bf16.msra.mxu0 0
    %6699 = vmatprep.subr.bf16.mxu0 0
    %6700 = vmatpush1.bf16.msra.mxu0 0
    %6701 = vmatprep.subr.bf16.mxu0 0
    %6702 = vmatpush1.bf16.msra.mxu0 0
    %6703 = vmatprep.subr.bf16.mxu0 0
    %6704 = vmatpush1.bf16.msra.mxu0 0
    %6705 = vmatprep.mubr.bf16.mxu0 0
    %6706 = vmatmul.mubr.bf16.gmra.mrb[0].mxu0 %v6668
    %v6707 = vpop.f32.mrb[0].mxu0
    %v6708 = vadd.f32 0.0, %v6707
    %v6709 = vpop.f32.mrb[0].mxu0
    %v6710 = vpop.f32.mrb[0].mxu0
    %v6711 = vpop.f32.mrb[0].mxu0
    %6712 = vdwg.mxu0
    %v6713 = vpack.c.bf16 %v6420, %v6372
    %v6714 = vpack.c.bf16 %v6516, %v6468
    %v6715 = vpack.c.bf16 %v6612, %v6564
    %v6716 = vpack.c.bf16 %v6708, %v6660
    %v6717 = vld [vmem:[#allocation7] sm:$0xf]
    %v6718 = vld [vmem:[#allocation7 + $0x4] sm:$0xf]
    %v6719 = vld [vmem:[#allocation7 + $0x8] sm:$0xf]
    %v6720 = vld [vmem:[#allocation7 + $0xc] sm:$0xf]
    %v6722 = vsel %vm201, %v6713, 0
    %v6725 = vsel %vm685, %v6717, 0
    %6727 = vmatprep.subr.bf16.mxu0 0
    %6728 = vmatpush1.bf16.msra.mxu0 %v6725
    %6729 = vmatprep.subr.bf16.mxu0 0
    %6730 = vmatpush1.bf16.msra.mxu0 0
    %6731 = vmatprep.subr.bf16.mxu0 0
    %6732 = vmatpush1.bf16.msra.mxu0 0
    %6733 = vmatprep.subr.bf16.mxu0 0
    %6734 = vmatpush1.bf16.msra.mxu0 0
    %6735 = vmatprep.subr.bf16.mxu0 0
    %6736 = vmatpush1.bf16.msra.mxu0 0
    %6737 = vmatprep.subr.bf16.mxu0 0
    %6738 = vmatpush1.bf16.msra.mxu0 0
    %6739 = vmatprep.subr.bf16.mxu0 0
    %6740 = vmatpush1.bf16.msra.mxu0 0
    %6741 = vmatprep.subr.bf16.mxu0 0
    %6742 = vmatpush1.bf16.msra.mxu0 0
    %6743 = vmatprep.subr.bf16.mxu0 0
    %6744 = vmatpush1.bf16.msra.mxu0 0
    %6745 = vmatprep.subr.bf16.mxu0 0
    %6746 = vmatpush1.bf16.msra.mxu0 0
    %6747 = vmatprep.subr.bf16.mxu0 0
    %6748 = vmatpush1.bf16.msra.mxu0 0
    %6749 = vmatprep.subr.bf16.mxu0 0
    %6750 = vmatpush1.bf16.msra.mxu0 0
    %6751 = vmatprep.subr.bf16.mxu0 0
    %6752 = vmatpush1.bf16.msra.mxu0 0
    %6753 = vmatprep.subr.bf16.mxu0 0
    %6754 = vmatpush1.bf16.msra.mxu0 0
    %6755 = vmatprep.subr.bf16.mxu0 0
    %6756 = vmatpush1.bf16.msra.mxu0 0
    %6757 = vmatprep.subr.bf16.mxu0 0
    %6758 = vmatpush1.bf16.msra.mxu0 0
    %6759 = vmatprep.mubr.bf16.mxu0 0
    %6760 = vmatmul.mubr.bf16.gmra.mrb[0].mxu0 %v6722
    %v6761 = vpop.f32.mrb[0].mxu0
    %v6762 = vadd.f32 0.0, %v6761
    %v6763 = vpop.f32.mrb[0].mxu0
    %v6764 = vpop.f32.mrb[0].mxu0
    %v6765 = vadd.f32 0.0, %v6764
    %v6766 = vpop.f32.mrb[0].mxu0
    %6767 = vdwg.mxu0
    %v6769 = vsel %vm201, %v6714, 0
    %v6772 = vsel %vm685, %v6718, 0
    %6774 = vmatprep.subr.bf16.mxu0 0
    %6775 = vmatpush1.bf16.msra.mxu0 %v6772
    %6776 = vmatprep.subr.bf16.mxu0 0
    %6777 = vmatpush1.bf16.msra.mxu0 0
    %6778 = vmatprep.subr.bf16.mxu0 0
    %6779 = vmatpush1.bf16.msra.mxu0 0
    %6780 = vmatprep.subr.bf16.mxu0 0
    %6781 = vmatpush1.bf16.msra.mxu0 0
    %6782 = vmatprep.subr.bf16.mxu0 0
    %6783 = vmatpush1.bf16.msra.mxu0 0
    %6784 = vmatprep.subr.bf16.mxu0 0
    %6785 = vmatpush1.bf16.msra.mxu0 0
    %6786 = vmatprep.subr.bf16.mxu0 0
    %6787 = vmatpush1.bf16.msra.mxu0 0
    %6788 = vmatprep.subr.bf16.mxu0 0
    %6789 = vmatpush1.bf16.msra.mxu0 0
    %6790 = vmatprep.subr.bf16.mxu0 0
    %6791 = vmatpush1.bf16.msra.mxu0 0
    %6792 = vmatprep.subr.bf16.mxu0 0
    %6793 = vmatpush1.bf16.msra.mxu0 0
    %6794 = vmatprep.subr.bf16.mxu0 0
    %6795 = vmatpush1.bf16.msra.mxu0 0
    %6796 = vmatprep.subr.bf16.mxu0 0
    %6797 = vmatpush1.bf16.msra.mxu0 0
    %6798 = vmatprep.subr.bf16.mxu0 0
    %6799 = vmatpush1.bf16.msra.mxu0 0
    %6800 = vmatprep.subr.bf16.mxu0 0
    %6801 = vmatpush1.bf16.msra.mxu0 0
    %6802 = vmatprep.subr.bf16.mxu0 0
    %6803 = vmatpush1.bf16.msra.mxu0 0
    %6804 = vmatprep.subr.bf16.mxu0 0
    %6805 = vmatpush1.bf16.msra.mxu0 0
    %6806 = vmatprep.mubr.bf16.mxu0 0
    %6807 = vmatmul.mubr.bf16.gmra.mrb[0].mxu0 %v6769
    %v6808 = vpop.f32.mrb[0].mxu0
    %v6809 = vadd.f32 0.0, %v6808
    %v6810 = vpop.f32.mrb[0].mxu0
    %v6811 = vpop.f32.mrb[0].mxu0
    %v6812 = vadd.f32 0.0, %v6811
    %v6813 = vpop.f32.mrb[0].mxu0
    %6814 = vdwg.mxu0
    %v6816 = vsel %vm201, %v6715, 0
    %v6819 = vsel %vm685, %v6719, 0
    %6821 = vmatprep.subr.bf16.mxu0 0
    %6822 = vmatpush1.bf16.msra.mxu0 %v6819
    %6823 = vmatprep.subr.bf16.mxu0 0
    %6824 = vmatpush1.bf16.msra.mxu0 0
    %6825 = vmatprep.subr.bf16.mxu0 0
    %6826 = vmatpush1.bf16.msra.mxu0 0
    %6827 = vmatprep.subr.bf16.mxu0 0
    %6828 = vmatpush1.bf16.msra.mxu0 0
    %6829 = vmatprep.subr.bf16.mxu0 0
    %6830 = vmatpush1.bf16.msra.mxu0 0
    %6831 = vmatprep.subr.bf16.mxu0 0
    %6832 = vmatpush1.bf16.msra.mxu0 0
    %6833 = vmatprep.subr.bf16.mxu0 0
    %6834 = vmatpush1.bf16.msra.mxu0 0
    %6835 = vmatprep.subr.bf16.mxu0 0
    %6836 = vmatpush1.bf16.msra.mxu0 0
    %6837 = vmatprep.subr.bf16.mxu0 0
    %6838 = vmatpush1.bf16.msra.mxu0 0
    %6839 = vmatprep.subr.bf16.mxu0 0
    %6840 = vmatpush1.bf16.msra.mxu0 0
    %6841 = vmatprep.subr.bf16.mxu0 0
    %6842 = vmatpush1.bf16.msra.mxu0 0
    %6843 = vmatprep.subr.bf16.mxu0 0
    %6844 = vmatpush1.bf16.msra.mxu0 0
    %6845 = vmatprep.subr.bf16.mxu0 0
    %6846 = vmatpush1.bf16.msra.mxu0 0
    %6847 = vmatprep.subr.bf16.mxu0 0
    %6848 = vmatpush1.bf16.msra.mxu0 0
    %6849 = vmatprep.subr.bf16.mxu0 0
    %6850 = vmatpush1.bf16.msra.mxu0 0
    %6851 = vmatprep.subr.bf16.mxu0 0
    %6852 = vmatpush1.bf16.msra.mxu0 0
    %6853 = vmatprep.mubr.bf16.mxu0 0
    %6854 = vmatmul.mubr.bf16.gmra.mrb[0].mxu0 %v6816
    %v6855 = vpop.f32.mrb[0].mxu0
    %v6856 = vadd.f32 0.0, %v6855
    %v6857 = vpop.f32.mrb[0].mxu0
    %v6858 = vpop.f32.mrb[0].mxu0
    %v6859 = vadd.f32 0.0, %v6858
    %v6860 = vpop.f32.mrb[0].mxu0
    %6861 = vdwg.mxu0
    %v6863 = vsel %vm201, %v6716, 0
    %v6866 = vsel %vm685, %v6720, 0
    %6868 = vmatprep.subr.bf16.mxu0 0
    %6869 = vmatpush1.bf16.msra.mxu0 %v6866
    %6870 = vmatprep.subr.bf16.mxu0 0
    %6871 = vmatpush1.bf16.msra.mxu0 0
    %6872 = vmatprep.subr.bf16.mxu0 0
    %6873 = vmatpush1.bf16.msra.mxu0 0
    %6874 = vmatprep.subr.bf16.mxu0 0
    %6875 = vmatpush1.bf16.msra.mxu0 0
    %6876 = vmatprep.subr.bf16.mxu0 0
    %6877 = vmatpush1.bf16.msra.mxu0 0
    %6878 = vmatprep.subr.bf16.mxu0 0
    %6879 = vmatpush1.bf16.msra.mxu0 0
    %6880 = vmatprep.subr.bf16.mxu0 0
    %6881 = vmatpush1.bf16.msra.mxu0 0
    %6882 = vmatprep.subr.bf16.mxu0 0
    %6883 = vmatpush1.bf16.msra.mxu0 0
    %6884 = vmatprep.subr.bf16.mxu0 0
    %6885 = vmatpush1.bf16.msra.mxu0 0
    %6886 = vmatprep.subr.bf16.mxu0 0
    %6887 = vmatpush1.bf16.msra.mxu0 0
    %6888 = vmatprep.subr.bf16.mxu0 0
    %6889 = vmatpush1.bf16.msra.mxu0 0
    %6890 = vmatprep.subr.bf16.mxu0 0
    %6891 = vmatpush1.bf16.msra.mxu0 0
    %6892 = vmatprep.subr.bf16.mxu0 0
    %6893 = vmatpush1.bf16.msra.mxu0 0
    %6894 = vmatprep.subr.bf16.mxu0 0
    %6895 = vmatpush1.bf16.msra.mxu0 0
    %6896 = vmatprep.subr.bf16.mxu0 0
    %6897 = vmatpush1.bf16.msra.mxu0 0
    %6898 = vmatprep.subr.bf16.mxu0 0
    %6899 = vmatpush1.bf16.msra.mxu0 0
    %6900 = vmatprep.mubr.bf16.mxu0 0
    %6901 = vmatmul.mubr.bf16.gmra.mrb[0].mxu0 %v6863
    %v6902 = vpop.f32.mrb[0].mxu0
    %v6903 = vadd.f32 0.0, %v6902
    %v6904 = vpop.f32.mrb[0].mxu0
    %v6905 = vpop.f32.mrb[0].mxu0
    %v6906 = vadd.f32 0.0, %v6905
    %v6907 = vpop.f32.mrb[0].mxu0
    %6908 = vdwg.mxu0
    %v6909 = vadd.f32 %v67, %v6762
    %v6910 = vadd.f32 %v67, %v6765
    %v6911 = vadd.f32 %v6909, %v6809
    %v6912 = vadd.f32 %v6910, %v6812
    %v6913 = vadd.f32 %v6911, %v6856
    %v6914 = vadd.f32 %v6912, %v6859
    %v6915 = vadd.f32 %v6913, %v6903
    %v6916 = vadd.f32 %v6914, %v6906
    %v6917 = vpack.c.bf16 %v6916, %v6915
    %v6918 = vld [vmem:[#allocation5 + $0x4] sm:$0xf]
    %v6919 = vld [vmem:[#allocation5 + $0x10] sm:$0xf]
    %v6920 = vld [vmem:[#allocation5 + $0x1c] sm:$0xf]
    %v6921 = vld [vmem:[#allocation5 + $0x28] sm:$0xf]
    %v6922 = vld [vmem:[#allocation5 + $0x34] sm:$0xf]
    %v6923 = vld [vmem:[#allocation5 + $0x40] sm:$0xf]
    %v6924 = vld [vmem:[#allocation5 + $0x4c] sm:$0xf]
    %v6925 = vld [vmem:[#allocation5 + $0x58] sm:$0xf]
    %v6926 = vld [vmem:[#allocation5 + $0x64] sm:$0xf]
    %v6927 = vld [vmem:[#allocation5 + $0x70] sm:$0xf]
    %v6928 = vld [vmem:[#allocation5 + $0x7c] sm:$0xf]
    %v6929 = vld [vmem:[#allocation5 + $0x88] sm:$0xf]
    %v6930 = vld [vmem:[#allocation5 + $0x94] sm:$0xf]
    %v6931 = vld [vmem:[#allocation5 + $0xa0] sm:$0xf]
    %v6932 = vld [vmem:[#allocation5 + $0xac] sm:$0xf]
    %v6933 = vld [vmem:[#allocation5 + $0xb8] sm:$0xf]
    %v6950 = vunpack.c.l.b16 %v6918
    %v6951 = vunpack.c.l.b16 %v6919
    %v6952 = vunpack.c.l.b16 %v6920
    %v6953 = vunpack.c.l.b16 %v6921
    %v6954 = vunpack.c.l.b16 %v6922
    %v6955 = vunpack.c.l.b16 %v6923
    %v6956 = vunpack.c.l.b16 %v6924
    %v6957 = vunpack.c.l.b16 %v6925
    %v6958 = vunpack.c.l.b16 %v6926
    %v6959 = vunpack.c.l.b16 %v6927
    %v6960 = vunpack.c.l.b16 %v6928
    %v6961 = vunpack.c.l.b16 %v6929
    %v6962 = vunpack.c.l.b16 %v6930
    %v6963 = vunpack.c.l.b16 %v6931
    %v6964 = vunpack.c.l.b16 %v6932
    %v6965 = vunpack.c.l.b16 %v6933
    %v6966 = vpack.c.b16 %v6951, %v6950
    %v6967 = vpack.c.b16 %v6953, %v6952
    %v6968 = vpack.c.b16 %v6955, %v6954
    %v6969 = vpack.c.b16 %v6957, %v6956
    %v6970 = vpack.c.b16 %v6959, %v6958
    %v6971 = vpack.c.b16 %v6961, %v6960
    %v6972 = vpack.c.b16 %v6963, %v6962
    %v6973 = vpack.c.b16 %v6965, %v6964
    %6982 = vmatprep.subr.bf16.mxu0 0
    %6983 = vmatpush1.bf16.msra.mxu0 %v6966
    %6984 = vmatprep.subr.bf16.mxu0 0
    %6985 = vmatpush1.bf16.msra.mxu0 %v6967
    %6986 = vmatprep.subr.bf16.mxu0 0
    %6987 = vmatpush1.bf16.msra.mxu0 %v6968
    %6988 = vmatprep.subr.bf16.mxu0 0
    %6989 = vmatpush1.bf16.msra.mxu0 %v6969
    %6990 = vmatprep.subr.bf16.mxu0 0
    %6991 = vmatpush1.bf16.msra.mxu0 %v6970
    %6992 = vmatprep.subr.bf16.mxu0 0
    %6993 = vmatpush1.bf16.msra.mxu0 %v6971
    %6994 = vmatprep.subr.bf16.mxu0 0
    %6995 = vmatpush1.bf16.msra.mxu0 %v6972
    %6996 = vmatprep.subr.bf16.mxu0 0
    %6997 = vmatpush1.bf16.msra.mxu0 %v6973
    %6998 = vmatprep.subr.bf16.mxu0 0
    %6999 = vmatpush1.bf16.msra.mxu0 0
    %7000 = vmatprep.subr.bf16.mxu0 0
    %7001 = vmatpush1.bf16.msra.mxu0 0
    %7002 = vmatprep.subr.bf16.mxu0 0
    %7003 = vmatpush1.bf16.msra.mxu0 0
    %7004 = vmatprep.subr.bf16.mxu0 0
    %7005 = vmatpush1.bf16.msra.mxu0 0
    %7006 = vmatprep.subr.bf16.mxu0 0
    %7007 = vmatpush1.bf16.msra.mxu0 0
    %7008 = vmatprep.subr.bf16.mxu0 0
    %7009 = vmatpush1.bf16.msra.mxu0 0
    %7010 = vmatprep.subr.bf16.mxu0 0
    %7011 = vmatpush1.bf16.msra.mxu0 0
    %7012 = vmatprep.subr.bf16.mxu0 0
    %7013 = vmatpush1.bf16.msra.mxu0 0
    %7014 = vmatprep.mubr.bf16.mxu0 0
    %7015 = vmatmul.mubr.bf16.gmra.mrb[0].mxu0 %v6917
    %v7016 = vpop.f32.mrb[0].mxu0
    %v7017 = vadd.f32 0.0, %v7016
    %v7018 = vpop.f32.mrb[0].mxu0
    %v7019 = vpop.f32.mrb[0].mxu0
    %v7020 = vadd.f32 0.0, %v7019
    %v7021 = vpop.f32.mrb[0].mxu0
    %7022 = vdwg.mxu0
    %v7023 = vmax.f32 %v7017, 0.0
    %v7024 = vmax.f32 %v7020, 0.0
    %v7025 = vpack.c.bf16 %v7024, %v7023
    %v7026 = vld [vmem:[#allocation5 + $0x8] sm:$0xf]
    %v7027 = vld [vmem:[#allocation5 + $0x14] sm:$0xf]
    %v7028 = vld [vmem:[#allocation5 + $0x20] sm:$0xf]
    %v7029 = vld [vmem:[#allocation5 + $0x2c] sm:$0xf]
    %v7030 = vld [vmem:[#allocation5 + $0x38] sm:$0xf]
    %v7031 = vld [vmem:[#allocation5 + $0x44] sm:$0xf]
    %v7032 = vld [vmem:[#allocation5 + $0x50] sm:$0xf]
    %v7033 = vld [vmem:[#allocation5 + $0x5c] sm:$0xf]
    %v7034 = vld [vmem:[#allocation5 + $0x68] sm:$0xf]
    %v7035 = vld [vmem:[#allocation5 + $0x74] sm:$0xf]
    %v7036 = vld [vmem:[#allocation5 + $0x80] sm:$0xf]
    %v7037 = vld [vmem:[#allocation5 + $0x8c] sm:$0xf]
    %v7038 = vld [vmem:[#allocation5 + $0x98] sm:$0xf]
    %v7039 = vld [vmem:[#allocation5 + $0xa4] sm:$0xf]
    %v7040 = vld [vmem:[#allocation5 + $0xb0] sm:$0xf]
    %v7041 = vld [vmem:[#allocation5 + $0xbc] sm:$0xf]
    %v7058 = vunpack.c.l.b16 %v7026
    %v7059 = vunpack.c.l.b16 %v7027
    %v7060 = vunpack.c.l.b16 %v7028
    %v7061 = vunpack.c.l.b16 %v7029
    %v7062 = vunpack.c.l.b16 %v7030
    %v7063 = vunpack.c.l.b16 %v7031
    %v7064 = vunpack.c.l.b16 %v7032
    %v7065 = vunpack.c.l.b16 %v7033
    %v7066 = vunpack.c.l.b16 %v7034
    %v7067 = vunpack.c.l.b16 %v7035
    %v7068 = vunpack.c.l.b16 %v7036
    %v7069 = vunpack.c.l.b16 %v7037
    %v7070 = vunpack.c.l.b16 %v7038
    %v7071 = vunpack.c.l.b16 %v7039
    %v7072 = vunpack.c.l.b16 %v7040
    %v7073 = vunpack.c.l.b16 %v7041
    %v7074 = vpack.c.b16 %v7059, %v7058
    %v7075 = vpack.c.b16 %v7061, %v7060
    %v7076 = vpack.c.b16 %v7063, %v7062
    %v7077 = vpack.c.b16 %v7065, %v7064
    %v7078 = vpack.c.b16 %v7067, %v7066
    %v7079 = vpack.c.b16 %v7069, %v7068
    %v7080 = vpack.c.b16 %v7071, %v7070
    %v7081 = vpack.c.b16 %v7073, %v7072
    %7090 = vmatprep.subr.bf16.mxu0 0
    %7091 = vmatpush1.bf16.msra.mxu0 %v7074
    %7092 = vmatprep.subr.bf16.mxu0 0
    %7093 = vmatpush1.bf16.msra.mxu0 %v7075
    %7094 = vmatprep.subr.bf16.mxu0 0
    %7095 = vmatpush1.bf16.msra.mxu0 %v7076
    %7096 = vmatprep.subr.bf16.mxu0 0
    %7097 = vmatpush1.bf16.msra.mxu0 %v7077
    %7098 = vmatprep.subr.bf16.mxu0 0
    %7099 = vmatpush1.bf16.msra.mxu0 %v7078
    %7100 = vmatprep.subr.bf16.mxu0 0
    %7101 = vmatpush1.bf16.msra.mxu0 %v7079
    %7102 = vmatprep.subr.bf16.mxu0 0
    %7103 = vmatpush1.bf16.msra.mxu0 %v7080
    %7104 = vmatprep.subr.bf16.mxu0 0
    %7105 = vmatpush1.bf16.msra.mxu0 %v7081
    %7106 = vmatprep.subr.bf16.mxu0 0
    %7107 = vmatpush1.bf16.msra.mxu0 0
    %7108 = vmatprep.subr.bf16.mxu0 0
    %7109 = vmatpush1.bf16.msra.mxu0 0
    %7110 = vmatprep.subr.bf16.mxu0 0
    %7111 = vmatpush1.bf16.msra.mxu0 0
    %7112 = vmatprep.subr.bf16.mxu0 0
    %7113 = vmatpush1.bf16.msra.mxu0 0
    %7114 = vmatprep.subr.bf16.mxu0 0
    %7115 = vmatpush1.bf16.msra.mxu0 0
    %7116 = vmatprep.subr.bf16.mxu0 0
    %7117 = vmatpush1.bf16.msra.mxu0 0
    %7118 = vmatprep.subr.bf16.mxu0 0
    %7119 = vmatpush1.bf16.msra.mxu0 0
    %7120 = vmatprep.subr.bf16.mxu0 0
    %7121 = vmatpush1.bf16.msra.mxu0 0
    %7122 = vmatprep.mubr.bf16.mxu0 0
    %7123 = vmatmul.mubr.bf16.gmra.mrb[0].mxu0 %v7025
    %v7124 = vpop.f32.mrb[0].mxu0
    %v7125 = vadd.f32 0.0, %v7124
    %v7126 = vpop.f32.mrb[0].mxu0
    %v7127 = vpop.f32.mrb[0].mxu0
    %v7128 = vadd.f32 0.0, %v7127
    %v7129 = vpop.f32.mrb[0].mxu0
    %7130 = vdwg.mxu0
    %v7131 = vpack.c.bf16 %v7128, %v7125
    %v7132 = vld [vmem:[#allocation5] sm:$0xf]
    %v7133 = vld [vmem:[#allocation5 + $0xc] sm:$0xf]
    %v7134 = vld [vmem:[#allocation5 + $0x18] sm:$0xf]
    %v7135 = vld [vmem:[#allocation5 + $0x24] sm:$0xf]
    %v7136 = vld [vmem:[#allocation5 + $0x30] sm:$0xf]
    %v7137 = vld [vmem:[#allocation5 + $0x3c] sm:$0xf]
    %v7138 = vld [vmem:[#allocation5 + $0x48] sm:$0xf]
    %v7139 = vld [vmem:[#allocation5 + $0x54] sm:$0xf]
    %v7140 = vld [vmem:[#allocation5 + $0x60] sm:$0xf]
    %v7141 = vld [vmem:[#allocation5 + $0x6c] sm:$0xf]
    %v7142 = vld [vmem:[#allocation5 + $0x78] sm:$0xf]
    %v7143 = vld [vmem:[#allocation5 + $0x84] sm:$0xf]
    %v7144 = vld [vmem:[#allocation5 + $0x90] sm:$0xf]
    %v7145 = vld [vmem:[#allocation5 + $0x9c] sm:$0xf]
    %v7146 = vld [vmem:[#allocation5 + $0xa8] sm:$0xf]
    %v7147 = vld [vmem:[#allocation5 + $0xb4] sm:$0xf]
    %v7164 = vunpack.c.l.b16 %v7132
    %v7165 = vunpack.c.l.b16 %v7133
    %v7166 = vunpack.c.l.b16 %v7134
    %v7167 = vunpack.c.l.b16 %v7135
    %v7168 = vunpack.c.l.b16 %v7136
    %v7169 = vunpack.c.l.b16 %v7137
    %v7170 = vunpack.c.l.b16 %v7138
    %v7171 = vunpack.c.l.b16 %v7139
    %v7172 = vunpack.c.l.b16 %v7140
    %v7173 = vunpack.c.l.b16 %v7141
    %v7174 = vunpack.c.l.b16 %v7142
    %v7175 = vunpack.c.l.b16 %v7143
    %v7176 = vunpack.c.l.b16 %v7144
    %v7177 = vunpack.c.l.b16 %v7145
    %v7178 = vunpack.c.l.b16 %v7146
    %v7179 = vunpack.c.l.b16 %v7147
    %v7180 = vpack.c.b16 %v7165, %v7164
    %v7181 = vpack.c.b16 %v7167, %v7166
    %v7182 = vpack.c.b16 %v7169, %v7168
    %v7183 = vpack.c.b16 %v7171, %v7170
    %v7184 = vpack.c.b16 %v7173, %v7172
    %v7185 = vpack.c.b16 %v7175, %v7174
    %v7186 = vpack.c.b16 %v7177, %v7176
    %v7187 = vpack.c.b16 %v7179, %v7178
    %7196 = vmatprep.subr.bf16.mxu0 0
    %7197 = vmatpush1.bf16.msra.mxu0 %v7180
    %7198 = vmatprep.subr.bf16.mxu0 0
    %7199 = vmatpush1.bf16.msra.mxu0 %v7181
    %7200 = vmatprep.subr.bf16.mxu0 0
    %7201 = vmatpush1.bf16.msra.mxu0 %v7182
    %7202 = vmatprep.subr.bf16.mxu0 0
    %7203 = vmatpush1.bf16.msra.mxu0 %v7183
    %7204 = vmatprep.subr.bf16.mxu0 0
    %7205 = vmatpush1.bf16.msra.mxu0 %v7184
    %7206 = vmatprep.subr.bf16.mxu0 0
    %7207 = vmatpush1.bf16.msra.mxu0 %v7185
    %7208 = vmatprep.subr.bf16.mxu0 0
    %7209 = vmatpush1.bf16.msra.mxu0 %v7186
    %7210 = vmatprep.subr.bf16.mxu0 0
    %7211 = vmatpush1.bf16.msra.mxu0 %v7187
    %7212 = vmatprep.subr.bf16.mxu0 0
    %7213 = vmatpush1.bf16.msra.mxu0 0
    %7214 = vmatprep.subr.bf16.mxu0 0
    %7215 = vmatpush1.bf16.msra.mxu0 0
    %7216 = vmatprep.subr.bf16.mxu0 0
    %7217 = vmatpush1.bf16.msra.mxu0 0
    %7218 = vmatprep.subr.bf16.mxu0 0
    %7219 = vmatpush1.bf16.msra.mxu0 0
    %7220 = vmatprep.subr.bf16.mxu0 0
    %7221 = vmatpush1.bf16.msra.mxu0 0
    %7222 = vmatprep.subr.bf16.mxu0 0
    %7223 = vmatpush1.bf16.msra.mxu0 0
    %7224 = vmatprep.subr.bf16.mxu0 0
    %7225 = vmatpush1.bf16.msra.mxu0 0
    %7226 = vmatprep.subr.bf16.mxu0 0
    %7227 = vmatpush1.bf16.msra.mxu0 0
    %7228 = vmatprep.mubr.bf16.mxu0 0
    %7229 = vmatmul.mubr.bf16.gmra.mrb[0].mxu0 %v7131
    %v7230 = vpop.f32.mrb[0].mxu0
    %v7231 = vadd.f32 0.0, %v7230
    %v7232 = vpop.f32.mrb[0].mxu0
    %v7233 = vpop.f32.mrb[0].mxu0
    %v7234 = vadd.f32 0.0, %v7233
    %v7235 = vpop.f32.mrb[0].mxu0
    %7236 = vdwg.mxu0
    %v7237 = vpack.c.bf16 %v7234, %v7231
    %7239 = vrot.lane.b32.xlu0 %v7237, 104
    %v7240 = vpop.permute.xlu0 %7239
    %7241 = vrot.lane.b32.xlu0 %v7237, 80
    %v7242 = vpop.permute.xlu0 %7241
    %7243 = vrot.lane.b32.xlu0 %v7237, 56
    %v7244 = vpop.permute.xlu0 %7243
    %v7245 = vunpack.c.l.b16 %v7237
    %v7246 = vunpack.c.h.b16 %v7237
    %v7247 = vunpack.c.l.b16 %v7240
    %v7248 = vunpack.c.h.b16 %v7240
    %v7249 = vunpack.c.l.b16 %v7242
    %v7250 = vunpack.c.h.b16 %v7242
    %v7251 = vunpack.c.l.b16 %v7244
    %v7252 = vunpack.c.h.b16 %v7244
    %v7253 = vpack.c.b16 %v7245, %v7245
    %v7254 = vpack.c.b16 %v7246, %v7246
    %v7255 = vpack.c.b16 %v7247, %v7247
    %v7256 = vpack.c.b16 %v7248, %v7248
    %v7257 = vpack.c.b16 %v7249, %v7249
    %v7258 = vpack.c.b16 %v7250, %v7250
    %v7259 = vpack.c.b16 %v7251, %v7251
    %v7260 = vpack.c.b16 %v7252, %v7252
    %7261 = vrot.lane.b32.xlu0 %v7253, 120
    %v7262 = vpop.permute.xlu0 %7261
    %v7264 = vsel %vm201, %v7253, 0
    %v7267 = vsel %vm201, %v7262, 0
    %7269 = vmatprep.subr.bf16.mxu0 0
    %7270 = vmatpush1.bf16.xpose.msra.mxu0 %v7267
    %7271 = vmatprep.subr.bf16.mxu0 0
    %7272 = vmatpush1.bf16.xpose.msra.mxu0 0
    %7273 = vmatprep.subr.bf16.mxu0 0
    %7274 = vmatpush1.bf16.xpose.msra.mxu0 0
    %7275 = vmatprep.subr.bf16.mxu0 0
    %7276 = vmatpush1.bf16.xpose.msra.mxu0 0
    %7277 = vmatprep.subr.bf16.mxu0 0
    %7278 = vmatpush1.bf16.xpose.msra.mxu0 0
    %7279 = vmatprep.subr.bf16.mxu0 0
    %7280 = vmatpush1.bf16.xpose.msra.mxu0 0
    %7281 = vmatprep.subr.bf16.mxu0 0
    %7282 = vmatpush1.bf16.xpose.msra.mxu0 0
    %7283 = vmatprep.subr.bf16.mxu0 0
    %7284 = vmatpush1.bf16.xpose.msra.mxu0 0
    %7285 = vmatprep.subr.bf16.mxu0 0
    %7286 = vmatpush1.bf16.xpose.msra.mxu0 0
    %7287 = vmatprep.subr.bf16.mxu0 0
    %7288 = vmatpush1.bf16.xpose.msra.mxu0 0
    %7289 = vmatprep.subr.bf16.mxu0 0
    %7290 = vmatpush1.bf16.xpose.msra.mxu0 0
    %7291 = vmatprep.subr.bf16.mxu0 0
    %7292 = vmatpush1.bf16.xpose.msra.mxu0 0
    %7293 = vmatprep.subr.bf16.mxu0 0
    %7294 = vmatpush1.bf16.xpose.msra.mxu0 0
    %7295 = vmatprep.subr.bf16.mxu0 0
    %7296 = vmatpush1.bf16.xpose.msra.mxu0 0
    %7297 = vmatprep.subr.bf16.mxu0 0
    %7298 = vmatpush1.bf16.xpose.msra.mxu0 0
    %7299 = vmatprep.subr.bf16.mxu0 0
    %7300 = vmatpush1.bf16.xpose.msra.mxu0 0
    %7301 = vmatprep.mubr.bf16.mxu0 0
    %7302 = vmatmul.mubr.bf16.gmra.mrb[0].mxu0 %v7264
    %v7303 = vpop.f32.mrb[0].mxu0
    %v7304 = vadd.f32 0.0, %v7303
    %v7305 = vpop.f32.mrb[0].mxu0
    %v7306 = vpop.f32.mrb[0].mxu0
    %v7307 = vpop.f32.mrb[0].mxu0
    %7308 = vdwg.mxu0
    %7309 = vrot.lane.b32.xlu0 %v7254, 120
    %v7310 = vpop.permute.xlu0 %7309
    %v7312 = vsel %vm201, %v7254, 0
    %v7315 = vsel %vm201, %v7310, 0
    %7317 = vmatprep.subr.bf16.mxu0 0
    %7318 = vmatpush1.bf16.xpose.msra.mxu0 %v7315
    %7319 = vmatprep.subr.bf16.mxu0 0
    %7320 = vmatpush1.bf16.xpose.msra.mxu0 0
    %7321 = vmatprep.subr.bf16.mxu0 0
    %7322 = vmatpush1.bf16.xpose.msra.mxu0 0
    %7323 = vmatprep.subr.bf16.mxu0 0
    %7324 = vmatpush1.bf16.xpose.msra.mxu0 0
    %7325 = vmatprep.subr.bf16.mxu0 0
    %7326 = vmatpush1.bf16.xpose.msra.mxu0 0
    %7327 = vmatprep.subr.bf16.mxu0 0
    %7328 = vmatpush1.bf16.xpose.msra.mxu0 0
    %7329 = vmatprep.subr.bf16.mxu0 0
    %7330 = vmatpush1.bf16.xpose.msra.mxu0 0
    %7331 = vmatprep.subr.bf16.mxu0 0
    %7332 = vmatpush1.bf16.xpose.msra.mxu0 0
    %7333 = vmatprep.subr.bf16.mxu0 0
    %7334 = vmatpush1.bf16.xpose.msra.mxu0 0
    %7335 = vmatprep.subr.bf16.mxu0 0
    %7336 = vmatpush1.bf16.xpose.msra.mxu0 0
    %7337 = vmatprep.subr.bf16.mxu0 0
    %7338 = vmatpush1.bf16.xpose.msra.mxu0 0
    %7339 = vmatprep.subr.bf16.mxu0 0
    %7340 = vmatpush1.bf16.xpose.msra.mxu0 0
    %7341 = vmatprep.subr.bf16.mxu0 0
    %7342 = vmatpush1.bf16.xpose.msra.mxu0 0
    %7343 = vmatprep.subr.bf16.mxu0 0
    %7344 = vmatpush1.bf16.xpose.msra.mxu0 0
    %7345 = vmatprep.subr.bf16.mxu0 0
    %7346 = vmatpush1.bf16.xpose.msra.mxu0 0
    %7347 = vmatprep.subr.bf16.mxu0 0
    %7348 = vmatpush1.bf16.xpose.msra.mxu0 0
    %7349 = vmatprep.mubr.bf16.mxu0 0
    %7350 = vmatmul.mubr.bf16.gmra.mrb[0].mxu0 %v7312
    %v7351 = vpop.f32.mrb[0].mxu0
    %v7352 = vadd.f32 0.0, %v7351
    %v7353 = vpop.f32.mrb[0].mxu0
    %v7354 = vpop.f32.mrb[0].mxu0
    %v7355 = vpop.f32.mrb[0].mxu0
    %7356 = vdwg.mxu0
    %7357 = vrot.lane.b32.xlu0 %v7255, 120
    %v7358 = vpop.permute.xlu0 %7357
    %v7360 = vsel %vm201, %v7255, 0
    %v7363 = vsel %vm201, %v7358, 0
    %7365 = vmatprep.subr.bf16.mxu0 0
    %7366 = vmatpush1.bf16.xpose.msra.mxu0 %v7363
    %7367 = vmatprep.subr.bf16.mxu0 0
    %7368 = vmatpush1.bf16.xpose.msra.mxu0 0
    %7369 = vmatprep.subr.bf16.mxu0 0
    %7370 = vmatpush1.bf16.xpose.msra.mxu0 0
    %7371 = vmatprep.subr.bf16.mxu0 0
    %7372 = vmatpush1.bf16.xpose.msra.mxu0 0
    %7373 = vmatprep.subr.bf16.mxu0 0
    %7374 = vmatpush1.bf16.xpose.msra.mxu0 0
    %7375 = vmatprep.subr.bf16.mxu0 0
    %7376 = vmatpush1.bf16.xpose.msra.mxu0 0
    %7377 = vmatprep.subr.bf16.mxu0 0
    %7378 = vmatpush1.bf16.xpose.msra.mxu0 0
    %7379 = vmatprep.subr.bf16.mxu0 0
    %7380 = vmatpush1.bf16.xpose.msra.mxu0 0
    %7381 = vmatprep.subr.bf16.mxu0 0
    %7382 = vmatpush1.bf16.xpose.msra.mxu0 0
    %7383 = vmatprep.subr.bf16.mxu0 0
    %7384 = vmatpush1.bf16.xpose.msra.mxu0 0
    %7385 = vmatprep.subr.bf16.mxu0 0
    %7386 = vmatpush1.bf16.xpose.msra.mxu0 0
    %7387 = vmatprep.subr.bf16.mxu0 0
    %7388 = vmatpush1.bf16.xpose.msra.mxu0 0
    %7389 = vmatprep.subr.bf16.mxu0 0
    %7390 = vmatpush1.bf16.xpose.msra.mxu0 0
    %7391 = vmatprep.subr.bf16.mxu0 0
    %7392 = vmatpush1.bf16.xpose.msra.mxu0 0
    %7393 = vmatprep.subr.bf16.mxu0 0
    %7394 = vmatpush1.bf16.xpose.msra.mxu0 0
    %7395 = vmatprep.subr.bf16.mxu0 0
    %7396 = vmatpush1.bf16.xpose.msra.mxu0 0
    %7397 = vmatprep.mubr.bf16.mxu0 0
    %7398 = vmatmul.mubr.bf16.gmra.mrb[0].mxu0 %v7360
    %v7399 = vpop.f32.mrb[0].mxu0
    %v7400 = vadd.f32 0.0, %v7399
    %v7401 = vpop.f32.mrb[0].mxu0
    %v7402 = vpop.f32.mrb[0].mxu0
    %v7403 = vpop.f32.mrb[0].mxu0
    %7404 = vdwg.mxu0
    %7405 = vrot.lane.b32.xlu0 %v7256, 120
    %v7406 = vpop.permute.xlu0 %7405
    %v7408 = vsel %vm201, %v7256, 0
    %v7411 = vsel %vm201, %v7406, 0
    %7413 = vmatprep.subr.bf16.mxu0 0
    %7414 = vmatpush1.bf16.xpose.msra.mxu0 %v7411
    %7415 = vmatprep.subr.bf16.mxu0 0
    %7416 = vmatpush1.bf16.xpose.msra.mxu0 0
    %7417 = vmatprep.subr.bf16.mxu0 0
    %7418 = vmatpush1.bf16.xpose.msra.mxu0 0
    %7419 = vmatprep.subr.bf16.mxu0 0
    %7420 = vmatpush1.bf16.xpose.msra.mxu0 0
    %7421 = vmatprep.subr.bf16.mxu0 0
    %7422 = vmatpush1.bf16.xpose.msra.mxu0 0
    %7423 = vmatprep.subr.bf16.mxu0 0
    %7424 = vmatpush1.bf16.xpose.msra.mxu0 0
    %7425 = vmatprep.subr.bf16.mxu0 0
    %7426 = vmatpush1.bf16.xpose.msra.mxu0 0
    %7427 = vmatprep.subr.bf16.mxu0 0
    %7428 = vmatpush1.bf16.xpose.msra.mxu0 0
    %7429 = vmatprep.subr.bf16.mxu0 0
    %7430 = vmatpush1.bf16.xpose.msra.mxu0 0
    %7431 = vmatprep.subr.bf16.mxu0 0
    %7432 = vmatpush1.bf16.xpose.msra.mxu0 0
    %7433 = vmatprep.subr.bf16.mxu0 0
    %7434 = vmatpush1.bf16.xpose.msra.mxu0 0
    %7435 = vmatprep.subr.bf16.mxu0 0
    %7436 = vmatpush1.bf16.xpose.msra.mxu0 0
    %7437 = vmatprep.subr.bf16.mxu0 0
    %7438 = vmatpush1.bf16.xpose.msra.mxu0 0
    %7439 = vmatprep.subr.bf16.mxu0 0
    %7440 = vmatpush1.bf16.xpose.msra.mxu0 0
    %7441 = vmatprep.subr.bf16.mxu0 0
    %7442 = vmatpush1.bf16.xpose.msra.mxu0 0
    %7443 = vmatprep.subr.bf16.mxu0 0
    %7444 = vmatpush1.bf16.xpose.msra.mxu0 0
    %7445 = vmatprep.mubr.bf16.mxu0 0
    %7446 = vmatmul.mubr.bf16.gmra.mrb[0].mxu0 %v7408
    %v7447 = vpop.f32.mrb[0].mxu0
    %v7448 = vadd.f32 0.0, %v7447
    %v7449 = vpop.f32.mrb[0].mxu0
    %v7450 = vpop.f32.mrb[0].mxu0
    %v7451 = vpop.f32.mrb[0].mxu0
    %7452 = vdwg.mxu0
    %7453 = vrot.lane.b32.xlu0 %v7257, 120
    %v7454 = vpop.permute.xlu0 %7453
    %v7456 = vsel %vm201, %v7257, 0
    %v7459 = vsel %vm201, %v7454, 0
    %7461 = vmatprep.subr.bf16.mxu0 0
    %7462 = vmatpush1.bf16.xpose.msra.mxu0 %v7459
    %7463 = vmatprep.subr.bf16.mxu0 0
    %7464 = vmatpush1.bf16.xpose.msra.mxu0 0
    %7465 = vmatprep.subr.bf16.mxu0 0
    %7466 = vmatpush1.bf16.xpose.msra.mxu0 0
    %7467 = vmatprep.subr.bf16.mxu0 0
    %7468 = vmatpush1.bf16.xpose.msra.mxu0 0
    %7469 = vmatprep.subr.bf16.mxu0 0
    %7470 = vmatpush1.bf16.xpose.msra.mxu0 0
    %7471 = vmatprep.subr.bf16.mxu0 0
    %7472 = vmatpush1.bf16.xpose.msra.mxu0 0
    %7473 = vmatprep.subr.bf16.mxu0 0
    %7474 = vmatpush1.bf16.xpose.msra.mxu0 0
    %7475 = vmatprep.subr.bf16.mxu0 0
    %7476 = vmatpush1.bf16.xpose.msra.mxu0 0
    %7477 = vmatprep.subr.bf16.mxu0 0
    %7478 = vmatpush1.bf16.xpose.msra.mxu0 0
    %7479 = vmatprep.subr.bf16.mxu0 0
    %7480 = vmatpush1.bf16.xpose.msra.mxu0 0
    %7481 = vmatprep.subr.bf16.mxu0 0
    %7482 = vmatpush1.bf16.xpose.msra.mxu0 0
    %7483 = vmatprep.subr.bf16.mxu0 0
    %7484 = vmatpush1.bf16.xpose.msra.mxu0 0
    %7485 = vmatprep.subr.bf16.mxu0 0
    %7486 = vmatpush1.bf16.xpose.msra.mxu0 0
    %7487 = vmatprep.subr.bf16.mxu0 0
    %7488 = vmatpush1.bf16.xpose.msra.mxu0 0
    %7489 = vmatprep.subr.bf16.mxu0 0
    %7490 = vmatpush1.bf16.xpose.msra.mxu0 0
    %7491 = vmatprep.subr.bf16.mxu0 0
    %7492 = vmatpush1.bf16.xpose.msra.mxu0 0
    %7493 = vmatprep.mubr.bf16.mxu0 0
    %7494 = vmatmul.mubr.bf16.gmra.mrb[0].mxu0 %v7456
    %v7495 = vpop.f32.mrb[0].mxu0
    %v7496 = vadd.f32 0.0, %v7495
    %v7497 = vpop.f32.mrb[0].mxu0
    %v7498 = vpop.f32.mrb[0].mxu0
    %v7499 = vpop.f32.mrb[0].mxu0
    %7500 = vdwg.mxu0
    %7501 = vrot.lane.b32.xlu0 %v7258, 120
    %v7502 = vpop.permute.xlu0 %7501
    %v7504 = vsel %vm201, %v7258, 0
    %v7507 = vsel %vm201, %v7502, 0
    %7509 = vmatprep.subr.bf16.mxu0 0
    %7510 = vmatpush1.bf16.xpose.msra.mxu0 %v7507
    %7511 = vmatprep.subr.bf16.mxu0 0
    %7512 = vmatpush1.bf16.xpose.msra.mxu0 0
    %7513 = vmatprep.subr.bf16.mxu0 0
    %7514 = vmatpush1.bf16.xpose.msra.mxu0 0
    %7515 = vmatprep.subr.bf16.mxu0 0
    %7516 = vmatpush1.bf16.xpose.msra.mxu0 0
    %7517 = vmatprep.subr.bf16.mxu0 0
    %7518 = vmatpush1.bf16.xpose.msra.mxu0 0
    %7519 = vmatprep.subr.bf16.mxu0 0
    %7520 = vmatpush1.bf16.xpose.msra.mxu0 0
    %7521 = vmatprep.subr.bf16.mxu0 0
    %7522 = vmatpush1.bf16.xpose.msra.mxu0 0
    %7523 = vmatprep.subr.bf16.mxu0 0
    %7524 = vmatpush1.bf16.xpose.msra.mxu0 0
    %7525 = vmatprep.subr.bf16.mxu0 0
    %7526 = vmatpush1.bf16.xpose.msra.mxu0 0
    %7527 = vmatprep.subr.bf16.mxu0 0
    %7528 = vmatpush1.bf16.xpose.msra.mxu0 0
    %7529 = vmatprep.subr.bf16.mxu0 0
    %7530 = vmatpush1.bf16.xpose.msra.mxu0 0
    %7531 = vmatprep.subr.bf16.mxu0 0
    %7532 = vmatpush1.bf16.xpose.msra.mxu0 0
    %7533 = vmatprep.subr.bf16.mxu0 0
    %7534 = vmatpush1.bf16.xpose.msra.mxu0 0
    %7535 = vmatprep.subr.bf16.mxu0 0
    %7536 = vmatpush1.bf16.xpose.msra.mxu0 0
    %7537 = vmatprep.subr.bf16.mxu0 0
    %7538 = vmatpush1.bf16.xpose.msra.mxu0 0
    %7539 = vmatprep.subr.bf16.mxu0 0
    %7540 = vmatpush1.bf16.xpose.msra.mxu0 0
    %7541 = vmatprep.mubr.bf16.mxu0 0
    %7542 = vmatmul.mubr.bf16.gmra.mrb[0].mxu0 %v7504
    %v7543 = vpop.f32.mrb[0].mxu0
    %v7544 = vadd.f32 0.0, %v7543
    %v7545 = vpop.f32.mrb[0].mxu0
    %v7546 = vpop.f32.mrb[0].mxu0
    %v7547 = vpop.f32.mrb[0].mxu0
    %7548 = vdwg.mxu0
    %7549 = vrot.lane.b32.xlu0 %v7259, 120
    %v7550 = vpop.permute.xlu0 %7549
    %v7552 = vsel %vm201, %v7259, 0
    %v7555 = vsel %vm201, %v7550, 0
    %7557 = vmatprep.subr.bf16.mxu0 0
    %7558 = vmatpush1.bf16.xpose.msra.mxu0 %v7555
    %7559 = vmatprep.subr.bf16.mxu0 0
    %7560 = vmatpush1.bf16.xpose.msra.mxu0 0
    %7561 = vmatprep.subr.bf16.mxu0 0
    %7562 = vmatpush1.bf16.xpose.msra.mxu0 0
    %7563 = vmatprep.subr.bf16.mxu0 0
    %7564 = vmatpush1.bf16.xpose.msra.mxu0 0
    %7565 = vmatprep.subr.bf16.mxu0 0
    %7566 = vmatpush1.bf16.xpose.msra.mxu0 0
    %7567 = vmatprep.subr.bf16.mxu0 0
    %7568 = vmatpush1.bf16.xpose.msra.mxu0 0
    %7569 = vmatprep.subr.bf16.mxu0 0
    %7570 = vmatpush1.bf16.xpose.msra.mxu0 0
    %7571 = vmatprep.subr.bf16.mxu0 0
    %7572 = vmatpush1.bf16.xpose.msra.mxu0 0
    %7573 = vmatprep.subr.bf16.mxu0 0
    %7574 = vmatpush1.bf16.xpose.msra.mxu0 0
    %7575 = vmatprep.subr.bf16.mxu0 0
    %7576 = vmatpush1.bf16.xpose.msra.mxu0 0
    %7577 = vmatprep.subr.bf16.mxu0 0
    %7578 = vmatpush1.bf16.xpose.msra.mxu0 0
    %7579 = vmatprep.subr.bf16.mxu0 0
    %7580 = vmatpush1.bf16.xpose.msra.mxu0 0
    %7581 = vmatprep.subr.bf16.mxu0 0
    %7582 = vmatpush1.bf16.xpose.msra.mxu0 0
    %7583 = vmatprep.subr.bf16.mxu0 0
    %7584 = vmatpush1.bf16.xpose.msra.mxu0 0
    %7585 = vmatprep.subr.bf16.mxu0 0
    %7586 = vmatpush1.bf16.xpose.msra.mxu0 0
    %7587 = vmatprep.subr.bf16.mxu0 0
    %7588 = vmatpush1.bf16.xpose.msra.mxu0 0
    %7589 = vmatprep.mubr.bf16.mxu0 0
    %7590 = vmatmul.mubr.bf16.gmra.mrb[0].mxu0 %v7552
    %v7591 = vpop.f32.mrb[0].mxu0
    %v7592 = vadd.f32 0.0, %v7591
    %v7593 = vpop.f32.mrb[0].mxu0
    %v7594 = vpop.f32.mrb[0].mxu0
    %v7595 = vpop.f32.mrb[0].mxu0
    %7596 = vdwg.mxu0
    %7597 = vrot.lane.b32.xlu0 %v7260, 120
    %v7598 = vpop.permute.xlu0 %7597
    %v7600 = vsel %vm201, %v7260, 0
    %v7603 = vsel %vm201, %v7598, 0
    %7605 = vmatprep.subr.bf16.mxu0 0
    %7606 = vmatpush1.bf16.xpose.msra.mxu0 %v7603
    %7607 = vmatprep.subr.bf16.mxu0 0
    %7608 = vmatpush1.bf16.xpose.msra.mxu0 0
    %7609 = vmatprep.subr.bf16.mxu0 0
    %7610 = vmatpush1.bf16.xpose.msra.mxu0 0
    %7611 = vmatprep.subr.bf16.mxu0 0
    %7612 = vmatpush1.bf16.xpose.msra.mxu0 0
    %7613 = vmatprep.subr.bf16.mxu0 0
    %7614 = vmatpush1.bf16.xpose.msra.mxu0 0
    %7615 = vmatprep.subr.bf16.mxu0 0
    %7616 = vmatpush1.bf16.xpose.msra.mxu0 0
    %7617 = vmatprep.subr.bf16.mxu0 0
    %7618 = vmatpush1.bf16.xpose.msra.mxu0 0
    %7619 = vmatprep.subr.bf16.mxu0 0
    %7620 = vmatpush1.bf16.xpose.msra.mxu0 0
    %7621 = vmatprep.subr.bf16.mxu0 0
    %7622 = vmatpush1.bf16.xpose.msra.mxu0 0
    %7623 = vmatprep.subr.bf16.mxu0 0
    %7624 = vmatpush1.bf16.xpose.msra.mxu0 0
    %7625 = vmatprep.subr.bf16.mxu0 0
    %7626 = vmatpush1.bf16.xpose.msra.mxu0 0
    %7627 = vmatprep.subr.bf16.mxu0 0
    %7628 = vmatpush1.bf16.xpose.msra.mxu0 0
    %7629 = vmatprep.subr.bf16.mxu0 0
    %7630 = vmatpush1.bf16.xpose.msra.mxu0 0
    %7631 = vmatprep.subr.bf16.mxu0 0
    %7632 = vmatpush1.bf16.xpose.msra.mxu0 0
    %7633 = vmatprep.subr.bf16.mxu0 0
    %7634 = vmatpush1.bf16.xpose.msra.mxu0 0
    %7635 = vmatprep.subr.bf16.mxu0 0
    %7636 = vmatpush1.bf16.xpose.msra.mxu0 0
    %7637 = vmatprep.mubr.bf16.mxu0 0
    %7638 = vmatmul.mubr.bf16.gmra.mrb[0].mxu0 %v7600
    %v7639 = vpop.f32.mrb[0].mxu0
    %v7640 = vadd.f32 0.0, %v7639
    %v7641 = vpop.f32.mrb[0].mxu0
    %v7642 = vpop.f32.mrb[0].mxu0
    %v7643 = vpop.f32.mrb[0].mxu0
    %7644 = vdwg.mxu0
    %v7645 = vsel %vm201, %v7304, -inf
    %7646 = vmax.xlane.f32.xlu0 %v7645
    %v7647 = vpop.xlane.xlu0 %7646
    %v7648 = vsel %vm201, %v7352, -inf
    %7649 = vmax.xlane.f32.xlu0 %v7648
    %v7650 = vpop.xlane.xlu0 %7649
    %v7651 = vsel %vm201, %v7400, -inf
    %7652 = vmax.xlane.f32.xlu0 %v7651
    %v7653 = vpop.xlane.xlu0 %7652
    %v7654 = vsel %vm201, %v7448, -inf
    %7655 = vmax.xlane.f32.xlu0 %v7654
    %v7656 = vpop.xlane.xlu0 %7655
    %v7657 = vsel %vm201, %v7496, -inf
    %7658 = vmax.xlane.f32.xlu0 %v7657
    %v7659 = vpop.xlane.xlu0 %7658
    %v7660 = vsel %vm201, %v7544, -inf
    %7661 = vmax.xlane.f32.xlu0 %v7660
    %v7662 = vpop.xlane.xlu0 %7661
    %v7663 = vsel %vm201, %v7592, -inf
    %7664 = vmax.xlane.f32.xlu0 %v7663
    %v7665 = vpop.xlane.xlu0 %7664
    %v7666 = vsel %vm201, %v7640, -inf
    %7667 = vmax.xlane.f32.xlu0 %v7666
    %v7668 = vpop.xlane.xlu0 %7667
    %v7669 = vsub.f32 %v7304, %v7647
    %v7670 = vsub.f32 %v7352, %v7650
    %v7671 = vsub.f32 %v7400, %v7653
    %v7672 = vsub.f32 %v7448, %v7656
    %v7673 = vsub.f32 %v7496, %v7659
    %v7674 = vsub.f32 %v7544, %v7662
    %v7675 = vsub.f32 %v7592, %v7665
    %v7676 = vsub.f32 %v7640, %v7668
    %v7677 = vmul.f32 %v7669, 1.442695
    %v7678 = vpow.pop %v7677
    %v7679 = vmul.f32 %v7670, 1.442695
    %v7680 = vpow.pop %v7679
    %v7681 = vmul.f32 %v7671, 1.442695
    %v7682 = vpow.pop %v7681
    %v7683 = vmul.f32 %v7672, 1.442695
    %v7684 = vpow.pop %v7683
    %v7685 = vmul.f32 %v7673, 1.442695
    %v7686 = vpow.pop %v7685
    %v7687 = vmul.f32 %v7674, 1.442695
    %v7688 = vpow.pop %v7687
    %v7689 = vmul.f32 %v7675, 1.442695
    %v7690 = vpow.pop %v7689
    %v7691 = vmul.f32 %v7676, 1.442695
    %v7692 = vpow.pop %v7691
    %v7693 = vsel %vm201, %v7678, 0.0
    %7694 = vadd.xlane.f32.xlu0 %v7693
    %v7695 = vpop.xlane.xlu0 %7694
    %v7696 = vsel %vm201, %v7680, 0.0
    %7697 = vadd.xlane.f32.xlu0 %v7696
    %v7698 = vpop.xlane.xlu0 %7697
    %v7699 = vsel %vm201, %v7682, 0.0
    %7700 = vadd.xlane.f32.xlu0 %v7699
    %v7701 = vpop.xlane.xlu0 %7700
    %v7702 = vsel %vm201, %v7684, 0.0
    %7703 = vadd.xlane.f32.xlu0 %v7702
    %v7704 = vpop.xlane.xlu0 %7703
    %v7705 = vsel %vm201, %v7686, 0.0
    %7706 = vadd.xlane.f32.xlu0 %v7705
    %v7707 = vpop.xlane.xlu0 %7706
    %v7708 = vsel %vm201, %v7688, 0.0
    %7709 = vadd.xlane.f32.xlu0 %v7708
    %v7710 = vpop.xlane.xlu0 %7709
    %v7711 = vsel %vm201, %v7690, 0.0
    %7712 = vadd.xlane.f32.xlu0 %v7711
    %v7713 = vpop.xlane.xlu0 %7712
    %v7714 = vsel %vm201, %v7692, 0.0
    %7715 = vadd.xlane.f32.xlu0 %v7714
    %v7716 = vpop.xlane.xlu0 %7715
    %v7717 = vrcp.pop %v7695
    %v7718 = vrcp.pop %v7698
    %v7719 = vrcp.pop %v7701
    %v7720 = vrcp.pop %v7704
    %v7721 = vrcp.pop %v7707
    %v7722 = vrcp.pop %v7710
    %v7723 = vrcp.pop %v7713
    %v7724 = vrcp.pop %v7716
    %v7725 = vmul.f32 %v7678, %v7717
    %v7726 = vmul.f32 %v7680, %v7718
    %v7727 = vmul.f32 %v7682, %v7719
    %v7728 = vmul.f32 %v7684, %v7720
    %v7729 = vmul.f32 %v7686, %v7721
    %v7730 = vmul.f32 %v7688, %v7722
    %v7731 = vmul.f32 %v7690, %v7723
    %v7732 = vmul.f32 %v7692, %v7724
    %v7733 = vpack.c.bf16 %v7725, %v7725
    %v7734 = vpack.c.bf16 %v7726, %v7726
    %v7735 = vpack.c.bf16 %v7727, %v7727
    %v7736 = vpack.c.bf16 %v7728, %v7728
    %v7737 = vpack.c.bf16 %v7729, %v7729
    %v7738 = vpack.c.bf16 %v7730, %v7730
    %v7739 = vpack.c.bf16 %v7731, %v7731
    %v7740 = vpack.c.bf16 %v7732, %v7732
    %7741 = vrot.lane.b32.xlu0 %v7253, 112
    %v7742 = vpop.permute.xlu0 %7741
    %v7744 = vsel %vm201, %v7733, 0
    %v7747 = vsel %vm685, %v7742, 0
    %7749 = vmatprep.subr.bf16.mxu0 0
    %7750 = vmatpush1.bf16.msra.mxu0 %v7747
    %7751 = vmatprep.subr.bf16.mxu0 0
    %7752 = vmatpush1.bf16.msra.mxu0 0
    %7753 = vmatprep.subr.bf16.mxu0 0
    %7754 = vmatpush1.bf16.msra.mxu0 0
    %7755 = vmatprep.subr.bf16.mxu0 0
    %7756 = vmatpush1.bf16.msra.mxu0 0
    %7757 = vmatprep.subr.bf16.mxu0 0
    %7758 = vmatpush1.bf16.msra.mxu0 0
    %7759 = vmatprep.subr.bf16.mxu0 0
    %7760 = vmatpush1.bf16.msra.mxu0 0
    %7761 = vmatprep.subr.bf16.mxu0 0
    %7762 = vmatpush1.bf16.msra.mxu0 0
    %7763 = vmatprep.subr.bf16.mxu0 0
    %7764 = vmatpush1.bf16.msra.mxu0 0
    %7765 = vmatprep.subr.bf16.mxu0 0
    %7766 = vmatpush1.bf16.msra.mxu0 0
    %7767 = vmatprep.subr.bf16.mxu0 0
    %7768 = vmatpush1.bf16.msra.mxu0 0
    %7769 = vmatprep.subr.bf16.mxu0 0
    %7770 = vmatpush1.bf16.msra.mxu0 0
    %7771 = vmatprep.subr.bf16.mxu0 0
    %7772 = vmatpush1.bf16.msra.mxu0 0
    %7773 = vmatprep.subr.bf16.mxu0 0
    %7774 = vmatpush1.bf16.msra.mxu0 0
    %7775 = vmatprep.subr.bf16.mxu0 0
    %7776 = vmatpush1.bf16.msra.mxu0 0
    %7777 = vmatprep.subr.bf16.mxu0 0
    %7778 = vmatpush1.bf16.msra.mxu0 0
    %7779 = vmatprep.subr.bf16.mxu0 0
    %7780 = vmatpush1.bf16.msra.mxu0 0
    %7781 = vmatprep.mubr.bf16.mxu0 0
    %7782 = vmatmul.mubr.bf16.gmra.mrb[0].mxu0 %v7744
    %v7783 = vpop.f32.mrb[0].mxu0
    %v7784 = vadd.f32 0.0, %v7783
    %v7785 = vpop.f32.mrb[0].mxu0
    %v7786 = vpop.f32.mrb[0].mxu0
    %v7787 = vpop.f32.mrb[0].mxu0
    %7788 = vdwg.mxu0
    %7789 = vrot.lane.b32.xlu0 %v7254, 112
    %v7790 = vpop.permute.xlu0 %7789
    %v7792 = vsel %vm201, %v7734, 0
    %v7795 = vsel %vm685, %v7790, 0
    %7797 = vmatprep.subr.bf16.mxu0 0
    %7798 = vmatpush1.bf16.msra.mxu0 %v7795
    %7799 = vmatprep.subr.bf16.mxu0 0
    %7800 = vmatpush1.bf16.msra.mxu0 0
    %7801 = vmatprep.subr.bf16.mxu0 0
    %7802 = vmatpush1.bf16.msra.mxu0 0
    %7803 = vmatprep.subr.bf16.mxu0 0
    %7804 = vmatpush1.bf16.msra.mxu0 0
    %7805 = vmatprep.subr.bf16.mxu0 0
    %7806 = vmatpush1.bf16.msra.mxu0 0
    %7807 = vmatprep.subr.bf16.mxu0 0
    %7808 = vmatpush1.bf16.msra.mxu0 0
    %7809 = vmatprep.subr.bf16.mxu0 0
    %7810 = vmatpush1.bf16.msra.mxu0 0
    %7811 = vmatprep.subr.bf16.mxu0 0
    %7812 = vmatpush1.bf16.msra.mxu0 0
    %7813 = vmatprep.subr.bf16.mxu0 0
    %7814 = vmatpush1.bf16.msra.mxu0 0
    %7815 = vmatprep.subr.bf16.mxu0 0
    %7816 = vmatpush1.bf16.msra.mxu0 0
    %7817 = vmatprep.subr.bf16.mxu0 0
    %7818 = vmatpush1.bf16.msra.mxu0 0
    %7819 = vmatprep.subr.bf16.mxu0 0
    %7820 = vmatpush1.bf16.msra.mxu0 0
    %7821 = vmatprep.subr.bf16.mxu0 0
    %7822 = vmatpush1.bf16.msra.mxu0 0
    %7823 = vmatprep.subr.bf16.mxu0 0
    %7824 = vmatpush1.bf16.msra.mxu0 0
    %7825 = vmatprep.subr.bf16.mxu0 0
    %7826 = vmatpush1.bf16.msra.mxu0 0
    %7827 = vmatprep.subr.bf16.mxu0 0
    %7828 = vmatpush1.bf16.msra.mxu0 0
    %7829 = vmatprep.mubr.bf16.mxu0 0
    %7830 = vmatmul.mubr.bf16.gmra.mrb[0].mxu0 %v7792
    %v7831 = vpop.f32.mrb[0].mxu0
    %v7832 = vadd.f32 0.0, %v7831
    %v7833 = vpop.f32.mrb[0].mxu0
    %v7834 = vpop.f32.mrb[0].mxu0
    %v7835 = vpop.f32.mrb[0].mxu0
    %7836 = vdwg.mxu0
    %7837 = vrot.lane.b32.xlu0 %v7255, 112
    %v7838 = vpop.permute.xlu0 %7837
    %v7840 = vsel %vm201, %v7735, 0
    %v7843 = vsel %vm685, %v7838, 0
    %7845 = vmatprep.subr.bf16.mxu0 0
    %7846 = vmatpush1.bf16.msra.mxu0 %v7843
    %7847 = vmatprep.subr.bf16.mxu0 0
    %7848 = vmatpush1.bf16.msra.mxu0 0
    %7849 = vmatprep.subr.bf16.mxu0 0
    %7850 = vmatpush1.bf16.msra.mxu0 0
    %7851 = vmatprep.subr.bf16.mxu0 0
    %7852 = vmatpush1.bf16.msra.mxu0 0
    %7853 = vmatprep.subr.bf16.mxu0 0
    %7854 = vmatpush1.bf16.msra.mxu0 0
    %7855 = vmatprep.subr.bf16.mxu0 0
    %7856 = vmatpush1.bf16.msra.mxu0 0
    %7857 = vmatprep.subr.bf16.mxu0 0
    %7858 = vmatpush1.bf16.msra.mxu0 0
    %7859 = vmatprep.subr.bf16.mxu0 0
    %7860 = vmatpush1.bf16.msra.mxu0 0
    %7861 = vmatprep.subr.bf16.mxu0 0
    %7862 = vmatpush1.bf16.msra.mxu0 0
    %7863 = vmatprep.subr.bf16.mxu0 0
    %7864 = vmatpush1.bf16.msra.mxu0 0
    %7865 = vmatprep.subr.bf16.mxu0 0
    %7866 = vmatpush1.bf16.msra.mxu0 0
    %7867 = vmatprep.subr.bf16.mxu0 0
    %7868 = vmatpush1.bf16.msra.mxu0 0
    %7869 = vmatprep.subr.bf16.mxu0 0
    %7870 = vmatpush1.bf16.msra.mxu0 0
    %7871 = vmatprep.subr.bf16.mxu0 0
    %7872 = vmatpush1.bf16.msra.mxu0 0
    %7873 = vmatprep.subr.bf16.mxu0 0
    %7874 = vmatpush1.bf16.msra.mxu0 0
    %7875 = vmatprep.subr.bf16.mxu0 0
    %7876 = vmatpush1.bf16.msra.mxu0 0
    %7877 = vmatprep.mubr.bf16.mxu0 0
    %7878 = vmatmul.mubr.bf16.gmra.mrb[0].mxu0 %v7840
    %v7879 = vpop.f32.mrb[0].mxu0
    %v7880 = vadd.f32 0.0, %v7879
    %v7881 = vpop.f32.mrb[0].mxu0
    %v7882 = vpop.f32.mrb[0].mxu0
    %v7883 = vpop.f32.mrb[0].mxu0
    %7884 = vdwg.mxu0
    %7885 = vrot.lane.b32.xlu0 %v7256, 112
    %v7886 = vpop.permute.xlu0 %7885
    %v7888 = vsel %vm201, %v7736, 0
    %v7891 = vsel %vm685, %v7886, 0
    %7893 = vmatprep.subr.bf16.mxu0 0
    %7894 = vmatpush1.bf16.msra.mxu0 %v7891
    %7895 = vmatprep.subr.bf16.mxu0 0
    %7896 = vmatpush1.bf16.msra.mxu0 0
    %7897 = vmatprep.subr.bf16.mxu0 0
    %7898 = vmatpush1.bf16.msra.mxu0 0
    %7899 = vmatprep.subr.bf16.mxu0 0
    %7900 = vmatpush1.bf16.msra.mxu0 0
    %7901 = vmatprep.subr.bf16.mxu0 0
    %7902 = vmatpush1.bf16.msra.mxu0 0
    %7903 = vmatprep.subr.bf16.mxu0 0
    %7904 = vmatpush1.bf16.msra.mxu0 0
    %7905 = vmatprep.subr.bf16.mxu0 0
    %7906 = vmatpush1.bf16.msra.mxu0 0
    %7907 = vmatprep.subr.bf16.mxu0 0
    %7908 = vmatpush1.bf16.msra.mxu0 0
    %7909 = vmatprep.subr.bf16.mxu0 0
    %7910 = vmatpush1.bf16.msra.mxu0 0
    %7911 = vmatprep.subr.bf16.mxu0 0
    %7912 = vmatpush1.bf16.msra.mxu0 0
    %7913 = vmatprep.subr.bf16.mxu0 0
    %7914 = vmatpush1.bf16.msra.mxu0 0
    %7915 = vmatprep.subr.bf16.mxu0 0
    %7916 = vmatpush1.bf16.msra.mxu0 0
    %7917 = vmatprep.subr.bf16.mxu0 0
    %7918 = vmatpush1.bf16.msra.mxu0 0
    %7919 = vmatprep.subr.bf16.mxu0 0
    %7920 = vmatpush1.bf16.msra.mxu0 0
    %7921 = vmatprep.subr.bf16.mxu0 0
    %7922 = vmatpush1.bf16.msra.mxu0 0
    %7923 = vmatprep.subr.bf16.mxu0 0
    %7924 = vmatpush1.bf16.msra.mxu0 0
    %7925 = vmatprep.mubr.bf16.mxu0 0
    %7926 = vmatmul.mubr.bf16.gmra.mrb[0].mxu0 %v7888
    %v7927 = vpop.f32.mrb[0].mxu0
    %v7928 = vadd.f32 0.0, %v7927
    %v7929 = vpop.f32.mrb[0].mxu0
    %v7930 = vpop.f32.mrb[0].mxu0
    %v7931 = vpop.f32.mrb[0].mxu0
    %7932 = vdwg.mxu0
    %7933 = vrot.lane.b32.xlu0 %v7257, 112
    %v7934 = vpop.permute.xlu0 %7933
    %v7936 = vsel %vm201, %v7737, 0
    %v7939 = vsel %vm685, %v7934, 0
    %7941 = vmatprep.subr.bf16.mxu0 0
    %7942 = vmatpush1.bf16.msra.mxu0 %v7939
    %7943 = vmatprep.subr.bf16.mxu0 0
    %7944 = vmatpush1.bf16.msra.mxu0 0
    %7945 = vmatprep.subr.bf16.mxu0 0
    %7946 = vmatpush1.bf16.msra.mxu0 0
    %7947 = vmatprep.subr.bf16.mxu0 0
    %7948 = vmatpush1.bf16.msra.mxu0 0
    %7949 = vmatprep.subr.bf16.mxu0 0
    %7950 = vmatpush1.bf16.msra.mxu0 0
    %7951 = vmatprep.subr.bf16.mxu0 0
    %7952 = vmatpush1.bf16.msra.mxu0 0
    %7953 = vmatprep.subr.bf16.mxu0 0
    %7954 = vmatpush1.bf16.msra.mxu0 0
    %7955 = vmatprep.subr.bf16.mxu0 0
    %7956 = vmatpush1.bf16.msra.mxu0 0
    %7957 = vmatprep.subr.bf16.mxu0 0
    %7958 = vmatpush1.bf16.msra.mxu0 0
    %7959 = vmatprep.subr.bf16.mxu0 0
    %7960 = vmatpush1.bf16.msra.mxu0 0
    %7961 = vmatprep.subr.bf16.mxu0 0
    %7962 = vmatpush1.bf16.msra.mxu0 0
    %7963 = vmatprep.subr.bf16.mxu0 0
    %7964 = vmatpush1.bf16.msra.mxu0 0
    %7965 = vmatprep.subr.bf16.mxu0 0
    %7966 = vmatpush1.bf16.msra.mxu0 0
    %7967 = vmatprep.subr.bf16.mxu0 0
    %7968 = vmatpush1.bf16.msra.mxu0 0
    %7969 = vmatprep.subr.bf16.mxu0 0
    %7970 = vmatpush1.bf16.msra.mxu0 0
    %7971 = vmatprep.subr.bf16.mxu0 0
    %7972 = vmatpush1.bf16.msra.mxu0 0
    %7973 = vmatprep.mubr.bf16.mxu0 0
    %7974 = vmatmul.mubr.bf16.gmra.mrb[0].mxu0 %v7936
    %v7975 = vpop.f32.mrb[0].mxu0
    %v7976 = vadd.f32 0.0, %v7975
    %v7977 = vpop.f32.mrb[0].mxu0
    %v7978 = vpop.f32.mrb[0].mxu0
    %v7979 = vpop.f32.mrb[0].mxu0
    %7980 = vdwg.mxu0
    %7981 = vrot.lane.b32.xlu0 %v7258, 112
    %v7982 = vpop.permute.xlu0 %7981
    %v7984 = vsel %vm201, %v7738, 0
    %v7987 = vsel %vm685, %v7982, 0
    %7989 = vmatprep.subr.bf16.mxu0 0
    %7990 = vmatpush1.bf16.msra.mxu0 %v7987
    %7991 = vmatprep.subr.bf16.mxu0 0
    %7992 = vmatpush1.bf16.msra.mxu0 0
    %7993 = vmatprep.subr.bf16.mxu0 0
    %7994 = vmatpush1.bf16.msra.mxu0 0
    %7995 = vmatprep.subr.bf16.mxu0 0
    %7996 = vmatpush1.bf16.msra.mxu0 0
    %7997 = vmatprep.subr.bf16.mxu0 0
    %7998 = vmatpush1.bf16.msra.mxu0 0
    %7999 = vmatprep.subr.bf16.mxu0 0
    %8000 = vmatpush1.bf16.msra.mxu0 0
    %8001 = vmatprep.subr.bf16.mxu0 0
    %8002 = vmatpush1.bf16.msra.mxu0 0
    %8003 = vmatprep.subr.bf16.mxu0 0
    %8004 = vmatpush1.bf16.msra.mxu0 0
    %8005 = vmatprep.subr.bf16.mxu0 0
    %8006 = vmatpush1.bf16.msra.mxu0 0
    %8007 = vmatprep.subr.bf16.mxu0 0
    %8008 = vmatpush1.bf16.msra.mxu0 0
    %8009 = vmatprep.subr.bf16.mxu0 0
    %8010 = vmatpush1.bf16.msra.mxu0 0
    %8011 = vmatprep.subr.bf16.mxu0 0
    %8012 = vmatpush1.bf16.msra.mxu0 0
    %8013 = vmatprep.subr.bf16.mxu0 0
    %8014 = vmatpush1.bf16.msra.mxu0 0
    %8015 = vmatprep.subr.bf16.mxu0 0
    %8016 = vmatpush1.bf16.msra.mxu0 0
    %8017 = vmatprep.subr.bf16.mxu0 0
    %8018 = vmatpush1.bf16.msra.mxu0 0
    %8019 = vmatprep.subr.bf16.mxu0 0
    %8020 = vmatpush1.bf16.msra.mxu0 0
    %8021 = vmatprep.mubr.bf16.mxu0 0
    %8022 = vmatmul.mubr.bf16.gmra.mrb[0].mxu0 %v7984
    %v8023 = vpop.f32.mrb[0].mxu0
    %v8024 = vadd.f32 0.0, %v8023
    %v8025 = vpop.f32.mrb[0].mxu0
    %v8026 = vpop.f32.mrb[0].mxu0
    %v8027 = vpop.f32.mrb[0].mxu0
    %8028 = vdwg.mxu0
    %8029 = vrot.lane.b32.xlu0 %v7259, 112
    %v8030 = vpop.permute.xlu0 %8029
    %v8032 = vsel %vm201, %v7739, 0
    %v8035 = vsel %vm685, %v8030, 0
    %8037 = vmatprep.subr.bf16.mxu0 0
    %8038 = vmatpush1.bf16.msra.mxu0 %v8035
    %8039 = vmatprep.subr.bf16.mxu0 0
    %8040 = vmatpush1.bf16.msra.mxu0 0
    %8041 = vmatprep.subr.bf16.mxu0 0
    %8042 = vmatpush1.bf16.msra.mxu0 0
    %8043 = vmatprep.subr.bf16.mxu0 0
    %8044 = vmatpush1.bf16.msra.mxu0 0
    %8045 = vmatprep.subr.bf16.mxu0 0
    %8046 = vmatpush1.bf16.msra.mxu0 0
    %8047 = vmatprep.subr.bf16.mxu0 0
    %8048 = vmatpush1.bf16.msra.mxu0 0
    %8049 = vmatprep.subr.bf16.mxu0 0
    %8050 = vmatpush1.bf16.msra.mxu0 0
    %8051 = vmatprep.subr.bf16.mxu0 0
    %8052 = vmatpush1.bf16.msra.mxu0 0
    %8053 = vmatprep.subr.bf16.mxu0 0
    %8054 = vmatpush1.bf16.msra.mxu0 0
    %8055 = vmatprep.subr.bf16.mxu0 0
    %8056 = vmatpush1.bf16.msra.mxu0 0
    %8057 = vmatprep.subr.bf16.mxu0 0
    %8058 = vmatpush1.bf16.msra.mxu0 0
    %8059 = vmatprep.subr.bf16.mxu0 0
    %8060 = vmatpush1.bf16.msra.mxu0 0
    %8061 = vmatprep.subr.bf16.mxu0 0
    %8062 = vmatpush1.bf16.msra.mxu0 0
    %8063 = vmatprep.subr.bf16.mxu0 0
    %8064 = vmatpush1.bf16.msra.mxu0 0
    %8065 = vmatprep.subr.bf16.mxu0 0
    %8066 = vmatpush1.bf16.msra.mxu0 0
    %8067 = vmatprep.subr.bf16.mxu0 0
    %8068 = vmatpush1.bf16.msra.mxu0 0
    %8069 = vmatprep.mubr.bf16.mxu0 0
    %8070 = vmatmul.mubr.bf16.gmra.mrb[0].mxu0 %v8032
    %v8071 = vpop.f32.mrb[0].mxu0
    %v8072 = vadd.f32 0.0, %v8071
    %v8073 = vpop.f32.mrb[0].mxu0
    %v8074 = vpop.f32.mrb[0].mxu0
    %v8075 = vpop.f32.mrb[0].mxu0
    %8076 = vdwg.mxu0
    %8077 = vrot.lane.b32.xlu0 %v7260, 112
    %v8078 = vpop.permute.xlu0 %8077
    %v8080 = vsel %vm201, %v7740, 0
    %v8083 = vsel %vm685, %v8078, 0
    %8085 = vmatprep.subr.bf16.mxu0 0
    %8086 = vmatpush1.bf16.msra.mxu0 %v8083
    %8087 = vmatprep.subr.bf16.mxu0 0
    %8088 = vmatpush1.bf16.msra.mxu0 0
    %8089 = vmatprep.subr.bf16.mxu0 0
    %8090 = vmatpush1.bf16.msra.mxu0 0
    %8091 = vmatprep.subr.bf16.mxu0 0
    %8092 = vmatpush1.bf16.msra.mxu0 0
    %8093 = vmatprep.subr.bf16.mxu0 0
    %8094 = vmatpush1.bf16.msra.mxu0 0
    %8095 = vmatprep.subr.bf16.mxu0 0
    %8096 = vmatpush1.bf16.msra.mxu0 0
    %8097 = vmatprep.subr.bf16.mxu0 0
    %8098 = vmatpush1.bf16.msra.mxu0 0
    %8099 = vmatprep.subr.bf16.mxu0 0
    %8100 = vmatpush1.bf16.msra.mxu0 0
    %8101 = vmatprep.subr.bf16.mxu0 0
    %8102 = vmatpush1.bf16.msra.mxu0 0
    %8103 = vmatprep.subr.bf16.mxu0 0
    %8104 = vmatpush1.bf16.msra.mxu0 0
    %8105 = vmatprep.subr.bf16.mxu0 0
    %8106 = vmatpush1.bf16.msra.mxu0 0
    %8107 = vmatprep.subr.bf16.mxu0 0
    %8108 = vmatpush1.bf16.msra.mxu0 0
    %8109 = vmatprep.subr.bf16.mxu0 0
    %8110 = vmatpush1.bf16.msra.mxu0 0
    %8111 = vmatprep.subr.bf16.mxu0 0
    %8112 = vmatpush1.bf16.msra.mxu0 0
    %8113 = vmatprep.subr.bf16.mxu0 0
    %8114 = vmatpush1.bf16.msra.mxu0 0
    %8115 = vmatprep.subr.bf16.mxu0 0
    %8116 = vmatpush1.bf16.msra.mxu0 0
    %8117 = vmatprep.mubr.bf16.mxu0 0
    %8118 = vmatmul.mubr.bf16.gmra.mrb[0].mxu0 %v8080
    %v8119 = vpop.f32.mrb[0].mxu0
    %v8120 = vadd.f32 0.0, %v8119
    %v8121 = vpop.f32.mrb[0].mxu0
    %v8122 = vpop.f32.mrb[0].mxu0
    %v8123 = vpop.f32.mrb[0].mxu0
    %8124 = vdwg.mxu0
    %v8125 = vpack.c.bf16 %v7832, %v7784
    %v8126 = vpack.c.bf16 %v7928, %v7880
    %v8127 = vpack.c.bf16 %v8024, %v7976
    %v8128 = vpack.c.bf16 %v8120, %v8072
    %v8129 = vld [vmem:[#allocation7] sm:$0xf]
    %v8130 = vld [vmem:[#allocation7 + $0x4] sm:$0xf]
    %v8131 = vld [vmem:[#allocation7 + $0x8] sm:$0xf]
    %v8132 = vld [vmem:[#allocation7 + $0xc] sm:$0xf]
    %v8134 = vsel %vm201, %v8125, 0
    %v8137 = vsel %vm685, %v8129, 0
    %8139 = vmatprep.subr.bf16.mxu0 0
    %8140 = vmatpush1.bf16.msra.mxu0 %v8137
    %8141 = vmatprep.subr.bf16.mxu0 0
    %8142 = vmatpush1.bf16.msra.mxu0 0
    %8143 = vmatprep.subr.bf16.mxu0 0
    %8144 = vmatpush1.bf16.msra.mxu0 0
    %8145 = vmatprep.subr.bf16.mxu0 0
    %8146 = vmatpush1.bf16.msra.mxu0 0
    %8147 = vmatprep.subr.bf16.mxu0 0
    %8148 = vmatpush1.bf16.msra.mxu0 0
    %8149 = vmatprep.subr.bf16.mxu0 0
    %8150 = vmatpush1.bf16.msra.mxu0 0
    %8151 = vmatprep.subr.bf16.mxu0 0
    %8152 = vmatpush1.bf16.msra.mxu0 0
    %8153 = vmatprep.subr.bf16.mxu0 0
    %8154 = vmatpush1.bf16.msra.mxu0 0
    %8155 = vmatprep.subr.bf16.mxu0 0
    %8156 = vmatpush1.bf16.msra.mxu0 0
    %8157 = vmatprep.subr.bf16.mxu0 0
    %8158 = vmatpush1.bf16.msra.mxu0 0
    %8159 = vmatprep.subr.bf16.mxu0 0
    %8160 = vmatpush1.bf16.msra.mxu0 0
    %8161 = vmatprep.subr.bf16.mxu0 0
    %8162 = vmatpush1.bf16.msra.mxu0 0
    %8163 = vmatprep.subr.bf16.mxu0 0
    %8164 = vmatpush1.bf16.msra.mxu0 0
    %8165 = vmatprep.subr.bf16.mxu0 0
    %8166 = vmatpush1.bf16.msra.mxu0 0
    %8167 = vmatprep.subr.bf16.mxu0 0
    %8168 = vmatpush1.bf16.msra.mxu0 0
    %8169 = vmatprep.subr.bf16.mxu0 0
    %8170 = vmatpush1.bf16.msra.mxu0 0
    %8171 = vmatprep.mubr.bf16.mxu0 0
    %8172 = vmatmul.mubr.bf16.gmra.mrb[0].mxu0 %v8134
    %v8173 = vpop.f32.mrb[0].mxu0
    %v8174 = vadd.f32 0.0, %v8173
    %v8175 = vpop.f32.mrb[0].mxu0
    %v8176 = vpop.f32.mrb[0].mxu0
    %v8177 = vadd.f32 0.0, %v8176
    %v8178 = vpop.f32.mrb[0].mxu0
    %8179 = vdwg.mxu0
    %v8181 = vsel %vm201, %v8126, 0
    %v8184 = vsel %vm685, %v8130, 0
    %8186 = vmatprep.subr.bf16.mxu0 0
    %8187 = vmatpush1.bf16.msra.mxu0 %v8184
    %8188 = vmatprep.subr.bf16.mxu0 0
    %8189 = vmatpush1.bf16.msra.mxu0 0
    %8190 = vmatprep.subr.bf16.mxu0 0
    %8191 = vmatpush1.bf16.msra.mxu0 0
    %8192 = vmatprep.subr.bf16.mxu0 0
    %8193 = vmatpush1.bf16.msra.mxu0 0
    %8194 = vmatprep.subr.bf16.mxu0 0
    %8195 = vmatpush1.bf16.msra.mxu0 0
    %8196 = vmatprep.subr.bf16.mxu0 0
    %8197 = vmatpush1.bf16.msra.mxu0 0
    %8198 = vmatprep.subr.bf16.mxu0 0
    %8199 = vmatpush1.bf16.msra.mxu0 0
    %8200 = vmatprep.subr.bf16.mxu0 0
    %8201 = vmatpush1.bf16.msra.mxu0 0
    %8202 = vmatprep.subr.bf16.mxu0 0
    %8203 = vmatpush1.bf16.msra.mxu0 0
    %8204 = vmatprep.subr.bf16.mxu0 0
    %8205 = vmatpush1.bf16.msra.mxu0 0
    %8206 = vmatprep.subr.bf16.mxu0 0
    %8207 = vmatpush1.bf16.msra.mxu0 0
    %8208 = vmatprep.subr.bf16.mxu0 0
    %8209 = vmatpush1.bf16.msra.mxu0 0
    %8210 = vmatprep.subr.bf16.mxu0 0
    %8211 = vmatpush1.bf16.msra.mxu0 0
    %8212 = vmatprep.subr.bf16.mxu0 0
    %8213 = vmatpush1.bf16.msra.mxu0 0
    %8214 = vmatprep.subr.bf16.mxu0 0
    %8215 = vmatpush1.bf16.msra.mxu0 0
    %8216 = vmatprep.subr.bf16.mxu0 0
    %8217 = vmatpush1.bf16.msra.mxu0 0
    %8218 = vmatprep.mubr.bf16.mxu0 0
    %8219 = vmatmul.mubr.bf16.gmra.mrb[0].mxu0 %v8181
    %v8220 = vpop.f32.mrb[0].mxu0
    %v8221 = vadd.f32 0.0, %v8220
    %v8222 = vpop.f32.mrb[0].mxu0
    %v8223 = vpop.f32.mrb[0].mxu0
    %v8224 = vadd.f32 0.0, %v8223
    %v8225 = vpop.f32.mrb[0].mxu0
    %8226 = vdwg.mxu0
    %v8228 = vsel %vm201, %v8127, 0
    %v8231 = vsel %vm685, %v8131, 0
    %8233 = vmatprep.subr.bf16.mxu0 0
    %8234 = vmatpush1.bf16.msra.mxu0 %v8231
    %8235 = vmatprep.subr.bf16.mxu0 0
    %8236 = vmatpush1.bf16.msra.mxu0 0
    %8237 = vmatprep.subr.bf16.mxu0 0
    %8238 = vmatpush1.bf16.msra.mxu0 0
    %8239 = vmatprep.subr.bf16.mxu0 0
    %8240 = vmatpush1.bf16.msra.mxu0 0
    %8241 = vmatprep.subr.bf16.mxu0 0
    %8242 = vmatpush1.bf16.msra.mxu0 0
    %8243 = vmatprep.subr.bf16.mxu0 0
    %8244 = vmatpush1.bf16.msra.mxu0 0
    %8245 = vmatprep.subr.bf16.mxu0 0
    %8246 = vmatpush1.bf16.msra.mxu0 0
    %8247 = vmatprep.subr.bf16.mxu0 0
    %8248 = vmatpush1.bf16.msra.mxu0 0
    %8249 = vmatprep.subr.bf16.mxu0 0
    %8250 = vmatpush1.bf16.msra.mxu0 0
    %8251 = vmatprep.subr.bf16.mxu0 0
    %8252 = vmatpush1.bf16.msra.mxu0 0
    %8253 = vmatprep.subr.bf16.mxu0 0
    %8254 = vmatpush1.bf16.msra.mxu0 0
    %8255 = vmatprep.subr.bf16.mxu0 0
    %8256 = vmatpush1.bf16.msra.mxu0 0
    %8257 = vmatprep.subr.bf16.mxu0 0
    %8258 = vmatpush1.bf16.msra.mxu0 0
    %8259 = vmatprep.subr.bf16.mxu0 0
    %8260 = vmatpush1.bf16.msra.mxu0 0
    %8261 = vmatprep.subr.bf16.mxu0 0
    %8262 = vmatpush1.bf16.msra.mxu0 0
    %8263 = vmatprep.subr.bf16.mxu0 0
    %8264 = vmatpush1.bf16.msra.mxu0 0
    %8265 = vmatprep.mubr.bf16.mxu0 0
    %8266 = vmatmul.mubr.bf16.gmra.mrb[0].mxu0 %v8228
    %v8267 = vpop.f32.mrb[0].mxu0
    %v8268 = vadd.f32 0.0, %v8267
    %v8269 = vpop.f32.mrb[0].mxu0
    %v8270 = vpop.f32.mrb[0].mxu0
    %v8271 = vadd.f32 0.0, %v8270
    %v8272 = vpop.f32.mrb[0].mxu0
    %8273 = vdwg.mxu0
    %v8275 = vsel %vm201, %v8128, 0
    %v8278 = vsel %vm685, %v8132, 0
    %8280 = vmatprep.subr.bf16.mxu0 0
    %8281 = vmatpush1.bf16.msra.mxu0 %v8278
    %8282 = vmatprep.subr.bf16.mxu0 0
    %8283 = vmatpush1.bf16.msra.mxu0 0
    %8284 = vmatprep.subr.bf16.mxu0 0
    %8285 = vmatpush1.bf16.msra.mxu0 0
    %8286 = vmatprep.subr.bf16.mxu0 0
    %8287 = vmatpush1.bf16.msra.mxu0 0
    %8288 = vmatprep.subr.bf16.mxu0 0
    %8289 = vmatpush1.bf16.msra.mxu0 0
    %8290 = vmatprep.subr.bf16.mxu0 0
    %8291 = vmatpush1.bf16.msra.mxu0 0
    %8292 = vmatprep.subr.bf16.mxu0 0
    %8293 = vmatpush1.bf16.msra.mxu0 0
    %8294 = vmatprep.subr.bf16.mxu0 0
    %8295 = vmatpush1.bf16.msra.mxu0 0
    %8296 = vmatprep.subr.bf16.mxu0 0
    %8297 = vmatpush1.bf16.msra.mxu0 0
    %8298 = vmatprep.subr.bf16.mxu0 0
    %8299 = vmatpush1.bf16.msra.mxu0 0
    %8300 = vmatprep.subr.bf16.mxu0 0
    %8301 = vmatpush1.bf16.msra.mxu0 0
    %8302 = vmatprep.subr.bf16.mxu0 0
    %8303 = vmatpush1.bf16.msra.mxu0 0
    %8304 = vmatprep.subr.bf16.mxu0 0
    %8305 = vmatpush1.bf16.msra.mxu0 0
    %8306 = vmatprep.subr.bf16.mxu0 0
    %8307 = vmatpush1.bf16.msra.mxu0 0
    %8308 = vmatprep.subr.bf16.mxu0 0
    %8309 = vmatpush1.bf16.msra.mxu0 0
    %8310 = vmatprep.subr.bf16.mxu0 0
    %8311 = vmatpush1.bf16.msra.mxu0 0
    %8312 = vmatprep.mubr.bf16.mxu0 0
    %8313 = vmatmul.mubr.bf16.gmra.mrb[0].mxu0 %v8275
    %v8314 = vpop.f32.mrb[0].mxu0
    %v8315 = vadd.f32 0.0, %v8314
    %v8316 = vpop.f32.mrb[0].mxu0
    %v8317 = vpop.f32.mrb[0].mxu0
    %v8318 = vadd.f32 0.0, %v8317
    %v8319 = vpop.f32.mrb[0].mxu0
    %8320 = vdwg.mxu0
    %v8321 = vadd.f32 %v67, %v8174
    %v8322 = vadd.f32 %v67, %v8177
    %v8323 = vadd.f32 %v8321, %v8221
    %v8324 = vadd.f32 %v8322, %v8224
    %v8325 = vadd.f32 %v8323, %v8268
    %v8326 = vadd.f32 %v8324, %v8271
    %v8327 = vadd.f32 %v8325, %v8315
    %v8328 = vadd.f32 %v8326, %v8318
    %v8329 = vpack.c.bf16 %v8328, %v8327
    %v8330 = vld [vmem:[#allocation5 + $0x4] sm:$0xf]
    %v8331 = vld [vmem:[#allocation5 + $0x10] sm:$0xf]
    %v8332 = vld [vmem:[#allocation5 + $0x1c] sm:$0xf]
    %v8333 = vld [vmem:[#allocation5 + $0x28] sm:$0xf]
    %v8334 = vld [vmem:[#allocation5 + $0x34] sm:$0xf]
    %v8335 = vld [vmem:[#allocation5 + $0x40] sm:$0xf]
    %v8336 = vld [vmem:[#allocation5 + $0x4c] sm:$0xf]
    %v8337 = vld [vmem:[#allocation5 + $0x58] sm:$0xf]
    %v8338 = vld [vmem:[#allocation5 + $0x64] sm:$0xf]
    %v8339 = vld [vmem:[#allocation5 + $0x70] sm:$0xf]
    %v8340 = vld [vmem:[#allocation5 + $0x7c] sm:$0xf]
    %v8341 = vld [vmem:[#allocation5 + $0x88] sm:$0xf]
    %v8342 = vld [vmem:[#allocation5 + $0x94] sm:$0xf]
    %v8343 = vld [vmem:[#allocation5 + $0xa0] sm:$0xf]
    %v8344 = vld [vmem:[#allocation5 + $0xac] sm:$0xf]
    %v8345 = vld [vmem:[#allocation5 + $0xb8] sm:$0xf]
    %v8362 = vunpack.c.l.b16 %v8330
    %v8363 = vunpack.c.l.b16 %v8331
    %v8364 = vunpack.c.l.b16 %v8332
    %v8365 = vunpack.c.l.b16 %v8333
    %v8366 = vunpack.c.l.b16 %v8334
    %v8367 = vunpack.c.l.b16 %v8335
    %v8368 = vunpack.c.l.b16 %v8336
    %v8369 = vunpack.c.l.b16 %v8337
    %v8370 = vunpack.c.l.b16 %v8338
    %v8371 = vunpack.c.l.b16 %v8339
    %v8372 = vunpack.c.l.b16 %v8340
    %v8373 = vunpack.c.l.b16 %v8341
    %v8374 = vunpack.c.l.b16 %v8342
    %v8375 = vunpack.c.l.b16 %v8343
    %v8376 = vunpack.c.l.b16 %v8344
    %v8377 = vunpack.c.l.b16 %v8345
    %v8378 = vpack.c.b16 %v8363, %v8362
    %v8379 = vpack.c.b16 %v8365, %v8364
    %v8380 = vpack.c.b16 %v8367, %v8366
    %v8381 = vpack.c.b16 %v8369, %v8368
    %v8382 = vpack.c.b16 %v8371, %v8370
    %v8383 = vpack.c.b16 %v8373, %v8372
    %v8384 = vpack.c.b16 %v8375, %v8374
    %v8385 = vpack.c.b16 %v8377, %v8376
    %8394 = vmatprep.subr.bf16.mxu0 0
    %8395 = vmatpush1.bf16.msra.mxu0 %v8378
    %8396 = vmatprep.subr.bf16.mxu0 0
    %8397 = vmatpush1.bf16.msra.mxu0 %v8379
    %8398 = vmatprep.subr.bf16.mxu0 0
    %8399 = vmatpush1.bf16.msra.mxu0 %v8380
    %8400 = vmatprep.subr.bf16.mxu0 0
    %8401 = vmatpush1.bf16.msra.mxu0 %v8381
    %8402 = vmatprep.subr.bf16.mxu0 0
    %8403 = vmatpush1.bf16.msra.mxu0 %v8382
    %8404 = vmatprep.subr.bf16.mxu0 0
    %8405 = vmatpush1.bf16.msra.mxu0 %v8383
    %8406 = vmatprep.subr.bf16.mxu0 0
    %8407 = vmatpush1.bf16.msra.mxu0 %v8384
    %8408 = vmatprep.subr.bf16.mxu0 0
    %8409 = vmatpush1.bf16.msra.mxu0 %v8385
    %8410 = vmatprep.subr.bf16.mxu0 0
    %8411 = vmatpush1.bf16.msra.mxu0 0
    %8412 = vmatprep.subr.bf16.mxu0 0
    %8413 = vmatpush1.bf16.msra.mxu0 0
    %8414 = vmatprep.subr.bf16.mxu0 0
    %8415 = vmatpush1.bf16.msra.mxu0 0
    %8416 = vmatprep.subr.bf16.mxu0 0
    %8417 = vmatpush1.bf16.msra.mxu0 0
    %8418 = vmatprep.subr.bf16.mxu0 0
    %8419 = vmatpush1.bf16.msra.mxu0 0
    %8420 = vmatprep.subr.bf16.mxu0 0
    %8421 = vmatpush1.bf16.msra.mxu0 0
    %8422 = vmatprep.subr.bf16.mxu0 0
    %8423 = vmatpush1.bf16.msra.mxu0 0
    %8424 = vmatprep.subr.bf16.mxu0 0
    %8425 = vmatpush1.bf16.msra.mxu0 0
    %8426 = vmatprep.mubr.bf16.mxu0 0
    %8427 = vmatmul.mubr.bf16.gmra.mrb[0].mxu0 %v8329
    %v8428 = vpop.f32.mrb[0].mxu0
    %v8429 = vadd.f32 0.0, %v8428
    %v8430 = vpop.f32.mrb[0].mxu0
    %v8431 = vpop.f32.mrb[0].mxu0
    %v8432 = vadd.f32 0.0, %v8431
    %v8433 = vpop.f32.mrb[0].mxu0
    %8434 = vdwg.mxu0
    %v8435 = vmax.f32 %v8429, 0.0
    %v8436 = vmax.f32 %v8432, 0.0
    %v8437 = vpack.c.bf16 %v8436, %v8435
    %v8438 = vld [vmem:[#allocation5 + $0x8] sm:$0xf]
    %v8439 = vld [vmem:[#allocation5 + $0x14] sm:$0xf]
    %v8440 = vld [vmem:[#allocation5 + $0x20] sm:$0xf]
    %v8441 = vld [vmem:[#allocation5 + $0x2c] sm:$0xf]
    %v8442 = vld [vmem:[#allocation5 + $0x38] sm:$0xf]
    %v8443 = vld [vmem:[#allocation5 + $0x44] sm:$0xf]
    %v8444 = vld [vmem:[#allocation5 + $0x50] sm:$0xf]
    %v8445 = vld [vmem:[#allocation5 + $0x5c] sm:$0xf]
    %v8446 = vld [vmem:[#allocation5 + $0x68] sm:$0xf]
    %v8447 = vld [vmem:[#allocation5 + $0x74] sm:$0xf]
    %v8448 = vld [vmem:[#allocation5 + $0x80] sm:$0xf]
    %v8449 = vld [vmem:[#allocation5 + $0x8c] sm:$0xf]
    %v8450 = vld [vmem:[#allocation5 + $0x98] sm:$0xf]
    %v8451 = vld [vmem:[#allocation5 + $0xa4] sm:$0xf]
    %v8452 = vld [vmem:[#allocation5 + $0xb0] sm:$0xf]
    %v8453 = vld [vmem:[#allocation5 + $0xbc] sm:$0xf]
    %v8470 = vunpack.c.l.b16 %v8438
    %v8471 = vunpack.c.l.b16 %v8439
    %v8472 = vunpack.c.l.b16 %v8440
    %v8473 = vunpack.c.l.b16 %v8441
    %v8474 = vunpack.c.l.b16 %v8442
    %v8475 = vunpack.c.l.b16 %v8443
    %v8476 = vunpack.c.l.b16 %v8444
    %v8477 = vunpack.c.l.b16 %v8445
    %v8478 = vunpack.c.l.b16 %v8446
    %v8479 = vunpack.c.l.b16 %v8447
    %v8480 = vunpack.c.l.b16 %v8448
    %v8481 = vunpack.c.l.b16 %v8449
    %v8482 = vunpack.c.l.b16 %v8450
    %v8483 = vunpack.c.l.b16 %v8451
    %v8484 = vunpack.c.l.b16 %v8452
    %v8485 = vunpack.c.l.b16 %v8453
    %v8486 = vpack.c.b16 %v8471, %v8470
    %v8487 = vpack.c.b16 %v8473, %v8472
    %v8488 = vpack.c.b16 %v8475, %v8474
    %v8489 = vpack.c.b16 %v8477, %v8476
    %v8490 = vpack.c.b16 %v8479, %v8478
    %v8491 = vpack.c.b16 %v8481, %v8480
    %v8492 = vpack.c.b16 %v8483, %v8482
    %v8493 = vpack.c.b16 %v8485, %v8484
    %8502 = vmatprep.subr.bf16.mxu0 0
    %8503 = vmatpush1.bf16.msra.mxu0 %v8486
    %8504 = vmatprep.subr.bf16.mxu0 0
    %8505 = vmatpush1.bf16.msra.mxu0 %v8487
    %8506 = vmatprep.subr.bf16.mxu0 0
    %8507 = vmatpush1.bf16.msra.mxu0 %v8488
    %8508 = vmatprep.subr.bf16.mxu0 0
    %8509 = vmatpush1.bf16.msra.mxu0 %v8489
    %8510 = vmatprep.subr.bf16.mxu0 0
    %8511 = vmatpush1.bf16.msra.mxu0 %v8490
    %8512 = vmatprep.subr.bf16.mxu0 0
    %8513 = vmatpush1.bf16.msra.mxu0 %v8491
    %8514 = vmatprep.subr.bf16.mxu0 0
    %8515 = vmatpush1.bf16.msra.mxu0 %v8492
    %8516 = vmatprep.subr.bf16.mxu0 0
    %8517 = vmatpush1.bf16.msra.mxu0 %v8493
    %8518 = vmatprep.subr.bf16.mxu0 0
    %8519 = vmatpush1.bf16.msra.mxu0 0
    %8520 = vmatprep.subr.bf16.mxu0 0
    %8521 = vmatpush1.bf16.msra.mxu0 0
    %8522 = vmatprep.subr.bf16.mxu0 0
    %8523 = vmatpush1.bf16.msra.mxu0 0
    %8524 = vmatprep.subr.bf16.mxu0 0
    %8525 = vmatpush1.bf16.msra.mxu0 0
    %8526 = vmatprep.subr.bf16.mxu0 0
    %8527 = vmatpush1.bf16.msra.mxu0 0
    %8528 = vmatprep.subr.bf16.mxu0 0
    %8529 = vmatpush1.bf16.msra.mxu0 0
    %8530 = vmatprep.subr.bf16.mxu0 0
    %8531 = vmatpush1.bf16.msra.mxu0 0
    %8532 = vmatprep.subr.bf16.mxu0 0
    %8533 = vmatpush1.bf16.msra.mxu0 0
    %8534 = vmatprep.mubr.bf16.mxu0 0
    %8535 = vmatmul.mubr.bf16.gmra.mrb[0].mxu0 %v8437
    %v8536 = vpop.f32.mrb[0].mxu0
    %v8537 = vadd.f32 0.0, %v8536
    %v8538 = vpop.f32.mrb[0].mxu0
    %v8539 = vpop.f32.mrb[0].mxu0
    %v8540 = vadd.f32 0.0, %v8539
    %v8541 = vpop.f32.mrb[0].mxu0
    %8542 = vdwg.mxu0
    %8543 = vst [vmem:[#allocation8] sm:$0xff] %v8537
    %8544 = vst [vmem:[#allocation8 + $0x8] sm:$0xff] %v8540
    // Predicated region
    $region30: #{tpu_custom_call.1} parent=1 // pred_check
      _
    $region31: #{tpu_custom_call.1} parent=1 // pred_check_branch
      %8546 = sbr.rel (0) target = $region33
    $region32: #{tpu_custom_call.1} parent=1 // pred_region
      %s8548 = ssub.s32 256, 256
      %8549 = vsyncadd [#allocation4], %s8548
      %s8550 = sshll.u32 [#allocation8], 4
      %s8551 = int_to_ptr.vmem [resolvable:$true] %s8550
      %8556 = dma.vmem_to_hbm [thread:$0]  %s8551, 256, %s4, [#allocation4], 128, 128, 8
    $region33: #{tpu_custom_call.1} parent=1 // pred_fallthru
      _
    // Predicated region
    $region34: #{tpu_custom_call.1} parent=1 // pred_check
      _
    $region35: #{tpu_custom_call.1} parent=1 // pred_check_branch
      %8558 = sbr.rel (0) target = $region37
    $region36: #{tpu_custom_call.1} parent=1 // pred_region
      %8559 = dma.done [#allocation4], 256
    $region37: #{tpu_custom_call.1} parent=1 // pred_fallthru
      _
    %8560 = vsyncpa [#allocation3], 1
    %8561 = vsyncpa [#allocation6], 1
    %8562 = vsyncpa [#allocation4], 1

</llo_original>
